<compile_context>
chip_gen: v5e
topology: v5e:2x2
jax: 0.10.0
libtpu: 0.0.40
codegen_flags: <defaults>
</compile_context>

<pallas_src>
import functools

import jax
import jax.numpy as jnp
from jax import lax
from jax.experimental import pallas as pl
from jax.experimental.pallas import tpu as pltpu


def _sir_edge_kernel(nnz_ref, adjg_ref, pq_ref, pk_ref, resid_ref, out_ref,
                     *, g_keys):
    qi = pl.program_id(0)
    ki = pl.program_id(1)

    tq, o_pad = out_ref.shape
    n_grp = adjg_ref.shape[0]                        # tk // g_keys (static)

    # First key step: initialise the resident output block with the residual.
    @pl.when(ki == 0)
    def _init():
        out_ref[...] = resid_ref[...]

    # Skip key blocks whose adjacency tile contains no edges (scalar prefetch).
    # TODO(synk): this only skips compute; a data-dependent index_map over
    # non-empty key blocks would also skip the adjacency DMA for sparse graphs.
    @pl.when(nnz_ref[qi, ki] > 0)
    def _edges():
        pq = pq_ref[...]                             # (tq, o_pad) compute dtype
        zero = jnp.zeros((), pq.dtype)

        def group_body(b, acc):
            # One sublane group of keys: dynamic index only on the leading dim.
            adj_grp = adjg_ref[b]                    # (tq, g_keys)
            start = pl.multiple_of(b * g_keys, g_keys)
            pk_grp = pk_ref[pl.ds(start, g_keys), :]  # (g_keys, o_pad)
            for g in range(g_keys):                  # static unroll (lane index)
                a_col = adj_grp[:, g:g + 1]          # (tq, 1)   static lane slice
                msg = jnp.maximum(pq + pk_grp[g:g + 1, :], zero)   # (tq, o_pad)
                # Weighted neighbour accumulate as a VPU FMA, f32 accumulation.
                acc = acc + (a_col * msg).astype(jnp.float32)
            return acc

        acc0 = jnp.zeros((tq, o_pad), jnp.float32)
        acc = lax.fori_loop(0, n_grp, group_body, acc0)
        # Single full-tile store per (qi, ki) step (lane-dense, unmasked).
        out_ref[...] = out_ref[...] + acc


def sir_conv(x, adj, params, *, agg_type="sum", tq=128, tk=256,
             compute_dtype=jnp.bfloat16, key_group=8):
    """x: (N, D) node features; adj: (N, N) dense adjacency (adj[u, v] = edge v->u).

    compute_dtype: dtype of the per-edge elementwise path and of the HBM-resident
    adjacency / pq / pk operands (bf16 for v6e/v7x; pass jnp.float32 on v5e where
    the VPU has no native bf16).
    """
    N, D = x.shape
    O = params["wa"].shape[1]
    tq = min(tq, N)
    tk = min(tk, N)
    G = key_group
    assert N % tq == 0 and N % tk == 0, (N, tq, tk)
    assert tk % G == 0 and N % G == 0, (N, tk, G)

    f32 = jnp.float32
    x = x.astype(f32)
    adj_f = adj.astype(f32)

    if agg_type == "sym":
        degs = jnp.maximum(jnp.sum(adj_f, axis=1, keepdims=True), 1.0)
        norm = degs ** -0.5                          # (N, 1)
    elif agg_type == "sum":
        norm = jnp.ones((N, 1), f32)
    else:
        # TODO(synk): 'max' / 'mean' aggregators not implemented (only sum/sym).
        raise NotImplementedError(agg_type)

    # Fold the norms into the adjacency -> one weighted-adjacency operand.
    adj_w = adj_f * norm * norm.T                    # (N_q, N_k)

    # Hoist grid-invariant projections out of the kernel (plain XLA matmuls).
    # (eq + ek) @ W_A + b_A == eq @ W_A + (ek @ W_A + b_A)   (exact split)
    eq = x @ params["wq"] + params["bq"]
    ek = x @ params["wk"] + params["bk"]
    pq = eq @ params["wa"]                           # (N, O) query side
    pk = ek @ params["wa"] + params["ba"]            # (N, O) key side
    resid = x @ params["wr"] + params["br"]          # (N, O) residual branch
    # TODO(synk): optional edge-feature path (g_E / message_func_edge) not implemented.

    # Lane-dense output: pad the feature axis to a multiple of 128.
    # TODO(synk): for small O, lane-packing 128//O keys per vreg would recover
    # the padding waste on the VPU path; not implemented.
    o_pad = max(128, ((O + 127) // 128) * 128)
    if o_pad != O:
        pad = ((0, 0), (0, o_pad - O))
        pq = jnp.pad(pq, pad)
        pk = jnp.pad(pk, pad)
        resid = jnp.pad(resid, pad)

    pq = pq.astype(compute_dtype)
    pk = pk.astype(compute_dtype)
    resid = resid.astype(f32)

    # Key-grouped adjacency relayout: adj_g[kb, u, g] = adj_w[u, kb*G + g].
    # Queries stay on the sublane axis so the kernel never needs a dynamic
    # lane-dim slice; stored in compute_dtype (bf16 halves the N^2 HBM stream;
    # exact for 0/1 adjacency).
    adj_g = adj_w.reshape(N, N // G, G).transpose(1, 0, 2).astype(compute_dtype)

    n_qb, n_kb = N // tq, N // tk
    # Per-(query-block, key-block) edge count -> skip empty adjacency tiles.
    block_nnz = jnp.sum(
        (adj_f != 0).reshape(n_qb, tq, n_kb, tk), axis=(1, 3)).astype(jnp.int32)

    kernel = functools.partial(_sir_edge_kernel, g_keys=G)

    out = pl.pallas_call(
        kernel,
        out_shape=jax.ShapeDtypeStruct((N, o_pad), f32),
        grid_spec=pltpu.PrefetchScalarGridSpec(
            num_scalar_prefetch=1,
            grid=(n_qb, n_kb),
            in_specs=[
                pl.BlockSpec((tk // G, tq, G), lambda qi, ki, nnz: (ki, qi, 0)),  # adj_g
                pl.BlockSpec((tq, o_pad), lambda qi, ki, nnz: (qi, 0)),           # pq
                pl.BlockSpec((tk, o_pad), lambda qi, ki, nnz: (ki, 0)),           # pk
                pl.BlockSpec((tq, o_pad), lambda qi, ki, nnz: (qi, 0)),           # resid
            ],
            out_specs=pl.BlockSpec((tq, o_pad), lambda qi, ki, nnz: (qi, 0)),
        ),
        compiler_params=pltpu.CompilerParams(
            dimension_semantics=("parallel", "arbitrary")),
    )(block_nnz, adj_g, pq, pk, resid)

    return out[:, :O]


def sir_conv_ref(x, adj, params, agg_type="sum"):
    """Pure-JAX reference matching the PyTorch forward semantics."""
    adj_f = adj.astype(jnp.float32)
    N = x.shape[0]
    if agg_type == "sym":
        degs = jnp.maximum(jnp.sum(adj_f, axis=1, keepdims=True), 1.0)
        norm = degs ** -0.5
    else:
        norm = jnp.ones((N, 1), jnp.float32)
    eq = x @ params["wq"] + params["bq"]
    ek = x @ params["wk"] + params["bk"]
    msg = jax.nn.relu((eq[:, None, :] + ek[None, :, :]) @ params["wa"] + params["ba"])
    w = adj_f * norm * norm.T
    agg = jnp.sum(msg * w[:, :, None], axis=1)
    return agg + x @ params["wr"] + params["br"]


def init_params(key, d_in, hidden, d_out):
    ks = jax.random.split(key, 8)
    def lin(kw, kb, fi, fo):
        s = 1.0 / jnp.sqrt(fi)
        return (jax.random.uniform(kw, (fi, fo), jnp.float32, -s, s),
                jax.random.uniform(kb, (1, fo), jnp.float32, -s, s))
    wq, bq = lin(ks[0], ks[1], d_in, hidden)
    wk, bk = lin(ks[2], ks[3], d_in, hidden)
    wa, ba = lin(ks[4], ks[5], hidden, d_out)
    wr, br = lin(ks[6], ks[7], d_in, d_out)
    return dict(wq=wq, bq=bq, wk=wk, bk=bk, wa=wa, ba=ba, wr=wr, br=br)


if __name__ == "__main__":
    N, D, H, O = 256, 32, 32, 32
    key = jax.random.PRNGKey(0)
    kx, kadj, kp = jax.random.split(key, 3)

    x = jax.random.normal(kx, (N, D), jnp.float32)
    adj = jax.random.bernoulli(kadj, 0.3, (N, N)).astype(jnp.float32)
    params = init_params(kp, D, H, O)

    out = sir_conv(x, adj, params, agg_type="sum", tq=128, tk=256)
    out = jax.block_until_ready(out)

    ref = jax.block_until_ready(sir_conv_ref(x, adj, params, agg_type="sum"))
    assert out.shape == (N, O)
    max_err = float(jnp.max(jnp.abs(out - ref)))
    # bf16 per-edge math with f32 accumulation; sums over ~0.3*N neighbours.
    assert jnp.allclose(out, ref, rtol=2e-2, atol=5e-2), max_err

    print("KERNEL_OK")
</pallas_src>

<mosaic_0001>
module attributes {stable_mosaic.version = 11 : i64} {
  func.func @_sir_edge_kernel(%arg0: i32, %arg1: i32, %arg2: memref<2x1xi32, #tpu.memory_space<smem>>, %arg3: memref<32x128x8xbf16, #tpu.memory_space<vmem>>, %arg4: memref<128x128xbf16, #tpu.memory_space<vmem>>, %arg5: memref<256x128xbf16, #tpu.memory_space<vmem>>, %arg6: memref<128x128xf32, #tpu.memory_space<vmem>>, %arg7: memref<128x128xf32, #tpu.memory_space<vmem>>) attributes {dimension_semantics = [#tpu.dimension_semantics<parallel>, #tpu.dimension_semantics<arbitrary>], iteration_bounds = array<i64: 2, 1>, scalar_prefetch = 1 : i64, scratch_operands = 0 : i64, tpu.core_type = #tpu.core_type<tc>, window_params = [{transform_indices = @transform_0, window_bounds = array<i64: 32, 128, 8>}, {transform_indices = @transform_1, window_bounds = array<i64: 128, 128>}, {transform_indices = @transform_2, window_bounds = array<i64: 256, 128>}, {transform_indices = @transform_3, window_bounds = array<i64: 128, 128>}, {transform_indices = @transform_4, window_bounds = array<i64: 128, 128>}]} {
    %c0_i32 = arith.constant 0 : i32
    %0 = arith.cmpi eq, %arg1, %c0_i32 : i32
    %1 = arith.extui %0 : i1 to i32
    %c0_i32_0 = arith.constant 0 : i32
    %2 = arith.cmpi ne, %1, %c0_i32_0 : i32
    scf.if %2 {
      %c0 = arith.constant 0 : index
      %c0_3 = arith.constant 0 : index
      %9 = vector.load %arg6[%c0, %c0_3] : memref<128x128xf32, #tpu.memory_space<vmem>>, vector<128x128xf32>
      %c0_4 = arith.constant 0 : index
      %c0_5 = arith.constant 0 : index
      %10 = vector.load %arg7[%c0_4, %c0_5] : memref<128x128xf32, #tpu.memory_space<vmem>>, vector<128x128xf32>
      tpu.vector_store %arg7[%c0_4, %c0_5], %9 {strides = array<i32>} : memref<128x128xf32, #tpu.memory_space<vmem>>, vector<128x128xf32>,
    } else {
    }
    %3 = arith.index_cast %arg0 : i32 to index
    %4 = arith.index_cast %arg1 : i32 to index
    %5 = memref.load %arg2[%3, %4] : memref<2x1xi32, #tpu.memory_space<smem>>
    %c0_i32_1 = arith.constant 0 : i32
    %6 = arith.cmpi sgt, %5, %c0_i32_1 : i32
    %7 = arith.extui %6 : i1 to i32
    %c0_i32_2 = arith.constant 0 : i32
    %8 = arith.cmpi ne, %7, %c0_i32_2 : i32
    scf.if %8 {
      %c0 = arith.constant 0 : index
      %c0_3 = arith.constant 0 : index
      %9 = vector.load %arg4[%c0, %c0_3] : memref<128x128xbf16, #tpu.memory_space<vmem>>, vector<128x128xbf16>
      %cst = arith.constant 0.000000e+00 : f32
      %10 = vector.broadcast %cst : f32 to vector<128x128xf32>
      %cst_4 = arith.constant 0.000000e+00 : bf16
      %c0_i32_5 = arith.constant 0 : i32
      %c32_i32 = arith.constant 32 : i32
      %11 = arith.addi %c0_i32_5, %c32_i32 : i32
      %c1_i32 = arith.constant 1 : i32
      %12 = scf.for %arg8 = %c0_i32_5 to %11 step %c1_i32 iter_args(%arg9 = %10) -> (vector<128x128xf32>)  : i32 {
        %16 = arith.index_cast %arg8 : i32 to index
        %c0_11 = arith.constant 0 : index
        %c0_12 = arith.constant 0 : index
        %17 = vector.load %arg3[%16, %c0_11, %c0_12] : memref<32x128x8xbf16, #tpu.memory_space<vmem>>, vector<1x128x8xbf16>
        %18 = vector.shape_cast %17 : vector<1x128x8xbf16> to vector<128x8xbf16>
        %c8_i32 = arith.constant 8 : i32
        %19 = arith.muli %arg8, %c8_i32 : i32
        %20 = tpu.assume_multiple %19, 8 : i32
        %21 = arith.index_cast %20 : i32 to index
        %c0_13 = arith.constant 0 : index
        %22 = vector.load %arg5[%21, %c0_13] : memref<256x128xbf16, #tpu.memory_space<vmem>>, vector<8x128xbf16>
        %23 = vector.extract_strided_slice %18 {offsets = [0, 0], sizes = [128, 1], strides = [1, 1]} : vector<128x8xbf16> to vector<128x1xbf16>
        %24 = vector.extract_strided_slice %22 {offsets = [0, 0], sizes = [1, 128], strides = [1, 1]} : vector<8x128xbf16> to vector<1x128xbf16>
        %25 = vector.broadcast %24 : vector<1x128xbf16> to vector<128x128xbf16>
        %26 = arith.addf %9, %25 : vector<128x128xbf16>
        %27 = vector.broadcast %cst_4 : bf16 to vector<128x128xbf16>
        %28 = arith.maximumf %26, %27 : vector<128x128xbf16>
        %29 = vector.broadcast %23 : vector<128x1xbf16> to vector<128x128xbf16>
        %30 = arith.mulf %29, %28 : vector<128x128xbf16>
        %31 = arith.extf %30 : vector<128x128xbf16> to vector<128x128xf32>
        %32 = arith.addf %arg9, %31 : vector<128x128xf32>
        %33 = vector.extract_strided_slice %18 {offsets = [0, 1], sizes = [128, 1], strides = [1, 1]} : vector<128x8xbf16> to vector<128x1xbf16>
        %34 = vector.extract_strided_slice %22 {offsets = [1, 0], sizes = [1, 128], strides = [1, 1]} : vector<8x128xbf16> to vector<1x128xbf16>
        %35 = vector.broadcast %34 : vector<1x128xbf16> to vector<128x128xbf16>
        %36 = arith.addf %9, %35 : vector<128x128xbf16>
        %37 = vector.broadcast %cst_4 : bf16 to vector<128x128xbf16>
        %38 = arith.maximumf %36, %37 : vector<128x128xbf16>
        %39 = vector.broadcast %33 : vector<128x1xbf16> to vector<128x128xbf16>
        %40 = arith.mulf %39, %38 : vector<128x128xbf16>
        %41 = arith.extf %40 : vector<128x128xbf16> to vector<128x128xf32>
        %42 = arith.addf %32, %41 : vector<128x128xf32>
        %43 = vector.extract_strided_slice %18 {offsets = [0, 2], sizes = [128, 1], strides = [1, 1]} : vector<128x8xbf16> to vector<128x1xbf16>
        %44 = vector.extract_strided_slice %22 {offsets = [2, 0], sizes = [1, 128], strides = [1, 1]} : vector<8x128xbf16> to vector<1x128xbf16>
        %45 = vector.broadcast %44 : vector<1x128xbf16> to vector<128x128xbf16>
        %46 = arith.addf %9, %45 : vector<128x128xbf16>
        %47 = vector.broadcast %cst_4 : bf16 to vector<128x128xbf16>
        %48 = arith.maximumf %46, %47 : vector<128x128xbf16>
        %49 = vector.broadcast %43 : vector<128x1xbf16> to vector<128x128xbf16>
        %50 = arith.mulf %49, %48 : vector<128x128xbf16>
        %51 = arith.extf %50 : vector<128x128xbf16> to vector<128x128xf32>
        %52 = arith.addf %42, %51 : vector<128x128xf32>
        %53 = vector.extract_strided_slice %18 {offsets = [0, 3], sizes = [128, 1], strides = [1, 1]} : vector<128x8xbf16> to vector<128x1xbf16>
        %54 = vector.extract_strided_slice %22 {offsets = [3, 0], sizes = [1, 128], strides = [1, 1]} : vector<8x128xbf16> to vector<1x128xbf16>
        %55 = vector.broadcast %54 : vector<1x128xbf16> to vector<128x128xbf16>
        %56 = arith.addf %9, %55 : vector<128x128xbf16>
        %57 = vector.broadcast %cst_4 : bf16 to vector<128x128xbf16>
        %58 = arith.maximumf %56, %57 : vector<128x128xbf16>
        %59 = vector.broadcast %53 : vector<128x1xbf16> to vector<128x128xbf16>
        %60 = arith.mulf %59, %58 : vector<128x128xbf16>
        %61 = arith.extf %60 : vector<128x128xbf16> to vector<128x128xf32>
        %62 = arith.addf %52, %61 : vector<128x128xf32>
        %63 = vector.extract_strided_slice %18 {offsets = [0, 4], sizes = [128, 1], strides = [1, 1]} : vector<128x8xbf16> to vector<128x1xbf16>
        %64 = vector.extract_strided_slice %22 {offsets = [4, 0], sizes = [1, 128], strides = [1, 1]} : vector<8x128xbf16> to vector<1x128xbf16>
        %65 = vector.broadcast %64 : vector<1x128xbf16> to vector<128x128xbf16>
        %66 = arith.addf %9, %65 : vector<128x128xbf16>
        %67 = vector.broadcast %cst_4 : bf16 to vector<128x128xbf16>
        %68 = arith.maximumf %66, %67 : vector<128x128xbf16>
        %69 = vector.broadcast %63 : vector<128x1xbf16> to vector<128x128xbf16>
        %70 = arith.mulf %69, %68 : vector<128x128xbf16>
        %71 = arith.extf %70 : vector<128x128xbf16> to vector<128x128xf32>
        %72 = arith.addf %62, %71 : vector<128x128xf32>
        %73 = vector.extract_strided_slice %18 {offsets = [0, 5], sizes = [128, 1], strides = [1, 1]} : vector<128x8xbf16> to vector<128x1xbf16>
        %74 = vector.extract_strided_slice %22 {offsets = [5, 0], sizes = [1, 128], strides = [1, 1]} : vector<8x128xbf16> to vector<1x128xbf16>
        %75 = vector.broadcast %74 : vector<1x128xbf16> to vector<128x128xbf16>
        %76 = arith.addf %9, %75 : vector<128x128xbf16>
        %77 = vector.broadcast %cst_4 : bf16 to vector<128x128xbf16>
        %78 = arith.maximumf %76, %77 : vector<128x128xbf16>
        %79 = vector.broadcast %73 : vector<128x1xbf16> to vector<128x128xbf16>
        %80 = arith.mulf %79, %78 : vector<128x128xbf16>
        %81 = arith.extf %80 : vector<128x128xbf16> to vector<128x128xf32>
        %82 = arith.addf %72, %81 : vector<128x128xf32>
        %83 = vector.extract_strided_slice %18 {offsets = [0, 6], sizes = [128, 1], strides = [1, 1]} : vector<128x8xbf16> to vector<128x1xbf16>
        %84 = vector.extract_strided_slice %22 {offsets = [6, 0], sizes = [1, 128], strides = [1, 1]} : vector<8x128xbf16> to vector<1x128xbf16>
        %85 = vector.broadcast %84 : vector<1x128xbf16> to vector<128x128xbf16>
        %86 = arith.addf %9, %85 : vector<128x128xbf16>
        %87 = vector.broadcast %cst_4 : bf16 to vector<128x128xbf16>
        %88 = arith.maximumf %86, %87 : vector<128x128xbf16>
        %89 = vector.broadcast %83 : vector<128x1xbf16> to vector<128x128xbf16>
        %90 = arith.mulf %89, %88 : vector<128x128xbf16>
        %91 = arith.extf %90 : vector<128x128xbf16> to vector<128x128xf32>
        %92 = arith.addf %82, %91 : vector<128x128xf32>
        %93 = vector.extract_strided_slice %18 {offsets = [0, 7], sizes = [128, 1], strides = [1, 1]} : vector<128x8xbf16> to vector<128x1xbf16>
        %94 = vector.extract_strided_slice %22 {offsets = [7, 0], sizes = [1, 128], strides = [1, 1]} : vector<8x128xbf16> to vector<1x128xbf16>
        %95 = vector.broadcast %94 : vector<1x128xbf16> to vector<128x128xbf16>
        %96 = arith.addf %9, %95 : vector<128x128xbf16>
        %97 = vector.broadcast %cst_4 : bf16 to vector<128x128xbf16>
        %98 = arith.maximumf %96, %97 : vector<128x128xbf16>
        %99 = vector.broadcast %93 : vector<128x1xbf16> to vector<128x128xbf16>
        %100 = arith.mulf %99, %98 : vector<128x128xbf16>
        %101 = arith.extf %100 : vector<128x128xbf16> to vector<128x128xf32>
        %102 = arith.addf %92, %101 : vector<128x128xf32>
        scf.yield %102 : vector<128x128xf32>
      }
      %c32_i32_6 = arith.constant 32 : i32
      %c0_7 = arith.constant 0 : index
      %c0_8 = arith.constant 0 : index
      %13 = vector.load %arg7[%c0_7, %c0_8] : memref<128x128xf32, #tpu.memory_space<vmem>>, vector<128x128xf32>
      %14 = arith.addf %13, %12 : vector<128x128xf32>
      %c0_9 = arith.constant 0 : index
      %c0_10 = arith.constant 0 : index
      %15 = vector.load %arg7[%c0_9, %c0_10] : memref<128x128xf32, #tpu.memory_space<vmem>>, vector<128x128xf32>
      tpu.vector_store %arg7[%c0_9, %c0_10], %14 {strides = array<i32>} : memref<128x128xf32, #tpu.memory_space<vmem>>, vector<128x128xf32>,
    } else {
    }
    return
  }
  func.func @transform_0(%arg0: i32, %arg1: i32, %arg2: memref<2x1xi32, #tpu.memory_space<smem>>) -> (i32, i32, i32) {
    %c0_i32 = arith.constant 0 : i32
    %c0_i32_0 = arith.constant 0 : i32
    return %arg1, %arg0, %c0_i32 : i32, i32, i32
  }
  func.func @transform_1(%arg0: i32, %arg1: i32, %arg2: memref<2x1xi32, #tpu.memory_space<smem>>) -> (i32, i32) {
    %c0_i32 = arith.constant 0 : i32
    %c0_i32_0 = arith.constant 0 : i32
    return %arg0, %c0_i32 : i32, i32
  }
  func.func @transform_2(%arg0: i32, %arg1: i32, %arg2: memref<2x1xi32, #tpu.memory_space<smem>>) -> (i32, i32) {
    %c0_i32 = arith.constant 0 : i32
    %c0_i32_0 = arith.constant 0 : i32
    return %arg1, %c0_i32 : i32, i32
  }
  func.func @transform_3(%arg0: i32, %arg1: i32, %arg2: memref<2x1xi32, #tpu.memory_space<smem>>) -> (i32, i32) {
    %c0_i32 = arith.constant 0 : i32
    %c0_i32_0 = arith.constant 0 : i32
    return %arg0, %c0_i32 : i32, i32
  }
  func.func @transform_4(%arg0: i32, %arg1: i32, %arg2: memref<2x1xi32, #tpu.memory_space<smem>>) -> (i32, i32) {
    %c0_i32 = arith.constant 0 : i32
    %c0_i32_0 = arith.constant 0 : i32
    return %arg0, %c0_i32 : i32, i32
  }
}

</mosaic_0001>

<llo_original>
// kernel: tpu_custom_call.1
$region0: #{tpu_custom_call.1}
  #allocation0 [shape = 'u32[]', space=smem, size = 0x4, offset = 0x4, fixed_abs, tag = 'smem constant byte address 0x4 - core index']
  #allocation1 [shape = 'u32[72,128]{1,0:T(1,128)}', space=vmem, size = 0x9000, scoped, tag = 'internal scratch']
  #allocation2 [shape = 's32[1]{0}', space=sflag, size = 0x4, scoped, tag = 'scoped memory for tpu_custom_call.1']
  #allocation3 [shape = 'u8[1024]{0}', space=smem, size = 0x400, scoped, tag = 'prefetched SMEM operand 0']
  %s0 = inlined_call_operand.vmem [shape: s32[2,1], index: 0, kind: input, shape index: {}]
  %s1 = inlined_call_operand.vmem [shape: bf16[32,256,8], index: 1, kind: input, shape index: {}]
  %s2 = inlined_call_operand.vmem [shape: bf16[256,128], index: 2, kind: input, shape index: {}]
  %s3 = inlined_call_operand.vmem [shape: bf16[256,128], index: 3, kind: input, shape index: {}]
  %s4 = inlined_call_operand.vmem [shape: f32[256,128], index: 4, kind: input, shape index: {}]
  %s5 = inlined_call_operand.hbm [shape: f32[256,128], index: 5, kind: output, shape index: {}]
  %s6 = sld [smem:[#allocation0]]
  $region116: #{tpu_custom_call.1} parent=0
    _
  %s8 = ssub.s32 1, %s6
  %s9 = scalar_select 0, %s8, %s6
  %s11 = sshll.u32 %s0, 4
  %s12 = int_to_ptr.vmem [resolvable:$true] %s11
  %14 = dma.vmem_to_smem %s12, 32, [#allocation3], [#allocation2]
  %16 = dma.done [#allocation2], 32
  %17 = sfence
  $region1: #{tpu_custom_call.1} parent=0
    #allocation4 [shape = 'u8[2097152]{0}', space=vmem, size = 0x200000, scoped, tag = 'input window, operand 1']
    #allocation5 [shape = 'u8[131072]{0}', space=vmem, size = 0x20000, scoped, tag = 'output window, operand 0']
    #allocation6 [shape = 's32[2]{0}', space=sflag, size = 0x8, scoped, tag = 'scoped memory for tpu_custom_call.1']
    %18 = vsyncpa [#allocation6], 0
    %s19 = scalar_lea.sflag [#allocation6], 1
    %20 = vsyncpa %s19, 0
    loop: start=0, step=1, limit=4
    $region2: #{tpu_custom_call.1} parent=1 // loop_pre_header
      _
    $region3: #{tpu_custom_call.1} parent=1 // loop_header
      %s22 = sphi 0, %s26
      %p23 = scmp.ge.s32.totalorder %s22, 4
      %s29 = sphi 0, %s41
      %s30 = sphi 0, %s37
      %s31 = sphi 0, %s29
      %s32 = sphi 0, %s30
      %s33 = sphi 0, %s31
      %s34 = sphi 0, %s32
      %s46 = sphi 0, %s48
      %s49 = sphi 0, %s46
      %s50 = sphi 0, %s49
      %s66 = sphi 0, %s50
      %s72 = sphi 0, %s74
      %s75 = sphi 0, %s72
      %s76 = sphi 0, %s75
      %s92 = sphi 0, %s76
      %s98 = sphi 0, %s100
      %s101 = sphi 0, %s98
      %s102 = sphi 0, %s101
      %s118 = sphi 0, %s102
      %s124 = sphi 0, %s126
      %s127 = sphi 0, %s124
      %s128 = sphi 0, %s127
      %s144 = sphi 0, %s128
      %s150 = sphi 0, %s152
      %s153 = sphi 0, %s150
      %s154 = sphi 0, %s153
      %s170 = sphi 0, %s154
    $region4: #{tpu_custom_call.1} parent=1 // loop_header_branch
      %25 = sbr.rel (%p23) target = $region8
    $region5: #{tpu_custom_call.1} parent=1 // loop_body
      %s27 = ssub.s32 %s22, 1
      %s28 = ssub.s32 %s22, 2
      %s35 = sadd.s32 1, %s30
      %p36 = scmp.ge.s32.totalorder %s35, 1
      %s37 = scalar_select %p36, 0, %s35
      %s38 = sadd.s32 1, %s29
      %s39 = scalar_select %p36, %s38, %s29
      %p40 = scmp.ge.s32.totalorder %s39, 2
      %s41 = scalar_select %p40, 0, %s39
      %s42 = ssub.s32 %s30, %s37
      %s43 = ssub.s32 %s29, %s41
      %s44 = sor.u32 %s42, %s43
      %p45 = scmp.eq.s32.totalorder %s44, 0
      %s47 = sadd.s32 %s46, 1
      %s48 = scalar_select %p45, %s46, %s47
      %p51 = pneg %p45
      %p52 = scmp.eq.s32.totalorder %s22, 1
      %p53 = por %p51, %p52
      %p54 = scmp.ne.s32.totalorder %s46, %s49
      %p55 = scmp.eq.s32.totalorder %s22, 0
      %p56 = por %p54, %p55
      %p57 = scmp.ne.s32.totalorder %s46, %s49
      %p58 = scmp.eq.s32.totalorder %s27, 1
      %p59 = por %p57, %p58
      %p60 = scmp.ne.s32.totalorder %s49, %s50
      %p61 = scmp.eq.s32.totalorder %s27, 0
      %p62 = por %p60, %p61
      %p63 = scmp.ne.s32.totalorder %s49, %s50
      %p64 = scmp.eq.s32.totalorder %s28, 1
      %p65 = por %p63, %p64
      %p67 = scmp.ne.s32.totalorder %s50, %s66
      %p68 = scmp.eq.s32.totalorder %s28, 0
      %p69 = por %p67, %p68
      %s70 = ssub.s32 %s29, %s41
      %p71 = scmp.eq.s32.totalorder %s70, 0
      %s73 = sadd.s32 %s72, 1
      %s74 = scalar_select %p71, %s72, %s73
      %p77 = pneg %p71
      %p78 = scmp.eq.s32.totalorder %s22, 1
      %p79 = por %p77, %p78
      %p80 = scmp.ne.s32.totalorder %s72, %s75
      %p81 = scmp.eq.s32.totalorder %s22, 0
      %p82 = por %p80, %p81
      %p83 = scmp.ne.s32.totalorder %s72, %s75
      %p84 = scmp.eq.s32.totalorder %s27, 1
      %p85 = por %p83, %p84
      %p86 = scmp.ne.s32.totalorder %s75, %s76
      %p87 = scmp.eq.s32.totalorder %s27, 0
      %p88 = por %p86, %p87
      %p89 = scmp.ne.s32.totalorder %s75, %s76
      %p90 = scmp.eq.s32.totalorder %s28, 1
      %p91 = por %p89, %p90
      %p93 = scmp.ne.s32.totalorder %s76, %s92
      %p94 = scmp.eq.s32.totalorder %s28, 0
      %p95 = por %p93, %p94
      %s96 = ssub.s32 %s30, %s37
      %p97 = scmp.eq.s32.totalorder %s96, 0
      %s99 = sadd.s32 %s98, 1
      %s100 = scalar_select %p97, %s98, %s99
      %p103 = pneg %p97
      %p104 = scmp.eq.s32.totalorder %s22, 1
      %p105 = por %p103, %p104
      %p106 = scmp.ne.s32.totalorder %s98, %s101
      %p107 = scmp.eq.s32.totalorder %s22, 0
      %p108 = por %p106, %p107
      %p109 = scmp.ne.s32.totalorder %s98, %s101
      %p110 = scmp.eq.s32.totalorder %s27, 1
      %p111 = por %p109, %p110
      %p112 = scmp.ne.s32.totalorder %s101, %s102
      %p113 = scmp.eq.s32.totalorder %s27, 0
      %p114 = por %p112, %p113
      %p115 = scmp.ne.s32.totalorder %s101, %s102
      %p116 = scmp.eq.s32.totalorder %s28, 1
      %p117 = por %p115, %p116
      %p119 = scmp.ne.s32.totalorder %s102, %s118
      %p120 = scmp.eq.s32.totalorder %s28, 0
      %p121 = por %p119, %p120
      %s122 = ssub.s32 %s29, %s41
      %p123 = scmp.eq.s32.totalorder %s122, 0
      %s125 = sadd.s32 %s124, 1
      %s126 = scalar_select %p123, %s124, %s125
      %p129 = pneg %p123
      %p130 = scmp.eq.s32.totalorder %s22, 1
      %p131 = por %p129, %p130
      %p132 = scmp.ne.s32.totalorder %s124, %s127
      %p133 = scmp.eq.s32.totalorder %s22, 0
      %p134 = por %p132, %p133
      %p135 = scmp.ne.s32.totalorder %s124, %s127
      %p136 = scmp.eq.s32.totalorder %s27, 1
      %p137 = por %p135, %p136
      %p138 = scmp.ne.s32.totalorder %s127, %s128
      %p139 = scmp.eq.s32.totalorder %s27, 0
      %p140 = por %p138, %p139
      %p141 = scmp.ne.s32.totalorder %s127, %s128
      %p142 = scmp.eq.s32.totalorder %s28, 1
      %p143 = por %p141, %p142
      %p145 = scmp.ne.s32.totalorder %s128, %s144
      %p146 = scmp.eq.s32.totalorder %s28, 0
      %p147 = por %p145, %p146
      %s148 = ssub.s32 %s29, %s41
      %p149 = scmp.eq.s32.totalorder %s148, 0
      %s151 = sadd.s32 %s150, 1
      %s152 = scalar_select %p149, %s150, %s151
      %p155 = pneg %p149
      %p156 = scmp.eq.s32.totalorder %s22, 1
      %p157 = por %p155, %p156
      %p158 = scmp.ne.s32.totalorder %s150, %s153
      %p159 = scmp.eq.s32.totalorder %s22, 0
      %p160 = por %p158, %p159
      %p161 = scmp.ne.s32.totalorder %s150, %s153
      %p162 = scmp.eq.s32.totalorder %s27, 1
      %p163 = por %p161, %p162
      %p164 = scmp.ne.s32.totalorder %s153, %s154
      %p165 = scmp.eq.s32.totalorder %s27, 0
      %p166 = por %p164, %p165
      %p167 = scmp.ne.s32.totalorder %s153, %s154
      %p168 = scmp.eq.s32.totalorder %s28, 1
      %p169 = por %p167, %p168
      %p171 = scmp.ne.s32.totalorder %s154, %s170
      %p172 = scmp.eq.s32.totalorder %s28, 0
      %p173 = por %p171, %p172
      %p174 = scmp.le.s32.totalorder 1, %s22
      %p175 = scmp.lt.s32.totalorder %s22, 3
      %p176 = pnand %p174, %p175
      %p177 = pneg %p176
      // Predicated region
      $region9: #{tpu_custom_call.1} parent=5 // pred_check
        _
      $region10: #{tpu_custom_call.1} parent=5 // pred_check_branch
        %179 = sbr.rel (%p176) target = $region12
      $region11: #{tpu_custom_call.1} parent=5 // pred_region
        %s180 = ssub.s32 %s22, 1
        // Predicated region
        $region13: #{tpu_custom_call.1} parent=11 // pred_check
          %p181 = pneg %p114
        $region14: #{tpu_custom_call.1} parent=11 // pred_check_branch
          %183 = sbr.rel (%p181) target = $region16
        $region15: #{tpu_custom_call.1} parent=11 // pred_region
          %s184 = smul.u32 32, %s32
          %p185 = scmp.lt.s32.totalorder %s184, 31
          %s186 = scalar_select %p185, %s184, 31
          %s187 = smul.addr %s186, 4
          %s188 = scalar_lea.vmem %s3, %s187
          %s189 = smul.u32 32, %s32
        $region16: #{tpu_custom_call.1} parent=11 // pred_fallthru
          _
      $region12: #{tpu_custom_call.1} parent=5 // pred_fallthru
        _
      %p190 = scmp.lt.s32.totalorder %s22, 2
      // Predicated region
      $region17: #{tpu_custom_call.1} parent=5 // pred_check
        %p191 = pneg %p190
      $region18: #{tpu_custom_call.1} parent=5 // pred_check_branch
        %193 = sbr.rel (%p191) target = $region20
      $region19: #{tpu_custom_call.1} parent=5 // pred_region
        // Predicated region
        $region21: #{tpu_custom_call.1} parent=19 // pred_check
          %p194 = pneg %p56
        $region22: #{tpu_custom_call.1} parent=19 // pred_check_branch
          %196 = sbr.rel (%p194) target = $region24
        $region23: #{tpu_custom_call.1} parent=19 // pred_region
          %s197 = sand.u32 %s46, 1
          %s198 = sand.u32 %s46, 1
          %s199 = smul.addr %s198, 2048
          %s200 = scalar_lea.vmem [#allocation4], %s199
          %s201 = smul.u32 32, %s30
          %s202 = smul.u32 16, %s29
          %s203 = smul.addr %s201, 32
          %s204 = sadd.s32 %s202, %s203
          %s205 = smul.addr %s204, 4
          %s206 = scalar_lea.vmem %s1, %s205
          // Predicated region
          $region25: #{tpu_custom_call.1} parent=23 // pred_check
            _
          $region26: #{tpu_custom_call.1} parent=23 // pred_check_branch
            %208 = sbr.rel (0) target = $region28
          $region27: #{tpu_custom_call.1} parent=23 // pred_region
            // Predicated region
            $region29: #{tpu_custom_call.1} parent=27 // pred_check
              _
            $region30: #{tpu_custom_call.1} parent=27 // pred_check_branch
              %210 = sbr.rel target = $region32
            $region31: #{tpu_custom_call.1} parent=27 // pred_region
              // Predicated region
              $region44: #{tpu_custom_call.1} parent=31 // pred_check
                _
              $region45: #{tpu_custom_call.1} parent=31 // pred_check_branch
                %1248 = sbr.rel target = $region47
              $region46: #{tpu_custom_call.1} parent=31 // pred_region
                loop: start=0, step=1, limit=0
                $region48: #{tpu_custom_call.1} parent=46 // loop_pre_header
                  _
                $region49: #{tpu_custom_call.1} parent=46 // loop_header
                  %s1250 = sphi 0, %s1254
                  %p1251 = scmp.ge.s32.totalorder %s1250, 0
                  %s1255 = sphi 0, %s2284
                  %s1256 = sphi %s206, %s2287
                  %s1257 = sphi %s200, %s2288
                $region50: #{tpu_custom_call.1} parent=46 // loop_header_branch
                  %1253 = sbr.rel (%p1251) target = $region54
                $region51: #{tpu_custom_call.1} parent=46 // loop_body
                  %v1258 = vld [vmem:[%s1256] sm:$0xff]
                  %1259 = vst [vmem:[%s1257] sm:$0xff] %v1258
                  %v1260 = vld [vmem:[%s1256 + $0x4] sm:$0xff]
                  %1261 = vst [vmem:[%s1257 + $0x4] sm:$0xff] %v1260
                  %v1262 = vld [vmem:[%s1256 + $0x8] sm:$0xff]
                  %1263 = vst [vmem:[%s1257 + $0x8] sm:$0xff] %v1262
                  %v1264 = vld [vmem:[%s1256 + $0xc] sm:$0xff]
                  %1265 = vst [vmem:[%s1257 + $0xc] sm:$0xff] %v1264
                  %v1266 = vld [vmem:[%s1256 + $0x10] sm:$0xff]
                  %1267 = vst [vmem:[%s1257 + $0x10] sm:$0xff] %v1266
                  %v1268 = vld [vmem:[%s1256 + $0x14] sm:$0xff]
                  %1269 = vst [vmem:[%s1257 + $0x14] sm:$0xff] %v1268
                  %v1270 = vld [vmem:[%s1256 + $0x18] sm:$0xff]
                  %1271 = vst [vmem:[%s1257 + $0x18] sm:$0xff] %v1270
                  %v1272 = vld [vmem:[%s1256 + $0x1c] sm:$0xff]
                  %1273 = vst [vmem:[%s1257 + $0x1c] sm:$0xff] %v1272
                  %v1274 = vld [vmem:[%s1256 + $0x20] sm:$0xff]
                  %1275 = vst [vmem:[%s1257 + $0x20] sm:$0xff] %v1274
                  %v1276 = vld [vmem:[%s1256 + $0x24] sm:$0xff]
                  %1277 = vst [vmem:[%s1257 + $0x24] sm:$0xff] %v1276
                  %v1278 = vld [vmem:[%s1256 + $0x28] sm:$0xff]
                  %1279 = vst [vmem:[%s1257 + $0x28] sm:$0xff] %v1278
                  %v1280 = vld [vmem:[%s1256 + $0x2c] sm:$0xff]
                  %1281 = vst [vmem:[%s1257 + $0x2c] sm:$0xff] %v1280
                  %v1282 = vld [vmem:[%s1256 + $0x30] sm:$0xff]
                  %1283 = vst [vmem:[%s1257 + $0x30] sm:$0xff] %v1282
                  %v1284 = vld [vmem:[%s1256 + $0x34] sm:$0xff]
                  %1285 = vst [vmem:[%s1257 + $0x34] sm:$0xff] %v1284
                  %v1286 = vld [vmem:[%s1256 + $0x38] sm:$0xff]
                  %1287 = vst [vmem:[%s1257 + $0x38] sm:$0xff] %v1286
                  %v1288 = vld [vmem:[%s1256 + $0x3c] sm:$0xff]
                  %1289 = vst [vmem:[%s1257 + $0x3c] sm:$0xff] %v1288
                  %v1290 = vld [vmem:[%s1256 + $0x80] sm:$0xff]
                  %1291 = vst [vmem:[%s1257 + $0x40] sm:$0xff] %v1290
                  %v1292 = vld [vmem:[%s1256 + $0x84] sm:$0xff]
                  %1293 = vst [vmem:[%s1257 + $0x44] sm:$0xff] %v1292
                  %v1294 = vld [vmem:[%s1256 + $0x88] sm:$0xff]
                  %1295 = vst [vmem:[%s1257 + $0x48] sm:$0xff] %v1294
                  %v1296 = vld [vmem:[%s1256 + $0x8c] sm:$0xff]
                  %1297 = vst [vmem:[%s1257 + $0x4c] sm:$0xff] %v1296
                  %v1298 = vld [vmem:[%s1256 + $0x90] sm:$0xff]
                  %1299 = vst [vmem:[%s1257 + $0x50] sm:$0xff] %v1298
                  %v1300 = vld [vmem:[%s1256 + $0x94] sm:$0xff]
                  %1301 = vst [vmem:[%s1257 + $0x54] sm:$0xff] %v1300
                  %v1302 = vld [vmem:[%s1256 + $0x98] sm:$0xff]
                  %1303 = vst [vmem:[%s1257 + $0x58] sm:$0xff] %v1302
                  %v1304 = vld [vmem:[%s1256 + $0x9c] sm:$0xff]
                  %1305 = vst [vmem:[%s1257 + $0x5c] sm:$0xff] %v1304
                  %v1306 = vld [vmem:[%s1256 + $0xa0] sm:$0xff]
                  %1307 = vst [vmem:[%s1257 + $0x60] sm:$0xff] %v1306
                  %v1308 = vld [vmem:[%s1256 + $0xa4] sm:$0xff]
                  %1309 = vst [vmem:[%s1257 + $0x64] sm:$0xff] %v1308
                  %v1310 = vld [vmem:[%s1256 + $0xa8] sm:$0xff]
                  %1311 = vst [vmem:[%s1257 + $0x68] sm:$0xff] %v1310
                  %v1312 = vld [vmem:[%s1256 + $0xac] sm:$0xff]
                  %1313 = vst [vmem:[%s1257 + $0x6c] sm:$0xff] %v1312
                  %v1314 = vld [vmem:[%s1256 + $0xb0] sm:$0xff]
                  %1315 = vst [vmem:[%s1257 + $0x70] sm:$0xff] %v1314
                  %v1316 = vld [vmem:[%s1256 + $0xb4] sm:$0xff]
                  %1317 = vst [vmem:[%s1257 + $0x74] sm:$0xff] %v1316
                  %v1318 = vld [vmem:[%s1256 + $0xb8] sm:$0xff]
                  %1319 = vst [vmem:[%s1257 + $0x78] sm:$0xff] %v1318
                  %v1320 = vld [vmem:[%s1256 + $0xbc] sm:$0xff]
                  %1321 = vst [vmem:[%s1257 + $0x7c] sm:$0xff] %v1320
                  %v1322 = vld [vmem:[%s1256 + $0x100] sm:$0xff]
                  %1323 = vst [vmem:[%s1257 + $0x80] sm:$0xff] %v1322
                  %v1324 = vld [vmem:[%s1256 + $0x104] sm:$0xff]
                  %1325 = vst [vmem:[%s1257 + $0x84] sm:$0xff] %v1324
                  %v1326 = vld [vmem:[%s1256 + $0x108] sm:$0xff]
                  %1327 = vst [vmem:[%s1257 + $0x88] sm:$0xff] %v1326
                  %v1328 = vld [vmem:[%s1256 + $0x10c] sm:$0xff]
                  %1329 = vst [vmem:[%s1257 + $0x8c] sm:$0xff] %v1328
                  %v1330 = vld [vmem:[%s1256 + $0x110] sm:$0xff]
                  %1331 = vst [vmem:[%s1257 + $0x90] sm:$0xff] %v1330
                  %v1332 = vld [vmem:[%s1256 + $0x114] sm:$0xff]
                  %1333 = vst [vmem:[%s1257 + $0x94] sm:$0xff] %v1332
                  %v1334 = vld [vmem:[%s1256 + $0x118] sm:$0xff]
                  %1335 = vst [vmem:[%s1257 + $0x98] sm:$0xff] %v1334
                  %v1336 = vld [vmem:[%s1256 + $0x11c] sm:$0xff]
                  %1337 = vst [vmem:[%s1257 + $0x9c] sm:$0xff] %v1336
                  %v1338 = vld [vmem:[%s1256 + $0x120] sm:$0xff]
                  %1339 = vst [vmem:[%s1257 + $0xa0] sm:$0xff] %v1338
                  %v1340 = vld [vmem:[%s1256 + $0x124] sm:$0xff]
                  %1341 = vst [vmem:[%s1257 + $0xa4] sm:$0xff] %v1340
                  %v1342 = vld [vmem:[%s1256 + $0x128] sm:$0xff]
                  %1343 = vst [vmem:[%s1257 + $0xa8] sm:$0xff] %v1342
                  %v1344 = vld [vmem:[%s1256 + $0x12c] sm:$0xff]
                  %1345 = vst [vmem:[%s1257 + $0xac] sm:$0xff] %v1344
                  %v1346 = vld [vmem:[%s1256 + $0x130] sm:$0xff]
                  %1347 = vst [vmem:[%s1257 + $0xb0] sm:$0xff] %v1346
                  %v1348 = vld [vmem:[%s1256 + $0x134] sm:$0xff]
                  %1349 = vst [vmem:[%s1257 + $0xb4] sm:$0xff] %v1348
                  %v1350 = vld [vmem:[%s1256 + $0x138] sm:$0xff]
                  %1351 = vst [vmem:[%s1257 + $0xb8] sm:$0xff] %v1350
                  %v1352 = vld [vmem:[%s1256 + $0x13c] sm:$0xff]
                  %1353 = vst [vmem:[%s1257 + $0xbc] sm:$0xff] %v1352
                  %v1354 = vld [vmem:[%s1256 + $0x180] sm:$0xff]
                  %1355 = vst [vmem:[%s1257 + $0xc0] sm:$0xff] %v1354
                  %v1356 = vld [vmem:[%s1256 + $0x184] sm:$0xff]
                  %1357 = vst [vmem:[%s1257 + $0xc4] sm:$0xff] %v1356
                  %v1358 = vld [vmem:[%s1256 + $0x188] sm:$0xff]
                  %1359 = vst [vmem:[%s1257 + $0xc8] sm:$0xff] %v1358
                  %v1360 = vld [vmem:[%s1256 + $0x18c] sm:$0xff]
                  %1361 = vst [vmem:[%s1257 + $0xcc] sm:$0xff] %v1360
                  %v1362 = vld [vmem:[%s1256 + $0x190] sm:$0xff]
                  %1363 = vst [vmem:[%s1257 + $0xd0] sm:$0xff] %v1362
                  %v1364 = vld [vmem:[%s1256 + $0x194] sm:$0xff]
                  %1365 = vst [vmem:[%s1257 + $0xd4] sm:$0xff] %v1364
                  %v1366 = vld [vmem:[%s1256 + $0x198] sm:$0xff]
                  %1367 = vst [vmem:[%s1257 + $0xd8] sm:$0xff] %v1366
                  %v1368 = vld [vmem:[%s1256 + $0x19c] sm:$0xff]
                  %1369 = vst [vmem:[%s1257 + $0xdc] sm:$0xff] %v1368
                  %v1370 = vld [vmem:[%s1256 + $0x1a0] sm:$0xff]
                  %1371 = vst [vmem:[%s1257 + $0xe0] sm:$0xff] %v1370
                  %v1372 = vld [vmem:[%s1256 + $0x1a4] sm:$0xff]
                  %1373 = vst [vmem:[%s1257 + $0xe4] sm:$0xff] %v1372
                  %v1374 = vld [vmem:[%s1256 + $0x1a8] sm:$0xff]
                  %1375 = vst [vmem:[%s1257 + $0xe8] sm:$0xff] %v1374
                  %v1376 = vld [vmem:[%s1256 + $0x1ac] sm:$0xff]
                  %1377 = vst [vmem:[%s1257 + $0xec] sm:$0xff] %v1376
                  %v1378 = vld [vmem:[%s1256 + $0x1b0] sm:$0xff]
                  %1379 = vst [vmem:[%s1257 + $0xf0] sm:$0xff] %v1378
                  %v1380 = vld [vmem:[%s1256 + $0x1b4] sm:$0xff]
                  %1381 = vst [vmem:[%s1257 + $0xf4] sm:$0xff] %v1380
                  %v1382 = vld [vmem:[%s1256 + $0x1b8] sm:$0xff]
                  %1383 = vst [vmem:[%s1257 + $0xf8] sm:$0xff] %v1382
                  %v1384 = vld [vmem:[%s1256 + $0x1bc] sm:$0xff]
                  %1385 = vst [vmem:[%s1257 + $0xfc] sm:$0xff] %v1384
                  %v1386 = vld [vmem:[%s1256 + $0x200] sm:$0xff]
                  %1387 = vst [vmem:[%s1257 + $0x100] sm:$0xff] %v1386
                  %v1388 = vld [vmem:[%s1256 + $0x204] sm:$0xff]
                  %1389 = vst [vmem:[%s1257 + $0x104] sm:$0xff] %v1388
                  %v1390 = vld [vmem:[%s1256 + $0x208] sm:$0xff]
                  %1391 = vst [vmem:[%s1257 + $0x108] sm:$0xff] %v1390
                  %v1392 = vld [vmem:[%s1256 + $0x20c] sm:$0xff]
                  %1393 = vst [vmem:[%s1257 + $0x10c] sm:$0xff] %v1392
                  %v1394 = vld [vmem:[%s1256 + $0x210] sm:$0xff]
                  %1395 = vst [vmem:[%s1257 + $0x110] sm:$0xff] %v1394
                  %v1396 = vld [vmem:[%s1256 + $0x214] sm:$0xff]
                  %1397 = vst [vmem:[%s1257 + $0x114] sm:$0xff] %v1396
                  %v1398 = vld [vmem:[%s1256 + $0x218] sm:$0xff]
                  %1399 = vst [vmem:[%s1257 + $0x118] sm:$0xff] %v1398
                  %v1400 = vld [vmem:[%s1256 + $0x21c] sm:$0xff]
                  %1401 = vst [vmem:[%s1257 + $0x11c] sm:$0xff] %v1400
                  %v1402 = vld [vmem:[%s1256 + $0x220] sm:$0xff]
                  %1403 = vst [vmem:[%s1257 + $0x120] sm:$0xff] %v1402
                  %v1404 = vld [vmem:[%s1256 + $0x224] sm:$0xff]
                  %1405 = vst [vmem:[%s1257 + $0x124] sm:$0xff] %v1404
                  %v1406 = vld [vmem:[%s1256 + $0x228] sm:$0xff]
                  %1407 = vst [vmem:[%s1257 + $0x128] sm:$0xff] %v1406
                  %v1408 = vld [vmem:[%s1256 + $0x22c] sm:$0xff]
                  %1409 = vst [vmem:[%s1257 + $0x12c] sm:$0xff] %v1408
                  %v1410 = vld [vmem:[%s1256 + $0x230] sm:$0xff]
                  %1411 = vst [vmem:[%s1257 + $0x130] sm:$0xff] %v1410
                  %v1412 = vld [vmem:[%s1256 + $0x234] sm:$0xff]
                  %1413 = vst [vmem:[%s1257 + $0x134] sm:$0xff] %v1412
                  %v1414 = vld [vmem:[%s1256 + $0x238] sm:$0xff]
                  %1415 = vst [vmem:[%s1257 + $0x138] sm:$0xff] %v1414
                  %v1416 = vld [vmem:[%s1256 + $0x23c] sm:$0xff]
                  %1417 = vst [vmem:[%s1257 + $0x13c] sm:$0xff] %v1416
                  %v1418 = vld [vmem:[%s1256 + $0x280] sm:$0xff]
                  %1419 = vst [vmem:[%s1257 + $0x140] sm:$0xff] %v1418
                  %v1420 = vld [vmem:[%s1256 + $0x284] sm:$0xff]
                  %1421 = vst [vmem:[%s1257 + $0x144] sm:$0xff] %v1420
                  %v1422 = vld [vmem:[%s1256 + $0x288] sm:$0xff]
                  %1423 = vst [vmem:[%s1257 + $0x148] sm:$0xff] %v1422
                  %v1424 = vld [vmem:[%s1256 + $0x28c] sm:$0xff]
                  %1425 = vst [vmem:[%s1257 + $0x14c] sm:$0xff] %v1424
                  %v1426 = vld [vmem:[%s1256 + $0x290] sm:$0xff]
                  %1427 = vst [vmem:[%s1257 + $0x150] sm:$0xff] %v1426
                  %v1428 = vld [vmem:[%s1256 + $0x294] sm:$0xff]
                  %1429 = vst [vmem:[%s1257 + $0x154] sm:$0xff] %v1428
                  %v1430 = vld [vmem:[%s1256 + $0x298] sm:$0xff]
                  %1431 = vst [vmem:[%s1257 + $0x158] sm:$0xff] %v1430
                  %v1432 = vld [vmem:[%s1256 + $0x29c] sm:$0xff]
                  %1433 = vst [vmem:[%s1257 + $0x15c] sm:$0xff] %v1432
                  %v1434 = vld [vmem:[%s1256 + $0x2a0] sm:$0xff]
                  %1435 = vst [vmem:[%s1257 + $0x160] sm:$0xff] %v1434
                  %v1436 = vld [vmem:[%s1256 + $0x2a4] sm:$0xff]
                  %1437 = vst [vmem:[%s1257 + $0x164] sm:$0xff] %v1436
                  %v1438 = vld [vmem:[%s1256 + $0x2a8] sm:$0xff]
                  %1439 = vst [vmem:[%s1257 + $0x168] sm:$0xff] %v1438
                  %v1440 = vld [vmem:[%s1256 + $0x2ac] sm:$0xff]
                  %1441 = vst [vmem:[%s1257 + $0x16c] sm:$0xff] %v1440
                  %v1442 = vld [vmem:[%s1256 + $0x2b0] sm:$0xff]
                  %1443 = vst [vmem:[%s1257 + $0x170] sm:$0xff] %v1442
                  %v1444 = vld [vmem:[%s1256 + $0x2b4] sm:$0xff]
                  %1445 = vst [vmem:[%s1257 + $0x174] sm:$0xff] %v1444
                  %v1446 = vld [vmem:[%s1256 + $0x2b8] sm:$0xff]
                  %1447 = vst [vmem:[%s1257 + $0x178] sm:$0xff] %v1446
                  %v1448 = vld [vmem:[%s1256 + $0x2bc] sm:$0xff]
                  %1449 = vst [vmem:[%s1257 + $0x17c] sm:$0xff] %v1448
                  %v1450 = vld [vmem:[%s1256 + $0x300] sm:$0xff]
                  %1451 = vst [vmem:[%s1257 + $0x180] sm:$0xff] %v1450
                  %v1452 = vld [vmem:[%s1256 + $0x304] sm:$0xff]
                  %1453 = vst [vmem:[%s1257 + $0x184] sm:$0xff] %v1452
                  %v1454 = vld [vmem:[%s1256 + $0x308] sm:$0xff]
                  %1455 = vst [vmem:[%s1257 + $0x188] sm:$0xff] %v1454
                  %v1456 = vld [vmem:[%s1256 + $0x30c] sm:$0xff]
                  %1457 = vst [vmem:[%s1257 + $0x18c] sm:$0xff] %v1456
                  %v1458 = vld [vmem:[%s1256 + $0x310] sm:$0xff]
                  %1459 = vst [vmem:[%s1257 + $0x190] sm:$0xff] %v1458
                  %v1460 = vld [vmem:[%s1256 + $0x314] sm:$0xff]
                  %1461 = vst [vmem:[%s1257 + $0x194] sm:$0xff] %v1460
                  %v1462 = vld [vmem:[%s1256 + $0x318] sm:$0xff]
                  %1463 = vst [vmem:[%s1257 + $0x198] sm:$0xff] %v1462
                  %v1464 = vld [vmem:[%s1256 + $0x31c] sm:$0xff]
                  %1465 = vst [vmem:[%s1257 + $0x19c] sm:$0xff] %v1464
                  %v1466 = vld [vmem:[%s1256 + $0x320] sm:$0xff]
                  %1467 = vst [vmem:[%s1257 + $0x1a0] sm:$0xff] %v1466
                  %v1468 = vld [vmem:[%s1256 + $0x324] sm:$0xff]
                  %1469 = vst [vmem:[%s1257 + $0x1a4] sm:$0xff] %v1468
                  %v1470 = vld [vmem:[%s1256 + $0x328] sm:$0xff]
                  %1471 = vst [vmem:[%s1257 + $0x1a8] sm:$0xff] %v1470
                  %v1472 = vld [vmem:[%s1256 + $0x32c] sm:$0xff]
                  %1473 = vst [vmem:[%s1257 + $0x1ac] sm:$0xff] %v1472
                  %v1474 = vld [vmem:[%s1256 + $0x330] sm:$0xff]
                  %1475 = vst [vmem:[%s1257 + $0x1b0] sm:$0xff] %v1474
                  %v1476 = vld [vmem:[%s1256 + $0x334] sm:$0xff]
                  %1477 = vst [vmem:[%s1257 + $0x1b4] sm:$0xff] %v1476
                  %v1478 = vld [vmem:[%s1256 + $0x338] sm:$0xff]
                  %1479 = vst [vmem:[%s1257 + $0x1b8] sm:$0xff] %v1478
                  %v1480 = vld [vmem:[%s1256 + $0x33c] sm:$0xff]
                  %1481 = vst [vmem:[%s1257 + $0x1bc] sm:$0xff] %v1480
                  %v1482 = vld [vmem:[%s1256 + $0x380] sm:$0xff]
                  %1483 = vst [vmem:[%s1257 + $0x1c0] sm:$0xff] %v1482
                  %v1484 = vld [vmem:[%s1256 + $0x384] sm:$0xff]
                  %1485 = vst [vmem:[%s1257 + $0x1c4] sm:$0xff] %v1484
                  %v1486 = vld [vmem:[%s1256 + $0x388] sm:$0xff]
                  %1487 = vst [vmem:[%s1257 + $0x1c8] sm:$0xff] %v1486
                  %v1488 = vld [vmem:[%s1256 + $0x38c] sm:$0xff]
                  %1489 = vst [vmem:[%s1257 + $0x1cc] sm:$0xff] %v1488
                  %v1490 = vld [vmem:[%s1256 + $0x390] sm:$0xff]
                  %1491 = vst [vmem:[%s1257 + $0x1d0] sm:$0xff] %v1490
                  %v1492 = vld [vmem:[%s1256 + $0x394] sm:$0xff]
                  %1493 = vst [vmem:[%s1257 + $0x1d4] sm:$0xff] %v1492
                  %v1494 = vld [vmem:[%s1256 + $0x398] sm:$0xff]
                  %1495 = vst [vmem:[%s1257 + $0x1d8] sm:$0xff] %v1494
                  %v1496 = vld [vmem:[%s1256 + $0x39c] sm:$0xff]
                  %1497 = vst [vmem:[%s1257 + $0x1dc] sm:$0xff] %v1496
                  %v1498 = vld [vmem:[%s1256 + $0x3a0] sm:$0xff]
                  %1499 = vst [vmem:[%s1257 + $0x1e0] sm:$0xff] %v1498
                  %v1500 = vld [vmem:[%s1256 + $0x3a4] sm:$0xff]
                  %1501 = vst [vmem:[%s1257 + $0x1e4] sm:$0xff] %v1500
                  %v1502 = vld [vmem:[%s1256 + $0x3a8] sm:$0xff]
                  %1503 = vst [vmem:[%s1257 + $0x1e8] sm:$0xff] %v1502
                  %v1504 = vld [vmem:[%s1256 + $0x3ac] sm:$0xff]
                  %1505 = vst [vmem:[%s1257 + $0x1ec] sm:$0xff] %v1504
                  %v1506 = vld [vmem:[%s1256 + $0x3b0] sm:$0xff]
                  %1507 = vst [vmem:[%s1257 + $0x1f0] sm:$0xff] %v1506
                  %v1508 = vld [vmem:[%s1256 + $0x3b4] sm:$0xff]
                  %1509 = vst [vmem:[%s1257 + $0x1f4] sm:$0xff] %v1508
                  %v1510 = vld [vmem:[%s1256 + $0x3b8] sm:$0xff]
                  %1511 = vst [vmem:[%s1257 + $0x1f8] sm:$0xff] %v1510
                  %v1512 = vld [vmem:[%s1256 + $0x3bc] sm:$0xff]
                  %1513 = vst [vmem:[%s1257 + $0x1fc] sm:$0xff] %v1512
                  %v1514 = vld [vmem:[%s1256 + $0x400] sm:$0xff]
                  %1515 = vst [vmem:[%s1257 + $0x200] sm:$0xff] %v1514
                  %v1516 = vld [vmem:[%s1256 + $0x404] sm:$0xff]
                  %1517 = vst [vmem:[%s1257 + $0x204] sm:$0xff] %v1516
                  %v1518 = vld [vmem:[%s1256 + $0x408] sm:$0xff]
                  %1519 = vst [vmem:[%s1257 + $0x208] sm:$0xff] %v1518
                  %v1520 = vld [vmem:[%s1256 + $0x40c] sm:$0xff]
                  %1521 = vst [vmem:[%s1257 + $0x20c] sm:$0xff] %v1520
                  %v1522 = vld [vmem:[%s1256 + $0x410] sm:$0xff]
                  %1523 = vst [vmem:[%s1257 + $0x210] sm:$0xff] %v1522
                  %v1524 = vld [vmem:[%s1256 + $0x414] sm:$0xff]
                  %1525 = vst [vmem:[%s1257 + $0x214] sm:$0xff] %v1524
                  %v1526 = vld [vmem:[%s1256 + $0x418] sm:$0xff]
                  %1527 = vst [vmem:[%s1257 + $0x218] sm:$0xff] %v1526
                  %v1528 = vld [vmem:[%s1256 + $0x41c] sm:$0xff]
                  %1529 = vst [vmem:[%s1257 + $0x21c] sm:$0xff] %v1528
                  %v1530 = vld [vmem:[%s1256 + $0x420] sm:$0xff]
                  %1531 = vst [vmem:[%s1257 + $0x220] sm:$0xff] %v1530
                  %v1532 = vld [vmem:[%s1256 + $0x424] sm:$0xff]
                  %1533 = vst [vmem:[%s1257 + $0x224] sm:$0xff] %v1532
                  %v1534 = vld [vmem:[%s1256 + $0x428] sm:$0xff]
                  %1535 = vst [vmem:[%s1257 + $0x228] sm:$0xff] %v1534
                  %v1536 = vld [vmem:[%s1256 + $0x42c] sm:$0xff]
                  %1537 = vst [vmem:[%s1257 + $0x22c] sm:$0xff] %v1536
                  %v1538 = vld [vmem:[%s1256 + $0x430] sm:$0xff]
                  %1539 = vst [vmem:[%s1257 + $0x230] sm:$0xff] %v1538
                  %v1540 = vld [vmem:[%s1256 + $0x434] sm:$0xff]
                  %1541 = vst [vmem:[%s1257 + $0x234] sm:$0xff] %v1540
                  %v1542 = vld [vmem:[%s1256 + $0x438] sm:$0xff]
                  %1543 = vst [vmem:[%s1257 + $0x238] sm:$0xff] %v1542
                  %v1544 = vld [vmem:[%s1256 + $0x43c] sm:$0xff]
                  %1545 = vst [vmem:[%s1257 + $0x23c] sm:$0xff] %v1544
                  %v1546 = vld [vmem:[%s1256 + $0x480] sm:$0xff]
                  %1547 = vst [vmem:[%s1257 + $0x240] sm:$0xff] %v1546
                  %v1548 = vld [vmem:[%s1256 + $0x484] sm:$0xff]
                  %1549 = vst [vmem:[%s1257 + $0x244] sm:$0xff] %v1548
                  %v1550 = vld [vmem:[%s1256 + $0x488] sm:$0xff]
                  %1551 = vst [vmem:[%s1257 + $0x248] sm:$0xff] %v1550
                  %v1552 = vld [vmem:[%s1256 + $0x48c] sm:$0xff]
                  %1553 = vst [vmem:[%s1257 + $0x24c] sm:$0xff] %v1552
                  %v1554 = vld [vmem:[%s1256 + $0x490] sm:$0xff]
                  %1555 = vst [vmem:[%s1257 + $0x250] sm:$0xff] %v1554
                  %v1556 = vld [vmem:[%s1256 + $0x494] sm:$0xff]
                  %1557 = vst [vmem:[%s1257 + $0x254] sm:$0xff] %v1556
                  %v1558 = vld [vmem:[%s1256 + $0x498] sm:$0xff]
                  %1559 = vst [vmem:[%s1257 + $0x258] sm:$0xff] %v1558
                  %v1560 = vld [vmem:[%s1256 + $0x49c] sm:$0xff]
                  %1561 = vst [vmem:[%s1257 + $0x25c] sm:$0xff] %v1560
                  %v1562 = vld [vmem:[%s1256 + $0x4a0] sm:$0xff]
                  %1563 = vst [vmem:[%s1257 + $0x260] sm:$0xff] %v1562
                  %v1564 = vld [vmem:[%s1256 + $0x4a4] sm:$0xff]
                  %1565 = vst [vmem:[%s1257 + $0x264] sm:$0xff] %v1564
                  %v1566 = vld [vmem:[%s1256 + $0x4a8] sm:$0xff]
                  %1567 = vst [vmem:[%s1257 + $0x268] sm:$0xff] %v1566
                  %v1568 = vld [vmem:[%s1256 + $0x4ac] sm:$0xff]
                  %1569 = vst [vmem:[%s1257 + $0x26c] sm:$0xff] %v1568
                  %v1570 = vld [vmem:[%s1256 + $0x4b0] sm:$0xff]
                  %1571 = vst [vmem:[%s1257 + $0x270] sm:$0xff] %v1570
                  %v1572 = vld [vmem:[%s1256 + $0x4b4] sm:$0xff]
                  %1573 = vst [vmem:[%s1257 + $0x274] sm:$0xff] %v1572
                  %v1574 = vld [vmem:[%s1256 + $0x4b8] sm:$0xff]
                  %1575 = vst [vmem:[%s1257 + $0x278] sm:$0xff] %v1574
                  %v1576 = vld [vmem:[%s1256 + $0x4bc] sm:$0xff]
                  %1577 = vst [vmem:[%s1257 + $0x27c] sm:$0xff] %v1576
                  %v1578 = vld [vmem:[%s1256 + $0x500] sm:$0xff]
                  %1579 = vst [vmem:[%s1257 + $0x280] sm:$0xff] %v1578
                  %v1580 = vld [vmem:[%s1256 + $0x504] sm:$0xff]
                  %1581 = vst [vmem:[%s1257 + $0x284] sm:$0xff] %v1580
                  %v1582 = vld [vmem:[%s1256 + $0x508] sm:$0xff]
                  %1583 = vst [vmem:[%s1257 + $0x288] sm:$0xff] %v1582
                  %v1584 = vld [vmem:[%s1256 + $0x50c] sm:$0xff]
                  %1585 = vst [vmem:[%s1257 + $0x28c] sm:$0xff] %v1584
                  %v1586 = vld [vmem:[%s1256 + $0x510] sm:$0xff]
                  %1587 = vst [vmem:[%s1257 + $0x290] sm:$0xff] %v1586
                  %v1588 = vld [vmem:[%s1256 + $0x514] sm:$0xff]
                  %1589 = vst [vmem:[%s1257 + $0x294] sm:$0xff] %v1588
                  %v1590 = vld [vmem:[%s1256 + $0x518] sm:$0xff]
                  %1591 = vst [vmem:[%s1257 + $0x298] sm:$0xff] %v1590
                  %v1592 = vld [vmem:[%s1256 + $0x51c] sm:$0xff]
                  %1593 = vst [vmem:[%s1257 + $0x29c] sm:$0xff] %v1592
                  %v1594 = vld [vmem:[%s1256 + $0x520] sm:$0xff]
                  %1595 = vst [vmem:[%s1257 + $0x2a0] sm:$0xff] %v1594
                  %v1596 = vld [vmem:[%s1256 + $0x524] sm:$0xff]
                  %1597 = vst [vmem:[%s1257 + $0x2a4] sm:$0xff] %v1596
                  %v1598 = vld [vmem:[%s1256 + $0x528] sm:$0xff]
                  %1599 = vst [vmem:[%s1257 + $0x2a8] sm:$0xff] %v1598
                  %v1600 = vld [vmem:[%s1256 + $0x52c] sm:$0xff]
                  %1601 = vst [vmem:[%s1257 + $0x2ac] sm:$0xff] %v1600
                  %v1602 = vld [vmem:[%s1256 + $0x530] sm:$0xff]
                  %1603 = vst [vmem:[%s1257 + $0x2b0] sm:$0xff] %v1602
                  %v1604 = vld [vmem:[%s1256 + $0x534] sm:$0xff]
                  %1605 = vst [vmem:[%s1257 + $0x2b4] sm:$0xff] %v1604
                  %v1606 = vld [vmem:[%s1256 + $0x538] sm:$0xff]
                  %1607 = vst [vmem:[%s1257 + $0x2b8] sm:$0xff] %v1606
                  %v1608 = vld [vmem:[%s1256 + $0x53c] sm:$0xff]
                  %1609 = vst [vmem:[%s1257 + $0x2bc] sm:$0xff] %v1608
                  %v1610 = vld [vmem:[%s1256 + $0x580] sm:$0xff]
                  %1611 = vst [vmem:[%s1257 + $0x2c0] sm:$0xff] %v1610
                  %v1612 = vld [vmem:[%s1256 + $0x584] sm:$0xff]
                  %1613 = vst [vmem:[%s1257 + $0x2c4] sm:$0xff] %v1612
                  %v1614 = vld [vmem:[%s1256 + $0x588] sm:$0xff]
                  %1615 = vst [vmem:[%s1257 + $0x2c8] sm:$0xff] %v1614
                  %v1616 = vld [vmem:[%s1256 + $0x58c] sm:$0xff]
                  %1617 = vst [vmem:[%s1257 + $0x2cc] sm:$0xff] %v1616
                  %v1618 = vld [vmem:[%s1256 + $0x590] sm:$0xff]
                  %1619 = vst [vmem:[%s1257 + $0x2d0] sm:$0xff] %v1618
                  %v1620 = vld [vmem:[%s1256 + $0x594] sm:$0xff]
                  %1621 = vst [vmem:[%s1257 + $0x2d4] sm:$0xff] %v1620
                  %v1622 = vld [vmem:[%s1256 + $0x598] sm:$0xff]
                  %1623 = vst [vmem:[%s1257 + $0x2d8] sm:$0xff] %v1622
                  %v1624 = vld [vmem:[%s1256 + $0x59c] sm:$0xff]
                  %1625 = vst [vmem:[%s1257 + $0x2dc] sm:$0xff] %v1624
                  %v1626 = vld [vmem:[%s1256 + $0x5a0] sm:$0xff]
                  %1627 = vst [vmem:[%s1257 + $0x2e0] sm:$0xff] %v1626
                  %v1628 = vld [vmem:[%s1256 + $0x5a4] sm:$0xff]
                  %1629 = vst [vmem:[%s1257 + $0x2e4] sm:$0xff] %v1628
                  %v1630 = vld [vmem:[%s1256 + $0x5a8] sm:$0xff]
                  %1631 = vst [vmem:[%s1257 + $0x2e8] sm:$0xff] %v1630
                  %v1632 = vld [vmem:[%s1256 + $0x5ac] sm:$0xff]
                  %1633 = vst [vmem:[%s1257 + $0x2ec] sm:$0xff] %v1632
                  %v1634 = vld [vmem:[%s1256 + $0x5b0] sm:$0xff]
                  %1635 = vst [vmem:[%s1257 + $0x2f0] sm:$0xff] %v1634
                  %v1636 = vld [vmem:[%s1256 + $0x5b4] sm:$0xff]
                  %1637 = vst [vmem:[%s1257 + $0x2f4] sm:$0xff] %v1636
                  %v1638 = vld [vmem:[%s1256 + $0x5b8] sm:$0xff]
                  %1639 = vst [vmem:[%s1257 + $0x2f8] sm:$0xff] %v1638
                  %v1640 = vld [vmem:[%s1256 + $0x5bc] sm:$0xff]
                  %1641 = vst [vmem:[%s1257 + $0x2fc] sm:$0xff] %v1640
                  %v1642 = vld [vmem:[%s1256 + $0x600] sm:$0xff]
                  %1643 = vst [vmem:[%s1257 + $0x300] sm:$0xff] %v1642
                  %v1644 = vld [vmem:[%s1256 + $0x604] sm:$0xff]
                  %1645 = vst [vmem:[%s1257 + $0x304] sm:$0xff] %v1644
                  %v1646 = vld [vmem:[%s1256 + $0x608] sm:$0xff]
                  %1647 = vst [vmem:[%s1257 + $0x308] sm:$0xff] %v1646
                  %v1648 = vld [vmem:[%s1256 + $0x60c] sm:$0xff]
                  %1649 = vst [vmem:[%s1257 + $0x30c] sm:$0xff] %v1648
                  %v1650 = vld [vmem:[%s1256 + $0x610] sm:$0xff]
                  %1651 = vst [vmem:[%s1257 + $0x310] sm:$0xff] %v1650
                  %v1652 = vld [vmem:[%s1256 + $0x614] sm:$0xff]
                  %1653 = vst [vmem:[%s1257 + $0x314] sm:$0xff] %v1652
                  %v1654 = vld [vmem:[%s1256 + $0x618] sm:$0xff]
                  %1655 = vst [vmem:[%s1257 + $0x318] sm:$0xff] %v1654
                  %v1656 = vld [vmem:[%s1256 + $0x61c] sm:$0xff]
                  %1657 = vst [vmem:[%s1257 + $0x31c] sm:$0xff] %v1656
                  %v1658 = vld [vmem:[%s1256 + $0x620] sm:$0xff]
                  %1659 = vst [vmem:[%s1257 + $0x320] sm:$0xff] %v1658
                  %v1660 = vld [vmem:[%s1256 + $0x624] sm:$0xff]
                  %1661 = vst [vmem:[%s1257 + $0x324] sm:$0xff] %v1660
                  %v1662 = vld [vmem:[%s1256 + $0x628] sm:$0xff]
                  %1663 = vst [vmem:[%s1257 + $0x328] sm:$0xff] %v1662
                  %v1664 = vld [vmem:[%s1256 + $0x62c] sm:$0xff]
                  %1665 = vst [vmem:[%s1257 + $0x32c] sm:$0xff] %v1664
                  %v1666 = vld [vmem:[%s1256 + $0x630] sm:$0xff]
                  %1667 = vst [vmem:[%s1257 + $0x330] sm:$0xff] %v1666
                  %v1668 = vld [vmem:[%s1256 + $0x634] sm:$0xff]
                  %1669 = vst [vmem:[%s1257 + $0x334] sm:$0xff] %v1668
                  %v1670 = vld [vmem:[%s1256 + $0x638] sm:$0xff]
                  %1671 = vst [vmem:[%s1257 + $0x338] sm:$0xff] %v1670
                  %v1672 = vld [vmem:[%s1256 + $0x63c] sm:$0xff]
                  %1673 = vst [vmem:[%s1257 + $0x33c] sm:$0xff] %v1672
                  %v1674 = vld [vmem:[%s1256 + $0x680] sm:$0xff]
                  %1675 = vst [vmem:[%s1257 + $0x340] sm:$0xff] %v1674
                  %v1676 = vld [vmem:[%s1256 + $0x684] sm:$0xff]
                  %1677 = vst [vmem:[%s1257 + $0x344] sm:$0xff] %v1676
                  %v1678 = vld [vmem:[%s1256 + $0x688] sm:$0xff]
                  %1679 = vst [vmem:[%s1257 + $0x348] sm:$0xff] %v1678
                  %v1680 = vld [vmem:[%s1256 + $0x68c] sm:$0xff]
                  %1681 = vst [vmem:[%s1257 + $0x34c] sm:$0xff] %v1680
                  %v1682 = vld [vmem:[%s1256 + $0x690] sm:$0xff]
                  %1683 = vst [vmem:[%s1257 + $0x350] sm:$0xff] %v1682
                  %v1684 = vld [vmem:[%s1256 + $0x694] sm:$0xff]
                  %1685 = vst [vmem:[%s1257 + $0x354] sm:$0xff] %v1684
                  %v1686 = vld [vmem:[%s1256 + $0x698] sm:$0xff]
                  %1687 = vst [vmem:[%s1257 + $0x358] sm:$0xff] %v1686
                  %v1688 = vld [vmem:[%s1256 + $0x69c] sm:$0xff]
                  %1689 = vst [vmem:[%s1257 + $0x35c] sm:$0xff] %v1688
                  %v1690 = vld [vmem:[%s1256 + $0x6a0] sm:$0xff]
                  %1691 = vst [vmem:[%s1257 + $0x360] sm:$0xff] %v1690
                  %v1692 = vld [vmem:[%s1256 + $0x6a4] sm:$0xff]
                  %1693 = vst [vmem:[%s1257 + $0x364] sm:$0xff] %v1692
                  %v1694 = vld [vmem:[%s1256 + $0x6a8] sm:$0xff]
                  %1695 = vst [vmem:[%s1257 + $0x368] sm:$0xff] %v1694
                  %v1696 = vld [vmem:[%s1256 + $0x6ac] sm:$0xff]
                  %1697 = vst [vmem:[%s1257 + $0x36c] sm:$0xff] %v1696
                  %v1698 = vld [vmem:[%s1256 + $0x6b0] sm:$0xff]
                  %1699 = vst [vmem:[%s1257 + $0x370] sm:$0xff] %v1698
                  %v1700 = vld [vmem:[%s1256 + $0x6b4] sm:$0xff]
                  %1701 = vst [vmem:[%s1257 + $0x374] sm:$0xff] %v1700
                  %v1702 = vld [vmem:[%s1256 + $0x6b8] sm:$0xff]
                  %1703 = vst [vmem:[%s1257 + $0x378] sm:$0xff] %v1702
                  %v1704 = vld [vmem:[%s1256 + $0x6bc] sm:$0xff]
                  %1705 = vst [vmem:[%s1257 + $0x37c] sm:$0xff] %v1704
                  %v1706 = vld [vmem:[%s1256 + $0x700] sm:$0xff]
                  %1707 = vst [vmem:[%s1257 + $0x380] sm:$0xff] %v1706
                  %v1708 = vld [vmem:[%s1256 + $0x704] sm:$0xff]
                  %1709 = vst [vmem:[%s1257 + $0x384] sm:$0xff] %v1708
                  %v1710 = vld [vmem:[%s1256 + $0x708] sm:$0xff]
                  %1711 = vst [vmem:[%s1257 + $0x388] sm:$0xff] %v1710
                  %v1712 = vld [vmem:[%s1256 + $0x70c] sm:$0xff]
                  %1713 = vst [vmem:[%s1257 + $0x38c] sm:$0xff] %v1712
                  %v1714 = vld [vmem:[%s1256 + $0x710] sm:$0xff]
                  %1715 = vst [vmem:[%s1257 + $0x390] sm:$0xff] %v1714
                  %v1716 = vld [vmem:[%s1256 + $0x714] sm:$0xff]
                  %1717 = vst [vmem:[%s1257 + $0x394] sm:$0xff] %v1716
                  %v1718 = vld [vmem:[%s1256 + $0x718] sm:$0xff]
                  %1719 = vst [vmem:[%s1257 + $0x398] sm:$0xff] %v1718
                  %v1720 = vld [vmem:[%s1256 + $0x71c] sm:$0xff]
                  %1721 = vst [vmem:[%s1257 + $0x39c] sm:$0xff] %v1720
                  %v1722 = vld [vmem:[%s1256 + $0x720] sm:$0xff]
                  %1723 = vst [vmem:[%s1257 + $0x3a0] sm:$0xff] %v1722
                  %v1724 = vld [vmem:[%s1256 + $0x724] sm:$0xff]
                  %1725 = vst [vmem:[%s1257 + $0x3a4] sm:$0xff] %v1724
                  %v1726 = vld [vmem:[%s1256 + $0x728] sm:$0xff]
                  %1727 = vst [vmem:[%s1257 + $0x3a8] sm:$0xff] %v1726
                  %v1728 = vld [vmem:[%s1256 + $0x72c] sm:$0xff]
                  %1729 = vst [vmem:[%s1257 + $0x3ac] sm:$0xff] %v1728
                  %v1730 = vld [vmem:[%s1256 + $0x730] sm:$0xff]
                  %1731 = vst [vmem:[%s1257 + $0x3b0] sm:$0xff] %v1730
                  %v1732 = vld [vmem:[%s1256 + $0x734] sm:$0xff]
                  %1733 = vst [vmem:[%s1257 + $0x3b4] sm:$0xff] %v1732
                  %v1734 = vld [vmem:[%s1256 + $0x738] sm:$0xff]
                  %1735 = vst [vmem:[%s1257 + $0x3b8] sm:$0xff] %v1734
                  %v1736 = vld [vmem:[%s1256 + $0x73c] sm:$0xff]
                  %1737 = vst [vmem:[%s1257 + $0x3bc] sm:$0xff] %v1736
                  %v1738 = vld [vmem:[%s1256 + $0x780] sm:$0xff]
                  %1739 = vst [vmem:[%s1257 + $0x3c0] sm:$0xff] %v1738
                  %v1740 = vld [vmem:[%s1256 + $0x784] sm:$0xff]
                  %1741 = vst [vmem:[%s1257 + $0x3c4] sm:$0xff] %v1740
                  %v1742 = vld [vmem:[%s1256 + $0x788] sm:$0xff]
                  %1743 = vst [vmem:[%s1257 + $0x3c8] sm:$0xff] %v1742
                  %v1744 = vld [vmem:[%s1256 + $0x78c] sm:$0xff]
                  %1745 = vst [vmem:[%s1257 + $0x3cc] sm:$0xff] %v1744
                  %v1746 = vld [vmem:[%s1256 + $0x790] sm:$0xff]
                  %1747 = vst [vmem:[%s1257 + $0x3d0] sm:$0xff] %v1746
                  %v1748 = vld [vmem:[%s1256 + $0x794] sm:$0xff]
                  %1749 = vst [vmem:[%s1257 + $0x3d4] sm:$0xff] %v1748
                  %v1750 = vld [vmem:[%s1256 + $0x798] sm:$0xff]
                  %1751 = vst [vmem:[%s1257 + $0x3d8] sm:$0xff] %v1750
                  %v1752 = vld [vmem:[%s1256 + $0x79c] sm:$0xff]
                  %1753 = vst [vmem:[%s1257 + $0x3dc] sm:$0xff] %v1752
                  %v1754 = vld [vmem:[%s1256 + $0x7a0] sm:$0xff]
                  %1755 = vst [vmem:[%s1257 + $0x3e0] sm:$0xff] %v1754
                  %v1756 = vld [vmem:[%s1256 + $0x7a4] sm:$0xff]
                  %1757 = vst [vmem:[%s1257 + $0x3e4] sm:$0xff] %v1756
                  %v1758 = vld [vmem:[%s1256 + $0x7a8] sm:$0xff]
                  %1759 = vst [vmem:[%s1257 + $0x3e8] sm:$0xff] %v1758
                  %v1760 = vld [vmem:[%s1256 + $0x7ac] sm:$0xff]
                  %1761 = vst [vmem:[%s1257 + $0x3ec] sm:$0xff] %v1760
                  %v1762 = vld [vmem:[%s1256 + $0x7b0] sm:$0xff]
                  %1763 = vst [vmem:[%s1257 + $0x3f0] sm:$0xff] %v1762
                  %v1764 = vld [vmem:[%s1256 + $0x7b4] sm:$0xff]
                  %1765 = vst [vmem:[%s1257 + $0x3f4] sm:$0xff] %v1764
                  %v1766 = vld [vmem:[%s1256 + $0x7b8] sm:$0xff]
                  %1767 = vst [vmem:[%s1257 + $0x3f8] sm:$0xff] %v1766
                  %v1768 = vld [vmem:[%s1256 + $0x7bc] sm:$0xff]
                  %1769 = vst [vmem:[%s1257 + $0x3fc] sm:$0xff] %v1768
                  %v1770 = vld [vmem:[%s1256 + $0x800] sm:$0xff]
                  %1771 = vst [vmem:[%s1257 + $0x400] sm:$0xff] %v1770
                  %v1772 = vld [vmem:[%s1256 + $0x804] sm:$0xff]
                  %1773 = vst [vmem:[%s1257 + $0x404] sm:$0xff] %v1772
                  %v1774 = vld [vmem:[%s1256 + $0x808] sm:$0xff]
                  %1775 = vst [vmem:[%s1257 + $0x408] sm:$0xff] %v1774
                  %v1776 = vld [vmem:[%s1256 + $0x80c] sm:$0xff]
                  %1777 = vst [vmem:[%s1257 + $0x40c] sm:$0xff] %v1776
                  %v1778 = vld [vmem:[%s1256 + $0x810] sm:$0xff]
                  %1779 = vst [vmem:[%s1257 + $0x410] sm:$0xff] %v1778
                  %v1780 = vld [vmem:[%s1256 + $0x814] sm:$0xff]
                  %1781 = vst [vmem:[%s1257 + $0x414] sm:$0xff] %v1780
                  %v1782 = vld [vmem:[%s1256 + $0x818] sm:$0xff]
                  %1783 = vst [vmem:[%s1257 + $0x418] sm:$0xff] %v1782
                  %v1784 = vld [vmem:[%s1256 + $0x81c] sm:$0xff]
                  %1785 = vst [vmem:[%s1257 + $0x41c] sm:$0xff] %v1784
                  %v1786 = vld [vmem:[%s1256 + $0x820] sm:$0xff]
                  %1787 = vst [vmem:[%s1257 + $0x420] sm:$0xff] %v1786
                  %v1788 = vld [vmem:[%s1256 + $0x824] sm:$0xff]
                  %1789 = vst [vmem:[%s1257 + $0x424] sm:$0xff] %v1788
                  %v1790 = vld [vmem:[%s1256 + $0x828] sm:$0xff]
                  %1791 = vst [vmem:[%s1257 + $0x428] sm:$0xff] %v1790
                  %v1792 = vld [vmem:[%s1256 + $0x82c] sm:$0xff]
                  %1793 = vst [vmem:[%s1257 + $0x42c] sm:$0xff] %v1792
                  %v1794 = vld [vmem:[%s1256 + $0x830] sm:$0xff]
                  %1795 = vst [vmem:[%s1257 + $0x430] sm:$0xff] %v1794
                  %v1796 = vld [vmem:[%s1256 + $0x834] sm:$0xff]
                  %1797 = vst [vmem:[%s1257 + $0x434] sm:$0xff] %v1796
                  %v1798 = vld [vmem:[%s1256 + $0x838] sm:$0xff]
                  %1799 = vst [vmem:[%s1257 + $0x438] sm:$0xff] %v1798
                  %v1800 = vld [vmem:[%s1256 + $0x83c] sm:$0xff]
                  %1801 = vst [vmem:[%s1257 + $0x43c] sm:$0xff] %v1800
                  %v1802 = vld [vmem:[%s1256 + $0x880] sm:$0xff]
                  %1803 = vst [vmem:[%s1257 + $0x440] sm:$0xff] %v1802
                  %v1804 = vld [vmem:[%s1256 + $0x884] sm:$0xff]
                  %1805 = vst [vmem:[%s1257 + $0x444] sm:$0xff] %v1804
                  %v1806 = vld [vmem:[%s1256 + $0x888] sm:$0xff]
                  %1807 = vst [vmem:[%s1257 + $0x448] sm:$0xff] %v1806
                  %v1808 = vld [vmem:[%s1256 + $0x88c] sm:$0xff]
                  %1809 = vst [vmem:[%s1257 + $0x44c] sm:$0xff] %v1808
                  %v1810 = vld [vmem:[%s1256 + $0x890] sm:$0xff]
                  %1811 = vst [vmem:[%s1257 + $0x450] sm:$0xff] %v1810
                  %v1812 = vld [vmem:[%s1256 + $0x894] sm:$0xff]
                  %1813 = vst [vmem:[%s1257 + $0x454] sm:$0xff] %v1812
                  %v1814 = vld [vmem:[%s1256 + $0x898] sm:$0xff]
                  %1815 = vst [vmem:[%s1257 + $0x458] sm:$0xff] %v1814
                  %v1816 = vld [vmem:[%s1256 + $0x89c] sm:$0xff]
                  %1817 = vst [vmem:[%s1257 + $0x45c] sm:$0xff] %v1816
                  %v1818 = vld [vmem:[%s1256 + $0x8a0] sm:$0xff]
                  %1819 = vst [vmem:[%s1257 + $0x460] sm:$0xff] %v1818
                  %v1820 = vld [vmem:[%s1256 + $0x8a4] sm:$0xff]
                  %1821 = vst [vmem:[%s1257 + $0x464] sm:$0xff] %v1820
                  %v1822 = vld [vmem:[%s1256 + $0x8a8] sm:$0xff]
                  %1823 = vst [vmem:[%s1257 + $0x468] sm:$0xff] %v1822
                  %v1824 = vld [vmem:[%s1256 + $0x8ac] sm:$0xff]
                  %1825 = vst [vmem:[%s1257 + $0x46c] sm:$0xff] %v1824
                  %v1826 = vld [vmem:[%s1256 + $0x8b0] sm:$0xff]
                  %1827 = vst [vmem:[%s1257 + $0x470] sm:$0xff] %v1826
                  %v1828 = vld [vmem:[%s1256 + $0x8b4] sm:$0xff]
                  %1829 = vst [vmem:[%s1257 + $0x474] sm:$0xff] %v1828
                  %v1830 = vld [vmem:[%s1256 + $0x8b8] sm:$0xff]
                  %1831 = vst [vmem:[%s1257 + $0x478] sm:$0xff] %v1830
                  %v1832 = vld [vmem:[%s1256 + $0x8bc] sm:$0xff]
                  %1833 = vst [vmem:[%s1257 + $0x47c] sm:$0xff] %v1832
                  %v1834 = vld [vmem:[%s1256 + $0x900] sm:$0xff]
                  %1835 = vst [vmem:[%s1257 + $0x480] sm:$0xff] %v1834
                  %v1836 = vld [vmem:[%s1256 + $0x904] sm:$0xff]
                  %1837 = vst [vmem:[%s1257 + $0x484] sm:$0xff] %v1836
                  %v1838 = vld [vmem:[%s1256 + $0x908] sm:$0xff]
                  %1839 = vst [vmem:[%s1257 + $0x488] sm:$0xff] %v1838
                  %v1840 = vld [vmem:[%s1256 + $0x90c] sm:$0xff]
                  %1841 = vst [vmem:[%s1257 + $0x48c] sm:$0xff] %v1840
                  %v1842 = vld [vmem:[%s1256 + $0x910] sm:$0xff]
                  %1843 = vst [vmem:[%s1257 + $0x490] sm:$0xff] %v1842
                  %v1844 = vld [vmem:[%s1256 + $0x914] sm:$0xff]
                  %1845 = vst [vmem:[%s1257 + $0x494] sm:$0xff] %v1844
                  %v1846 = vld [vmem:[%s1256 + $0x918] sm:$0xff]
                  %1847 = vst [vmem:[%s1257 + $0x498] sm:$0xff] %v1846
                  %v1848 = vld [vmem:[%s1256 + $0x91c] sm:$0xff]
                  %1849 = vst [vmem:[%s1257 + $0x49c] sm:$0xff] %v1848
                  %v1850 = vld [vmem:[%s1256 + $0x920] sm:$0xff]
                  %1851 = vst [vmem:[%s1257 + $0x4a0] sm:$0xff] %v1850
                  %v1852 = vld [vmem:[%s1256 + $0x924] sm:$0xff]
                  %1853 = vst [vmem:[%s1257 + $0x4a4] sm:$0xff] %v1852
                  %v1854 = vld [vmem:[%s1256 + $0x928] sm:$0xff]
                  %1855 = vst [vmem:[%s1257 + $0x4a8] sm:$0xff] %v1854
                  %v1856 = vld [vmem:[%s1256 + $0x92c] sm:$0xff]
                  %1857 = vst [vmem:[%s1257 + $0x4ac] sm:$0xff] %v1856
                  %v1858 = vld [vmem:[%s1256 + $0x930] sm:$0xff]
                  %1859 = vst [vmem:[%s1257 + $0x4b0] sm:$0xff] %v1858
                  %v1860 = vld [vmem:[%s1256 + $0x934] sm:$0xff]
                  %1861 = vst [vmem:[%s1257 + $0x4b4] sm:$0xff] %v1860
                  %v1862 = vld [vmem:[%s1256 + $0x938] sm:$0xff]
                  %1863 = vst [vmem:[%s1257 + $0x4b8] sm:$0xff] %v1862
                  %v1864 = vld [vmem:[%s1256 + $0x93c] sm:$0xff]
                  %1865 = vst [vmem:[%s1257 + $0x4bc] sm:$0xff] %v1864
                  %v1866 = vld [vmem:[%s1256 + $0x980] sm:$0xff]
                  %1867 = vst [vmem:[%s1257 + $0x4c0] sm:$0xff] %v1866
                  %v1868 = vld [vmem:[%s1256 + $0x984] sm:$0xff]
                  %1869 = vst [vmem:[%s1257 + $0x4c4] sm:$0xff] %v1868
                  %v1870 = vld [vmem:[%s1256 + $0x988] sm:$0xff]
                  %1871 = vst [vmem:[%s1257 + $0x4c8] sm:$0xff] %v1870
                  %v1872 = vld [vmem:[%s1256 + $0x98c] sm:$0xff]
                  %1873 = vst [vmem:[%s1257 + $0x4cc] sm:$0xff] %v1872
                  %v1874 = vld [vmem:[%s1256 + $0x990] sm:$0xff]
                  %1875 = vst [vmem:[%s1257 + $0x4d0] sm:$0xff] %v1874
                  %v1876 = vld [vmem:[%s1256 + $0x994] sm:$0xff]
                  %1877 = vst [vmem:[%s1257 + $0x4d4] sm:$0xff] %v1876
                  %v1878 = vld [vmem:[%s1256 + $0x998] sm:$0xff]
                  %1879 = vst [vmem:[%s1257 + $0x4d8] sm:$0xff] %v1878
                  %v1880 = vld [vmem:[%s1256 + $0x99c] sm:$0xff]
                  %1881 = vst [vmem:[%s1257 + $0x4dc] sm:$0xff] %v1880
                  %v1882 = vld [vmem:[%s1256 + $0x9a0] sm:$0xff]
                  %1883 = vst [vmem:[%s1257 + $0x4e0] sm:$0xff] %v1882
                  %v1884 = vld [vmem:[%s1256 + $0x9a4] sm:$0xff]
                  %1885 = vst [vmem:[%s1257 + $0x4e4] sm:$0xff] %v1884
                  %v1886 = vld [vmem:[%s1256 + $0x9a8] sm:$0xff]
                  %1887 = vst [vmem:[%s1257 + $0x4e8] sm:$0xff] %v1886
                  %v1888 = vld [vmem:[%s1256 + $0x9ac] sm:$0xff]
                  %1889 = vst [vmem:[%s1257 + $0x4ec] sm:$0xff] %v1888
                  %v1890 = vld [vmem:[%s1256 + $0x9b0] sm:$0xff]
                  %1891 = vst [vmem:[%s1257 + $0x4f0] sm:$0xff] %v1890
                  %v1892 = vld [vmem:[%s1256 + $0x9b4] sm:$0xff]
                  %1893 = vst [vmem:[%s1257 + $0x4f4] sm:$0xff] %v1892
                  %v1894 = vld [vmem:[%s1256 + $0x9b8] sm:$0xff]
                  %1895 = vst [vmem:[%s1257 + $0x4f8] sm:$0xff] %v1894
                  %v1896 = vld [vmem:[%s1256 + $0x9bc] sm:$0xff]
                  %1897 = vst [vmem:[%s1257 + $0x4fc] sm:$0xff] %v1896
                  %v1898 = vld [vmem:[%s1256 + $0xa00] sm:$0xff]
                  %1899 = vst [vmem:[%s1257 + $0x500] sm:$0xff] %v1898
                  %v1900 = vld [vmem:[%s1256 + $0xa04] sm:$0xff]
                  %1901 = vst [vmem:[%s1257 + $0x504] sm:$0xff] %v1900
                  %v1902 = vld [vmem:[%s1256 + $0xa08] sm:$0xff]
                  %1903 = vst [vmem:[%s1257 + $0x508] sm:$0xff] %v1902
                  %v1904 = vld [vmem:[%s1256 + $0xa0c] sm:$0xff]
                  %1905 = vst [vmem:[%s1257 + $0x50c] sm:$0xff] %v1904
                  %v1906 = vld [vmem:[%s1256 + $0xa10] sm:$0xff]
                  %1907 = vst [vmem:[%s1257 + $0x510] sm:$0xff] %v1906
                  %v1908 = vld [vmem:[%s1256 + $0xa14] sm:$0xff]
                  %1909 = vst [vmem:[%s1257 + $0x514] sm:$0xff] %v1908
                  %v1910 = vld [vmem:[%s1256 + $0xa18] sm:$0xff]
                  %1911 = vst [vmem:[%s1257 + $0x518] sm:$0xff] %v1910
                  %v1912 = vld [vmem:[%s1256 + $0xa1c] sm:$0xff]
                  %1913 = vst [vmem:[%s1257 + $0x51c] sm:$0xff] %v1912
                  %v1914 = vld [vmem:[%s1256 + $0xa20] sm:$0xff]
                  %1915 = vst [vmem:[%s1257 + $0x520] sm:$0xff] %v1914
                  %v1916 = vld [vmem:[%s1256 + $0xa24] sm:$0xff]
                  %1917 = vst [vmem:[%s1257 + $0x524] sm:$0xff] %v1916
                  %v1918 = vld [vmem:[%s1256 + $0xa28] sm:$0xff]
                  %1919 = vst [vmem:[%s1257 + $0x528] sm:$0xff] %v1918
                  %v1920 = vld [vmem:[%s1256 + $0xa2c] sm:$0xff]
                  %1921 = vst [vmem:[%s1257 + $0x52c] sm:$0xff] %v1920
                  %v1922 = vld [vmem:[%s1256 + $0xa30] sm:$0xff]
                  %1923 = vst [vmem:[%s1257 + $0x530] sm:$0xff] %v1922
                  %v1924 = vld [vmem:[%s1256 + $0xa34] sm:$0xff]
                  %1925 = vst [vmem:[%s1257 + $0x534] sm:$0xff] %v1924
                  %v1926 = vld [vmem:[%s1256 + $0xa38] sm:$0xff]
                  %1927 = vst [vmem:[%s1257 + $0x538] sm:$0xff] %v1926
                  %v1928 = vld [vmem:[%s1256 + $0xa3c] sm:$0xff]
                  %1929 = vst [vmem:[%s1257 + $0x53c] sm:$0xff] %v1928
                  %v1930 = vld [vmem:[%s1256 + $0xa80] sm:$0xff]
                  %1931 = vst [vmem:[%s1257 + $0x540] sm:$0xff] %v1930
                  %v1932 = vld [vmem:[%s1256 + $0xa84] sm:$0xff]
                  %1933 = vst [vmem:[%s1257 + $0x544] sm:$0xff] %v1932
                  %v1934 = vld [vmem:[%s1256 + $0xa88] sm:$0xff]
                  %1935 = vst [vmem:[%s1257 + $0x548] sm:$0xff] %v1934
                  %v1936 = vld [vmem:[%s1256 + $0xa8c] sm:$0xff]
                  %1937 = vst [vmem:[%s1257 + $0x54c] sm:$0xff] %v1936
                  %v1938 = vld [vmem:[%s1256 + $0xa90] sm:$0xff]
                  %1939 = vst [vmem:[%s1257 + $0x550] sm:$0xff] %v1938
                  %v1940 = vld [vmem:[%s1256 + $0xa94] sm:$0xff]
                  %1941 = vst [vmem:[%s1257 + $0x554] sm:$0xff] %v1940
                  %v1942 = vld [vmem:[%s1256 + $0xa98] sm:$0xff]
                  %1943 = vst [vmem:[%s1257 + $0x558] sm:$0xff] %v1942
                  %v1944 = vld [vmem:[%s1256 + $0xa9c] sm:$0xff]
                  %1945 = vst [vmem:[%s1257 + $0x55c] sm:$0xff] %v1944
                  %v1946 = vld [vmem:[%s1256 + $0xaa0] sm:$0xff]
                  %1947 = vst [vmem:[%s1257 + $0x560] sm:$0xff] %v1946
                  %v1948 = vld [vmem:[%s1256 + $0xaa4] sm:$0xff]
                  %1949 = vst [vmem:[%s1257 + $0x564] sm:$0xff] %v1948
                  %v1950 = vld [vmem:[%s1256 + $0xaa8] sm:$0xff]
                  %1951 = vst [vmem:[%s1257 + $0x568] sm:$0xff] %v1950
                  %v1952 = vld [vmem:[%s1256 + $0xaac] sm:$0xff]
                  %1953 = vst [vmem:[%s1257 + $0x56c] sm:$0xff] %v1952
                  %v1954 = vld [vmem:[%s1256 + $0xab0] sm:$0xff]
                  %1955 = vst [vmem:[%s1257 + $0x570] sm:$0xff] %v1954
                  %v1956 = vld [vmem:[%s1256 + $0xab4] sm:$0xff]
                  %1957 = vst [vmem:[%s1257 + $0x574] sm:$0xff] %v1956
                  %v1958 = vld [vmem:[%s1256 + $0xab8] sm:$0xff]
                  %1959 = vst [vmem:[%s1257 + $0x578] sm:$0xff] %v1958
                  %v1960 = vld [vmem:[%s1256 + $0xabc] sm:$0xff]
                  %1961 = vst [vmem:[%s1257 + $0x57c] sm:$0xff] %v1960
                  %v1962 = vld [vmem:[%s1256 + $0xb00] sm:$0xff]
                  %1963 = vst [vmem:[%s1257 + $0x580] sm:$0xff] %v1962
                  %v1964 = vld [vmem:[%s1256 + $0xb04] sm:$0xff]
                  %1965 = vst [vmem:[%s1257 + $0x584] sm:$0xff] %v1964
                  %v1966 = vld [vmem:[%s1256 + $0xb08] sm:$0xff]
                  %1967 = vst [vmem:[%s1257 + $0x588] sm:$0xff] %v1966
                  %v1968 = vld [vmem:[%s1256 + $0xb0c] sm:$0xff]
                  %1969 = vst [vmem:[%s1257 + $0x58c] sm:$0xff] %v1968
                  %v1970 = vld [vmem:[%s1256 + $0xb10] sm:$0xff]
                  %1971 = vst [vmem:[%s1257 + $0x590] sm:$0xff] %v1970
                  %v1972 = vld [vmem:[%s1256 + $0xb14] sm:$0xff]
                  %1973 = vst [vmem:[%s1257 + $0x594] sm:$0xff] %v1972
                  %v1974 = vld [vmem:[%s1256 + $0xb18] sm:$0xff]
                  %1975 = vst [vmem:[%s1257 + $0x598] sm:$0xff] %v1974
                  %v1976 = vld [vmem:[%s1256 + $0xb1c] sm:$0xff]
                  %1977 = vst [vmem:[%s1257 + $0x59c] sm:$0xff] %v1976
                  %v1978 = vld [vmem:[%s1256 + $0xb20] sm:$0xff]
                  %1979 = vst [vmem:[%s1257 + $0x5a0] sm:$0xff] %v1978
                  %v1980 = vld [vmem:[%s1256 + $0xb24] sm:$0xff]
                  %1981 = vst [vmem:[%s1257 + $0x5a4] sm:$0xff] %v1980
                  %v1982 = vld [vmem:[%s1256 + $0xb28] sm:$0xff]
                  %1983 = vst [vmem:[%s1257 + $0x5a8] sm:$0xff] %v1982
                  %v1984 = vld [vmem:[%s1256 + $0xb2c] sm:$0xff]
                  %1985 = vst [vmem:[%s1257 + $0x5ac] sm:$0xff] %v1984
                  %v1986 = vld [vmem:[%s1256 + $0xb30] sm:$0xff]
                  %1987 = vst [vmem:[%s1257 + $0x5b0] sm:$0xff] %v1986
                  %v1988 = vld [vmem:[%s1256 + $0xb34] sm:$0xff]
                  %1989 = vst [vmem:[%s1257 + $0x5b4] sm:$0xff] %v1988
                  %v1990 = vld [vmem:[%s1256 + $0xb38] sm:$0xff]
                  %1991 = vst [vmem:[%s1257 + $0x5b8] sm:$0xff] %v1990
                  %v1992 = vld [vmem:[%s1256 + $0xb3c] sm:$0xff]
                  %1993 = vst [vmem:[%s1257 + $0x5bc] sm:$0xff] %v1992
                  %v1994 = vld [vmem:[%s1256 + $0xb80] sm:$0xff]
                  %1995 = vst [vmem:[%s1257 + $0x5c0] sm:$0xff] %v1994
                  %v1996 = vld [vmem:[%s1256 + $0xb84] sm:$0xff]
                  %1997 = vst [vmem:[%s1257 + $0x5c4] sm:$0xff] %v1996
                  %v1998 = vld [vmem:[%s1256 + $0xb88] sm:$0xff]
                  %1999 = vst [vmem:[%s1257 + $0x5c8] sm:$0xff] %v1998
                  %v2000 = vld [vmem:[%s1256 + $0xb8c] sm:$0xff]
                  %2001 = vst [vmem:[%s1257 + $0x5cc] sm:$0xff] %v2000
                  %v2002 = vld [vmem:[%s1256 + $0xb90] sm:$0xff]
                  %2003 = vst [vmem:[%s1257 + $0x5d0] sm:$0xff] %v2002
                  %v2004 = vld [vmem:[%s1256 + $0xb94] sm:$0xff]
                  %2005 = vst [vmem:[%s1257 + $0x5d4] sm:$0xff] %v2004
                  %v2006 = vld [vmem:[%s1256 + $0xb98] sm:$0xff]
                  %2007 = vst [vmem:[%s1257 + $0x5d8] sm:$0xff] %v2006
                  %v2008 = vld [vmem:[%s1256 + $0xb9c] sm:$0xff]
                  %2009 = vst [vmem:[%s1257 + $0x5dc] sm:$0xff] %v2008
                  %v2010 = vld [vmem:[%s1256 + $0xba0] sm:$0xff]
                  %2011 = vst [vmem:[%s1257 + $0x5e0] sm:$0xff] %v2010
                  %v2012 = vld [vmem:[%s1256 + $0xba4] sm:$0xff]
                  %2013 = vst [vmem:[%s1257 + $0x5e4] sm:$0xff] %v2012
                  %v2014 = vld [vmem:[%s1256 + $0xba8] sm:$0xff]
                  %2015 = vst [vmem:[%s1257 + $0x5e8] sm:$0xff] %v2014
                  %v2016 = vld [vmem:[%s1256 + $0xbac] sm:$0xff]
                  %2017 = vst [vmem:[%s1257 + $0x5ec] sm:$0xff] %v2016
                  %v2018 = vld [vmem:[%s1256 + $0xbb0] sm:$0xff]
                  %2019 = vst [vmem:[%s1257 + $0x5f0] sm:$0xff] %v2018
                  %v2020 = vld [vmem:[%s1256 + $0xbb4] sm:$0xff]
                  %2021 = vst [vmem:[%s1257 + $0x5f4] sm:$0xff] %v2020
                  %v2022 = vld [vmem:[%s1256 + $0xbb8] sm:$0xff]
                  %2023 = vst [vmem:[%s1257 + $0x5f8] sm:$0xff] %v2022
                  %v2024 = vld [vmem:[%s1256 + $0xbbc] sm:$0xff]
                  %2025 = vst [vmem:[%s1257 + $0x5fc] sm:$0xff] %v2024
                  %v2026 = vld [vmem:[%s1256 + $0xc00] sm:$0xff]
                  %2027 = vst [vmem:[%s1257 + $0x600] sm:$0xff] %v2026
                  %v2028 = vld [vmem:[%s1256 + $0xc04] sm:$0xff]
                  %2029 = vst [vmem:[%s1257 + $0x604] sm:$0xff] %v2028
                  %v2030 = vld [vmem:[%s1256 + $0xc08] sm:$0xff]
                  %2031 = vst [vmem:[%s1257 + $0x608] sm:$0xff] %v2030
                  %v2032 = vld [vmem:[%s1256 + $0xc0c] sm:$0xff]
                  %2033 = vst [vmem:[%s1257 + $0x60c] sm:$0xff] %v2032
                  %v2034 = vld [vmem:[%s1256 + $0xc10] sm:$0xff]
                  %2035 = vst [vmem:[%s1257 + $0x610] sm:$0xff] %v2034
                  %v2036 = vld [vmem:[%s1256 + $0xc14] sm:$0xff]
                  %2037 = vst [vmem:[%s1257 + $0x614] sm:$0xff] %v2036
                  %v2038 = vld [vmem:[%s1256 + $0xc18] sm:$0xff]
                  %2039 = vst [vmem:[%s1257 + $0x618] sm:$0xff] %v2038
                  %v2040 = vld [vmem:[%s1256 + $0xc1c] sm:$0xff]
                  %2041 = vst [vmem:[%s1257 + $0x61c] sm:$0xff] %v2040
                  %v2042 = vld [vmem:[%s1256 + $0xc20] sm:$0xff]
                  %2043 = vst [vmem:[%s1257 + $0x620] sm:$0xff] %v2042
                  %v2044 = vld [vmem:[%s1256 + $0xc24] sm:$0xff]
                  %2045 = vst [vmem:[%s1257 + $0x624] sm:$0xff] %v2044
                  %v2046 = vld [vmem:[%s1256 + $0xc28] sm:$0xff]
                  %2047 = vst [vmem:[%s1257 + $0x628] sm:$0xff] %v2046
                  %v2048 = vld [vmem:[%s1256 + $0xc2c] sm:$0xff]
                  %2049 = vst [vmem:[%s1257 + $0x62c] sm:$0xff] %v2048
                  %v2050 = vld [vmem:[%s1256 + $0xc30] sm:$0xff]
                  %2051 = vst [vmem:[%s1257 + $0x630] sm:$0xff] %v2050
                  %v2052 = vld [vmem:[%s1256 + $0xc34] sm:$0xff]
                  %2053 = vst [vmem:[%s1257 + $0x634] sm:$0xff] %v2052
                  %v2054 = vld [vmem:[%s1256 + $0xc38] sm:$0xff]
                  %2055 = vst [vmem:[%s1257 + $0x638] sm:$0xff] %v2054
                  %v2056 = vld [vmem:[%s1256 + $0xc3c] sm:$0xff]
                  %2057 = vst [vmem:[%s1257 + $0x63c] sm:$0xff] %v2056
                  %v2058 = vld [vmem:[%s1256 + $0xc80] sm:$0xff]
                  %2059 = vst [vmem:[%s1257 + $0x640] sm:$0xff] %v2058
                  %v2060 = vld [vmem:[%s1256 + $0xc84] sm:$0xff]
                  %2061 = vst [vmem:[%s1257 + $0x644] sm:$0xff] %v2060
                  %v2062 = vld [vmem:[%s1256 + $0xc88] sm:$0xff]
                  %2063 = vst [vmem:[%s1257 + $0x648] sm:$0xff] %v2062
                  %v2064 = vld [vmem:[%s1256 + $0xc8c] sm:$0xff]
                  %2065 = vst [vmem:[%s1257 + $0x64c] sm:$0xff] %v2064
                  %v2066 = vld [vmem:[%s1256 + $0xc90] sm:$0xff]
                  %2067 = vst [vmem:[%s1257 + $0x650] sm:$0xff] %v2066
                  %v2068 = vld [vmem:[%s1256 + $0xc94] sm:$0xff]
                  %2069 = vst [vmem:[%s1257 + $0x654] sm:$0xff] %v2068
                  %v2070 = vld [vmem:[%s1256 + $0xc98] sm:$0xff]
                  %2071 = vst [vmem:[%s1257 + $0x658] sm:$0xff] %v2070
                  %v2072 = vld [vmem:[%s1256 + $0xc9c] sm:$0xff]
                  %2073 = vst [vmem:[%s1257 + $0x65c] sm:$0xff] %v2072
                  %v2074 = vld [vmem:[%s1256 + $0xca0] sm:$0xff]
                  %2075 = vst [vmem:[%s1257 + $0x660] sm:$0xff] %v2074
                  %v2076 = vld [vmem:[%s1256 + $0xca4] sm:$0xff]
                  %2077 = vst [vmem:[%s1257 + $0x664] sm:$0xff] %v2076
                  %v2078 = vld [vmem:[%s1256 + $0xca8] sm:$0xff]
                  %2079 = vst [vmem:[%s1257 + $0x668] sm:$0xff] %v2078
                  %v2080 = vld [vmem:[%s1256 + $0xcac] sm:$0xff]
                  %2081 = vst [vmem:[%s1257 + $0x66c] sm:$0xff] %v2080
                  %v2082 = vld [vmem:[%s1256 + $0xcb0] sm:$0xff]
                  %2083 = vst [vmem:[%s1257 + $0x670] sm:$0xff] %v2082
                  %v2084 = vld [vmem:[%s1256 + $0xcb4] sm:$0xff]
                  %2085 = vst [vmem:[%s1257 + $0x674] sm:$0xff] %v2084
                  %v2086 = vld [vmem:[%s1256 + $0xcb8] sm:$0xff]
                  %2087 = vst [vmem:[%s1257 + $0x678] sm:$0xff] %v2086
                  %v2088 = vld [vmem:[%s1256 + $0xcbc] sm:$0xff]
                  %2089 = vst [vmem:[%s1257 + $0x67c] sm:$0xff] %v2088
                  %v2090 = vld [vmem:[%s1256 + $0xd00] sm:$0xff]
                  %2091 = vst [vmem:[%s1257 + $0x680] sm:$0xff] %v2090
                  %v2092 = vld [vmem:[%s1256 + $0xd04] sm:$0xff]
                  %2093 = vst [vmem:[%s1257 + $0x684] sm:$0xff] %v2092
                  %v2094 = vld [vmem:[%s1256 + $0xd08] sm:$0xff]
                  %2095 = vst [vmem:[%s1257 + $0x688] sm:$0xff] %v2094
                  %v2096 = vld [vmem:[%s1256 + $0xd0c] sm:$0xff]
                  %2097 = vst [vmem:[%s1257 + $0x68c] sm:$0xff] %v2096
                  %v2098 = vld [vmem:[%s1256 + $0xd10] sm:$0xff]
                  %2099 = vst [vmem:[%s1257 + $0x690] sm:$0xff] %v2098
                  %v2100 = vld [vmem:[%s1256 + $0xd14] sm:$0xff]
                  %2101 = vst [vmem:[%s1257 + $0x694] sm:$0xff] %v2100
                  %v2102 = vld [vmem:[%s1256 + $0xd18] sm:$0xff]
                  %2103 = vst [vmem:[%s1257 + $0x698] sm:$0xff] %v2102
                  %v2104 = vld [vmem:[%s1256 + $0xd1c] sm:$0xff]
                  %2105 = vst [vmem:[%s1257 + $0x69c] sm:$0xff] %v2104
                  %v2106 = vld [vmem:[%s1256 + $0xd20] sm:$0xff]
                  %2107 = vst [vmem:[%s1257 + $0x6a0] sm:$0xff] %v2106
                  %v2108 = vld [vmem:[%s1256 + $0xd24] sm:$0xff]
                  %2109 = vst [vmem:[%s1257 + $0x6a4] sm:$0xff] %v2108
                  %v2110 = vld [vmem:[%s1256 + $0xd28] sm:$0xff]
                  %2111 = vst [vmem:[%s1257 + $0x6a8] sm:$0xff] %v2110
                  %v2112 = vld [vmem:[%s1256 + $0xd2c] sm:$0xff]
                  %2113 = vst [vmem:[%s1257 + $0x6ac] sm:$0xff] %v2112
                  %v2114 = vld [vmem:[%s1256 + $0xd30] sm:$0xff]
                  %2115 = vst [vmem:[%s1257 + $0x6b0] sm:$0xff] %v2114
                  %v2116 = vld [vmem:[%s1256 + $0xd34] sm:$0xff]
                  %2117 = vst [vmem:[%s1257 + $0x6b4] sm:$0xff] %v2116
                  %v2118 = vld [vmem:[%s1256 + $0xd38] sm:$0xff]
                  %2119 = vst [vmem:[%s1257 + $0x6b8] sm:$0xff] %v2118
                  %v2120 = vld [vmem:[%s1256 + $0xd3c] sm:$0xff]
                  %2121 = vst [vmem:[%s1257 + $0x6bc] sm:$0xff] %v2120
                  %v2122 = vld [vmem:[%s1256 + $0xd80] sm:$0xff]
                  %2123 = vst [vmem:[%s1257 + $0x6c0] sm:$0xff] %v2122
                  %v2124 = vld [vmem:[%s1256 + $0xd84] sm:$0xff]
                  %2125 = vst [vmem:[%s1257 + $0x6c4] sm:$0xff] %v2124
                  %v2126 = vld [vmem:[%s1256 + $0xd88] sm:$0xff]
                  %2127 = vst [vmem:[%s1257 + $0x6c8] sm:$0xff] %v2126
                  %v2128 = vld [vmem:[%s1256 + $0xd8c] sm:$0xff]
                  %2129 = vst [vmem:[%s1257 + $0x6cc] sm:$0xff] %v2128
                  %v2130 = vld [vmem:[%s1256 + $0xd90] sm:$0xff]
                  %2131 = vst [vmem:[%s1257 + $0x6d0] sm:$0xff] %v2130
                  %v2132 = vld [vmem:[%s1256 + $0xd94] sm:$0xff]
                  %2133 = vst [vmem:[%s1257 + $0x6d4] sm:$0xff] %v2132
                  %v2134 = vld [vmem:[%s1256 + $0xd98] sm:$0xff]
                  %2135 = vst [vmem:[%s1257 + $0x6d8] sm:$0xff] %v2134
                  %v2136 = vld [vmem:[%s1256 + $0xd9c] sm:$0xff]
                  %2137 = vst [vmem:[%s1257 + $0x6dc] sm:$0xff] %v2136
                  %v2138 = vld [vmem:[%s1256 + $0xda0] sm:$0xff]
                  %2139 = vst [vmem:[%s1257 + $0x6e0] sm:$0xff] %v2138
                  %v2140 = vld [vmem:[%s1256 + $0xda4] sm:$0xff]
                  %2141 = vst [vmem:[%s1257 + $0x6e4] sm:$0xff] %v2140
                  %v2142 = vld [vmem:[%s1256 + $0xda8] sm:$0xff]
                  %2143 = vst [vmem:[%s1257 + $0x6e8] sm:$0xff] %v2142
                  %v2144 = vld [vmem:[%s1256 + $0xdac] sm:$0xff]
                  %2145 = vst [vmem:[%s1257 + $0x6ec] sm:$0xff] %v2144
                  %v2146 = vld [vmem:[%s1256 + $0xdb0] sm:$0xff]
                  %2147 = vst [vmem:[%s1257 + $0x6f0] sm:$0xff] %v2146
                  %v2148 = vld [vmem:[%s1256 + $0xdb4] sm:$0xff]
                  %2149 = vst [vmem:[%s1257 + $0x6f4] sm:$0xff] %v2148
                  %v2150 = vld [vmem:[%s1256 + $0xdb8] sm:$0xff]
                  %2151 = vst [vmem:[%s1257 + $0x6f8] sm:$0xff] %v2150
                  %v2152 = vld [vmem:[%s1256 + $0xdbc] sm:$0xff]
                  %2153 = vst [vmem:[%s1257 + $0x6fc] sm:$0xff] %v2152
                  %v2154 = vld [vmem:[%s1256 + $0xe00] sm:$0xff]
                  %2155 = vst [vmem:[%s1257 + $0x700] sm:$0xff] %v2154
                  %v2156 = vld [vmem:[%s1256 + $0xe04] sm:$0xff]
                  %2157 = vst [vmem:[%s1257 + $0x704] sm:$0xff] %v2156
                  %v2158 = vld [vmem:[%s1256 + $0xe08] sm:$0xff]
                  %2159 = vst [vmem:[%s1257 + $0x708] sm:$0xff] %v2158
                  %v2160 = vld [vmem:[%s1256 + $0xe0c] sm:$0xff]
                  %2161 = vst [vmem:[%s1257 + $0x70c] sm:$0xff] %v2160
                  %v2162 = vld [vmem:[%s1256 + $0xe10] sm:$0xff]
                  %2163 = vst [vmem:[%s1257 + $0x710] sm:$0xff] %v2162
                  %v2164 = vld [vmem:[%s1256 + $0xe14] sm:$0xff]
                  %2165 = vst [vmem:[%s1257 + $0x714] sm:$0xff] %v2164
                  %v2166 = vld [vmem:[%s1256 + $0xe18] sm:$0xff]
                  %2167 = vst [vmem:[%s1257 + $0x718] sm:$0xff] %v2166
                  %v2168 = vld [vmem:[%s1256 + $0xe1c] sm:$0xff]
                  %2169 = vst [vmem:[%s1257 + $0x71c] sm:$0xff] %v2168
                  %v2170 = vld [vmem:[%s1256 + $0xe20] sm:$0xff]
                  %2171 = vst [vmem:[%s1257 + $0x720] sm:$0xff] %v2170
                  %v2172 = vld [vmem:[%s1256 + $0xe24] sm:$0xff]
                  %2173 = vst [vmem:[%s1257 + $0x724] sm:$0xff] %v2172
                  %v2174 = vld [vmem:[%s1256 + $0xe28] sm:$0xff]
                  %2175 = vst [vmem:[%s1257 + $0x728] sm:$0xff] %v2174
                  %v2176 = vld [vmem:[%s1256 + $0xe2c] sm:$0xff]
                  %2177 = vst [vmem:[%s1257 + $0x72c] sm:$0xff] %v2176
                  %v2178 = vld [vmem:[%s1256 + $0xe30] sm:$0xff]
                  %2179 = vst [vmem:[%s1257 + $0x730] sm:$0xff] %v2178
                  %v2180 = vld [vmem:[%s1256 + $0xe34] sm:$0xff]
                  %2181 = vst [vmem:[%s1257 + $0x734] sm:$0xff] %v2180
                  %v2182 = vld [vmem:[%s1256 + $0xe38] sm:$0xff]
                  %2183 = vst [vmem:[%s1257 + $0x738] sm:$0xff] %v2182
                  %v2184 = vld [vmem:[%s1256 + $0xe3c] sm:$0xff]
                  %2185 = vst [vmem:[%s1257 + $0x73c] sm:$0xff] %v2184
                  %v2186 = vld [vmem:[%s1256 + $0xe80] sm:$0xff]
                  %2187 = vst [vmem:[%s1257 + $0x740] sm:$0xff] %v2186
                  %v2188 = vld [vmem:[%s1256 + $0xe84] sm:$0xff]
                  %2189 = vst [vmem:[%s1257 + $0x744] sm:$0xff] %v2188
                  %v2190 = vld [vmem:[%s1256 + $0xe88] sm:$0xff]
                  %2191 = vst [vmem:[%s1257 + $0x748] sm:$0xff] %v2190
                  %v2192 = vld [vmem:[%s1256 + $0xe8c] sm:$0xff]
                  %2193 = vst [vmem:[%s1257 + $0x74c] sm:$0xff] %v2192
                  %v2194 = vld [vmem:[%s1256 + $0xe90] sm:$0xff]
                  %2195 = vst [vmem:[%s1257 + $0x750] sm:$0xff] %v2194
                  %v2196 = vld [vmem:[%s1256 + $0xe94] sm:$0xff]
                  %2197 = vst [vmem:[%s1257 + $0x754] sm:$0xff] %v2196
                  %v2198 = vld [vmem:[%s1256 + $0xe98] sm:$0xff]
                  %2199 = vst [vmem:[%s1257 + $0x758] sm:$0xff] %v2198
                  %v2200 = vld [vmem:[%s1256 + $0xe9c] sm:$0xff]
                  %2201 = vst [vmem:[%s1257 + $0x75c] sm:$0xff] %v2200
                  %v2202 = vld [vmem:[%s1256 + $0xea0] sm:$0xff]
                  %2203 = vst [vmem:[%s1257 + $0x760] sm:$0xff] %v2202
                  %v2204 = vld [vmem:[%s1256 + $0xea4] sm:$0xff]
                  %2205 = vst [vmem:[%s1257 + $0x764] sm:$0xff] %v2204
                  %v2206 = vld [vmem:[%s1256 + $0xea8] sm:$0xff]
                  %2207 = vst [vmem:[%s1257 + $0x768] sm:$0xff] %v2206
                  %v2208 = vld [vmem:[%s1256 + $0xeac] sm:$0xff]
                  %2209 = vst [vmem:[%s1257 + $0x76c] sm:$0xff] %v2208
                  %v2210 = vld [vmem:[%s1256 + $0xeb0] sm:$0xff]
                  %2211 = vst [vmem:[%s1257 + $0x770] sm:$0xff] %v2210
                  %v2212 = vld [vmem:[%s1256 + $0xeb4] sm:$0xff]
                  %2213 = vst [vmem:[%s1257 + $0x774] sm:$0xff] %v2212
                  %v2214 = vld [vmem:[%s1256 + $0xeb8] sm:$0xff]
                  %2215 = vst [vmem:[%s1257 + $0x778] sm:$0xff] %v2214
                  %v2216 = vld [vmem:[%s1256 + $0xebc] sm:$0xff]
                  %2217 = vst [vmem:[%s1257 + $0x77c] sm:$0xff] %v2216
                  %v2218 = vld [vmem:[%s1256 + $0xf00] sm:$0xff]
                  %2219 = vst [vmem:[%s1257 + $0x780] sm:$0xff] %v2218
                  %v2220 = vld [vmem:[%s1256 + $0xf04] sm:$0xff]
                  %2221 = vst [vmem:[%s1257 + $0x784] sm:$0xff] %v2220
                  %v2222 = vld [vmem:[%s1256 + $0xf08] sm:$0xff]
                  %2223 = vst [vmem:[%s1257 + $0x788] sm:$0xff] %v2222
                  %v2224 = vld [vmem:[%s1256 + $0xf0c] sm:$0xff]
                  %2225 = vst [vmem:[%s1257 + $0x78c] sm:$0xff] %v2224
                  %v2226 = vld [vmem:[%s1256 + $0xf10] sm:$0xff]
                  %2227 = vst [vmem:[%s1257 + $0x790] sm:$0xff] %v2226
                  %v2228 = vld [vmem:[%s1256 + $0xf14] sm:$0xff]
                  %2229 = vst [vmem:[%s1257 + $0x794] sm:$0xff] %v2228
                  %v2230 = vld [vmem:[%s1256 + $0xf18] sm:$0xff]
                  %2231 = vst [vmem:[%s1257 + $0x798] sm:$0xff] %v2230
                  %v2232 = vld [vmem:[%s1256 + $0xf1c] sm:$0xff]
                  %2233 = vst [vmem:[%s1257 + $0x79c] sm:$0xff] %v2232
                  %v2234 = vld [vmem:[%s1256 + $0xf20] sm:$0xff]
                  %2235 = vst [vmem:[%s1257 + $0x7a0] sm:$0xff] %v2234
                  %v2236 = vld [vmem:[%s1256 + $0xf24] sm:$0xff]
                  %2237 = vst [vmem:[%s1257 + $0x7a4] sm:$0xff] %v2236
                  %v2238 = vld [vmem:[%s1256 + $0xf28] sm:$0xff]
                  %2239 = vst [vmem:[%s1257 + $0x7a8] sm:$0xff] %v2238
                  %v2240 = vld [vmem:[%s1256 + $0xf2c] sm:$0xff]
                  %2241 = vst [vmem:[%s1257 + $0x7ac] sm:$0xff] %v2240
                  %v2242 = vld [vmem:[%s1256 + $0xf30] sm:$0xff]
                  %2243 = vst [vmem:[%s1257 + $0x7b0] sm:$0xff] %v2242
                  %v2244 = vld [vmem:[%s1256 + $0xf34] sm:$0xff]
                  %2245 = vst [vmem:[%s1257 + $0x7b4] sm:$0xff] %v2244
                  %v2246 = vld [vmem:[%s1256 + $0xf38] sm:$0xff]
                  %2247 = vst [vmem:[%s1257 + $0x7b8] sm:$0xff] %v2246
                  %v2248 = vld [vmem:[%s1256 + $0xf3c] sm:$0xff]
                  %2249 = vst [vmem:[%s1257 + $0x7bc] sm:$0xff] %v2248
                  %v2250 = vld [vmem:[%s1256 + $0xf80] sm:$0xff]
                  %2251 = vst [vmem:[%s1257 + $0x7c0] sm:$0xff] %v2250
                  %v2252 = vld [vmem:[%s1256 + $0xf84] sm:$0xff]
                  %2253 = vst [vmem:[%s1257 + $0x7c4] sm:$0xff] %v2252
                  %v2254 = vld [vmem:[%s1256 + $0xf88] sm:$0xff]
                  %2255 = vst [vmem:[%s1257 + $0x7c8] sm:$0xff] %v2254
                  %v2256 = vld [vmem:[%s1256 + $0xf8c] sm:$0xff]
                  %2257 = vst [vmem:[%s1257 + $0x7cc] sm:$0xff] %v2256
                  %v2258 = vld [vmem:[%s1256 + $0xf90] sm:$0xff]
                  %2259 = vst [vmem:[%s1257 + $0x7d0] sm:$0xff] %v2258
                  %v2260 = vld [vmem:[%s1256 + $0xf94] sm:$0xff]
                  %2261 = vst [vmem:[%s1257 + $0x7d4] sm:$0xff] %v2260
                  %v2262 = vld [vmem:[%s1256 + $0xf98] sm:$0xff]
                  %2263 = vst [vmem:[%s1257 + $0x7d8] sm:$0xff] %v2262
                  %v2264 = vld [vmem:[%s1256 + $0xf9c] sm:$0xff]
                  %2265 = vst [vmem:[%s1257 + $0x7dc] sm:$0xff] %v2264
                  %v2266 = vld [vmem:[%s1256 + $0xfa0] sm:$0xff]
                  %2267 = vst [vmem:[%s1257 + $0x7e0] sm:$0xff] %v2266
                  %v2268 = vld [vmem:[%s1256 + $0xfa4] sm:$0xff]
                  %2269 = vst [vmem:[%s1257 + $0x7e4] sm:$0xff] %v2268
                  %v2270 = vld [vmem:[%s1256 + $0xfa8] sm:$0xff]
                  %2271 = vst [vmem:[%s1257 + $0x7e8] sm:$0xff] %v2270
                  %v2272 = vld [vmem:[%s1256 + $0xfac] sm:$0xff]
                  %2273 = vst [vmem:[%s1257 + $0x7ec] sm:$0xff] %v2272
                  %v2274 = vld [vmem:[%s1256 + $0xfb0] sm:$0xff]
                  %2275 = vst [vmem:[%s1257 + $0x7f0] sm:$0xff] %v2274
                  %v2276 = vld [vmem:[%s1256 + $0xfb4] sm:$0xff]
                  %2277 = vst [vmem:[%s1257 + $0x7f4] sm:$0xff] %v2276
                  %v2278 = vld [vmem:[%s1256 + $0xfb8] sm:$0xff]
                  %2279 = vst [vmem:[%s1257 + $0x7f8] sm:$0xff] %v2278
                  %v2280 = vld [vmem:[%s1256 + $0xfbc] sm:$0xff]
                  %2281 = vst [vmem:[%s1257 + $0x7fc] sm:$0xff] %v2280
                  %s2282 = sadd.s32 1, %s1255
                  %p2283 = scmp.ge.s32.totalorder %s2282, 0
                  %s2284 = scalar_select %p2283, 0, %s2282
                  %s2285 = smul.u32 %s2284, 8
                  %s2286 = smul.u32 %s2284, 8
                  %s2287 = scalar_lea.vmem %s206, %s2285
                  %s2288 = scalar_lea.vmem %s200, %s2286 [#allocation4]
                $region52: #{tpu_custom_call.1} parent=46 // loop_footer
                  %s1254 = sadd.s32 1, %s1250
                $region53: #{tpu_custom_call.1} parent=46 // loop_footer_branch
                  %1249 = sbr.rel target = $region49
                $region54: #{tpu_custom_call.1} parent=46 // loop_exit
                  _
              $region47: #{tpu_custom_call.1} parent=31 // pred_fallthru
                _
              // Predicated region
              $region55: #{tpu_custom_call.1} parent=31 // pred_check
                _
              $region56: #{tpu_custom_call.1} parent=31 // pred_check_branch
                %2290 = sbr.rel (0) target = $region58
              $region57: #{tpu_custom_call.1} parent=31 // pred_region
                loop: start=0, step=1, limit=0
                $region59: #{tpu_custom_call.1} parent=57 // loop_pre_header
                  _
                $region60: #{tpu_custom_call.1} parent=57 // loop_header
                  %s2292 = sphi 0, %s2296
                  %p2293 = scmp.ge.s32.totalorder %s2292, 0
                  %s2297 = sphi 0, %s3326
                  %s2298 = sphi %s206, %s3329
                  %s2299 = sphi %s200, %s3330
                $region61: #{tpu_custom_call.1} parent=57 // loop_header_branch
                  %2295 = sbr.rel (%p2293) target = $region65
                $region62: #{tpu_custom_call.1} parent=57 // loop_body
                  %v2300 = vld [vmem:[%s2298] sm:$0xff]
                  %2301 = vst [vmem:[%s2299] sm:$0xff] %v2300
                  %v2302 = vld [vmem:[%s2298 + $0x4] sm:$0xff]
                  %2303 = vst [vmem:[%s2299 + $0x4] sm:$0xff] %v2302
                  %v2304 = vld [vmem:[%s2298 + $0x8] sm:$0xff]
                  %2305 = vst [vmem:[%s2299 + $0x8] sm:$0xff] %v2304
                  %v2306 = vld [vmem:[%s2298 + $0xc] sm:$0xff]
                  %2307 = vst [vmem:[%s2299 + $0xc] sm:$0xff] %v2306
                  %v2308 = vld [vmem:[%s2298 + $0x10] sm:$0xff]
                  %2309 = vst [vmem:[%s2299 + $0x10] sm:$0xff] %v2308
                  %v2310 = vld [vmem:[%s2298 + $0x14] sm:$0xff]
                  %2311 = vst [vmem:[%s2299 + $0x14] sm:$0xff] %v2310
                  %v2312 = vld [vmem:[%s2298 + $0x18] sm:$0xff]
                  %2313 = vst [vmem:[%s2299 + $0x18] sm:$0xff] %v2312
                  %v2314 = vld [vmem:[%s2298 + $0x1c] sm:$0xff]
                  %2315 = vst [vmem:[%s2299 + $0x1c] sm:$0xff] %v2314
                  %v2316 = vld [vmem:[%s2298 + $0x20] sm:$0xff]
                  %2317 = vst [vmem:[%s2299 + $0x20] sm:$0xff] %v2316
                  %v2318 = vld [vmem:[%s2298 + $0x24] sm:$0xff]
                  %2319 = vst [vmem:[%s2299 + $0x24] sm:$0xff] %v2318
                  %v2320 = vld [vmem:[%s2298 + $0x28] sm:$0xff]
                  %2321 = vst [vmem:[%s2299 + $0x28] sm:$0xff] %v2320
                  %v2322 = vld [vmem:[%s2298 + $0x2c] sm:$0xff]
                  %2323 = vst [vmem:[%s2299 + $0x2c] sm:$0xff] %v2322
                  %v2324 = vld [vmem:[%s2298 + $0x30] sm:$0xff]
                  %2325 = vst [vmem:[%s2299 + $0x30] sm:$0xff] %v2324
                  %v2326 = vld [vmem:[%s2298 + $0x34] sm:$0xff]
                  %2327 = vst [vmem:[%s2299 + $0x34] sm:$0xff] %v2326
                  %v2328 = vld [vmem:[%s2298 + $0x38] sm:$0xff]
                  %2329 = vst [vmem:[%s2299 + $0x38] sm:$0xff] %v2328
                  %v2330 = vld [vmem:[%s2298 + $0x3c] sm:$0xff]
                  %2331 = vst [vmem:[%s2299 + $0x3c] sm:$0xff] %v2330
                  %v2332 = vld [vmem:[%s2298 + $0x80] sm:$0xff]
                  %2333 = vst [vmem:[%s2299 + $0x40] sm:$0xff] %v2332
                  %v2334 = vld [vmem:[%s2298 + $0x84] sm:$0xff]
                  %2335 = vst [vmem:[%s2299 + $0x44] sm:$0xff] %v2334
                  %v2336 = vld [vmem:[%s2298 + $0x88] sm:$0xff]
                  %2337 = vst [vmem:[%s2299 + $0x48] sm:$0xff] %v2336
                  %v2338 = vld [vmem:[%s2298 + $0x8c] sm:$0xff]
                  %2339 = vst [vmem:[%s2299 + $0x4c] sm:$0xff] %v2338
                  %v2340 = vld [vmem:[%s2298 + $0x90] sm:$0xff]
                  %2341 = vst [vmem:[%s2299 + $0x50] sm:$0xff] %v2340
                  %v2342 = vld [vmem:[%s2298 + $0x94] sm:$0xff]
                  %2343 = vst [vmem:[%s2299 + $0x54] sm:$0xff] %v2342
                  %v2344 = vld [vmem:[%s2298 + $0x98] sm:$0xff]
                  %2345 = vst [vmem:[%s2299 + $0x58] sm:$0xff] %v2344
                  %v2346 = vld [vmem:[%s2298 + $0x9c] sm:$0xff]
                  %2347 = vst [vmem:[%s2299 + $0x5c] sm:$0xff] %v2346
                  %v2348 = vld [vmem:[%s2298 + $0xa0] sm:$0xff]
                  %2349 = vst [vmem:[%s2299 + $0x60] sm:$0xff] %v2348
                  %v2350 = vld [vmem:[%s2298 + $0xa4] sm:$0xff]
                  %2351 = vst [vmem:[%s2299 + $0x64] sm:$0xff] %v2350
                  %v2352 = vld [vmem:[%s2298 + $0xa8] sm:$0xff]
                  %2353 = vst [vmem:[%s2299 + $0x68] sm:$0xff] %v2352
                  %v2354 = vld [vmem:[%s2298 + $0xac] sm:$0xff]
                  %2355 = vst [vmem:[%s2299 + $0x6c] sm:$0xff] %v2354
                  %v2356 = vld [vmem:[%s2298 + $0xb0] sm:$0xff]
                  %2357 = vst [vmem:[%s2299 + $0x70] sm:$0xff] %v2356
                  %v2358 = vld [vmem:[%s2298 + $0xb4] sm:$0xff]
                  %2359 = vst [vmem:[%s2299 + $0x74] sm:$0xff] %v2358
                  %v2360 = vld [vmem:[%s2298 + $0xb8] sm:$0xff]
                  %2361 = vst [vmem:[%s2299 + $0x78] sm:$0xff] %v2360
                  %v2362 = vld [vmem:[%s2298 + $0xbc] sm:$0xff]
                  %2363 = vst [vmem:[%s2299 + $0x7c] sm:$0xff] %v2362
                  %v2364 = vld [vmem:[%s2298 + $0x100] sm:$0xff]
                  %2365 = vst [vmem:[%s2299 + $0x80] sm:$0xff] %v2364
                  %v2366 = vld [vmem:[%s2298 + $0x104] sm:$0xff]
                  %2367 = vst [vmem:[%s2299 + $0x84] sm:$0xff] %v2366
                  %v2368 = vld [vmem:[%s2298 + $0x108] sm:$0xff]
                  %2369 = vst [vmem:[%s2299 + $0x88] sm:$0xff] %v2368
                  %v2370 = vld [vmem:[%s2298 + $0x10c] sm:$0xff]
                  %2371 = vst [vmem:[%s2299 + $0x8c] sm:$0xff] %v2370
                  %v2372 = vld [vmem:[%s2298 + $0x110] sm:$0xff]
                  %2373 = vst [vmem:[%s2299 + $0x90] sm:$0xff] %v2372
                  %v2374 = vld [vmem:[%s2298 + $0x114] sm:$0xff]
                  %2375 = vst [vmem:[%s2299 + $0x94] sm:$0xff] %v2374
                  %v2376 = vld [vmem:[%s2298 + $0x118] sm:$0xff]
                  %2377 = vst [vmem:[%s2299 + $0x98] sm:$0xff] %v2376
                  %v2378 = vld [vmem:[%s2298 + $0x11c] sm:$0xff]
                  %2379 = vst [vmem:[%s2299 + $0x9c] sm:$0xff] %v2378
                  %v2380 = vld [vmem:[%s2298 + $0x120] sm:$0xff]
                  %2381 = vst [vmem:[%s2299 + $0xa0] sm:$0xff] %v2380
                  %v2382 = vld [vmem:[%s2298 + $0x124] sm:$0xff]
                  %2383 = vst [vmem:[%s2299 + $0xa4] sm:$0xff] %v2382
                  %v2384 = vld [vmem:[%s2298 + $0x128] sm:$0xff]
                  %2385 = vst [vmem:[%s2299 + $0xa8] sm:$0xff] %v2384
                  %v2386 = vld [vmem:[%s2298 + $0x12c] sm:$0xff]
                  %2387 = vst [vmem:[%s2299 + $0xac] sm:$0xff] %v2386
                  %v2388 = vld [vmem:[%s2298 + $0x130] sm:$0xff]
                  %2389 = vst [vmem:[%s2299 + $0xb0] sm:$0xff] %v2388
                  %v2390 = vld [vmem:[%s2298 + $0x134] sm:$0xff]
                  %2391 = vst [vmem:[%s2299 + $0xb4] sm:$0xff] %v2390
                  %v2392 = vld [vmem:[%s2298 + $0x138] sm:$0xff]
                  %2393 = vst [vmem:[%s2299 + $0xb8] sm:$0xff] %v2392
                  %v2394 = vld [vmem:[%s2298 + $0x13c] sm:$0xff]
                  %2395 = vst [vmem:[%s2299 + $0xbc] sm:$0xff] %v2394
                  %v2396 = vld [vmem:[%s2298 + $0x180] sm:$0xff]
                  %2397 = vst [vmem:[%s2299 + $0xc0] sm:$0xff] %v2396
                  %v2398 = vld [vmem:[%s2298 + $0x184] sm:$0xff]
                  %2399 = vst [vmem:[%s2299 + $0xc4] sm:$0xff] %v2398
                  %v2400 = vld [vmem:[%s2298 + $0x188] sm:$0xff]
                  %2401 = vst [vmem:[%s2299 + $0xc8] sm:$0xff] %v2400
                  %v2402 = vld [vmem:[%s2298 + $0x18c] sm:$0xff]
                  %2403 = vst [vmem:[%s2299 + $0xcc] sm:$0xff] %v2402
                  %v2404 = vld [vmem:[%s2298 + $0x190] sm:$0xff]
                  %2405 = vst [vmem:[%s2299 + $0xd0] sm:$0xff] %v2404
                  %v2406 = vld [vmem:[%s2298 + $0x194] sm:$0xff]
                  %2407 = vst [vmem:[%s2299 + $0xd4] sm:$0xff] %v2406
                  %v2408 = vld [vmem:[%s2298 + $0x198] sm:$0xff]
                  %2409 = vst [vmem:[%s2299 + $0xd8] sm:$0xff] %v2408
                  %v2410 = vld [vmem:[%s2298 + $0x19c] sm:$0xff]
                  %2411 = vst [vmem:[%s2299 + $0xdc] sm:$0xff] %v2410
                  %v2412 = vld [vmem:[%s2298 + $0x1a0] sm:$0xff]
                  %2413 = vst [vmem:[%s2299 + $0xe0] sm:$0xff] %v2412
                  %v2414 = vld [vmem:[%s2298 + $0x1a4] sm:$0xff]
                  %2415 = vst [vmem:[%s2299 + $0xe4] sm:$0xff] %v2414
                  %v2416 = vld [vmem:[%s2298 + $0x1a8] sm:$0xff]
                  %2417 = vst [vmem:[%s2299 + $0xe8] sm:$0xff] %v2416
                  %v2418 = vld [vmem:[%s2298 + $0x1ac] sm:$0xff]
                  %2419 = vst [vmem:[%s2299 + $0xec] sm:$0xff] %v2418
                  %v2420 = vld [vmem:[%s2298 + $0x1b0] sm:$0xff]
                  %2421 = vst [vmem:[%s2299 + $0xf0] sm:$0xff] %v2420
                  %v2422 = vld [vmem:[%s2298 + $0x1b4] sm:$0xff]
                  %2423 = vst [vmem:[%s2299 + $0xf4] sm:$0xff] %v2422
                  %v2424 = vld [vmem:[%s2298 + $0x1b8] sm:$0xff]
                  %2425 = vst [vmem:[%s2299 + $0xf8] sm:$0xff] %v2424
                  %v2426 = vld [vmem:[%s2298 + $0x1bc] sm:$0xff]
                  %2427 = vst [vmem:[%s2299 + $0xfc] sm:$0xff] %v2426
                  %v2428 = vld [vmem:[%s2298 + $0x200] sm:$0xff]
                  %2429 = vst [vmem:[%s2299 + $0x100] sm:$0xff] %v2428
                  %v2430 = vld [vmem:[%s2298 + $0x204] sm:$0xff]
                  %2431 = vst [vmem:[%s2299 + $0x104] sm:$0xff] %v2430
                  %v2432 = vld [vmem:[%s2298 + $0x208] sm:$0xff]
                  %2433 = vst [vmem:[%s2299 + $0x108] sm:$0xff] %v2432
                  %v2434 = vld [vmem:[%s2298 + $0x20c] sm:$0xff]
                  %2435 = vst [vmem:[%s2299 + $0x10c] sm:$0xff] %v2434
                  %v2436 = vld [vmem:[%s2298 + $0x210] sm:$0xff]
                  %2437 = vst [vmem:[%s2299 + $0x110] sm:$0xff] %v2436
                  %v2438 = vld [vmem:[%s2298 + $0x214] sm:$0xff]
                  %2439 = vst [vmem:[%s2299 + $0x114] sm:$0xff] %v2438
                  %v2440 = vld [vmem:[%s2298 + $0x218] sm:$0xff]
                  %2441 = vst [vmem:[%s2299 + $0x118] sm:$0xff] %v2440
                  %v2442 = vld [vmem:[%s2298 + $0x21c] sm:$0xff]
                  %2443 = vst [vmem:[%s2299 + $0x11c] sm:$0xff] %v2442
                  %v2444 = vld [vmem:[%s2298 + $0x220] sm:$0xff]
                  %2445 = vst [vmem:[%s2299 + $0x120] sm:$0xff] %v2444
                  %v2446 = vld [vmem:[%s2298 + $0x224] sm:$0xff]
                  %2447 = vst [vmem:[%s2299 + $0x124] sm:$0xff] %v2446
                  %v2448 = vld [vmem:[%s2298 + $0x228] sm:$0xff]
                  %2449 = vst [vmem:[%s2299 + $0x128] sm:$0xff] %v2448
                  %v2450 = vld [vmem:[%s2298 + $0x22c] sm:$0xff]
                  %2451 = vst [vmem:[%s2299 + $0x12c] sm:$0xff] %v2450
                  %v2452 = vld [vmem:[%s2298 + $0x230] sm:$0xff]
                  %2453 = vst [vmem:[%s2299 + $0x130] sm:$0xff] %v2452
                  %v2454 = vld [vmem:[%s2298 + $0x234] sm:$0xff]
                  %2455 = vst [vmem:[%s2299 + $0x134] sm:$0xff] %v2454
                  %v2456 = vld [vmem:[%s2298 + $0x238] sm:$0xff]
                  %2457 = vst [vmem:[%s2299 + $0x138] sm:$0xff] %v2456
                  %v2458 = vld [vmem:[%s2298 + $0x23c] sm:$0xff]
                  %2459 = vst [vmem:[%s2299 + $0x13c] sm:$0xff] %v2458
                  %v2460 = vld [vmem:[%s2298 + $0x280] sm:$0xff]
                  %2461 = vst [vmem:[%s2299 + $0x140] sm:$0xff] %v2460
                  %v2462 = vld [vmem:[%s2298 + $0x284] sm:$0xff]
                  %2463 = vst [vmem:[%s2299 + $0x144] sm:$0xff] %v2462
                  %v2464 = vld [vmem:[%s2298 + $0x288] sm:$0xff]
                  %2465 = vst [vmem:[%s2299 + $0x148] sm:$0xff] %v2464
                  %v2466 = vld [vmem:[%s2298 + $0x28c] sm:$0xff]
                  %2467 = vst [vmem:[%s2299 + $0x14c] sm:$0xff] %v2466
                  %v2468 = vld [vmem:[%s2298 + $0x290] sm:$0xff]
                  %2469 = vst [vmem:[%s2299 + $0x150] sm:$0xff] %v2468
                  %v2470 = vld [vmem:[%s2298 + $0x294] sm:$0xff]
                  %2471 = vst [vmem:[%s2299 + $0x154] sm:$0xff] %v2470
                  %v2472 = vld [vmem:[%s2298 + $0x298] sm:$0xff]
                  %2473 = vst [vmem:[%s2299 + $0x158] sm:$0xff] %v2472
                  %v2474 = vld [vmem:[%s2298 + $0x29c] sm:$0xff]
                  %2475 = vst [vmem:[%s2299 + $0x15c] sm:$0xff] %v2474
                  %v2476 = vld [vmem:[%s2298 + $0x2a0] sm:$0xff]
                  %2477 = vst [vmem:[%s2299 + $0x160] sm:$0xff] %v2476
                  %v2478 = vld [vmem:[%s2298 + $0x2a4] sm:$0xff]
                  %2479 = vst [vmem:[%s2299 + $0x164] sm:$0xff] %v2478
                  %v2480 = vld [vmem:[%s2298 + $0x2a8] sm:$0xff]
                  %2481 = vst [vmem:[%s2299 + $0x168] sm:$0xff] %v2480
                  %v2482 = vld [vmem:[%s2298 + $0x2ac] sm:$0xff]
                  %2483 = vst [vmem:[%s2299 + $0x16c] sm:$0xff] %v2482
                  %v2484 = vld [vmem:[%s2298 + $0x2b0] sm:$0xff]
                  %2485 = vst [vmem:[%s2299 + $0x170] sm:$0xff] %v2484
                  %v2486 = vld [vmem:[%s2298 + $0x2b4] sm:$0xff]
                  %2487 = vst [vmem:[%s2299 + $0x174] sm:$0xff] %v2486
                  %v2488 = vld [vmem:[%s2298 + $0x2b8] sm:$0xff]
                  %2489 = vst [vmem:[%s2299 + $0x178] sm:$0xff] %v2488
                  %v2490 = vld [vmem:[%s2298 + $0x2bc] sm:$0xff]
                  %2491 = vst [vmem:[%s2299 + $0x17c] sm:$0xff] %v2490
                  %v2492 = vld [vmem:[%s2298 + $0x300] sm:$0xff]
                  %2493 = vst [vmem:[%s2299 + $0x180] sm:$0xff] %v2492
                  %v2494 = vld [vmem:[%s2298 + $0x304] sm:$0xff]
                  %2495 = vst [vmem:[%s2299 + $0x184] sm:$0xff] %v2494
                  %v2496 = vld [vmem:[%s2298 + $0x308] sm:$0xff]
                  %2497 = vst [vmem:[%s2299 + $0x188] sm:$0xff] %v2496
                  %v2498 = vld [vmem:[%s2298 + $0x30c] sm:$0xff]
                  %2499 = vst [vmem:[%s2299 + $0x18c] sm:$0xff] %v2498
                  %v2500 = vld [vmem:[%s2298 + $0x310] sm:$0xff]
                  %2501 = vst [vmem:[%s2299 + $0x190] sm:$0xff] %v2500
                  %v2502 = vld [vmem:[%s2298 + $0x314] sm:$0xff]
                  %2503 = vst [vmem:[%s2299 + $0x194] sm:$0xff] %v2502
                  %v2504 = vld [vmem:[%s2298 + $0x318] sm:$0xff]
                  %2505 = vst [vmem:[%s2299 + $0x198] sm:$0xff] %v2504
                  %v2506 = vld [vmem:[%s2298 + $0x31c] sm:$0xff]
                  %2507 = vst [vmem:[%s2299 + $0x19c] sm:$0xff] %v2506
                  %v2508 = vld [vmem:[%s2298 + $0x320] sm:$0xff]
                  %2509 = vst [vmem:[%s2299 + $0x1a0] sm:$0xff] %v2508
                  %v2510 = vld [vmem:[%s2298 + $0x324] sm:$0xff]
                  %2511 = vst [vmem:[%s2299 + $0x1a4] sm:$0xff] %v2510
                  %v2512 = vld [vmem:[%s2298 + $0x328] sm:$0xff]
                  %2513 = vst [vmem:[%s2299 + $0x1a8] sm:$0xff] %v2512
                  %v2514 = vld [vmem:[%s2298 + $0x32c] sm:$0xff]
                  %2515 = vst [vmem:[%s2299 + $0x1ac] sm:$0xff] %v2514
                  %v2516 = vld [vmem:[%s2298 + $0x330] sm:$0xff]
                  %2517 = vst [vmem:[%s2299 + $0x1b0] sm:$0xff] %v2516
                  %v2518 = vld [vmem:[%s2298 + $0x334] sm:$0xff]
                  %2519 = vst [vmem:[%s2299 + $0x1b4] sm:$0xff] %v2518
                  %v2520 = vld [vmem:[%s2298 + $0x338] sm:$0xff]
                  %2521 = vst [vmem:[%s2299 + $0x1b8] sm:$0xff] %v2520
                  %v2522 = vld [vmem:[%s2298 + $0x33c] sm:$0xff]
                  %2523 = vst [vmem:[%s2299 + $0x1bc] sm:$0xff] %v2522
                  %v2524 = vld [vmem:[%s2298 + $0x380] sm:$0xff]
                  %2525 = vst [vmem:[%s2299 + $0x1c0] sm:$0xff] %v2524
                  %v2526 = vld [vmem:[%s2298 + $0x384] sm:$0xff]
                  %2527 = vst [vmem:[%s2299 + $0x1c4] sm:$0xff] %v2526
                  %v2528 = vld [vmem:[%s2298 + $0x388] sm:$0xff]
                  %2529 = vst [vmem:[%s2299 + $0x1c8] sm:$0xff] %v2528
                  %v2530 = vld [vmem:[%s2298 + $0x38c] sm:$0xff]
                  %2531 = vst [vmem:[%s2299 + $0x1cc] sm:$0xff] %v2530
                  %v2532 = vld [vmem:[%s2298 + $0x390] sm:$0xff]
                  %2533 = vst [vmem:[%s2299 + $0x1d0] sm:$0xff] %v2532
                  %v2534 = vld [vmem:[%s2298 + $0x394] sm:$0xff]
                  %2535 = vst [vmem:[%s2299 + $0x1d4] sm:$0xff] %v2534
                  %v2536 = vld [vmem:[%s2298 + $0x398] sm:$0xff]
                  %2537 = vst [vmem:[%s2299 + $0x1d8] sm:$0xff] %v2536
                  %v2538 = vld [vmem:[%s2298 + $0x39c] sm:$0xff]
                  %2539 = vst [vmem:[%s2299 + $0x1dc] sm:$0xff] %v2538
                  %v2540 = vld [vmem:[%s2298 + $0x3a0] sm:$0xff]
                  %2541 = vst [vmem:[%s2299 + $0x1e0] sm:$0xff] %v2540
                  %v2542 = vld [vmem:[%s2298 + $0x3a4] sm:$0xff]
                  %2543 = vst [vmem:[%s2299 + $0x1e4] sm:$0xff] %v2542
                  %v2544 = vld [vmem:[%s2298 + $0x3a8] sm:$0xff]
                  %2545 = vst [vmem:[%s2299 + $0x1e8] sm:$0xff] %v2544
                  %v2546 = vld [vmem:[%s2298 + $0x3ac] sm:$0xff]
                  %2547 = vst [vmem:[%s2299 + $0x1ec] sm:$0xff] %v2546
                  %v2548 = vld [vmem:[%s2298 + $0x3b0] sm:$0xff]
                  %2549 = vst [vmem:[%s2299 + $0x1f0] sm:$0xff] %v2548
                  %v2550 = vld [vmem:[%s2298 + $0x3b4] sm:$0xff]
                  %2551 = vst [vmem:[%s2299 + $0x1f4] sm:$0xff] %v2550
                  %v2552 = vld [vmem:[%s2298 + $0x3b8] sm:$0xff]
                  %2553 = vst [vmem:[%s2299 + $0x1f8] sm:$0xff] %v2552
                  %v2554 = vld [vmem:[%s2298 + $0x3bc] sm:$0xff]
                  %2555 = vst [vmem:[%s2299 + $0x1fc] sm:$0xff] %v2554
                  %v2556 = vld [vmem:[%s2298 + $0x400] sm:$0xff]
                  %2557 = vst [vmem:[%s2299 + $0x200] sm:$0xff] %v2556
                  %v2558 = vld [vmem:[%s2298 + $0x404] sm:$0xff]
                  %2559 = vst [vmem:[%s2299 + $0x204] sm:$0xff] %v2558
                  %v2560 = vld [vmem:[%s2298 + $0x408] sm:$0xff]
                  %2561 = vst [vmem:[%s2299 + $0x208] sm:$0xff] %v2560
                  %v2562 = vld [vmem:[%s2298 + $0x40c] sm:$0xff]
                  %2563 = vst [vmem:[%s2299 + $0x20c] sm:$0xff] %v2562
                  %v2564 = vld [vmem:[%s2298 + $0x410] sm:$0xff]
                  %2565 = vst [vmem:[%s2299 + $0x210] sm:$0xff] %v2564
                  %v2566 = vld [vmem:[%s2298 + $0x414] sm:$0xff]
                  %2567 = vst [vmem:[%s2299 + $0x214] sm:$0xff] %v2566
                  %v2568 = vld [vmem:[%s2298 + $0x418] sm:$0xff]
                  %2569 = vst [vmem:[%s2299 + $0x218] sm:$0xff] %v2568
                  %v2570 = vld [vmem:[%s2298 + $0x41c] sm:$0xff]
                  %2571 = vst [vmem:[%s2299 + $0x21c] sm:$0xff] %v2570
                  %v2572 = vld [vmem:[%s2298 + $0x420] sm:$0xff]
                  %2573 = vst [vmem:[%s2299 + $0x220] sm:$0xff] %v2572
                  %v2574 = vld [vmem:[%s2298 + $0x424] sm:$0xff]
                  %2575 = vst [vmem:[%s2299 + $0x224] sm:$0xff] %v2574
                  %v2576 = vld [vmem:[%s2298 + $0x428] sm:$0xff]
                  %2577 = vst [vmem:[%s2299 + $0x228] sm:$0xff] %v2576
                  %v2578 = vld [vmem:[%s2298 + $0x42c] sm:$0xff]
                  %2579 = vst [vmem:[%s2299 + $0x22c] sm:$0xff] %v2578
                  %v2580 = vld [vmem:[%s2298 + $0x430] sm:$0xff]
                  %2581 = vst [vmem:[%s2299 + $0x230] sm:$0xff] %v2580
                  %v2582 = vld [vmem:[%s2298 + $0x434] sm:$0xff]
                  %2583 = vst [vmem:[%s2299 + $0x234] sm:$0xff] %v2582
                  %v2584 = vld [vmem:[%s2298 + $0x438] sm:$0xff]
                  %2585 = vst [vmem:[%s2299 + $0x238] sm:$0xff] %v2584
                  %v2586 = vld [vmem:[%s2298 + $0x43c] sm:$0xff]
                  %2587 = vst [vmem:[%s2299 + $0x23c] sm:$0xff] %v2586
                  %v2588 = vld [vmem:[%s2298 + $0x480] sm:$0xff]
                  %2589 = vst [vmem:[%s2299 + $0x240] sm:$0xff] %v2588
                  %v2590 = vld [vmem:[%s2298 + $0x484] sm:$0xff]
                  %2591 = vst [vmem:[%s2299 + $0x244] sm:$0xff] %v2590
                  %v2592 = vld [vmem:[%s2298 + $0x488] sm:$0xff]
                  %2593 = vst [vmem:[%s2299 + $0x248] sm:$0xff] %v2592
                  %v2594 = vld [vmem:[%s2298 + $0x48c] sm:$0xff]
                  %2595 = vst [vmem:[%s2299 + $0x24c] sm:$0xff] %v2594
                  %v2596 = vld [vmem:[%s2298 + $0x490] sm:$0xff]
                  %2597 = vst [vmem:[%s2299 + $0x250] sm:$0xff] %v2596
                  %v2598 = vld [vmem:[%s2298 + $0x494] sm:$0xff]
                  %2599 = vst [vmem:[%s2299 + $0x254] sm:$0xff] %v2598
                  %v2600 = vld [vmem:[%s2298 + $0x498] sm:$0xff]
                  %2601 = vst [vmem:[%s2299 + $0x258] sm:$0xff] %v2600
                  %v2602 = vld [vmem:[%s2298 + $0x49c] sm:$0xff]
                  %2603 = vst [vmem:[%s2299 + $0x25c] sm:$0xff] %v2602
                  %v2604 = vld [vmem:[%s2298 + $0x4a0] sm:$0xff]
                  %2605 = vst [vmem:[%s2299 + $0x260] sm:$0xff] %v2604
                  %v2606 = vld [vmem:[%s2298 + $0x4a4] sm:$0xff]
                  %2607 = vst [vmem:[%s2299 + $0x264] sm:$0xff] %v2606
                  %v2608 = vld [vmem:[%s2298 + $0x4a8] sm:$0xff]
                  %2609 = vst [vmem:[%s2299 + $0x268] sm:$0xff] %v2608
                  %v2610 = vld [vmem:[%s2298 + $0x4ac] sm:$0xff]
                  %2611 = vst [vmem:[%s2299 + $0x26c] sm:$0xff] %v2610
                  %v2612 = vld [vmem:[%s2298 + $0x4b0] sm:$0xff]
                  %2613 = vst [vmem:[%s2299 + $0x270] sm:$0xff] %v2612
                  %v2614 = vld [vmem:[%s2298 + $0x4b4] sm:$0xff]
                  %2615 = vst [vmem:[%s2299 + $0x274] sm:$0xff] %v2614
                  %v2616 = vld [vmem:[%s2298 + $0x4b8] sm:$0xff]
                  %2617 = vst [vmem:[%s2299 + $0x278] sm:$0xff] %v2616
                  %v2618 = vld [vmem:[%s2298 + $0x4bc] sm:$0xff]
                  %2619 = vst [vmem:[%s2299 + $0x27c] sm:$0xff] %v2618
                  %v2620 = vld [vmem:[%s2298 + $0x500] sm:$0xff]
                  %2621 = vst [vmem:[%s2299 + $0x280] sm:$0xff] %v2620
                  %v2622 = vld [vmem:[%s2298 + $0x504] sm:$0xff]
                  %2623 = vst [vmem:[%s2299 + $0x284] sm:$0xff] %v2622
                  %v2624 = vld [vmem:[%s2298 + $0x508] sm:$0xff]
                  %2625 = vst [vmem:[%s2299 + $0x288] sm:$0xff] %v2624
                  %v2626 = vld [vmem:[%s2298 + $0x50c] sm:$0xff]
                  %2627 = vst [vmem:[%s2299 + $0x28c] sm:$0xff] %v2626
                  %v2628 = vld [vmem:[%s2298 + $0x510] sm:$0xff]
                  %2629 = vst [vmem:[%s2299 + $0x290] sm:$0xff] %v2628
                  %v2630 = vld [vmem:[%s2298 + $0x514] sm:$0xff]
                  %2631 = vst [vmem:[%s2299 + $0x294] sm:$0xff] %v2630
                  %v2632 = vld [vmem:[%s2298 + $0x518] sm:$0xff]
                  %2633 = vst [vmem:[%s2299 + $0x298] sm:$0xff] %v2632
                  %v2634 = vld [vmem:[%s2298 + $0x51c] sm:$0xff]
                  %2635 = vst [vmem:[%s2299 + $0x29c] sm:$0xff] %v2634
                  %v2636 = vld [vmem:[%s2298 + $0x520] sm:$0xff]
                  %2637 = vst [vmem:[%s2299 + $0x2a0] sm:$0xff] %v2636
                  %v2638 = vld [vmem:[%s2298 + $0x524] sm:$0xff]
                  %2639 = vst [vmem:[%s2299 + $0x2a4] sm:$0xff] %v2638
                  %v2640 = vld [vmem:[%s2298 + $0x528] sm:$0xff]
                  %2641 = vst [vmem:[%s2299 + $0x2a8] sm:$0xff] %v2640
                  %v2642 = vld [vmem:[%s2298 + $0x52c] sm:$0xff]
                  %2643 = vst [vmem:[%s2299 + $0x2ac] sm:$0xff] %v2642
                  %v2644 = vld [vmem:[%s2298 + $0x530] sm:$0xff]
                  %2645 = vst [vmem:[%s2299 + $0x2b0] sm:$0xff] %v2644
                  %v2646 = vld [vmem:[%s2298 + $0x534] sm:$0xff]
                  %2647 = vst [vmem:[%s2299 + $0x2b4] sm:$0xff] %v2646
                  %v2648 = vld [vmem:[%s2298 + $0x538] sm:$0xff]
                  %2649 = vst [vmem:[%s2299 + $0x2b8] sm:$0xff] %v2648
                  %v2650 = vld [vmem:[%s2298 + $0x53c] sm:$0xff]
                  %2651 = vst [vmem:[%s2299 + $0x2bc] sm:$0xff] %v2650
                  %v2652 = vld [vmem:[%s2298 + $0x580] sm:$0xff]
                  %2653 = vst [vmem:[%s2299 + $0x2c0] sm:$0xff] %v2652
                  %v2654 = vld [vmem:[%s2298 + $0x584] sm:$0xff]
                  %2655 = vst [vmem:[%s2299 + $0x2c4] sm:$0xff] %v2654
                  %v2656 = vld [vmem:[%s2298 + $0x588] sm:$0xff]
                  %2657 = vst [vmem:[%s2299 + $0x2c8] sm:$0xff] %v2656
                  %v2658 = vld [vmem:[%s2298 + $0x58c] sm:$0xff]
                  %2659 = vst [vmem:[%s2299 + $0x2cc] sm:$0xff] %v2658
                  %v2660 = vld [vmem:[%s2298 + $0x590] sm:$0xff]
                  %2661 = vst [vmem:[%s2299 + $0x2d0] sm:$0xff] %v2660
                  %v2662 = vld [vmem:[%s2298 + $0x594] sm:$0xff]
                  %2663 = vst [vmem:[%s2299 + $0x2d4] sm:$0xff] %v2662
                  %v2664 = vld [vmem:[%s2298 + $0x598] sm:$0xff]
                  %2665 = vst [vmem:[%s2299 + $0x2d8] sm:$0xff] %v2664
                  %v2666 = vld [vmem:[%s2298 + $0x59c] sm:$0xff]
                  %2667 = vst [vmem:[%s2299 + $0x2dc] sm:$0xff] %v2666
                  %v2668 = vld [vmem:[%s2298 + $0x5a0] sm:$0xff]
                  %2669 = vst [vmem:[%s2299 + $0x2e0] sm:$0xff] %v2668
                  %v2670 = vld [vmem:[%s2298 + $0x5a4] sm:$0xff]
                  %2671 = vst [vmem:[%s2299 + $0x2e4] sm:$0xff] %v2670
                  %v2672 = vld [vmem:[%s2298 + $0x5a8] sm:$0xff]
                  %2673 = vst [vmem:[%s2299 + $0x2e8] sm:$0xff] %v2672
                  %v2674 = vld [vmem:[%s2298 + $0x5ac] sm:$0xff]
                  %2675 = vst [vmem:[%s2299 + $0x2ec] sm:$0xff] %v2674
                  %v2676 = vld [vmem:[%s2298 + $0x5b0] sm:$0xff]
                  %2677 = vst [vmem:[%s2299 + $0x2f0] sm:$0xff] %v2676
                  %v2678 = vld [vmem:[%s2298 + $0x5b4] sm:$0xff]
                  %2679 = vst [vmem:[%s2299 + $0x2f4] sm:$0xff] %v2678
                  %v2680 = vld [vmem:[%s2298 + $0x5b8] sm:$0xff]
                  %2681 = vst [vmem:[%s2299 + $0x2f8] sm:$0xff] %v2680
                  %v2682 = vld [vmem:[%s2298 + $0x5bc] sm:$0xff]
                  %2683 = vst [vmem:[%s2299 + $0x2fc] sm:$0xff] %v2682
                  %v2684 = vld [vmem:[%s2298 + $0x600] sm:$0xff]
                  %2685 = vst [vmem:[%s2299 + $0x300] sm:$0xff] %v2684
                  %v2686 = vld [vmem:[%s2298 + $0x604] sm:$0xff]
                  %2687 = vst [vmem:[%s2299 + $0x304] sm:$0xff] %v2686
                  %v2688 = vld [vmem:[%s2298 + $0x608] sm:$0xff]
                  %2689 = vst [vmem:[%s2299 + $0x308] sm:$0xff] %v2688
                  %v2690 = vld [vmem:[%s2298 + $0x60c] sm:$0xff]
                  %2691 = vst [vmem:[%s2299 + $0x30c] sm:$0xff] %v2690
                  %v2692 = vld [vmem:[%s2298 + $0x610] sm:$0xff]
                  %2693 = vst [vmem:[%s2299 + $0x310] sm:$0xff] %v2692
                  %v2694 = vld [vmem:[%s2298 + $0x614] sm:$0xff]
                  %2695 = vst [vmem:[%s2299 + $0x314] sm:$0xff] %v2694
                  %v2696 = vld [vmem:[%s2298 + $0x618] sm:$0xff]
                  %2697 = vst [vmem:[%s2299 + $0x318] sm:$0xff] %v2696
                  %v2698 = vld [vmem:[%s2298 + $0x61c] sm:$0xff]
                  %2699 = vst [vmem:[%s2299 + $0x31c] sm:$0xff] %v2698
                  %v2700 = vld [vmem:[%s2298 + $0x620] sm:$0xff]
                  %2701 = vst [vmem:[%s2299 + $0x320] sm:$0xff] %v2700
                  %v2702 = vld [vmem:[%s2298 + $0x624] sm:$0xff]
                  %2703 = vst [vmem:[%s2299 + $0x324] sm:$0xff] %v2702
                  %v2704 = vld [vmem:[%s2298 + $0x628] sm:$0xff]
                  %2705 = vst [vmem:[%s2299 + $0x328] sm:$0xff] %v2704
                  %v2706 = vld [vmem:[%s2298 + $0x62c] sm:$0xff]
                  %2707 = vst [vmem:[%s2299 + $0x32c] sm:$0xff] %v2706
                  %v2708 = vld [vmem:[%s2298 + $0x630] sm:$0xff]
                  %2709 = vst [vmem:[%s2299 + $0x330] sm:$0xff] %v2708
                  %v2710 = vld [vmem:[%s2298 + $0x634] sm:$0xff]
                  %2711 = vst [vmem:[%s2299 + $0x334] sm:$0xff] %v2710
                  %v2712 = vld [vmem:[%s2298 + $0x638] sm:$0xff]
                  %2713 = vst [vmem:[%s2299 + $0x338] sm:$0xff] %v2712
                  %v2714 = vld [vmem:[%s2298 + $0x63c] sm:$0xff]
                  %2715 = vst [vmem:[%s2299 + $0x33c] sm:$0xff] %v2714
                  %v2716 = vld [vmem:[%s2298 + $0x680] sm:$0xff]
                  %2717 = vst [vmem:[%s2299 + $0x340] sm:$0xff] %v2716
                  %v2718 = vld [vmem:[%s2298 + $0x684] sm:$0xff]
                  %2719 = vst [vmem:[%s2299 + $0x344] sm:$0xff] %v2718
                  %v2720 = vld [vmem:[%s2298 + $0x688] sm:$0xff]
                  %2721 = vst [vmem:[%s2299 + $0x348] sm:$0xff] %v2720
                  %v2722 = vld [vmem:[%s2298 + $0x68c] sm:$0xff]
                  %2723 = vst [vmem:[%s2299 + $0x34c] sm:$0xff] %v2722
                  %v2724 = vld [vmem:[%s2298 + $0x690] sm:$0xff]
                  %2725 = vst [vmem:[%s2299 + $0x350] sm:$0xff] %v2724
                  %v2726 = vld [vmem:[%s2298 + $0x694] sm:$0xff]
                  %2727 = vst [vmem:[%s2299 + $0x354] sm:$0xff] %v2726
                  %v2728 = vld [vmem:[%s2298 + $0x698] sm:$0xff]
                  %2729 = vst [vmem:[%s2299 + $0x358] sm:$0xff] %v2728
                  %v2730 = vld [vmem:[%s2298 + $0x69c] sm:$0xff]
                  %2731 = vst [vmem:[%s2299 + $0x35c] sm:$0xff] %v2730
                  %v2732 = vld [vmem:[%s2298 + $0x6a0] sm:$0xff]
                  %2733 = vst [vmem:[%s2299 + $0x360] sm:$0xff] %v2732
                  %v2734 = vld [vmem:[%s2298 + $0x6a4] sm:$0xff]
                  %2735 = vst [vmem:[%s2299 + $0x364] sm:$0xff] %v2734
                  %v2736 = vld [vmem:[%s2298 + $0x6a8] sm:$0xff]
                  %2737 = vst [vmem:[%s2299 + $0x368] sm:$0xff] %v2736
                  %v2738 = vld [vmem:[%s2298 + $0x6ac] sm:$0xff]
                  %2739 = vst [vmem:[%s2299 + $0x36c] sm:$0xff] %v2738
                  %v2740 = vld [vmem:[%s2298 + $0x6b0] sm:$0xff]
                  %2741 = vst [vmem:[%s2299 + $0x370] sm:$0xff] %v2740
                  %v2742 = vld [vmem:[%s2298 + $0x6b4] sm:$0xff]
                  %2743 = vst [vmem:[%s2299 + $0x374] sm:$0xff] %v2742
                  %v2744 = vld [vmem:[%s2298 + $0x6b8] sm:$0xff]
                  %2745 = vst [vmem:[%s2299 + $0x378] sm:$0xff] %v2744
                  %v2746 = vld [vmem:[%s2298 + $0x6bc] sm:$0xff]
                  %2747 = vst [vmem:[%s2299 + $0x37c] sm:$0xff] %v2746
                  %v2748 = vld [vmem:[%s2298 + $0x700] sm:$0xff]
                  %2749 = vst [vmem:[%s2299 + $0x380] sm:$0xff] %v2748
                  %v2750 = vld [vmem:[%s2298 + $0x704] sm:$0xff]
                  %2751 = vst [vmem:[%s2299 + $0x384] sm:$0xff] %v2750
                  %v2752 = vld [vmem:[%s2298 + $0x708] sm:$0xff]
                  %2753 = vst [vmem:[%s2299 + $0x388] sm:$0xff] %v2752
                  %v2754 = vld [vmem:[%s2298 + $0x70c] sm:$0xff]
                  %2755 = vst [vmem:[%s2299 + $0x38c] sm:$0xff] %v2754
                  %v2756 = vld [vmem:[%s2298 + $0x710] sm:$0xff]
                  %2757 = vst [vmem:[%s2299 + $0x390] sm:$0xff] %v2756
                  %v2758 = vld [vmem:[%s2298 + $0x714] sm:$0xff]
                  %2759 = vst [vmem:[%s2299 + $0x394] sm:$0xff] %v2758
                  %v2760 = vld [vmem:[%s2298 + $0x718] sm:$0xff]
                  %2761 = vst [vmem:[%s2299 + $0x398] sm:$0xff] %v2760
                  %v2762 = vld [vmem:[%s2298 + $0x71c] sm:$0xff]
                  %2763 = vst [vmem:[%s2299 + $0x39c] sm:$0xff] %v2762
                  %v2764 = vld [vmem:[%s2298 + $0x720] sm:$0xff]
                  %2765 = vst [vmem:[%s2299 + $0x3a0] sm:$0xff] %v2764
                  %v2766 = vld [vmem:[%s2298 + $0x724] sm:$0xff]
                  %2767 = vst [vmem:[%s2299 + $0x3a4] sm:$0xff] %v2766
                  %v2768 = vld [vmem:[%s2298 + $0x728] sm:$0xff]
                  %2769 = vst [vmem:[%s2299 + $0x3a8] sm:$0xff] %v2768
                  %v2770 = vld [vmem:[%s2298 + $0x72c] sm:$0xff]
                  %2771 = vst [vmem:[%s2299 + $0x3ac] sm:$0xff] %v2770
                  %v2772 = vld [vmem:[%s2298 + $0x730] sm:$0xff]
                  %2773 = vst [vmem:[%s2299 + $0x3b0] sm:$0xff] %v2772
                  %v2774 = vld [vmem:[%s2298 + $0x734] sm:$0xff]
                  %2775 = vst [vmem:[%s2299 + $0x3b4] sm:$0xff] %v2774
                  %v2776 = vld [vmem:[%s2298 + $0x738] sm:$0xff]
                  %2777 = vst [vmem:[%s2299 + $0x3b8] sm:$0xff] %v2776
                  %v2778 = vld [vmem:[%s2298 + $0x73c] sm:$0xff]
                  %2779 = vst [vmem:[%s2299 + $0x3bc] sm:$0xff] %v2778
                  %v2780 = vld [vmem:[%s2298 + $0x780] sm:$0xff]
                  %2781 = vst [vmem:[%s2299 + $0x3c0] sm:$0xff] %v2780
                  %v2782 = vld [vmem:[%s2298 + $0x784] sm:$0xff]
                  %2783 = vst [vmem:[%s2299 + $0x3c4] sm:$0xff] %v2782
                  %v2784 = vld [vmem:[%s2298 + $0x788] sm:$0xff]
                  %2785 = vst [vmem:[%s2299 + $0x3c8] sm:$0xff] %v2784
                  %v2786 = vld [vmem:[%s2298 + $0x78c] sm:$0xff]
                  %2787 = vst [vmem:[%s2299 + $0x3cc] sm:$0xff] %v2786
                  %v2788 = vld [vmem:[%s2298 + $0x790] sm:$0xff]
                  %2789 = vst [vmem:[%s2299 + $0x3d0] sm:$0xff] %v2788
                  %v2790 = vld [vmem:[%s2298 + $0x794] sm:$0xff]
                  %2791 = vst [vmem:[%s2299 + $0x3d4] sm:$0xff] %v2790
                  %v2792 = vld [vmem:[%s2298 + $0x798] sm:$0xff]
                  %2793 = vst [vmem:[%s2299 + $0x3d8] sm:$0xff] %v2792
                  %v2794 = vld [vmem:[%s2298 + $0x79c] sm:$0xff]
                  %2795 = vst [vmem:[%s2299 + $0x3dc] sm:$0xff] %v2794
                  %v2796 = vld [vmem:[%s2298 + $0x7a0] sm:$0xff]
                  %2797 = vst [vmem:[%s2299 + $0x3e0] sm:$0xff] %v2796
                  %v2798 = vld [vmem:[%s2298 + $0x7a4] sm:$0xff]
                  %2799 = vst [vmem:[%s2299 + $0x3e4] sm:$0xff] %v2798
                  %v2800 = vld [vmem:[%s2298 + $0x7a8] sm:$0xff]
                  %2801 = vst [vmem:[%s2299 + $0x3e8] sm:$0xff] %v2800
                  %v2802 = vld [vmem:[%s2298 + $0x7ac] sm:$0xff]
                  %2803 = vst [vmem:[%s2299 + $0x3ec] sm:$0xff] %v2802
                  %v2804 = vld [vmem:[%s2298 + $0x7b0] sm:$0xff]
                  %2805 = vst [vmem:[%s2299 + $0x3f0] sm:$0xff] %v2804
                  %v2806 = vld [vmem:[%s2298 + $0x7b4] sm:$0xff]
                  %2807 = vst [vmem:[%s2299 + $0x3f4] sm:$0xff] %v2806
                  %v2808 = vld [vmem:[%s2298 + $0x7b8] sm:$0xff]
                  %2809 = vst [vmem:[%s2299 + $0x3f8] sm:$0xff] %v2808
                  %v2810 = vld [vmem:[%s2298 + $0x7bc] sm:$0xff]
                  %2811 = vst [vmem:[%s2299 + $0x3fc] sm:$0xff] %v2810
                  %v2812 = vld [vmem:[%s2298 + $0x800] sm:$0xff]
                  %2813 = vst [vmem:[%s2299 + $0x400] sm:$0xff] %v2812
                  %v2814 = vld [vmem:[%s2298 + $0x804] sm:$0xff]
                  %2815 = vst [vmem:[%s2299 + $0x404] sm:$0xff] %v2814
                  %v2816 = vld [vmem:[%s2298 + $0x808] sm:$0xff]
                  %2817 = vst [vmem:[%s2299 + $0x408] sm:$0xff] %v2816
                  %v2818 = vld [vmem:[%s2298 + $0x80c] sm:$0xff]
                  %2819 = vst [vmem:[%s2299 + $0x40c] sm:$0xff] %v2818
                  %v2820 = vld [vmem:[%s2298 + $0x810] sm:$0xff]
                  %2821 = vst [vmem:[%s2299 + $0x410] sm:$0xff] %v2820
                  %v2822 = vld [vmem:[%s2298 + $0x814] sm:$0xff]
                  %2823 = vst [vmem:[%s2299 + $0x414] sm:$0xff] %v2822
                  %v2824 = vld [vmem:[%s2298 + $0x818] sm:$0xff]
                  %2825 = vst [vmem:[%s2299 + $0x418] sm:$0xff] %v2824
                  %v2826 = vld [vmem:[%s2298 + $0x81c] sm:$0xff]
                  %2827 = vst [vmem:[%s2299 + $0x41c] sm:$0xff] %v2826
                  %v2828 = vld [vmem:[%s2298 + $0x820] sm:$0xff]
                  %2829 = vst [vmem:[%s2299 + $0x420] sm:$0xff] %v2828
                  %v2830 = vld [vmem:[%s2298 + $0x824] sm:$0xff]
                  %2831 = vst [vmem:[%s2299 + $0x424] sm:$0xff] %v2830
                  %v2832 = vld [vmem:[%s2298 + $0x828] sm:$0xff]
                  %2833 = vst [vmem:[%s2299 + $0x428] sm:$0xff] %v2832
                  %v2834 = vld [vmem:[%s2298 + $0x82c] sm:$0xff]
                  %2835 = vst [vmem:[%s2299 + $0x42c] sm:$0xff] %v2834
                  %v2836 = vld [vmem:[%s2298 + $0x830] sm:$0xff]
                  %2837 = vst [vmem:[%s2299 + $0x430] sm:$0xff] %v2836
                  %v2838 = vld [vmem:[%s2298 + $0x834] sm:$0xff]
                  %2839 = vst [vmem:[%s2299 + $0x434] sm:$0xff] %v2838
                  %v2840 = vld [vmem:[%s2298 + $0x838] sm:$0xff]
                  %2841 = vst [vmem:[%s2299 + $0x438] sm:$0xff] %v2840
                  %v2842 = vld [vmem:[%s2298 + $0x83c] sm:$0xff]
                  %2843 = vst [vmem:[%s2299 + $0x43c] sm:$0xff] %v2842
                  %v2844 = vld [vmem:[%s2298 + $0x880] sm:$0xff]
                  %2845 = vst [vmem:[%s2299 + $0x440] sm:$0xff] %v2844
                  %v2846 = vld [vmem:[%s2298 + $0x884] sm:$0xff]
                  %2847 = vst [vmem:[%s2299 + $0x444] sm:$0xff] %v2846
                  %v2848 = vld [vmem:[%s2298 + $0x888] sm:$0xff]
                  %2849 = vst [vmem:[%s2299 + $0x448] sm:$0xff] %v2848
                  %v2850 = vld [vmem:[%s2298 + $0x88c] sm:$0xff]
                  %2851 = vst [vmem:[%s2299 + $0x44c] sm:$0xff] %v2850
                  %v2852 = vld [vmem:[%s2298 + $0x890] sm:$0xff]
                  %2853 = vst [vmem:[%s2299 + $0x450] sm:$0xff] %v2852
                  %v2854 = vld [vmem:[%s2298 + $0x894] sm:$0xff]
                  %2855 = vst [vmem:[%s2299 + $0x454] sm:$0xff] %v2854
                  %v2856 = vld [vmem:[%s2298 + $0x898] sm:$0xff]
                  %2857 = vst [vmem:[%s2299 + $0x458] sm:$0xff] %v2856
                  %v2858 = vld [vmem:[%s2298 + $0x89c] sm:$0xff]
                  %2859 = vst [vmem:[%s2299 + $0x45c] sm:$0xff] %v2858
                  %v2860 = vld [vmem:[%s2298 + $0x8a0] sm:$0xff]
                  %2861 = vst [vmem:[%s2299 + $0x460] sm:$0xff] %v2860
                  %v2862 = vld [vmem:[%s2298 + $0x8a4] sm:$0xff]
                  %2863 = vst [vmem:[%s2299 + $0x464] sm:$0xff] %v2862
                  %v2864 = vld [vmem:[%s2298 + $0x8a8] sm:$0xff]
                  %2865 = vst [vmem:[%s2299 + $0x468] sm:$0xff] %v2864
                  %v2866 = vld [vmem:[%s2298 + $0x8ac] sm:$0xff]
                  %2867 = vst [vmem:[%s2299 + $0x46c] sm:$0xff] %v2866
                  %v2868 = vld [vmem:[%s2298 + $0x8b0] sm:$0xff]
                  %2869 = vst [vmem:[%s2299 + $0x470] sm:$0xff] %v2868
                  %v2870 = vld [vmem:[%s2298 + $0x8b4] sm:$0xff]
                  %2871 = vst [vmem:[%s2299 + $0x474] sm:$0xff] %v2870
                  %v2872 = vld [vmem:[%s2298 + $0x8b8] sm:$0xff]
                  %2873 = vst [vmem:[%s2299 + $0x478] sm:$0xff] %v2872
                  %v2874 = vld [vmem:[%s2298 + $0x8bc] sm:$0xff]
                  %2875 = vst [vmem:[%s2299 + $0x47c] sm:$0xff] %v2874
                  %v2876 = vld [vmem:[%s2298 + $0x900] sm:$0xff]
                  %2877 = vst [vmem:[%s2299 + $0x480] sm:$0xff] %v2876
                  %v2878 = vld [vmem:[%s2298 + $0x904] sm:$0xff]
                  %2879 = vst [vmem:[%s2299 + $0x484] sm:$0xff] %v2878
                  %v2880 = vld [vmem:[%s2298 + $0x908] sm:$0xff]
                  %2881 = vst [vmem:[%s2299 + $0x488] sm:$0xff] %v2880
                  %v2882 = vld [vmem:[%s2298 + $0x90c] sm:$0xff]
                  %2883 = vst [vmem:[%s2299 + $0x48c] sm:$0xff] %v2882
                  %v2884 = vld [vmem:[%s2298 + $0x910] sm:$0xff]
                  %2885 = vst [vmem:[%s2299 + $0x490] sm:$0xff] %v2884
                  %v2886 = vld [vmem:[%s2298 + $0x914] sm:$0xff]
                  %2887 = vst [vmem:[%s2299 + $0x494] sm:$0xff] %v2886
                  %v2888 = vld [vmem:[%s2298 + $0x918] sm:$0xff]
                  %2889 = vst [vmem:[%s2299 + $0x498] sm:$0xff] %v2888
                  %v2890 = vld [vmem:[%s2298 + $0x91c] sm:$0xff]
                  %2891 = vst [vmem:[%s2299 + $0x49c] sm:$0xff] %v2890
                  %v2892 = vld [vmem:[%s2298 + $0x920] sm:$0xff]
                  %2893 = vst [vmem:[%s2299 + $0x4a0] sm:$0xff] %v2892
                  %v2894 = vld [vmem:[%s2298 + $0x924] sm:$0xff]
                  %2895 = vst [vmem:[%s2299 + $0x4a4] sm:$0xff] %v2894
                  %v2896 = vld [vmem:[%s2298 + $0x928] sm:$0xff]
                  %2897 = vst [vmem:[%s2299 + $0x4a8] sm:$0xff] %v2896
                  %v2898 = vld [vmem:[%s2298 + $0x92c] sm:$0xff]
                  %2899 = vst [vmem:[%s2299 + $0x4ac] sm:$0xff] %v2898
                  %v2900 = vld [vmem:[%s2298 + $0x930] sm:$0xff]
                  %2901 = vst [vmem:[%s2299 + $0x4b0] sm:$0xff] %v2900
                  %v2902 = vld [vmem:[%s2298 + $0x934] sm:$0xff]
                  %2903 = vst [vmem:[%s2299 + $0x4b4] sm:$0xff] %v2902
                  %v2904 = vld [vmem:[%s2298 + $0x938] sm:$0xff]
                  %2905 = vst [vmem:[%s2299 + $0x4b8] sm:$0xff] %v2904
                  %v2906 = vld [vmem:[%s2298 + $0x93c] sm:$0xff]
                  %2907 = vst [vmem:[%s2299 + $0x4bc] sm:$0xff] %v2906
                  %v2908 = vld [vmem:[%s2298 + $0x980] sm:$0xff]
                  %2909 = vst [vmem:[%s2299 + $0x4c0] sm:$0xff] %v2908
                  %v2910 = vld [vmem:[%s2298 + $0x984] sm:$0xff]
                  %2911 = vst [vmem:[%s2299 + $0x4c4] sm:$0xff] %v2910
                  %v2912 = vld [vmem:[%s2298 + $0x988] sm:$0xff]
                  %2913 = vst [vmem:[%s2299 + $0x4c8] sm:$0xff] %v2912
                  %v2914 = vld [vmem:[%s2298 + $0x98c] sm:$0xff]
                  %2915 = vst [vmem:[%s2299 + $0x4cc] sm:$0xff] %v2914
                  %v2916 = vld [vmem:[%s2298 + $0x990] sm:$0xff]
                  %2917 = vst [vmem:[%s2299 + $0x4d0] sm:$0xff] %v2916
                  %v2918 = vld [vmem:[%s2298 + $0x994] sm:$0xff]
                  %2919 = vst [vmem:[%s2299 + $0x4d4] sm:$0xff] %v2918
                  %v2920 = vld [vmem:[%s2298 + $0x998] sm:$0xff]
                  %2921 = vst [vmem:[%s2299 + $0x4d8] sm:$0xff] %v2920
                  %v2922 = vld [vmem:[%s2298 + $0x99c] sm:$0xff]
                  %2923 = vst [vmem:[%s2299 + $0x4dc] sm:$0xff] %v2922
                  %v2924 = vld [vmem:[%s2298 + $0x9a0] sm:$0xff]
                  %2925 = vst [vmem:[%s2299 + $0x4e0] sm:$0xff] %v2924
                  %v2926 = vld [vmem:[%s2298 + $0x9a4] sm:$0xff]
                  %2927 = vst [vmem:[%s2299 + $0x4e4] sm:$0xff] %v2926
                  %v2928 = vld [vmem:[%s2298 + $0x9a8] sm:$0xff]
                  %2929 = vst [vmem:[%s2299 + $0x4e8] sm:$0xff] %v2928
                  %v2930 = vld [vmem:[%s2298 + $0x9ac] sm:$0xff]
                  %2931 = vst [vmem:[%s2299 + $0x4ec] sm:$0xff] %v2930
                  %v2932 = vld [vmem:[%s2298 + $0x9b0] sm:$0xff]
                  %2933 = vst [vmem:[%s2299 + $0x4f0] sm:$0xff] %v2932
                  %v2934 = vld [vmem:[%s2298 + $0x9b4] sm:$0xff]
                  %2935 = vst [vmem:[%s2299 + $0x4f4] sm:$0xff] %v2934
                  %v2936 = vld [vmem:[%s2298 + $0x9b8] sm:$0xff]
                  %2937 = vst [vmem:[%s2299 + $0x4f8] sm:$0xff] %v2936
                  %v2938 = vld [vmem:[%s2298 + $0x9bc] sm:$0xff]
                  %2939 = vst [vmem:[%s2299 + $0x4fc] sm:$0xff] %v2938
                  %v2940 = vld [vmem:[%s2298 + $0xa00] sm:$0xff]
                  %2941 = vst [vmem:[%s2299 + $0x500] sm:$0xff] %v2940
                  %v2942 = vld [vmem:[%s2298 + $0xa04] sm:$0xff]
                  %2943 = vst [vmem:[%s2299 + $0x504] sm:$0xff] %v2942
                  %v2944 = vld [vmem:[%s2298 + $0xa08] sm:$0xff]
                  %2945 = vst [vmem:[%s2299 + $0x508] sm:$0xff] %v2944
                  %v2946 = vld [vmem:[%s2298 + $0xa0c] sm:$0xff]
                  %2947 = vst [vmem:[%s2299 + $0x50c] sm:$0xff] %v2946
                  %v2948 = vld [vmem:[%s2298 + $0xa10] sm:$0xff]
                  %2949 = vst [vmem:[%s2299 + $0x510] sm:$0xff] %v2948
                  %v2950 = vld [vmem:[%s2298 + $0xa14] sm:$0xff]
                  %2951 = vst [vmem:[%s2299 + $0x514] sm:$0xff] %v2950
                  %v2952 = vld [vmem:[%s2298 + $0xa18] sm:$0xff]
                  %2953 = vst [vmem:[%s2299 + $0x518] sm:$0xff] %v2952
                  %v2954 = vld [vmem:[%s2298 + $0xa1c] sm:$0xff]
                  %2955 = vst [vmem:[%s2299 + $0x51c] sm:$0xff] %v2954
                  %v2956 = vld [vmem:[%s2298 + $0xa20] sm:$0xff]
                  %2957 = vst [vmem:[%s2299 + $0x520] sm:$0xff] %v2956
                  %v2958 = vld [vmem:[%s2298 + $0xa24] sm:$0xff]
                  %2959 = vst [vmem:[%s2299 + $0x524] sm:$0xff] %v2958
                  %v2960 = vld [vmem:[%s2298 + $0xa28] sm:$0xff]
                  %2961 = vst [vmem:[%s2299 + $0x528] sm:$0xff] %v2960
                  %v2962 = vld [vmem:[%s2298 + $0xa2c] sm:$0xff]
                  %2963 = vst [vmem:[%s2299 + $0x52c] sm:$0xff] %v2962
                  %v2964 = vld [vmem:[%s2298 + $0xa30] sm:$0xff]
                  %2965 = vst [vmem:[%s2299 + $0x530] sm:$0xff] %v2964
                  %v2966 = vld [vmem:[%s2298 + $0xa34] sm:$0xff]
                  %2967 = vst [vmem:[%s2299 + $0x534] sm:$0xff] %v2966
                  %v2968 = vld [vmem:[%s2298 + $0xa38] sm:$0xff]
                  %2969 = vst [vmem:[%s2299 + $0x538] sm:$0xff] %v2968
                  %v2970 = vld [vmem:[%s2298 + $0xa3c] sm:$0xff]
                  %2971 = vst [vmem:[%s2299 + $0x53c] sm:$0xff] %v2970
                  %v2972 = vld [vmem:[%s2298 + $0xa80] sm:$0xff]
                  %2973 = vst [vmem:[%s2299 + $0x540] sm:$0xff] %v2972
                  %v2974 = vld [vmem:[%s2298 + $0xa84] sm:$0xff]
                  %2975 = vst [vmem:[%s2299 + $0x544] sm:$0xff] %v2974
                  %v2976 = vld [vmem:[%s2298 + $0xa88] sm:$0xff]
                  %2977 = vst [vmem:[%s2299 + $0x548] sm:$0xff] %v2976
                  %v2978 = vld [vmem:[%s2298 + $0xa8c] sm:$0xff]
                  %2979 = vst [vmem:[%s2299 + $0x54c] sm:$0xff] %v2978
                  %v2980 = vld [vmem:[%s2298 + $0xa90] sm:$0xff]
                  %2981 = vst [vmem:[%s2299 + $0x550] sm:$0xff] %v2980
                  %v2982 = vld [vmem:[%s2298 + $0xa94] sm:$0xff]
                  %2983 = vst [vmem:[%s2299 + $0x554] sm:$0xff] %v2982
                  %v2984 = vld [vmem:[%s2298 + $0xa98] sm:$0xff]
                  %2985 = vst [vmem:[%s2299 + $0x558] sm:$0xff] %v2984
                  %v2986 = vld [vmem:[%s2298 + $0xa9c] sm:$0xff]
                  %2987 = vst [vmem:[%s2299 + $0x55c] sm:$0xff] %v2986
                  %v2988 = vld [vmem:[%s2298 + $0xaa0] sm:$0xff]
                  %2989 = vst [vmem:[%s2299 + $0x560] sm:$0xff] %v2988
                  %v2990 = vld [vmem:[%s2298 + $0xaa4] sm:$0xff]
                  %2991 = vst [vmem:[%s2299 + $0x564] sm:$0xff] %v2990
                  %v2992 = vld [vmem:[%s2298 + $0xaa8] sm:$0xff]
                  %2993 = vst [vmem:[%s2299 + $0x568] sm:$0xff] %v2992
                  %v2994 = vld [vmem:[%s2298 + $0xaac] sm:$0xff]
                  %2995 = vst [vmem:[%s2299 + $0x56c] sm:$0xff] %v2994
                  %v2996 = vld [vmem:[%s2298 + $0xab0] sm:$0xff]
                  %2997 = vst [vmem:[%s2299 + $0x570] sm:$0xff] %v2996
                  %v2998 = vld [vmem:[%s2298 + $0xab4] sm:$0xff]
                  %2999 = vst [vmem:[%s2299 + $0x574] sm:$0xff] %v2998
                  %v3000 = vld [vmem:[%s2298 + $0xab8] sm:$0xff]
                  %3001 = vst [vmem:[%s2299 + $0x578] sm:$0xff] %v3000
                  %v3002 = vld [vmem:[%s2298 + $0xabc] sm:$0xff]
                  %3003 = vst [vmem:[%s2299 + $0x57c] sm:$0xff] %v3002
                  %v3004 = vld [vmem:[%s2298 + $0xb00] sm:$0xff]
                  %3005 = vst [vmem:[%s2299 + $0x580] sm:$0xff] %v3004
                  %v3006 = vld [vmem:[%s2298 + $0xb04] sm:$0xff]
                  %3007 = vst [vmem:[%s2299 + $0x584] sm:$0xff] %v3006
                  %v3008 = vld [vmem:[%s2298 + $0xb08] sm:$0xff]
                  %3009 = vst [vmem:[%s2299 + $0x588] sm:$0xff] %v3008
                  %v3010 = vld [vmem:[%s2298 + $0xb0c] sm:$0xff]
                  %3011 = vst [vmem:[%s2299 + $0x58c] sm:$0xff] %v3010
                  %v3012 = vld [vmem:[%s2298 + $0xb10] sm:$0xff]
                  %3013 = vst [vmem:[%s2299 + $0x590] sm:$0xff] %v3012
                  %v3014 = vld [vmem:[%s2298 + $0xb14] sm:$0xff]
                  %3015 = vst [vmem:[%s2299 + $0x594] sm:$0xff] %v3014
                  %v3016 = vld [vmem:[%s2298 + $0xb18] sm:$0xff]
                  %3017 = vst [vmem:[%s2299 + $0x598] sm:$0xff] %v3016
                  %v3018 = vld [vmem:[%s2298 + $0xb1c] sm:$0xff]
                  %3019 = vst [vmem:[%s2299 + $0x59c] sm:$0xff] %v3018
                  %v3020 = vld [vmem:[%s2298 + $0xb20] sm:$0xff]
                  %3021 = vst [vmem:[%s2299 + $0x5a0] sm:$0xff] %v3020
                  %v3022 = vld [vmem:[%s2298 + $0xb24] sm:$0xff]
                  %3023 = vst [vmem:[%s2299 + $0x5a4] sm:$0xff] %v3022
                  %v3024 = vld [vmem:[%s2298 + $0xb28] sm:$0xff]
                  %3025 = vst [vmem:[%s2299 + $0x5a8] sm:$0xff] %v3024
                  %v3026 = vld [vmem:[%s2298 + $0xb2c] sm:$0xff]
                  %3027 = vst [vmem:[%s2299 + $0x5ac] sm:$0xff] %v3026
                  %v3028 = vld [vmem:[%s2298 + $0xb30] sm:$0xff]
                  %3029 = vst [vmem:[%s2299 + $0x5b0] sm:$0xff] %v3028
                  %v3030 = vld [vmem:[%s2298 + $0xb34] sm:$0xff]
                  %3031 = vst [vmem:[%s2299 + $0x5b4] sm:$0xff] %v3030
                  %v3032 = vld [vmem:[%s2298 + $0xb38] sm:$0xff]
                  %3033 = vst [vmem:[%s2299 + $0x5b8] sm:$0xff] %v3032
                  %v3034 = vld [vmem:[%s2298 + $0xb3c] sm:$0xff]
                  %3035 = vst [vmem:[%s2299 + $0x5bc] sm:$0xff] %v3034
                  %v3036 = vld [vmem:[%s2298 + $0xb80] sm:$0xff]
                  %3037 = vst [vmem:[%s2299 + $0x5c0] sm:$0xff] %v3036
                  %v3038 = vld [vmem:[%s2298 + $0xb84] sm:$0xff]
                  %3039 = vst [vmem:[%s2299 + $0x5c4] sm:$0xff] %v3038
                  %v3040 = vld [vmem:[%s2298 + $0xb88] sm:$0xff]
                  %3041 = vst [vmem:[%s2299 + $0x5c8] sm:$0xff] %v3040
                  %v3042 = vld [vmem:[%s2298 + $0xb8c] sm:$0xff]
                  %3043 = vst [vmem:[%s2299 + $0x5cc] sm:$0xff] %v3042
                  %v3044 = vld [vmem:[%s2298 + $0xb90] sm:$0xff]
                  %3045 = vst [vmem:[%s2299 + $0x5d0] sm:$0xff] %v3044
                  %v3046 = vld [vmem:[%s2298 + $0xb94] sm:$0xff]
                  %3047 = vst [vmem:[%s2299 + $0x5d4] sm:$0xff] %v3046
                  %v3048 = vld [vmem:[%s2298 + $0xb98] sm:$0xff]
                  %3049 = vst [vmem:[%s2299 + $0x5d8] sm:$0xff] %v3048
                  %v3050 = vld [vmem:[%s2298 + $0xb9c] sm:$0xff]
                  %3051 = vst [vmem:[%s2299 + $0x5dc] sm:$0xff] %v3050
                  %v3052 = vld [vmem:[%s2298 + $0xba0] sm:$0xff]
                  %3053 = vst [vmem:[%s2299 + $0x5e0] sm:$0xff] %v3052
                  %v3054 = vld [vmem:[%s2298 + $0xba4] sm:$0xff]
                  %3055 = vst [vmem:[%s2299 + $0x5e4] sm:$0xff] %v3054
                  %v3056 = vld [vmem:[%s2298 + $0xba8] sm:$0xff]
                  %3057 = vst [vmem:[%s2299 + $0x5e8] sm:$0xff] %v3056
                  %v3058 = vld [vmem:[%s2298 + $0xbac] sm:$0xff]
                  %3059 = vst [vmem:[%s2299 + $0x5ec] sm:$0xff] %v3058
                  %v3060 = vld [vmem:[%s2298 + $0xbb0] sm:$0xff]
                  %3061 = vst [vmem:[%s2299 + $0x5f0] sm:$0xff] %v3060
                  %v3062 = vld [vmem:[%s2298 + $0xbb4] sm:$0xff]
                  %3063 = vst [vmem:[%s2299 + $0x5f4] sm:$0xff] %v3062
                  %v3064 = vld [vmem:[%s2298 + $0xbb8] sm:$0xff]
                  %3065 = vst [vmem:[%s2299 + $0x5f8] sm:$0xff] %v3064
                  %v3066 = vld [vmem:[%s2298 + $0xbbc] sm:$0xff]
                  %3067 = vst [vmem:[%s2299 + $0x5fc] sm:$0xff] %v3066
                  %v3068 = vld [vmem:[%s2298 + $0xc00] sm:$0xff]
                  %3069 = vst [vmem:[%s2299 + $0x600] sm:$0xff] %v3068
                  %v3070 = vld [vmem:[%s2298 + $0xc04] sm:$0xff]
                  %3071 = vst [vmem:[%s2299 + $0x604] sm:$0xff] %v3070
                  %v3072 = vld [vmem:[%s2298 + $0xc08] sm:$0xff]
                  %3073 = vst [vmem:[%s2299 + $0x608] sm:$0xff] %v3072
                  %v3074 = vld [vmem:[%s2298 + $0xc0c] sm:$0xff]
                  %3075 = vst [vmem:[%s2299 + $0x60c] sm:$0xff] %v3074
                  %v3076 = vld [vmem:[%s2298 + $0xc10] sm:$0xff]
                  %3077 = vst [vmem:[%s2299 + $0x610] sm:$0xff] %v3076
                  %v3078 = vld [vmem:[%s2298 + $0xc14] sm:$0xff]
                  %3079 = vst [vmem:[%s2299 + $0x614] sm:$0xff] %v3078
                  %v3080 = vld [vmem:[%s2298 + $0xc18] sm:$0xff]
                  %3081 = vst [vmem:[%s2299 + $0x618] sm:$0xff] %v3080
                  %v3082 = vld [vmem:[%s2298 + $0xc1c] sm:$0xff]
                  %3083 = vst [vmem:[%s2299 + $0x61c] sm:$0xff] %v3082
                  %v3084 = vld [vmem:[%s2298 + $0xc20] sm:$0xff]
                  %3085 = vst [vmem:[%s2299 + $0x620] sm:$0xff] %v3084
                  %v3086 = vld [vmem:[%s2298 + $0xc24] sm:$0xff]
                  %3087 = vst [vmem:[%s2299 + $0x624] sm:$0xff] %v3086
                  %v3088 = vld [vmem:[%s2298 + $0xc28] sm:$0xff]
                  %3089 = vst [vmem:[%s2299 + $0x628] sm:$0xff] %v3088
                  %v3090 = vld [vmem:[%s2298 + $0xc2c] sm:$0xff]
                  %3091 = vst [vmem:[%s2299 + $0x62c] sm:$0xff] %v3090
                  %v3092 = vld [vmem:[%s2298 + $0xc30] sm:$0xff]
                  %3093 = vst [vmem:[%s2299 + $0x630] sm:$0xff] %v3092
                  %v3094 = vld [vmem:[%s2298 + $0xc34] sm:$0xff]
                  %3095 = vst [vmem:[%s2299 + $0x634] sm:$0xff] %v3094
                  %v3096 = vld [vmem:[%s2298 + $0xc38] sm:$0xff]
                  %3097 = vst [vmem:[%s2299 + $0x638] sm:$0xff] %v3096
                  %v3098 = vld [vmem:[%s2298 + $0xc3c] sm:$0xff]
                  %3099 = vst [vmem:[%s2299 + $0x63c] sm:$0xff] %v3098
                  %v3100 = vld [vmem:[%s2298 + $0xc80] sm:$0xff]
                  %3101 = vst [vmem:[%s2299 + $0x640] sm:$0xff] %v3100
                  %v3102 = vld [vmem:[%s2298 + $0xc84] sm:$0xff]
                  %3103 = vst [vmem:[%s2299 + $0x644] sm:$0xff] %v3102
                  %v3104 = vld [vmem:[%s2298 + $0xc88] sm:$0xff]
                  %3105 = vst [vmem:[%s2299 + $0x648] sm:$0xff] %v3104
                  %v3106 = vld [vmem:[%s2298 + $0xc8c] sm:$0xff]
                  %3107 = vst [vmem:[%s2299 + $0x64c] sm:$0xff] %v3106
                  %v3108 = vld [vmem:[%s2298 + $0xc90] sm:$0xff]
                  %3109 = vst [vmem:[%s2299 + $0x650] sm:$0xff] %v3108
                  %v3110 = vld [vmem:[%s2298 + $0xc94] sm:$0xff]
                  %3111 = vst [vmem:[%s2299 + $0x654] sm:$0xff] %v3110
                  %v3112 = vld [vmem:[%s2298 + $0xc98] sm:$0xff]
                  %3113 = vst [vmem:[%s2299 + $0x658] sm:$0xff] %v3112
                  %v3114 = vld [vmem:[%s2298 + $0xc9c] sm:$0xff]
                  %3115 = vst [vmem:[%s2299 + $0x65c] sm:$0xff] %v3114
                  %v3116 = vld [vmem:[%s2298 + $0xca0] sm:$0xff]
                  %3117 = vst [vmem:[%s2299 + $0x660] sm:$0xff] %v3116
                  %v3118 = vld [vmem:[%s2298 + $0xca4] sm:$0xff]
                  %3119 = vst [vmem:[%s2299 + $0x664] sm:$0xff] %v3118
                  %v3120 = vld [vmem:[%s2298 + $0xca8] sm:$0xff]
                  %3121 = vst [vmem:[%s2299 + $0x668] sm:$0xff] %v3120
                  %v3122 = vld [vmem:[%s2298 + $0xcac] sm:$0xff]
                  %3123 = vst [vmem:[%s2299 + $0x66c] sm:$0xff] %v3122
                  %v3124 = vld [vmem:[%s2298 + $0xcb0] sm:$0xff]
                  %3125 = vst [vmem:[%s2299 + $0x670] sm:$0xff] %v3124
                  %v3126 = vld [vmem:[%s2298 + $0xcb4] sm:$0xff]
                  %3127 = vst [vmem:[%s2299 + $0x674] sm:$0xff] %v3126
                  %v3128 = vld [vmem:[%s2298 + $0xcb8] sm:$0xff]
                  %3129 = vst [vmem:[%s2299 + $0x678] sm:$0xff] %v3128
                  %v3130 = vld [vmem:[%s2298 + $0xcbc] sm:$0xff]
                  %3131 = vst [vmem:[%s2299 + $0x67c] sm:$0xff] %v3130
                  %v3132 = vld [vmem:[%s2298 + $0xd00] sm:$0xff]
                  %3133 = vst [vmem:[%s2299 + $0x680] sm:$0xff] %v3132
                  %v3134 = vld [vmem:[%s2298 + $0xd04] sm:$0xff]
                  %3135 = vst [vmem:[%s2299 + $0x684] sm:$0xff] %v3134
                  %v3136 = vld [vmem:[%s2298 + $0xd08] sm:$0xff]
                  %3137 = vst [vmem:[%s2299 + $0x688] sm:$0xff] %v3136
                  %v3138 = vld [vmem:[%s2298 + $0xd0c] sm:$0xff]
                  %3139 = vst [vmem:[%s2299 + $0x68c] sm:$0xff] %v3138
                  %v3140 = vld [vmem:[%s2298 + $0xd10] sm:$0xff]
                  %3141 = vst [vmem:[%s2299 + $0x690] sm:$0xff] %v3140
                  %v3142 = vld [vmem:[%s2298 + $0xd14] sm:$0xff]
                  %3143 = vst [vmem:[%s2299 + $0x694] sm:$0xff] %v3142
                  %v3144 = vld [vmem:[%s2298 + $0xd18] sm:$0xff]
                  %3145 = vst [vmem:[%s2299 + $0x698] sm:$0xff] %v3144
                  %v3146 = vld [vmem:[%s2298 + $0xd1c] sm:$0xff]
                  %3147 = vst [vmem:[%s2299 + $0x69c] sm:$0xff] %v3146
                  %v3148 = vld [vmem:[%s2298 + $0xd20] sm:$0xff]
                  %3149 = vst [vmem:[%s2299 + $0x6a0] sm:$0xff] %v3148
                  %v3150 = vld [vmem:[%s2298 + $0xd24] sm:$0xff]
                  %3151 = vst [vmem:[%s2299 + $0x6a4] sm:$0xff] %v3150
                  %v3152 = vld [vmem:[%s2298 + $0xd28] sm:$0xff]
                  %3153 = vst [vmem:[%s2299 + $0x6a8] sm:$0xff] %v3152
                  %v3154 = vld [vmem:[%s2298 + $0xd2c] sm:$0xff]
                  %3155 = vst [vmem:[%s2299 + $0x6ac] sm:$0xff] %v3154
                  %v3156 = vld [vmem:[%s2298 + $0xd30] sm:$0xff]
                  %3157 = vst [vmem:[%s2299 + $0x6b0] sm:$0xff] %v3156
                  %v3158 = vld [vmem:[%s2298 + $0xd34] sm:$0xff]
                  %3159 = vst [vmem:[%s2299 + $0x6b4] sm:$0xff] %v3158
                  %v3160 = vld [vmem:[%s2298 + $0xd38] sm:$0xff]
                  %3161 = vst [vmem:[%s2299 + $0x6b8] sm:$0xff] %v3160
                  %v3162 = vld [vmem:[%s2298 + $0xd3c] sm:$0xff]
                  %3163 = vst [vmem:[%s2299 + $0x6bc] sm:$0xff] %v3162
                  %v3164 = vld [vmem:[%s2298 + $0xd80] sm:$0xff]
                  %3165 = vst [vmem:[%s2299 + $0x6c0] sm:$0xff] %v3164
                  %v3166 = vld [vmem:[%s2298 + $0xd84] sm:$0xff]
                  %3167 = vst [vmem:[%s2299 + $0x6c4] sm:$0xff] %v3166
                  %v3168 = vld [vmem:[%s2298 + $0xd88] sm:$0xff]
                  %3169 = vst [vmem:[%s2299 + $0x6c8] sm:$0xff] %v3168
                  %v3170 = vld [vmem:[%s2298 + $0xd8c] sm:$0xff]
                  %3171 = vst [vmem:[%s2299 + $0x6cc] sm:$0xff] %v3170
                  %v3172 = vld [vmem:[%s2298 + $0xd90] sm:$0xff]
                  %3173 = vst [vmem:[%s2299 + $0x6d0] sm:$0xff] %v3172
                  %v3174 = vld [vmem:[%s2298 + $0xd94] sm:$0xff]
                  %3175 = vst [vmem:[%s2299 + $0x6d4] sm:$0xff] %v3174
                  %v3176 = vld [vmem:[%s2298 + $0xd98] sm:$0xff]
                  %3177 = vst [vmem:[%s2299 + $0x6d8] sm:$0xff] %v3176
                  %v3178 = vld [vmem:[%s2298 + $0xd9c] sm:$0xff]
                  %3179 = vst [vmem:[%s2299 + $0x6dc] sm:$0xff] %v3178
                  %v3180 = vld [vmem:[%s2298 + $0xda0] sm:$0xff]
                  %3181 = vst [vmem:[%s2299 + $0x6e0] sm:$0xff] %v3180
                  %v3182 = vld [vmem:[%s2298 + $0xda4] sm:$0xff]
                  %3183 = vst [vmem:[%s2299 + $0x6e4] sm:$0xff] %v3182
                  %v3184 = vld [vmem:[%s2298 + $0xda8] sm:$0xff]
                  %3185 = vst [vmem:[%s2299 + $0x6e8] sm:$0xff] %v3184
                  %v3186 = vld [vmem:[%s2298 + $0xdac] sm:$0xff]
                  %3187 = vst [vmem:[%s2299 + $0x6ec] sm:$0xff] %v3186
                  %v3188 = vld [vmem:[%s2298 + $0xdb0] sm:$0xff]
                  %3189 = vst [vmem:[%s2299 + $0x6f0] sm:$0xff] %v3188
                  %v3190 = vld [vmem:[%s2298 + $0xdb4] sm:$0xff]
                  %3191 = vst [vmem:[%s2299 + $0x6f4] sm:$0xff] %v3190
                  %v3192 = vld [vmem:[%s2298 + $0xdb8] sm:$0xff]
                  %3193 = vst [vmem:[%s2299 + $0x6f8] sm:$0xff] %v3192
                  %v3194 = vld [vmem:[%s2298 + $0xdbc] sm:$0xff]
                  %3195 = vst [vmem:[%s2299 + $0x6fc] sm:$0xff] %v3194
                  %v3196 = vld [vmem:[%s2298 + $0xe00] sm:$0xff]
                  %3197 = vst [vmem:[%s2299 + $0x700] sm:$0xff] %v3196
                  %v3198 = vld [vmem:[%s2298 + $0xe04] sm:$0xff]
                  %3199 = vst [vmem:[%s2299 + $0x704] sm:$0xff] %v3198
                  %v3200 = vld [vmem:[%s2298 + $0xe08] sm:$0xff]
                  %3201 = vst [vmem:[%s2299 + $0x708] sm:$0xff] %v3200
                  %v3202 = vld [vmem:[%s2298 + $0xe0c] sm:$0xff]
                  %3203 = vst [vmem:[%s2299 + $0x70c] sm:$0xff] %v3202
                  %v3204 = vld [vmem:[%s2298 + $0xe10] sm:$0xff]
                  %3205 = vst [vmem:[%s2299 + $0x710] sm:$0xff] %v3204
                  %v3206 = vld [vmem:[%s2298 + $0xe14] sm:$0xff]
                  %3207 = vst [vmem:[%s2299 + $0x714] sm:$0xff] %v3206
                  %v3208 = vld [vmem:[%s2298 + $0xe18] sm:$0xff]
                  %3209 = vst [vmem:[%s2299 + $0x718] sm:$0xff] %v3208
                  %v3210 = vld [vmem:[%s2298 + $0xe1c] sm:$0xff]
                  %3211 = vst [vmem:[%s2299 + $0x71c] sm:$0xff] %v3210
                  %v3212 = vld [vmem:[%s2298 + $0xe20] sm:$0xff]
                  %3213 = vst [vmem:[%s2299 + $0x720] sm:$0xff] %v3212
                  %v3214 = vld [vmem:[%s2298 + $0xe24] sm:$0xff]
                  %3215 = vst [vmem:[%s2299 + $0x724] sm:$0xff] %v3214
                  %v3216 = vld [vmem:[%s2298 + $0xe28] sm:$0xff]
                  %3217 = vst [vmem:[%s2299 + $0x728] sm:$0xff] %v3216
                  %v3218 = vld [vmem:[%s2298 + $0xe2c] sm:$0xff]
                  %3219 = vst [vmem:[%s2299 + $0x72c] sm:$0xff] %v3218
                  %v3220 = vld [vmem:[%s2298 + $0xe30] sm:$0xff]
                  %3221 = vst [vmem:[%s2299 + $0x730] sm:$0xff] %v3220
                  %v3222 = vld [vmem:[%s2298 + $0xe34] sm:$0xff]
                  %3223 = vst [vmem:[%s2299 + $0x734] sm:$0xff] %v3222
                  %v3224 = vld [vmem:[%s2298 + $0xe38] sm:$0xff]
                  %3225 = vst [vmem:[%s2299 + $0x738] sm:$0xff] %v3224
                  %v3226 = vld [vmem:[%s2298 + $0xe3c] sm:$0xff]
                  %3227 = vst [vmem:[%s2299 + $0x73c] sm:$0xff] %v3226
                  %v3228 = vld [vmem:[%s2298 + $0xe80] sm:$0xff]
                  %3229 = vst [vmem:[%s2299 + $0x740] sm:$0xff] %v3228
                  %v3230 = vld [vmem:[%s2298 + $0xe84] sm:$0xff]
                  %3231 = vst [vmem:[%s2299 + $0x744] sm:$0xff] %v3230
                  %v3232 = vld [vmem:[%s2298 + $0xe88] sm:$0xff]
                  %3233 = vst [vmem:[%s2299 + $0x748] sm:$0xff] %v3232
                  %v3234 = vld [vmem:[%s2298 + $0xe8c] sm:$0xff]
                  %3235 = vst [vmem:[%s2299 + $0x74c] sm:$0xff] %v3234
                  %v3236 = vld [vmem:[%s2298 + $0xe90] sm:$0xff]
                  %3237 = vst [vmem:[%s2299 + $0x750] sm:$0xff] %v3236
                  %v3238 = vld [vmem:[%s2298 + $0xe94] sm:$0xff]
                  %3239 = vst [vmem:[%s2299 + $0x754] sm:$0xff] %v3238
                  %v3240 = vld [vmem:[%s2298 + $0xe98] sm:$0xff]
                  %3241 = vst [vmem:[%s2299 + $0x758] sm:$0xff] %v3240
                  %v3242 = vld [vmem:[%s2298 + $0xe9c] sm:$0xff]
                  %3243 = vst [vmem:[%s2299 + $0x75c] sm:$0xff] %v3242
                  %v3244 = vld [vmem:[%s2298 + $0xea0] sm:$0xff]
                  %3245 = vst [vmem:[%s2299 + $0x760] sm:$0xff] %v3244
                  %v3246 = vld [vmem:[%s2298 + $0xea4] sm:$0xff]
                  %3247 = vst [vmem:[%s2299 + $0x764] sm:$0xff] %v3246
                  %v3248 = vld [vmem:[%s2298 + $0xea8] sm:$0xff]
                  %3249 = vst [vmem:[%s2299 + $0x768] sm:$0xff] %v3248
                  %v3250 = vld [vmem:[%s2298 + $0xeac] sm:$0xff]
                  %3251 = vst [vmem:[%s2299 + $0x76c] sm:$0xff] %v3250
                  %v3252 = vld [vmem:[%s2298 + $0xeb0] sm:$0xff]
                  %3253 = vst [vmem:[%s2299 + $0x770] sm:$0xff] %v3252
                  %v3254 = vld [vmem:[%s2298 + $0xeb4] sm:$0xff]
                  %3255 = vst [vmem:[%s2299 + $0x774] sm:$0xff] %v3254
                  %v3256 = vld [vmem:[%s2298 + $0xeb8] sm:$0xff]
                  %3257 = vst [vmem:[%s2299 + $0x778] sm:$0xff] %v3256
                  %v3258 = vld [vmem:[%s2298 + $0xebc] sm:$0xff]
                  %3259 = vst [vmem:[%s2299 + $0x77c] sm:$0xff] %v3258
                  %v3260 = vld [vmem:[%s2298 + $0xf00] sm:$0xff]
                  %3261 = vst [vmem:[%s2299 + $0x780] sm:$0xff] %v3260
                  %v3262 = vld [vmem:[%s2298 + $0xf04] sm:$0xff]
                  %3263 = vst [vmem:[%s2299 + $0x784] sm:$0xff] %v3262
                  %v3264 = vld [vmem:[%s2298 + $0xf08] sm:$0xff]
                  %3265 = vst [vmem:[%s2299 + $0x788] sm:$0xff] %v3264
                  %v3266 = vld [vmem:[%s2298 + $0xf0c] sm:$0xff]
                  %3267 = vst [vmem:[%s2299 + $0x78c] sm:$0xff] %v3266
                  %v3268 = vld [vmem:[%s2298 + $0xf10] sm:$0xff]
                  %3269 = vst [vmem:[%s2299 + $0x790] sm:$0xff] %v3268
                  %v3270 = vld [vmem:[%s2298 + $0xf14] sm:$0xff]
                  %3271 = vst [vmem:[%s2299 + $0x794] sm:$0xff] %v3270
                  %v3272 = vld [vmem:[%s2298 + $0xf18] sm:$0xff]
                  %3273 = vst [vmem:[%s2299 + $0x798] sm:$0xff] %v3272
                  %v3274 = vld [vmem:[%s2298 + $0xf1c] sm:$0xff]
                  %3275 = vst [vmem:[%s2299 + $0x79c] sm:$0xff] %v3274
                  %v3276 = vld [vmem:[%s2298 + $0xf20] sm:$0xff]
                  %3277 = vst [vmem:[%s2299 + $0x7a0] sm:$0xff] %v3276
                  %v3278 = vld [vmem:[%s2298 + $0xf24] sm:$0xff]
                  %3279 = vst [vmem:[%s2299 + $0x7a4] sm:$0xff] %v3278
                  %v3280 = vld [vmem:[%s2298 + $0xf28] sm:$0xff]
                  %3281 = vst [vmem:[%s2299 + $0x7a8] sm:$0xff] %v3280
                  %v3282 = vld [vmem:[%s2298 + $0xf2c] sm:$0xff]
                  %3283 = vst [vmem:[%s2299 + $0x7ac] sm:$0xff] %v3282
                  %v3284 = vld [vmem:[%s2298 + $0xf30] sm:$0xff]
                  %3285 = vst [vmem:[%s2299 + $0x7b0] sm:$0xff] %v3284
                  %v3286 = vld [vmem:[%s2298 + $0xf34] sm:$0xff]
                  %3287 = vst [vmem:[%s2299 + $0x7b4] sm:$0xff] %v3286
                  %v3288 = vld [vmem:[%s2298 + $0xf38] sm:$0xff]
                  %3289 = vst [vmem:[%s2299 + $0x7b8] sm:$0xff] %v3288
                  %v3290 = vld [vmem:[%s2298 + $0xf3c] sm:$0xff]
                  %3291 = vst [vmem:[%s2299 + $0x7bc] sm:$0xff] %v3290
                  %v3292 = vld [vmem:[%s2298 + $0xf80] sm:$0xff]
                  %3293 = vst [vmem:[%s2299 + $0x7c0] sm:$0xff] %v3292
                  %v3294 = vld [vmem:[%s2298 + $0xf84] sm:$0xff]
                  %3295 = vst [vmem:[%s2299 + $0x7c4] sm:$0xff] %v3294
                  %v3296 = vld [vmem:[%s2298 + $0xf88] sm:$0xff]
                  %3297 = vst [vmem:[%s2299 + $0x7c8] sm:$0xff] %v3296
                  %v3298 = vld [vmem:[%s2298 + $0xf8c] sm:$0xff]
                  %3299 = vst [vmem:[%s2299 + $0x7cc] sm:$0xff] %v3298
                  %v3300 = vld [vmem:[%s2298 + $0xf90] sm:$0xff]
                  %3301 = vst [vmem:[%s2299 + $0x7d0] sm:$0xff] %v3300
                  %v3302 = vld [vmem:[%s2298 + $0xf94] sm:$0xff]
                  %3303 = vst [vmem:[%s2299 + $0x7d4] sm:$0xff] %v3302
                  %v3304 = vld [vmem:[%s2298 + $0xf98] sm:$0xff]
                  %3305 = vst [vmem:[%s2299 + $0x7d8] sm:$0xff] %v3304
                  %v3306 = vld [vmem:[%s2298 + $0xf9c] sm:$0xff]
                  %3307 = vst [vmem:[%s2299 + $0x7dc] sm:$0xff] %v3306
                  %v3308 = vld [vmem:[%s2298 + $0xfa0] sm:$0xff]
                  %3309 = vst [vmem:[%s2299 + $0x7e0] sm:$0xff] %v3308
                  %v3310 = vld [vmem:[%s2298 + $0xfa4] sm:$0xff]
                  %3311 = vst [vmem:[%s2299 + $0x7e4] sm:$0xff] %v3310
                  %v3312 = vld [vmem:[%s2298 + $0xfa8] sm:$0xff]
                  %3313 = vst [vmem:[%s2299 + $0x7e8] sm:$0xff] %v3312
                  %v3314 = vld [vmem:[%s2298 + $0xfac] sm:$0xff]
                  %3315 = vst [vmem:[%s2299 + $0x7ec] sm:$0xff] %v3314
                  %v3316 = vld [vmem:[%s2298 + $0xfb0] sm:$0xff]
                  %3317 = vst [vmem:[%s2299 + $0x7f0] sm:$0xff] %v3316
                  %v3318 = vld [vmem:[%s2298 + $0xfb4] sm:$0xff]
                  %3319 = vst [vmem:[%s2299 + $0x7f4] sm:$0xff] %v3318
                  %v3320 = vld [vmem:[%s2298 + $0xfb8] sm:$0xff]
                  %3321 = vst [vmem:[%s2299 + $0x7f8] sm:$0xff] %v3320
                  %v3322 = vld [vmem:[%s2298 + $0xfbc] sm:$0xff]
                  %3323 = vst [vmem:[%s2299 + $0x7fc] sm:$0xff] %v3322
                  %s3324 = sadd.s32 1, %s2297
                  %p3325 = scmp.ge.s32.totalorder %s3324, 0
                  %s3326 = scalar_select %p3325, 0, %s3324
                  %s3327 = smul.u32 %s3326, 8
                  %s3328 = smul.u32 %s3326, 8
                  %s3329 = scalar_lea.vmem %s206, %s3327
                  %s3330 = scalar_lea.vmem %s200, %s3328 [#allocation4]
                $region63: #{tpu_custom_call.1} parent=57 // loop_footer
                  %s2296 = sadd.s32 1, %s2292
                $region64: #{tpu_custom_call.1} parent=57 // loop_footer_branch
                  %2291 = sbr.rel target = $region60
                $region65: #{tpu_custom_call.1} parent=57 // loop_exit
                  _
                %s3332 = ssub.s32 16, 1
                loop: start=0, step=1, limit=1
                $region66: #{tpu_custom_call.1} parent=57 // loop_pre_header
                  _
                $region67: #{tpu_custom_call.1} parent=57 // loop_header
                  %s3334 = sphi 0, %s3338
                  %p3335 = scmp.ge.s32.totalorder %s3334, 1
                  %s3339 = sphi %s206, %s206
                  %s3340 = sphi %s200, %s200
                $region68: #{tpu_custom_call.1} parent=57 // loop_header_branch
                  %3337 = sbr.rel (%p3335) target = $region72
                $region69: #{tpu_custom_call.1} parent=57 // loop_body
                  %v3341 = vld [vmem:[%s3339] sm:%s3332]
                  %3342 = vst [vmem:[%s3340] sm:%s3332] %v3341
                  %v3343 = vld [vmem:[%s3339 + $0x4] sm:%s3332]
                  %3344 = vst [vmem:[%s3340 + $0x4] sm:%s3332] %v3343
                  %v3345 = vld [vmem:[%s3339 + $0x8] sm:%s3332]
                  %3346 = vst [vmem:[%s3340 + $0x8] sm:%s3332] %v3345
                  %v3347 = vld [vmem:[%s3339 + $0xc] sm:%s3332]
                  %3348 = vst [vmem:[%s3340 + $0xc] sm:%s3332] %v3347
                  %v3349 = vld [vmem:[%s3339 + $0x10] sm:%s3332]
                  %3350 = vst [vmem:[%s3340 + $0x10] sm:%s3332] %v3349
                  %v3351 = vld [vmem:[%s3339 + $0x14] sm:%s3332]
                  %3352 = vst [vmem:[%s3340 + $0x14] sm:%s3332] %v3351
                  %v3353 = vld [vmem:[%s3339 + $0x18] sm:%s3332]
                  %3354 = vst [vmem:[%s3340 + $0x18] sm:%s3332] %v3353
                  %v3355 = vld [vmem:[%s3339 + $0x1c] sm:%s3332]
                  %3356 = vst [vmem:[%s3340 + $0x1c] sm:%s3332] %v3355
                  %v3357 = vld [vmem:[%s3339 + $0x20] sm:%s3332]
                  %3358 = vst [vmem:[%s3340 + $0x20] sm:%s3332] %v3357
                  %v3359 = vld [vmem:[%s3339 + $0x24] sm:%s3332]
                  %3360 = vst [vmem:[%s3340 + $0x24] sm:%s3332] %v3359
                  %v3361 = vld [vmem:[%s3339 + $0x28] sm:%s3332]
                  %3362 = vst [vmem:[%s3340 + $0x28] sm:%s3332] %v3361
                  %v3363 = vld [vmem:[%s3339 + $0x2c] sm:%s3332]
                  %3364 = vst [vmem:[%s3340 + $0x2c] sm:%s3332] %v3363
                  %v3365 = vld [vmem:[%s3339 + $0x30] sm:%s3332]
                  %3366 = vst [vmem:[%s3340 + $0x30] sm:%s3332] %v3365
                  %v3367 = vld [vmem:[%s3339 + $0x34] sm:%s3332]
                  %3368 = vst [vmem:[%s3340 + $0x34] sm:%s3332] %v3367
                  %v3369 = vld [vmem:[%s3339 + $0x38] sm:%s3332]
                  %3370 = vst [vmem:[%s3340 + $0x38] sm:%s3332] %v3369
                  %v3371 = vld [vmem:[%s3339 + $0x3c] sm:%s3332]
                  %3372 = vst [vmem:[%s3340 + $0x3c] sm:%s3332] %v3371
                  %v3373 = vld [vmem:[%s3339 + $0x80] sm:%s3332]
                  %3374 = vst [vmem:[%s3340 + $0x40] sm:%s3332] %v3373
                  %v3375 = vld [vmem:[%s3339 + $0x84] sm:%s3332]
                  %3376 = vst [vmem:[%s3340 + $0x44] sm:%s3332] %v3375
                  %v3377 = vld [vmem:[%s3339 + $0x88] sm:%s3332]
                  %3378 = vst [vmem:[%s3340 + $0x48] sm:%s3332] %v3377
                  %v3379 = vld [vmem:[%s3339 + $0x8c] sm:%s3332]
                  %3380 = vst [vmem:[%s3340 + $0x4c] sm:%s3332] %v3379
                  %v3381 = vld [vmem:[%s3339 + $0x90] sm:%s3332]
                  %3382 = vst [vmem:[%s3340 + $0x50] sm:%s3332] %v3381
                  %v3383 = vld [vmem:[%s3339 + $0x94] sm:%s3332]
                  %3384 = vst [vmem:[%s3340 + $0x54] sm:%s3332] %v3383
                  %v3385 = vld [vmem:[%s3339 + $0x98] sm:%s3332]
                  %3386 = vst [vmem:[%s3340 + $0x58] sm:%s3332] %v3385
                  %v3387 = vld [vmem:[%s3339 + $0x9c] sm:%s3332]
                  %3388 = vst [vmem:[%s3340 + $0x5c] sm:%s3332] %v3387
                  %v3389 = vld [vmem:[%s3339 + $0xa0] sm:%s3332]
                  %3390 = vst [vmem:[%s3340 + $0x60] sm:%s3332] %v3389
                  %v3391 = vld [vmem:[%s3339 + $0xa4] sm:%s3332]
                  %3392 = vst [vmem:[%s3340 + $0x64] sm:%s3332] %v3391
                  %v3393 = vld [vmem:[%s3339 + $0xa8] sm:%s3332]
                  %3394 = vst [vmem:[%s3340 + $0x68] sm:%s3332] %v3393
                  %v3395 = vld [vmem:[%s3339 + $0xac] sm:%s3332]
                  %3396 = vst [vmem:[%s3340 + $0x6c] sm:%s3332] %v3395
                  %v3397 = vld [vmem:[%s3339 + $0xb0] sm:%s3332]
                  %3398 = vst [vmem:[%s3340 + $0x70] sm:%s3332] %v3397
                  %v3399 = vld [vmem:[%s3339 + $0xb4] sm:%s3332]
                  %3400 = vst [vmem:[%s3340 + $0x74] sm:%s3332] %v3399
                  %v3401 = vld [vmem:[%s3339 + $0xb8] sm:%s3332]
                  %3402 = vst [vmem:[%s3340 + $0x78] sm:%s3332] %v3401
                  %v3403 = vld [vmem:[%s3339 + $0xbc] sm:%s3332]
                  %3404 = vst [vmem:[%s3340 + $0x7c] sm:%s3332] %v3403
                  %v3405 = vld [vmem:[%s3339 + $0x100] sm:%s3332]
                  %3406 = vst [vmem:[%s3340 + $0x80] sm:%s3332] %v3405
                  %v3407 = vld [vmem:[%s3339 + $0x104] sm:%s3332]
                  %3408 = vst [vmem:[%s3340 + $0x84] sm:%s3332] %v3407
                  %v3409 = vld [vmem:[%s3339 + $0x108] sm:%s3332]
                  %3410 = vst [vmem:[%s3340 + $0x88] sm:%s3332] %v3409
                  %v3411 = vld [vmem:[%s3339 + $0x10c] sm:%s3332]
                  %3412 = vst [vmem:[%s3340 + $0x8c] sm:%s3332] %v3411
                  %v3413 = vld [vmem:[%s3339 + $0x110] sm:%s3332]
                  %3414 = vst [vmem:[%s3340 + $0x90] sm:%s3332] %v3413
                  %v3415 = vld [vmem:[%s3339 + $0x114] sm:%s3332]
                  %3416 = vst [vmem:[%s3340 + $0x94] sm:%s3332] %v3415
                  %v3417 = vld [vmem:[%s3339 + $0x118] sm:%s3332]
                  %3418 = vst [vmem:[%s3340 + $0x98] sm:%s3332] %v3417
                  %v3419 = vld [vmem:[%s3339 + $0x11c] sm:%s3332]
                  %3420 = vst [vmem:[%s3340 + $0x9c] sm:%s3332] %v3419
                  %v3421 = vld [vmem:[%s3339 + $0x120] sm:%s3332]
                  %3422 = vst [vmem:[%s3340 + $0xa0] sm:%s3332] %v3421
                  %v3423 = vld [vmem:[%s3339 + $0x124] sm:%s3332]
                  %3424 = vst [vmem:[%s3340 + $0xa4] sm:%s3332] %v3423
                  %v3425 = vld [vmem:[%s3339 + $0x128] sm:%s3332]
                  %3426 = vst [vmem:[%s3340 + $0xa8] sm:%s3332] %v3425
                  %v3427 = vld [vmem:[%s3339 + $0x12c] sm:%s3332]
                  %3428 = vst [vmem:[%s3340 + $0xac] sm:%s3332] %v3427
                  %v3429 = vld [vmem:[%s3339 + $0x130] sm:%s3332]
                  %3430 = vst [vmem:[%s3340 + $0xb0] sm:%s3332] %v3429
                  %v3431 = vld [vmem:[%s3339 + $0x134] sm:%s3332]
                  %3432 = vst [vmem:[%s3340 + $0xb4] sm:%s3332] %v3431
                  %v3433 = vld [vmem:[%s3339 + $0x138] sm:%s3332]
                  %3434 = vst [vmem:[%s3340 + $0xb8] sm:%s3332] %v3433
                  %v3435 = vld [vmem:[%s3339 + $0x13c] sm:%s3332]
                  %3436 = vst [vmem:[%s3340 + $0xbc] sm:%s3332] %v3435
                  %v3437 = vld [vmem:[%s3339 + $0x180] sm:%s3332]
                  %3438 = vst [vmem:[%s3340 + $0xc0] sm:%s3332] %v3437
                  %v3439 = vld [vmem:[%s3339 + $0x184] sm:%s3332]
                  %3440 = vst [vmem:[%s3340 + $0xc4] sm:%s3332] %v3439
                  %v3441 = vld [vmem:[%s3339 + $0x188] sm:%s3332]
                  %3442 = vst [vmem:[%s3340 + $0xc8] sm:%s3332] %v3441
                  %v3443 = vld [vmem:[%s3339 + $0x18c] sm:%s3332]
                  %3444 = vst [vmem:[%s3340 + $0xcc] sm:%s3332] %v3443
                  %v3445 = vld [vmem:[%s3339 + $0x190] sm:%s3332]
                  %3446 = vst [vmem:[%s3340 + $0xd0] sm:%s3332] %v3445
                  %v3447 = vld [vmem:[%s3339 + $0x194] sm:%s3332]
                  %3448 = vst [vmem:[%s3340 + $0xd4] sm:%s3332] %v3447
                  %v3449 = vld [vmem:[%s3339 + $0x198] sm:%s3332]
                  %3450 = vst [vmem:[%s3340 + $0xd8] sm:%s3332] %v3449
                  %v3451 = vld [vmem:[%s3339 + $0x19c] sm:%s3332]
                  %3452 = vst [vmem:[%s3340 + $0xdc] sm:%s3332] %v3451
                  %v3453 = vld [vmem:[%s3339 + $0x1a0] sm:%s3332]
                  %3454 = vst [vmem:[%s3340 + $0xe0] sm:%s3332] %v3453
                  %v3455 = vld [vmem:[%s3339 + $0x1a4] sm:%s3332]
                  %3456 = vst [vmem:[%s3340 + $0xe4] sm:%s3332] %v3455
                  %v3457 = vld [vmem:[%s3339 + $0x1a8] sm:%s3332]
                  %3458 = vst [vmem:[%s3340 + $0xe8] sm:%s3332] %v3457
                  %v3459 = vld [vmem:[%s3339 + $0x1ac] sm:%s3332]
                  %3460 = vst [vmem:[%s3340 + $0xec] sm:%s3332] %v3459
                  %v3461 = vld [vmem:[%s3339 + $0x1b0] sm:%s3332]
                  %3462 = vst [vmem:[%s3340 + $0xf0] sm:%s3332] %v3461
                  %v3463 = vld [vmem:[%s3339 + $0x1b4] sm:%s3332]
                  %3464 = vst [vmem:[%s3340 + $0xf4] sm:%s3332] %v3463
                  %v3465 = vld [vmem:[%s3339 + $0x1b8] sm:%s3332]
                  %3466 = vst [vmem:[%s3340 + $0xf8] sm:%s3332] %v3465
                  %v3467 = vld [vmem:[%s3339 + $0x1bc] sm:%s3332]
                  %3468 = vst [vmem:[%s3340 + $0xfc] sm:%s3332] %v3467
                  %v3469 = vld [vmem:[%s3339 + $0x200] sm:%s3332]
                  %3470 = vst [vmem:[%s3340 + $0x100] sm:%s3332] %v3469
                  %v3471 = vld [vmem:[%s3339 + $0x204] sm:%s3332]
                  %3472 = vst [vmem:[%s3340 + $0x104] sm:%s3332] %v3471
                  %v3473 = vld [vmem:[%s3339 + $0x208] sm:%s3332]
                  %3474 = vst [vmem:[%s3340 + $0x108] sm:%s3332] %v3473
                  %v3475 = vld [vmem:[%s3339 + $0x20c] sm:%s3332]
                  %3476 = vst [vmem:[%s3340 + $0x10c] sm:%s3332] %v3475
                  %v3477 = vld [vmem:[%s3339 + $0x210] sm:%s3332]
                  %3478 = vst [vmem:[%s3340 + $0x110] sm:%s3332] %v3477
                  %v3479 = vld [vmem:[%s3339 + $0x214] sm:%s3332]
                  %3480 = vst [vmem:[%s3340 + $0x114] sm:%s3332] %v3479
                  %v3481 = vld [vmem:[%s3339 + $0x218] sm:%s3332]
                  %3482 = vst [vmem:[%s3340 + $0x118] sm:%s3332] %v3481
                  %v3483 = vld [vmem:[%s3339 + $0x21c] sm:%s3332]
                  %3484 = vst [vmem:[%s3340 + $0x11c] sm:%s3332] %v3483
                  %v3485 = vld [vmem:[%s3339 + $0x220] sm:%s3332]
                  %3486 = vst [vmem:[%s3340 + $0x120] sm:%s3332] %v3485
                  %v3487 = vld [vmem:[%s3339 + $0x224] sm:%s3332]
                  %3488 = vst [vmem:[%s3340 + $0x124] sm:%s3332] %v3487
                  %v3489 = vld [vmem:[%s3339 + $0x228] sm:%s3332]
                  %3490 = vst [vmem:[%s3340 + $0x128] sm:%s3332] %v3489
                  %v3491 = vld [vmem:[%s3339 + $0x22c] sm:%s3332]
                  %3492 = vst [vmem:[%s3340 + $0x12c] sm:%s3332] %v3491
                  %v3493 = vld [vmem:[%s3339 + $0x230] sm:%s3332]
                  %3494 = vst [vmem:[%s3340 + $0x130] sm:%s3332] %v3493
                  %v3495 = vld [vmem:[%s3339 + $0x234] sm:%s3332]
                  %3496 = vst [vmem:[%s3340 + $0x134] sm:%s3332] %v3495
                  %v3497 = vld [vmem:[%s3339 + $0x238] sm:%s3332]
                  %3498 = vst [vmem:[%s3340 + $0x138] sm:%s3332] %v3497
                  %v3499 = vld [vmem:[%s3339 + $0x23c] sm:%s3332]
                  %3500 = vst [vmem:[%s3340 + $0x13c] sm:%s3332] %v3499
                  %v3501 = vld [vmem:[%s3339 + $0x280] sm:%s3332]
                  %3502 = vst [vmem:[%s3340 + $0x140] sm:%s3332] %v3501
                  %v3503 = vld [vmem:[%s3339 + $0x284] sm:%s3332]
                  %3504 = vst [vmem:[%s3340 + $0x144] sm:%s3332] %v3503
                  %v3505 = vld [vmem:[%s3339 + $0x288] sm:%s3332]
                  %3506 = vst [vmem:[%s3340 + $0x148] sm:%s3332] %v3505
                  %v3507 = vld [vmem:[%s3339 + $0x28c] sm:%s3332]
                  %3508 = vst [vmem:[%s3340 + $0x14c] sm:%s3332] %v3507
                  %v3509 = vld [vmem:[%s3339 + $0x290] sm:%s3332]
                  %3510 = vst [vmem:[%s3340 + $0x150] sm:%s3332] %v3509
                  %v3511 = vld [vmem:[%s3339 + $0x294] sm:%s3332]
                  %3512 = vst [vmem:[%s3340 + $0x154] sm:%s3332] %v3511
                  %v3513 = vld [vmem:[%s3339 + $0x298] sm:%s3332]
                  %3514 = vst [vmem:[%s3340 + $0x158] sm:%s3332] %v3513
                  %v3515 = vld [vmem:[%s3339 + $0x29c] sm:%s3332]
                  %3516 = vst [vmem:[%s3340 + $0x15c] sm:%s3332] %v3515
                  %v3517 = vld [vmem:[%s3339 + $0x2a0] sm:%s3332]
                  %3518 = vst [vmem:[%s3340 + $0x160] sm:%s3332] %v3517
                  %v3519 = vld [vmem:[%s3339 + $0x2a4] sm:%s3332]
                  %3520 = vst [vmem:[%s3340 + $0x164] sm:%s3332] %v3519
                  %v3521 = vld [vmem:[%s3339 + $0x2a8] sm:%s3332]
                  %3522 = vst [vmem:[%s3340 + $0x168] sm:%s3332] %v3521
                  %v3523 = vld [vmem:[%s3339 + $0x2ac] sm:%s3332]
                  %3524 = vst [vmem:[%s3340 + $0x16c] sm:%s3332] %v3523
                  %v3525 = vld [vmem:[%s3339 + $0x2b0] sm:%s3332]
                  %3526 = vst [vmem:[%s3340 + $0x170] sm:%s3332] %v3525
                  %v3527 = vld [vmem:[%s3339 + $0x2b4] sm:%s3332]
                  %3528 = vst [vmem:[%s3340 + $0x174] sm:%s3332] %v3527
                  %v3529 = vld [vmem:[%s3339 + $0x2b8] sm:%s3332]
                  %3530 = vst [vmem:[%s3340 + $0x178] sm:%s3332] %v3529
                  %v3531 = vld [vmem:[%s3339 + $0x2bc] sm:%s3332]
                  %3532 = vst [vmem:[%s3340 + $0x17c] sm:%s3332] %v3531
                  %v3533 = vld [vmem:[%s3339 + $0x300] sm:%s3332]
                  %3534 = vst [vmem:[%s3340 + $0x180] sm:%s3332] %v3533
                  %v3535 = vld [vmem:[%s3339 + $0x304] sm:%s3332]
                  %3536 = vst [vmem:[%s3340 + $0x184] sm:%s3332] %v3535
                  %v3537 = vld [vmem:[%s3339 + $0x308] sm:%s3332]
                  %3538 = vst [vmem:[%s3340 + $0x188] sm:%s3332] %v3537
                  %v3539 = vld [vmem:[%s3339 + $0x30c] sm:%s3332]
                  %3540 = vst [vmem:[%s3340 + $0x18c] sm:%s3332] %v3539
                  %v3541 = vld [vmem:[%s3339 + $0x310] sm:%s3332]
                  %3542 = vst [vmem:[%s3340 + $0x190] sm:%s3332] %v3541
                  %v3543 = vld [vmem:[%s3339 + $0x314] sm:%s3332]
                  %3544 = vst [vmem:[%s3340 + $0x194] sm:%s3332] %v3543
                  %v3545 = vld [vmem:[%s3339 + $0x318] sm:%s3332]
                  %3546 = vst [vmem:[%s3340 + $0x198] sm:%s3332] %v3545
                  %v3547 = vld [vmem:[%s3339 + $0x31c] sm:%s3332]
                  %3548 = vst [vmem:[%s3340 + $0x19c] sm:%s3332] %v3547
                  %v3549 = vld [vmem:[%s3339 + $0x320] sm:%s3332]
                  %3550 = vst [vmem:[%s3340 + $0x1a0] sm:%s3332] %v3549
                  %v3551 = vld [vmem:[%s3339 + $0x324] sm:%s3332]
                  %3552 = vst [vmem:[%s3340 + $0x1a4] sm:%s3332] %v3551
                  %v3553 = vld [vmem:[%s3339 + $0x328] sm:%s3332]
                  %3554 = vst [vmem:[%s3340 + $0x1a8] sm:%s3332] %v3553
                  %v3555 = vld [vmem:[%s3339 + $0x32c] sm:%s3332]
                  %3556 = vst [vmem:[%s3340 + $0x1ac] sm:%s3332] %v3555
                  %v3557 = vld [vmem:[%s3339 + $0x330] sm:%s3332]
                  %3558 = vst [vmem:[%s3340 + $0x1b0] sm:%s3332] %v3557
                  %v3559 = vld [vmem:[%s3339 + $0x334] sm:%s3332]
                  %3560 = vst [vmem:[%s3340 + $0x1b4] sm:%s3332] %v3559
                  %v3561 = vld [vmem:[%s3339 + $0x338] sm:%s3332]
                  %3562 = vst [vmem:[%s3340 + $0x1b8] sm:%s3332] %v3561
                  %v3563 = vld [vmem:[%s3339 + $0x33c] sm:%s3332]
                  %3564 = vst [vmem:[%s3340 + $0x1bc] sm:%s3332] %v3563
                  %v3565 = vld [vmem:[%s3339 + $0x380] sm:%s3332]
                  %3566 = vst [vmem:[%s3340 + $0x1c0] sm:%s3332] %v3565
                  %v3567 = vld [vmem:[%s3339 + $0x384] sm:%s3332]
                  %3568 = vst [vmem:[%s3340 + $0x1c4] sm:%s3332] %v3567
                  %v3569 = vld [vmem:[%s3339 + $0x388] sm:%s3332]
                  %3570 = vst [vmem:[%s3340 + $0x1c8] sm:%s3332] %v3569
                  %v3571 = vld [vmem:[%s3339 + $0x38c] sm:%s3332]
                  %3572 = vst [vmem:[%s3340 + $0x1cc] sm:%s3332] %v3571
                  %v3573 = vld [vmem:[%s3339 + $0x390] sm:%s3332]
                  %3574 = vst [vmem:[%s3340 + $0x1d0] sm:%s3332] %v3573
                  %v3575 = vld [vmem:[%s3339 + $0x394] sm:%s3332]
                  %3576 = vst [vmem:[%s3340 + $0x1d4] sm:%s3332] %v3575
                  %v3577 = vld [vmem:[%s3339 + $0x398] sm:%s3332]
                  %3578 = vst [vmem:[%s3340 + $0x1d8] sm:%s3332] %v3577
                  %v3579 = vld [vmem:[%s3339 + $0x39c] sm:%s3332]
                  %3580 = vst [vmem:[%s3340 + $0x1dc] sm:%s3332] %v3579
                  %v3581 = vld [vmem:[%s3339 + $0x3a0] sm:%s3332]
                  %3582 = vst [vmem:[%s3340 + $0x1e0] sm:%s3332] %v3581
                  %v3583 = vld [vmem:[%s3339 + $0x3a4] sm:%s3332]
                  %3584 = vst [vmem:[%s3340 + $0x1e4] sm:%s3332] %v3583
                  %v3585 = vld [vmem:[%s3339 + $0x3a8] sm:%s3332]
                  %3586 = vst [vmem:[%s3340 + $0x1e8] sm:%s3332] %v3585
                  %v3587 = vld [vmem:[%s3339 + $0x3ac] sm:%s3332]
                  %3588 = vst [vmem:[%s3340 + $0x1ec] sm:%s3332] %v3587
                  %v3589 = vld [vmem:[%s3339 + $0x3b0] sm:%s3332]
                  %3590 = vst [vmem:[%s3340 + $0x1f0] sm:%s3332] %v3589
                  %v3591 = vld [vmem:[%s3339 + $0x3b4] sm:%s3332]
                  %3592 = vst [vmem:[%s3340 + $0x1f4] sm:%s3332] %v3591
                  %v3593 = vld [vmem:[%s3339 + $0x3b8] sm:%s3332]
                  %3594 = vst [vmem:[%s3340 + $0x1f8] sm:%s3332] %v3593
                  %v3595 = vld [vmem:[%s3339 + $0x3bc] sm:%s3332]
                  %3596 = vst [vmem:[%s3340 + $0x1fc] sm:%s3332] %v3595
                  %v3597 = vld [vmem:[%s3339 + $0x400] sm:%s3332]
                  %3598 = vst [vmem:[%s3340 + $0x200] sm:%s3332] %v3597
                  %v3599 = vld [vmem:[%s3339 + $0x404] sm:%s3332]
                  %3600 = vst [vmem:[%s3340 + $0x204] sm:%s3332] %v3599
                  %v3601 = vld [vmem:[%s3339 + $0x408] sm:%s3332]
                  %3602 = vst [vmem:[%s3340 + $0x208] sm:%s3332] %v3601
                  %v3603 = vld [vmem:[%s3339 + $0x40c] sm:%s3332]
                  %3604 = vst [vmem:[%s3340 + $0x20c] sm:%s3332] %v3603
                  %v3605 = vld [vmem:[%s3339 + $0x410] sm:%s3332]
                  %3606 = vst [vmem:[%s3340 + $0x210] sm:%s3332] %v3605
                  %v3607 = vld [vmem:[%s3339 + $0x414] sm:%s3332]
                  %3608 = vst [vmem:[%s3340 + $0x214] sm:%s3332] %v3607
                  %v3609 = vld [vmem:[%s3339 + $0x418] sm:%s3332]
                  %3610 = vst [vmem:[%s3340 + $0x218] sm:%s3332] %v3609
                  %v3611 = vld [vmem:[%s3339 + $0x41c] sm:%s3332]
                  %3612 = vst [vmem:[%s3340 + $0x21c] sm:%s3332] %v3611
                  %v3613 = vld [vmem:[%s3339 + $0x420] sm:%s3332]
                  %3614 = vst [vmem:[%s3340 + $0x220] sm:%s3332] %v3613
                  %v3615 = vld [vmem:[%s3339 + $0x424] sm:%s3332]
                  %3616 = vst [vmem:[%s3340 + $0x224] sm:%s3332] %v3615
                  %v3617 = vld [vmem:[%s3339 + $0x428] sm:%s3332]
                  %3618 = vst [vmem:[%s3340 + $0x228] sm:%s3332] %v3617
                  %v3619 = vld [vmem:[%s3339 + $0x42c] sm:%s3332]
                  %3620 = vst [vmem:[%s3340 + $0x22c] sm:%s3332] %v3619
                  %v3621 = vld [vmem:[%s3339 + $0x430] sm:%s3332]
                  %3622 = vst [vmem:[%s3340 + $0x230] sm:%s3332] %v3621
                  %v3623 = vld [vmem:[%s3339 + $0x434] sm:%s3332]
                  %3624 = vst [vmem:[%s3340 + $0x234] sm:%s3332] %v3623
                  %v3625 = vld [vmem:[%s3339 + $0x438] sm:%s3332]
                  %3626 = vst [vmem:[%s3340 + $0x238] sm:%s3332] %v3625
                  %v3627 = vld [vmem:[%s3339 + $0x43c] sm:%s3332]
                  %3628 = vst [vmem:[%s3340 + $0x23c] sm:%s3332] %v3627
                  %v3629 = vld [vmem:[%s3339 + $0x480] sm:%s3332]
                  %3630 = vst [vmem:[%s3340 + $0x240] sm:%s3332] %v3629
                  %v3631 = vld [vmem:[%s3339 + $0x484] sm:%s3332]
                  %3632 = vst [vmem:[%s3340 + $0x244] sm:%s3332] %v3631
                  %v3633 = vld [vmem:[%s3339 + $0x488] sm:%s3332]
                  %3634 = vst [vmem:[%s3340 + $0x248] sm:%s3332] %v3633
                  %v3635 = vld [vmem:[%s3339 + $0x48c] sm:%s3332]
                  %3636 = vst [vmem:[%s3340 + $0x24c] sm:%s3332] %v3635
                  %v3637 = vld [vmem:[%s3339 + $0x490] sm:%s3332]
                  %3638 = vst [vmem:[%s3340 + $0x250] sm:%s3332] %v3637
                  %v3639 = vld [vmem:[%s3339 + $0x494] sm:%s3332]
                  %3640 = vst [vmem:[%s3340 + $0x254] sm:%s3332] %v3639
                  %v3641 = vld [vmem:[%s3339 + $0x498] sm:%s3332]
                  %3642 = vst [vmem:[%s3340 + $0x258] sm:%s3332] %v3641
                  %v3643 = vld [vmem:[%s3339 + $0x49c] sm:%s3332]
                  %3644 = vst [vmem:[%s3340 + $0x25c] sm:%s3332] %v3643
                  %v3645 = vld [vmem:[%s3339 + $0x4a0] sm:%s3332]
                  %3646 = vst [vmem:[%s3340 + $0x260] sm:%s3332] %v3645
                  %v3647 = vld [vmem:[%s3339 + $0x4a4] sm:%s3332]
                  %3648 = vst [vmem:[%s3340 + $0x264] sm:%s3332] %v3647
                  %v3649 = vld [vmem:[%s3339 + $0x4a8] sm:%s3332]
                  %3650 = vst [vmem:[%s3340 + $0x268] sm:%s3332] %v3649
                  %v3651 = vld [vmem:[%s3339 + $0x4ac] sm:%s3332]
                  %3652 = vst [vmem:[%s3340 + $0x26c] sm:%s3332] %v3651
                  %v3653 = vld [vmem:[%s3339 + $0x4b0] sm:%s3332]
                  %3654 = vst [vmem:[%s3340 + $0x270] sm:%s3332] %v3653
                  %v3655 = vld [vmem:[%s3339 + $0x4b4] sm:%s3332]
                  %3656 = vst [vmem:[%s3340 + $0x274] sm:%s3332] %v3655
                  %v3657 = vld [vmem:[%s3339 + $0x4b8] sm:%s3332]
                  %3658 = vst [vmem:[%s3340 + $0x278] sm:%s3332] %v3657
                  %v3659 = vld [vmem:[%s3339 + $0x4bc] sm:%s3332]
                  %3660 = vst [vmem:[%s3340 + $0x27c] sm:%s3332] %v3659
                  %v3661 = vld [vmem:[%s3339 + $0x500] sm:%s3332]
                  %3662 = vst [vmem:[%s3340 + $0x280] sm:%s3332] %v3661
                  %v3663 = vld [vmem:[%s3339 + $0x504] sm:%s3332]
                  %3664 = vst [vmem:[%s3340 + $0x284] sm:%s3332] %v3663
                  %v3665 = vld [vmem:[%s3339 + $0x508] sm:%s3332]
                  %3666 = vst [vmem:[%s3340 + $0x288] sm:%s3332] %v3665
                  %v3667 = vld [vmem:[%s3339 + $0x50c] sm:%s3332]
                  %3668 = vst [vmem:[%s3340 + $0x28c] sm:%s3332] %v3667
                  %v3669 = vld [vmem:[%s3339 + $0x510] sm:%s3332]
                  %3670 = vst [vmem:[%s3340 + $0x290] sm:%s3332] %v3669
                  %v3671 = vld [vmem:[%s3339 + $0x514] sm:%s3332]
                  %3672 = vst [vmem:[%s3340 + $0x294] sm:%s3332] %v3671
                  %v3673 = vld [vmem:[%s3339 + $0x518] sm:%s3332]
                  %3674 = vst [vmem:[%s3340 + $0x298] sm:%s3332] %v3673
                  %v3675 = vld [vmem:[%s3339 + $0x51c] sm:%s3332]
                  %3676 = vst [vmem:[%s3340 + $0x29c] sm:%s3332] %v3675
                  %v3677 = vld [vmem:[%s3339 + $0x520] sm:%s3332]
                  %3678 = vst [vmem:[%s3340 + $0x2a0] sm:%s3332] %v3677
                  %v3679 = vld [vmem:[%s3339 + $0x524] sm:%s3332]
                  %3680 = vst [vmem:[%s3340 + $0x2a4] sm:%s3332] %v3679
                  %v3681 = vld [vmem:[%s3339 + $0x528] sm:%s3332]
                  %3682 = vst [vmem:[%s3340 + $0x2a8] sm:%s3332] %v3681
                  %v3683 = vld [vmem:[%s3339 + $0x52c] sm:%s3332]
                  %3684 = vst [vmem:[%s3340 + $0x2ac] sm:%s3332] %v3683
                  %v3685 = vld [vmem:[%s3339 + $0x530] sm:%s3332]
                  %3686 = vst [vmem:[%s3340 + $0x2b0] sm:%s3332] %v3685
                  %v3687 = vld [vmem:[%s3339 + $0x534] sm:%s3332]
                  %3688 = vst [vmem:[%s3340 + $0x2b4] sm:%s3332] %v3687
                  %v3689 = vld [vmem:[%s3339 + $0x538] sm:%s3332]
                  %3690 = vst [vmem:[%s3340 + $0x2b8] sm:%s3332] %v3689
                  %v3691 = vld [vmem:[%s3339 + $0x53c] sm:%s3332]
                  %3692 = vst [vmem:[%s3340 + $0x2bc] sm:%s3332] %v3691
                  %v3693 = vld [vmem:[%s3339 + $0x580] sm:%s3332]
                  %3694 = vst [vmem:[%s3340 + $0x2c0] sm:%s3332] %v3693
                  %v3695 = vld [vmem:[%s3339 + $0x584] sm:%s3332]
                  %3696 = vst [vmem:[%s3340 + $0x2c4] sm:%s3332] %v3695
                  %v3697 = vld [vmem:[%s3339 + $0x588] sm:%s3332]
                  %3698 = vst [vmem:[%s3340 + $0x2c8] sm:%s3332] %v3697
                  %v3699 = vld [vmem:[%s3339 + $0x58c] sm:%s3332]
                  %3700 = vst [vmem:[%s3340 + $0x2cc] sm:%s3332] %v3699
                  %v3701 = vld [vmem:[%s3339 + $0x590] sm:%s3332]
                  %3702 = vst [vmem:[%s3340 + $0x2d0] sm:%s3332] %v3701
                  %v3703 = vld [vmem:[%s3339 + $0x594] sm:%s3332]
                  %3704 = vst [vmem:[%s3340 + $0x2d4] sm:%s3332] %v3703
                  %v3705 = vld [vmem:[%s3339 + $0x598] sm:%s3332]
                  %3706 = vst [vmem:[%s3340 + $0x2d8] sm:%s3332] %v3705
                  %v3707 = vld [vmem:[%s3339 + $0x59c] sm:%s3332]
                  %3708 = vst [vmem:[%s3340 + $0x2dc] sm:%s3332] %v3707
                  %v3709 = vld [vmem:[%s3339 + $0x5a0] sm:%s3332]
                  %3710 = vst [vmem:[%s3340 + $0x2e0] sm:%s3332] %v3709
                  %v3711 = vld [vmem:[%s3339 + $0x5a4] sm:%s3332]
                  %3712 = vst [vmem:[%s3340 + $0x2e4] sm:%s3332] %v3711
                  %v3713 = vld [vmem:[%s3339 + $0x5a8] sm:%s3332]
                  %3714 = vst [vmem:[%s3340 + $0x2e8] sm:%s3332] %v3713
                  %v3715 = vld [vmem:[%s3339 + $0x5ac] sm:%s3332]
                  %3716 = vst [vmem:[%s3340 + $0x2ec] sm:%s3332] %v3715
                  %v3717 = vld [vmem:[%s3339 + $0x5b0] sm:%s3332]
                  %3718 = vst [vmem:[%s3340 + $0x2f0] sm:%s3332] %v3717
                  %v3719 = vld [vmem:[%s3339 + $0x5b4] sm:%s3332]
                  %3720 = vst [vmem:[%s3340 + $0x2f4] sm:%s3332] %v3719
                  %v3721 = vld [vmem:[%s3339 + $0x5b8] sm:%s3332]
                  %3722 = vst [vmem:[%s3340 + $0x2f8] sm:%s3332] %v3721
                  %v3723 = vld [vmem:[%s3339 + $0x5bc] sm:%s3332]
                  %3724 = vst [vmem:[%s3340 + $0x2fc] sm:%s3332] %v3723
                  %v3725 = vld [vmem:[%s3339 + $0x600] sm:%s3332]
                  %3726 = vst [vmem:[%s3340 + $0x300] sm:%s3332] %v3725
                  %v3727 = vld [vmem:[%s3339 + $0x604] sm:%s3332]
                  %3728 = vst [vmem:[%s3340 + $0x304] sm:%s3332] %v3727
                  %v3729 = vld [vmem:[%s3339 + $0x608] sm:%s3332]
                  %3730 = vst [vmem:[%s3340 + $0x308] sm:%s3332] %v3729
                  %v3731 = vld [vmem:[%s3339 + $0x60c] sm:%s3332]
                  %3732 = vst [vmem:[%s3340 + $0x30c] sm:%s3332] %v3731
                  %v3733 = vld [vmem:[%s3339 + $0x610] sm:%s3332]
                  %3734 = vst [vmem:[%s3340 + $0x310] sm:%s3332] %v3733
                  %v3735 = vld [vmem:[%s3339 + $0x614] sm:%s3332]
                  %3736 = vst [vmem:[%s3340 + $0x314] sm:%s3332] %v3735
                  %v3737 = vld [vmem:[%s3339 + $0x618] sm:%s3332]
                  %3738 = vst [vmem:[%s3340 + $0x318] sm:%s3332] %v3737
                  %v3739 = vld [vmem:[%s3339 + $0x61c] sm:%s3332]
                  %3740 = vst [vmem:[%s3340 + $0x31c] sm:%s3332] %v3739
                  %v3741 = vld [vmem:[%s3339 + $0x620] sm:%s3332]
                  %3742 = vst [vmem:[%s3340 + $0x320] sm:%s3332] %v3741
                  %v3743 = vld [vmem:[%s3339 + $0x624] sm:%s3332]
                  %3744 = vst [vmem:[%s3340 + $0x324] sm:%s3332] %v3743
                  %v3745 = vld [vmem:[%s3339 + $0x628] sm:%s3332]
                  %3746 = vst [vmem:[%s3340 + $0x328] sm:%s3332] %v3745
                  %v3747 = vld [vmem:[%s3339 + $0x62c] sm:%s3332]
                  %3748 = vst [vmem:[%s3340 + $0x32c] sm:%s3332] %v3747
                  %v3749 = vld [vmem:[%s3339 + $0x630] sm:%s3332]
                  %3750 = vst [vmem:[%s3340 + $0x330] sm:%s3332] %v3749
                  %v3751 = vld [vmem:[%s3339 + $0x634] sm:%s3332]
                  %3752 = vst [vmem:[%s3340 + $0x334] sm:%s3332] %v3751
                  %v3753 = vld [vmem:[%s3339 + $0x638] sm:%s3332]
                  %3754 = vst [vmem:[%s3340 + $0x338] sm:%s3332] %v3753
                  %v3755 = vld [vmem:[%s3339 + $0x63c] sm:%s3332]
                  %3756 = vst [vmem:[%s3340 + $0x33c] sm:%s3332] %v3755
                  %v3757 = vld [vmem:[%s3339 + $0x680] sm:%s3332]
                  %3758 = vst [vmem:[%s3340 + $0x340] sm:%s3332] %v3757
                  %v3759 = vld [vmem:[%s3339 + $0x684] sm:%s3332]
                  %3760 = vst [vmem:[%s3340 + $0x344] sm:%s3332] %v3759
                  %v3761 = vld [vmem:[%s3339 + $0x688] sm:%s3332]
                  %3762 = vst [vmem:[%s3340 + $0x348] sm:%s3332] %v3761
                  %v3763 = vld [vmem:[%s3339 + $0x68c] sm:%s3332]
                  %3764 = vst [vmem:[%s3340 + $0x34c] sm:%s3332] %v3763
                  %v3765 = vld [vmem:[%s3339 + $0x690] sm:%s3332]
                  %3766 = vst [vmem:[%s3340 + $0x350] sm:%s3332] %v3765
                  %v3767 = vld [vmem:[%s3339 + $0x694] sm:%s3332]
                  %3768 = vst [vmem:[%s3340 + $0x354] sm:%s3332] %v3767
                  %v3769 = vld [vmem:[%s3339 + $0x698] sm:%s3332]
                  %3770 = vst [vmem:[%s3340 + $0x358] sm:%s3332] %v3769
                  %v3771 = vld [vmem:[%s3339 + $0x69c] sm:%s3332]
                  %3772 = vst [vmem:[%s3340 + $0x35c] sm:%s3332] %v3771
                  %v3773 = vld [vmem:[%s3339 + $0x6a0] sm:%s3332]
                  %3774 = vst [vmem:[%s3340 + $0x360] sm:%s3332] %v3773
                  %v3775 = vld [vmem:[%s3339 + $0x6a4] sm:%s3332]
                  %3776 = vst [vmem:[%s3340 + $0x364] sm:%s3332] %v3775
                  %v3777 = vld [vmem:[%s3339 + $0x6a8] sm:%s3332]
                  %3778 = vst [vmem:[%s3340 + $0x368] sm:%s3332] %v3777
                  %v3779 = vld [vmem:[%s3339 + $0x6ac] sm:%s3332]
                  %3780 = vst [vmem:[%s3340 + $0x36c] sm:%s3332] %v3779
                  %v3781 = vld [vmem:[%s3339 + $0x6b0] sm:%s3332]
                  %3782 = vst [vmem:[%s3340 + $0x370] sm:%s3332] %v3781
                  %v3783 = vld [vmem:[%s3339 + $0x6b4] sm:%s3332]
                  %3784 = vst [vmem:[%s3340 + $0x374] sm:%s3332] %v3783
                  %v3785 = vld [vmem:[%s3339 + $0x6b8] sm:%s3332]
                  %3786 = vst [vmem:[%s3340 + $0x378] sm:%s3332] %v3785
                  %v3787 = vld [vmem:[%s3339 + $0x6bc] sm:%s3332]
                  %3788 = vst [vmem:[%s3340 + $0x37c] sm:%s3332] %v3787
                  %v3789 = vld [vmem:[%s3339 + $0x700] sm:%s3332]
                  %3790 = vst [vmem:[%s3340 + $0x380] sm:%s3332] %v3789
                  %v3791 = vld [vmem:[%s3339 + $0x704] sm:%s3332]
                  %3792 = vst [vmem:[%s3340 + $0x384] sm:%s3332] %v3791
                  %v3793 = vld [vmem:[%s3339 + $0x708] sm:%s3332]
                  %3794 = vst [vmem:[%s3340 + $0x388] sm:%s3332] %v3793
                  %v3795 = vld [vmem:[%s3339 + $0x70c] sm:%s3332]
                  %3796 = vst [vmem:[%s3340 + $0x38c] sm:%s3332] %v3795
                  %v3797 = vld [vmem:[%s3339 + $0x710] sm:%s3332]
                  %3798 = vst [vmem:[%s3340 + $0x390] sm:%s3332] %v3797
                  %v3799 = vld [vmem:[%s3339 + $0x714] sm:%s3332]
                  %3800 = vst [vmem:[%s3340 + $0x394] sm:%s3332] %v3799
                  %v3801 = vld [vmem:[%s3339 + $0x718] sm:%s3332]
                  %3802 = vst [vmem:[%s3340 + $0x398] sm:%s3332] %v3801
                  %v3803 = vld [vmem:[%s3339 + $0x71c] sm:%s3332]
                  %3804 = vst [vmem:[%s3340 + $0x39c] sm:%s3332] %v3803
                  %v3805 = vld [vmem:[%s3339 + $0x720] sm:%s3332]
                  %3806 = vst [vmem:[%s3340 + $0x3a0] sm:%s3332] %v3805
                  %v3807 = vld [vmem:[%s3339 + $0x724] sm:%s3332]
                  %3808 = vst [vmem:[%s3340 + $0x3a4] sm:%s3332] %v3807
                  %v3809 = vld [vmem:[%s3339 + $0x728] sm:%s3332]
                  %3810 = vst [vmem:[%s3340 + $0x3a8] sm:%s3332] %v3809
                  %v3811 = vld [vmem:[%s3339 + $0x72c] sm:%s3332]
                  %3812 = vst [vmem:[%s3340 + $0x3ac] sm:%s3332] %v3811
                  %v3813 = vld [vmem:[%s3339 + $0x730] sm:%s3332]
                  %3814 = vst [vmem:[%s3340 + $0x3b0] sm:%s3332] %v3813
                  %v3815 = vld [vmem:[%s3339 + $0x734] sm:%s3332]
                  %3816 = vst [vmem:[%s3340 + $0x3b4] sm:%s3332] %v3815
                  %v3817 = vld [vmem:[%s3339 + $0x738] sm:%s3332]
                  %3818 = vst [vmem:[%s3340 + $0x3b8] sm:%s3332] %v3817
                  %v3819 = vld [vmem:[%s3339 + $0x73c] sm:%s3332]
                  %3820 = vst [vmem:[%s3340 + $0x3bc] sm:%s3332] %v3819
                  %v3821 = vld [vmem:[%s3339 + $0x780] sm:%s3332]
                  %3822 = vst [vmem:[%s3340 + $0x3c0] sm:%s3332] %v3821
                  %v3823 = vld [vmem:[%s3339 + $0x784] sm:%s3332]
                  %3824 = vst [vmem:[%s3340 + $0x3c4] sm:%s3332] %v3823
                  %v3825 = vld [vmem:[%s3339 + $0x788] sm:%s3332]
                  %3826 = vst [vmem:[%s3340 + $0x3c8] sm:%s3332] %v3825
                  %v3827 = vld [vmem:[%s3339 + $0x78c] sm:%s3332]
                  %3828 = vst [vmem:[%s3340 + $0x3cc] sm:%s3332] %v3827
                  %v3829 = vld [vmem:[%s3339 + $0x790] sm:%s3332]
                  %3830 = vst [vmem:[%s3340 + $0x3d0] sm:%s3332] %v3829
                  %v3831 = vld [vmem:[%s3339 + $0x794] sm:%s3332]
                  %3832 = vst [vmem:[%s3340 + $0x3d4] sm:%s3332] %v3831
                  %v3833 = vld [vmem:[%s3339 + $0x798] sm:%s3332]
                  %3834 = vst [vmem:[%s3340 + $0x3d8] sm:%s3332] %v3833
                  %v3835 = vld [vmem:[%s3339 + $0x79c] sm:%s3332]
                  %3836 = vst [vmem:[%s3340 + $0x3dc] sm:%s3332] %v3835
                  %v3837 = vld [vmem:[%s3339 + $0x7a0] sm:%s3332]
                  %3838 = vst [vmem:[%s3340 + $0x3e0] sm:%s3332] %v3837
                  %v3839 = vld [vmem:[%s3339 + $0x7a4] sm:%s3332]
                  %3840 = vst [vmem:[%s3340 + $0x3e4] sm:%s3332] %v3839
                  %v3841 = vld [vmem:[%s3339 + $0x7a8] sm:%s3332]
                  %3842 = vst [vmem:[%s3340 + $0x3e8] sm:%s3332] %v3841
                  %v3843 = vld [vmem:[%s3339 + $0x7ac] sm:%s3332]
                  %3844 = vst [vmem:[%s3340 + $0x3ec] sm:%s3332] %v3843
                  %v3845 = vld [vmem:[%s3339 + $0x7b0] sm:%s3332]
                  %3846 = vst [vmem:[%s3340 + $0x3f0] sm:%s3332] %v3845
                  %v3847 = vld [vmem:[%s3339 + $0x7b4] sm:%s3332]
                  %3848 = vst [vmem:[%s3340 + $0x3f4] sm:%s3332] %v3847
                  %v3849 = vld [vmem:[%s3339 + $0x7b8] sm:%s3332]
                  %3850 = vst [vmem:[%s3340 + $0x3f8] sm:%s3332] %v3849
                  %v3851 = vld [vmem:[%s3339 + $0x7bc] sm:%s3332]
                  %3852 = vst [vmem:[%s3340 + $0x3fc] sm:%s3332] %v3851
                  %v3853 = vld [vmem:[%s3339 + $0x800] sm:%s3332]
                  %3854 = vst [vmem:[%s3340 + $0x400] sm:%s3332] %v3853
                  %v3855 = vld [vmem:[%s3339 + $0x804] sm:%s3332]
                  %3856 = vst [vmem:[%s3340 + $0x404] sm:%s3332] %v3855
                  %v3857 = vld [vmem:[%s3339 + $0x808] sm:%s3332]
                  %3858 = vst [vmem:[%s3340 + $0x408] sm:%s3332] %v3857
                  %v3859 = vld [vmem:[%s3339 + $0x80c] sm:%s3332]
                  %3860 = vst [vmem:[%s3340 + $0x40c] sm:%s3332] %v3859
                  %v3861 = vld [vmem:[%s3339 + $0x810] sm:%s3332]
                  %3862 = vst [vmem:[%s3340 + $0x410] sm:%s3332] %v3861
                  %v3863 = vld [vmem:[%s3339 + $0x814] sm:%s3332]
                  %3864 = vst [vmem:[%s3340 + $0x414] sm:%s3332] %v3863
                  %v3865 = vld [vmem:[%s3339 + $0x818] sm:%s3332]
                  %3866 = vst [vmem:[%s3340 + $0x418] sm:%s3332] %v3865
                  %v3867 = vld [vmem:[%s3339 + $0x81c] sm:%s3332]
                  %3868 = vst [vmem:[%s3340 + $0x41c] sm:%s3332] %v3867
                  %v3869 = vld [vmem:[%s3339 + $0x820] sm:%s3332]
                  %3870 = vst [vmem:[%s3340 + $0x420] sm:%s3332] %v3869
                  %v3871 = vld [vmem:[%s3339 + $0x824] sm:%s3332]
                  %3872 = vst [vmem:[%s3340 + $0x424] sm:%s3332] %v3871
                  %v3873 = vld [vmem:[%s3339 + $0x828] sm:%s3332]
                  %3874 = vst [vmem:[%s3340 + $0x428] sm:%s3332] %v3873
                  %v3875 = vld [vmem:[%s3339 + $0x82c] sm:%s3332]
                  %3876 = vst [vmem:[%s3340 + $0x42c] sm:%s3332] %v3875
                  %v3877 = vld [vmem:[%s3339 + $0x830] sm:%s3332]
                  %3878 = vst [vmem:[%s3340 + $0x430] sm:%s3332] %v3877
                  %v3879 = vld [vmem:[%s3339 + $0x834] sm:%s3332]
                  %3880 = vst [vmem:[%s3340 + $0x434] sm:%s3332] %v3879
                  %v3881 = vld [vmem:[%s3339 + $0x838] sm:%s3332]
                  %3882 = vst [vmem:[%s3340 + $0x438] sm:%s3332] %v3881
                  %v3883 = vld [vmem:[%s3339 + $0x83c] sm:%s3332]
                  %3884 = vst [vmem:[%s3340 + $0x43c] sm:%s3332] %v3883
                  %v3885 = vld [vmem:[%s3339 + $0x880] sm:%s3332]
                  %3886 = vst [vmem:[%s3340 + $0x440] sm:%s3332] %v3885
                  %v3887 = vld [vmem:[%s3339 + $0x884] sm:%s3332]
                  %3888 = vst [vmem:[%s3340 + $0x444] sm:%s3332] %v3887
                  %v3889 = vld [vmem:[%s3339 + $0x888] sm:%s3332]
                  %3890 = vst [vmem:[%s3340 + $0x448] sm:%s3332] %v3889
                  %v3891 = vld [vmem:[%s3339 + $0x88c] sm:%s3332]
                  %3892 = vst [vmem:[%s3340 + $0x44c] sm:%s3332] %v3891
                  %v3893 = vld [vmem:[%s3339 + $0x890] sm:%s3332]
                  %3894 = vst [vmem:[%s3340 + $0x450] sm:%s3332] %v3893
                  %v3895 = vld [vmem:[%s3339 + $0x894] sm:%s3332]
                  %3896 = vst [vmem:[%s3340 + $0x454] sm:%s3332] %v3895
                  %v3897 = vld [vmem:[%s3339 + $0x898] sm:%s3332]
                  %3898 = vst [vmem:[%s3340 + $0x458] sm:%s3332] %v3897
                  %v3899 = vld [vmem:[%s3339 + $0x89c] sm:%s3332]
                  %3900 = vst [vmem:[%s3340 + $0x45c] sm:%s3332] %v3899
                  %v3901 = vld [vmem:[%s3339 + $0x8a0] sm:%s3332]
                  %3902 = vst [vmem:[%s3340 + $0x460] sm:%s3332] %v3901
                  %v3903 = vld [vmem:[%s3339 + $0x8a4] sm:%s3332]
                  %3904 = vst [vmem:[%s3340 + $0x464] sm:%s3332] %v3903
                  %v3905 = vld [vmem:[%s3339 + $0x8a8] sm:%s3332]
                  %3906 = vst [vmem:[%s3340 + $0x468] sm:%s3332] %v3905
                  %v3907 = vld [vmem:[%s3339 + $0x8ac] sm:%s3332]
                  %3908 = vst [vmem:[%s3340 + $0x46c] sm:%s3332] %v3907
                  %v3909 = vld [vmem:[%s3339 + $0x8b0] sm:%s3332]
                  %3910 = vst [vmem:[%s3340 + $0x470] sm:%s3332] %v3909
                  %v3911 = vld [vmem:[%s3339 + $0x8b4] sm:%s3332]
                  %3912 = vst [vmem:[%s3340 + $0x474] sm:%s3332] %v3911
                  %v3913 = vld [vmem:[%s3339 + $0x8b8] sm:%s3332]
                  %3914 = vst [vmem:[%s3340 + $0x478] sm:%s3332] %v3913
                  %v3915 = vld [vmem:[%s3339 + $0x8bc] sm:%s3332]
                  %3916 = vst [vmem:[%s3340 + $0x47c] sm:%s3332] %v3915
                  %v3917 = vld [vmem:[%s3339 + $0x900] sm:%s3332]
                  %3918 = vst [vmem:[%s3340 + $0x480] sm:%s3332] %v3917
                  %v3919 = vld [vmem:[%s3339 + $0x904] sm:%s3332]
                  %3920 = vst [vmem:[%s3340 + $0x484] sm:%s3332] %v3919
                  %v3921 = vld [vmem:[%s3339 + $0x908] sm:%s3332]
                  %3922 = vst [vmem:[%s3340 + $0x488] sm:%s3332] %v3921
                  %v3923 = vld [vmem:[%s3339 + $0x90c] sm:%s3332]
                  %3924 = vst [vmem:[%s3340 + $0x48c] sm:%s3332] %v3923
                  %v3925 = vld [vmem:[%s3339 + $0x910] sm:%s3332]
                  %3926 = vst [vmem:[%s3340 + $0x490] sm:%s3332] %v3925
                  %v3927 = vld [vmem:[%s3339 + $0x914] sm:%s3332]
                  %3928 = vst [vmem:[%s3340 + $0x494] sm:%s3332] %v3927
                  %v3929 = vld [vmem:[%s3339 + $0x918] sm:%s3332]
                  %3930 = vst [vmem:[%s3340 + $0x498] sm:%s3332] %v3929
                  %v3931 = vld [vmem:[%s3339 + $0x91c] sm:%s3332]
                  %3932 = vst [vmem:[%s3340 + $0x49c] sm:%s3332] %v3931
                  %v3933 = vld [vmem:[%s3339 + $0x920] sm:%s3332]
                  %3934 = vst [vmem:[%s3340 + $0x4a0] sm:%s3332] %v3933
                  %v3935 = vld [vmem:[%s3339 + $0x924] sm:%s3332]
                  %3936 = vst [vmem:[%s3340 + $0x4a4] sm:%s3332] %v3935
                  %v3937 = vld [vmem:[%s3339 + $0x928] sm:%s3332]
                  %3938 = vst [vmem:[%s3340 + $0x4a8] sm:%s3332] %v3937
                  %v3939 = vld [vmem:[%s3339 + $0x92c] sm:%s3332]
                  %3940 = vst [vmem:[%s3340 + $0x4ac] sm:%s3332] %v3939
                  %v3941 = vld [vmem:[%s3339 + $0x930] sm:%s3332]
                  %3942 = vst [vmem:[%s3340 + $0x4b0] sm:%s3332] %v3941
                  %v3943 = vld [vmem:[%s3339 + $0x934] sm:%s3332]
                  %3944 = vst [vmem:[%s3340 + $0x4b4] sm:%s3332] %v3943
                  %v3945 = vld [vmem:[%s3339 + $0x938] sm:%s3332]
                  %3946 = vst [vmem:[%s3340 + $0x4b8] sm:%s3332] %v3945
                  %v3947 = vld [vmem:[%s3339 + $0x93c] sm:%s3332]
                  %3948 = vst [vmem:[%s3340 + $0x4bc] sm:%s3332] %v3947
                  %v3949 = vld [vmem:[%s3339 + $0x980] sm:%s3332]
                  %3950 = vst [vmem:[%s3340 + $0x4c0] sm:%s3332] %v3949
                  %v3951 = vld [vmem:[%s3339 + $0x984] sm:%s3332]
                  %3952 = vst [vmem:[%s3340 + $0x4c4] sm:%s3332] %v3951
                  %v3953 = vld [vmem:[%s3339 + $0x988] sm:%s3332]
                  %3954 = vst [vmem:[%s3340 + $0x4c8] sm:%s3332] %v3953
                  %v3955 = vld [vmem:[%s3339 + $0x98c] sm:%s3332]
                  %3956 = vst [vmem:[%s3340 + $0x4cc] sm:%s3332] %v3955
                  %v3957 = vld [vmem:[%s3339 + $0x990] sm:%s3332]
                  %3958 = vst [vmem:[%s3340 + $0x4d0] sm:%s3332] %v3957
                  %v3959 = vld [vmem:[%s3339 + $0x994] sm:%s3332]
                  %3960 = vst [vmem:[%s3340 + $0x4d4] sm:%s3332] %v3959
                  %v3961 = vld [vmem:[%s3339 + $0x998] sm:%s3332]
                  %3962 = vst [vmem:[%s3340 + $0x4d8] sm:%s3332] %v3961
                  %v3963 = vld [vmem:[%s3339 + $0x99c] sm:%s3332]
                  %3964 = vst [vmem:[%s3340 + $0x4dc] sm:%s3332] %v3963
                  %v3965 = vld [vmem:[%s3339 + $0x9a0] sm:%s3332]
                  %3966 = vst [vmem:[%s3340 + $0x4e0] sm:%s3332] %v3965
                  %v3967 = vld [vmem:[%s3339 + $0x9a4] sm:%s3332]
                  %3968 = vst [vmem:[%s3340 + $0x4e4] sm:%s3332] %v3967
                  %v3969 = vld [vmem:[%s3339 + $0x9a8] sm:%s3332]
                  %3970 = vst [vmem:[%s3340 + $0x4e8] sm:%s3332] %v3969
                  %v3971 = vld [vmem:[%s3339 + $0x9ac] sm:%s3332]
                  %3972 = vst [vmem:[%s3340 + $0x4ec] sm:%s3332] %v3971
                  %v3973 = vld [vmem:[%s3339 + $0x9b0] sm:%s3332]
                  %3974 = vst [vmem:[%s3340 + $0x4f0] sm:%s3332] %v3973
                  %v3975 = vld [vmem:[%s3339 + $0x9b4] sm:%s3332]
                  %3976 = vst [vmem:[%s3340 + $0x4f4] sm:%s3332] %v3975
                  %v3977 = vld [vmem:[%s3339 + $0x9b8] sm:%s3332]
                  %3978 = vst [vmem:[%s3340 + $0x4f8] sm:%s3332] %v3977
                  %v3979 = vld [vmem:[%s3339 + $0x9bc] sm:%s3332]
                  %3980 = vst [vmem:[%s3340 + $0x4fc] sm:%s3332] %v3979
                  %v3981 = vld [vmem:[%s3339 + $0xa00] sm:%s3332]
                  %3982 = vst [vmem:[%s3340 + $0x500] sm:%s3332] %v3981
                  %v3983 = vld [vmem:[%s3339 + $0xa04] sm:%s3332]
                  %3984 = vst [vmem:[%s3340 + $0x504] sm:%s3332] %v3983
                  %v3985 = vld [vmem:[%s3339 + $0xa08] sm:%s3332]
                  %3986 = vst [vmem:[%s3340 + $0x508] sm:%s3332] %v3985
                  %v3987 = vld [vmem:[%s3339 + $0xa0c] sm:%s3332]
                  %3988 = vst [vmem:[%s3340 + $0x50c] sm:%s3332] %v3987
                  %v3989 = vld [vmem:[%s3339 + $0xa10] sm:%s3332]
                  %3990 = vst [vmem:[%s3340 + $0x510] sm:%s3332] %v3989
                  %v3991 = vld [vmem:[%s3339 + $0xa14] sm:%s3332]
                  %3992 = vst [vmem:[%s3340 + $0x514] sm:%s3332] %v3991
                  %v3993 = vld [vmem:[%s3339 + $0xa18] sm:%s3332]
                  %3994 = vst [vmem:[%s3340 + $0x518] sm:%s3332] %v3993
                  %v3995 = vld [vmem:[%s3339 + $0xa1c] sm:%s3332]
                  %3996 = vst [vmem:[%s3340 + $0x51c] sm:%s3332] %v3995
                  %v3997 = vld [vmem:[%s3339 + $0xa20] sm:%s3332]
                  %3998 = vst [vmem:[%s3340 + $0x520] sm:%s3332] %v3997
                  %v3999 = vld [vmem:[%s3339 + $0xa24] sm:%s3332]
                  %4000 = vst [vmem:[%s3340 + $0x524] sm:%s3332] %v3999
                  %v4001 = vld [vmem:[%s3339 + $0xa28] sm:%s3332]
                  %4002 = vst [vmem:[%s3340 + $0x528] sm:%s3332] %v4001
                  %v4003 = vld [vmem:[%s3339 + $0xa2c] sm:%s3332]
                  %4004 = vst [vmem:[%s3340 + $0x52c] sm:%s3332] %v4003
                  %v4005 = vld [vmem:[%s3339 + $0xa30] sm:%s3332]
                  %4006 = vst [vmem:[%s3340 + $0x530] sm:%s3332] %v4005
                  %v4007 = vld [vmem:[%s3339 + $0xa34] sm:%s3332]
                  %4008 = vst [vmem:[%s3340 + $0x534] sm:%s3332] %v4007
                  %v4009 = vld [vmem:[%s3339 + $0xa38] sm:%s3332]
                  %4010 = vst [vmem:[%s3340 + $0x538] sm:%s3332] %v4009
                  %v4011 = vld [vmem:[%s3339 + $0xa3c] sm:%s3332]
                  %4012 = vst [vmem:[%s3340 + $0x53c] sm:%s3332] %v4011
                  %v4013 = vld [vmem:[%s3339 + $0xa80] sm:%s3332]
                  %4014 = vst [vmem:[%s3340 + $0x540] sm:%s3332] %v4013
                  %v4015 = vld [vmem:[%s3339 + $0xa84] sm:%s3332]
                  %4016 = vst [vmem:[%s3340 + $0x544] sm:%s3332] %v4015
                  %v4017 = vld [vmem:[%s3339 + $0xa88] sm:%s3332]
                  %4018 = vst [vmem:[%s3340 + $0x548] sm:%s3332] %v4017
                  %v4019 = vld [vmem:[%s3339 + $0xa8c] sm:%s3332]
                  %4020 = vst [vmem:[%s3340 + $0x54c] sm:%s3332] %v4019
                  %v4021 = vld [vmem:[%s3339 + $0xa90] sm:%s3332]
                  %4022 = vst [vmem:[%s3340 + $0x550] sm:%s3332] %v4021
                  %v4023 = vld [vmem:[%s3339 + $0xa94] sm:%s3332]
                  %4024 = vst [vmem:[%s3340 + $0x554] sm:%s3332] %v4023
                  %v4025 = vld [vmem:[%s3339 + $0xa98] sm:%s3332]
                  %4026 = vst [vmem:[%s3340 + $0x558] sm:%s3332] %v4025
                  %v4027 = vld [vmem:[%s3339 + $0xa9c] sm:%s3332]
                  %4028 = vst [vmem:[%s3340 + $0x55c] sm:%s3332] %v4027
                  %v4029 = vld [vmem:[%s3339 + $0xaa0] sm:%s3332]
                  %4030 = vst [vmem:[%s3340 + $0x560] sm:%s3332] %v4029
                  %v4031 = vld [vmem:[%s3339 + $0xaa4] sm:%s3332]
                  %4032 = vst [vmem:[%s3340 + $0x564] sm:%s3332] %v4031
                  %v4033 = vld [vmem:[%s3339 + $0xaa8] sm:%s3332]
                  %4034 = vst [vmem:[%s3340 + $0x568] sm:%s3332] %v4033
                  %v4035 = vld [vmem:[%s3339 + $0xaac] sm:%s3332]
                  %4036 = vst [vmem:[%s3340 + $0x56c] sm:%s3332] %v4035
                  %v4037 = vld [vmem:[%s3339 + $0xab0] sm:%s3332]
                  %4038 = vst [vmem:[%s3340 + $0x570] sm:%s3332] %v4037
                  %v4039 = vld [vmem:[%s3339 + $0xab4] sm:%s3332]
                  %4040 = vst [vmem:[%s3340 + $0x574] sm:%s3332] %v4039
                  %v4041 = vld [vmem:[%s3339 + $0xab8] sm:%s3332]
                  %4042 = vst [vmem:[%s3340 + $0x578] sm:%s3332] %v4041
                  %v4043 = vld [vmem:[%s3339 + $0xabc] sm:%s3332]
                  %4044 = vst [vmem:[%s3340 + $0x57c] sm:%s3332] %v4043
                  %v4045 = vld [vmem:[%s3339 + $0xb00] sm:%s3332]
                  %4046 = vst [vmem:[%s3340 + $0x580] sm:%s3332] %v4045
                  %v4047 = vld [vmem:[%s3339 + $0xb04] sm:%s3332]
                  %4048 = vst [vmem:[%s3340 + $0x584] sm:%s3332] %v4047
                  %v4049 = vld [vmem:[%s3339 + $0xb08] sm:%s3332]
                  %4050 = vst [vmem:[%s3340 + $0x588] sm:%s3332] %v4049
                  %v4051 = vld [vmem:[%s3339 + $0xb0c] sm:%s3332]
                  %4052 = vst [vmem:[%s3340 + $0x58c] sm:%s3332] %v4051
                  %v4053 = vld [vmem:[%s3339 + $0xb10] sm:%s3332]
                  %4054 = vst [vmem:[%s3340 + $0x590] sm:%s3332] %v4053
                  %v4055 = vld [vmem:[%s3339 + $0xb14] sm:%s3332]
                  %4056 = vst [vmem:[%s3340 + $0x594] sm:%s3332] %v4055
                  %v4057 = vld [vmem:[%s3339 + $0xb18] sm:%s3332]
                  %4058 = vst [vmem:[%s3340 + $0x598] sm:%s3332] %v4057
                  %v4059 = vld [vmem:[%s3339 + $0xb1c] sm:%s3332]
                  %4060 = vst [vmem:[%s3340 + $0x59c] sm:%s3332] %v4059
                  %v4061 = vld [vmem:[%s3339 + $0xb20] sm:%s3332]
                  %4062 = vst [vmem:[%s3340 + $0x5a0] sm:%s3332] %v4061
                  %v4063 = vld [vmem:[%s3339 + $0xb24] sm:%s3332]
                  %4064 = vst [vmem:[%s3340 + $0x5a4] sm:%s3332] %v4063
                  %v4065 = vld [vmem:[%s3339 + $0xb28] sm:%s3332]
                  %4066 = vst [vmem:[%s3340 + $0x5a8] sm:%s3332] %v4065
                  %v4067 = vld [vmem:[%s3339 + $0xb2c] sm:%s3332]
                  %4068 = vst [vmem:[%s3340 + $0x5ac] sm:%s3332] %v4067
                  %v4069 = vld [vmem:[%s3339 + $0xb30] sm:%s3332]
                  %4070 = vst [vmem:[%s3340 + $0x5b0] sm:%s3332] %v4069
                  %v4071 = vld [vmem:[%s3339 + $0xb34] sm:%s3332]
                  %4072 = vst [vmem:[%s3340 + $0x5b4] sm:%s3332] %v4071
                  %v4073 = vld [vmem:[%s3339 + $0xb38] sm:%s3332]
                  %4074 = vst [vmem:[%s3340 + $0x5b8] sm:%s3332] %v4073
                  %v4075 = vld [vmem:[%s3339 + $0xb3c] sm:%s3332]
                  %4076 = vst [vmem:[%s3340 + $0x5bc] sm:%s3332] %v4075
                  %v4077 = vld [vmem:[%s3339 + $0xb80] sm:%s3332]
                  %4078 = vst [vmem:[%s3340 + $0x5c0] sm:%s3332] %v4077
                  %v4079 = vld [vmem:[%s3339 + $0xb84] sm:%s3332]
                  %4080 = vst [vmem:[%s3340 + $0x5c4] sm:%s3332] %v4079
                  %v4081 = vld [vmem:[%s3339 + $0xb88] sm:%s3332]
                  %4082 = vst [vmem:[%s3340 + $0x5c8] sm:%s3332] %v4081
                  %v4083 = vld [vmem:[%s3339 + $0xb8c] sm:%s3332]
                  %4084 = vst [vmem:[%s3340 + $0x5cc] sm:%s3332] %v4083
                  %v4085 = vld [vmem:[%s3339 + $0xb90] sm:%s3332]
                  %4086 = vst [vmem:[%s3340 + $0x5d0] sm:%s3332] %v4085
                  %v4087 = vld [vmem:[%s3339 + $0xb94] sm:%s3332]
                  %4088 = vst [vmem:[%s3340 + $0x5d4] sm:%s3332] %v4087
                  %v4089 = vld [vmem:[%s3339 + $0xb98] sm:%s3332]
                  %4090 = vst [vmem:[%s3340 + $0x5d8] sm:%s3332] %v4089
                  %v4091 = vld [vmem:[%s3339 + $0xb9c] sm:%s3332]
                  %4092 = vst [vmem:[%s3340 + $0x5dc] sm:%s3332] %v4091
                  %v4093 = vld [vmem:[%s3339 + $0xba0] sm:%s3332]
                  %4094 = vst [vmem:[%s3340 + $0x5e0] sm:%s3332] %v4093
                  %v4095 = vld [vmem:[%s3339 + $0xba4] sm:%s3332]
                  %4096 = vst [vmem:[%s3340 + $0x5e4] sm:%s3332] %v4095
                  %v4097 = vld [vmem:[%s3339 + $0xba8] sm:%s3332]
                  %4098 = vst [vmem:[%s3340 + $0x5e8] sm:%s3332] %v4097
                  %v4099 = vld [vmem:[%s3339 + $0xbac] sm:%s3332]
                  %4100 = vst [vmem:[%s3340 + $0x5ec] sm:%s3332] %v4099
                  %v4101 = vld [vmem:[%s3339 + $0xbb0] sm:%s3332]
                  %4102 = vst [vmem:[%s3340 + $0x5f0] sm:%s3332] %v4101
                  %v4103 = vld [vmem:[%s3339 + $0xbb4] sm:%s3332]
                  %4104 = vst [vmem:[%s3340 + $0x5f4] sm:%s3332] %v4103
                  %v4105 = vld [vmem:[%s3339 + $0xbb8] sm:%s3332]
                  %4106 = vst [vmem:[%s3340 + $0x5f8] sm:%s3332] %v4105
                  %v4107 = vld [vmem:[%s3339 + $0xbbc] sm:%s3332]
                  %4108 = vst [vmem:[%s3340 + $0x5fc] sm:%s3332] %v4107
                  %v4109 = vld [vmem:[%s3339 + $0xc00] sm:%s3332]
                  %4110 = vst [vmem:[%s3340 + $0x600] sm:%s3332] %v4109
                  %v4111 = vld [vmem:[%s3339 + $0xc04] sm:%s3332]
                  %4112 = vst [vmem:[%s3340 + $0x604] sm:%s3332] %v4111
                  %v4113 = vld [vmem:[%s3339 + $0xc08] sm:%s3332]
                  %4114 = vst [vmem:[%s3340 + $0x608] sm:%s3332] %v4113
                  %v4115 = vld [vmem:[%s3339 + $0xc0c] sm:%s3332]
                  %4116 = vst [vmem:[%s3340 + $0x60c] sm:%s3332] %v4115
                  %v4117 = vld [vmem:[%s3339 + $0xc10] sm:%s3332]
                  %4118 = vst [vmem:[%s3340 + $0x610] sm:%s3332] %v4117
                  %v4119 = vld [vmem:[%s3339 + $0xc14] sm:%s3332]
                  %4120 = vst [vmem:[%s3340 + $0x614] sm:%s3332] %v4119
                  %v4121 = vld [vmem:[%s3339 + $0xc18] sm:%s3332]
                  %4122 = vst [vmem:[%s3340 + $0x618] sm:%s3332] %v4121
                  %v4123 = vld [vmem:[%s3339 + $0xc1c] sm:%s3332]
                  %4124 = vst [vmem:[%s3340 + $0x61c] sm:%s3332] %v4123
                  %v4125 = vld [vmem:[%s3339 + $0xc20] sm:%s3332]
                  %4126 = vst [vmem:[%s3340 + $0x620] sm:%s3332] %v4125
                  %v4127 = vld [vmem:[%s3339 + $0xc24] sm:%s3332]
                  %4128 = vst [vmem:[%s3340 + $0x624] sm:%s3332] %v4127
                  %v4129 = vld [vmem:[%s3339 + $0xc28] sm:%s3332]
                  %4130 = vst [vmem:[%s3340 + $0x628] sm:%s3332] %v4129
                  %v4131 = vld [vmem:[%s3339 + $0xc2c] sm:%s3332]
                  %4132 = vst [vmem:[%s3340 + $0x62c] sm:%s3332] %v4131
                  %v4133 = vld [vmem:[%s3339 + $0xc30] sm:%s3332]
                  %4134 = vst [vmem:[%s3340 + $0x630] sm:%s3332] %v4133
                  %v4135 = vld [vmem:[%s3339 + $0xc34] sm:%s3332]
                  %4136 = vst [vmem:[%s3340 + $0x634] sm:%s3332] %v4135
                  %v4137 = vld [vmem:[%s3339 + $0xc38] sm:%s3332]
                  %4138 = vst [vmem:[%s3340 + $0x638] sm:%s3332] %v4137
                  %v4139 = vld [vmem:[%s3339 + $0xc3c] sm:%s3332]
                  %4140 = vst [vmem:[%s3340 + $0x63c] sm:%s3332] %v4139
                  %v4141 = vld [vmem:[%s3339 + $0xc80] sm:%s3332]
                  %4142 = vst [vmem:[%s3340 + $0x640] sm:%s3332] %v4141
                  %v4143 = vld [vmem:[%s3339 + $0xc84] sm:%s3332]
                  %4144 = vst [vmem:[%s3340 + $0x644] sm:%s3332] %v4143
                  %v4145 = vld [vmem:[%s3339 + $0xc88] sm:%s3332]
                  %4146 = vst [vmem:[%s3340 + $0x648] sm:%s3332] %v4145
                  %v4147 = vld [vmem:[%s3339 + $0xc8c] sm:%s3332]
                  %4148 = vst [vmem:[%s3340 + $0x64c] sm:%s3332] %v4147
                  %v4149 = vld [vmem:[%s3339 + $0xc90] sm:%s3332]
                  %4150 = vst [vmem:[%s3340 + $0x650] sm:%s3332] %v4149
                  %v4151 = vld [vmem:[%s3339 + $0xc94] sm:%s3332]
                  %4152 = vst [vmem:[%s3340 + $0x654] sm:%s3332] %v4151
                  %v4153 = vld [vmem:[%s3339 + $0xc98] sm:%s3332]
                  %4154 = vst [vmem:[%s3340 + $0x658] sm:%s3332] %v4153
                  %v4155 = vld [vmem:[%s3339 + $0xc9c] sm:%s3332]
                  %4156 = vst [vmem:[%s3340 + $0x65c] sm:%s3332] %v4155
                  %v4157 = vld [vmem:[%s3339 + $0xca0] sm:%s3332]
                  %4158 = vst [vmem:[%s3340 + $0x660] sm:%s3332] %v4157
                  %v4159 = vld [vmem:[%s3339 + $0xca4] sm:%s3332]
                  %4160 = vst [vmem:[%s3340 + $0x664] sm:%s3332] %v4159
                  %v4161 = vld [vmem:[%s3339 + $0xca8] sm:%s3332]
                  %4162 = vst [vmem:[%s3340 + $0x668] sm:%s3332] %v4161
                  %v4163 = vld [vmem:[%s3339 + $0xcac] sm:%s3332]
                  %4164 = vst [vmem:[%s3340 + $0x66c] sm:%s3332] %v4163
                  %v4165 = vld [vmem:[%s3339 + $0xcb0] sm:%s3332]
                  %4166 = vst [vmem:[%s3340 + $0x670] sm:%s3332] %v4165
                  %v4167 = vld [vmem:[%s3339 + $0xcb4] sm:%s3332]
                  %4168 = vst [vmem:[%s3340 + $0x674] sm:%s3332] %v4167
                  %v4169 = vld [vmem:[%s3339 + $0xcb8] sm:%s3332]
                  %4170 = vst [vmem:[%s3340 + $0x678] sm:%s3332] %v4169
                  %v4171 = vld [vmem:[%s3339 + $0xcbc] sm:%s3332]
                  %4172 = vst [vmem:[%s3340 + $0x67c] sm:%s3332] %v4171
                  %v4173 = vld [vmem:[%s3339 + $0xd00] sm:%s3332]
                  %4174 = vst [vmem:[%s3340 + $0x680] sm:%s3332] %v4173
                  %v4175 = vld [vmem:[%s3339 + $0xd04] sm:%s3332]
                  %4176 = vst [vmem:[%s3340 + $0x684] sm:%s3332] %v4175
                  %v4177 = vld [vmem:[%s3339 + $0xd08] sm:%s3332]
                  %4178 = vst [vmem:[%s3340 + $0x688] sm:%s3332] %v4177
                  %v4179 = vld [vmem:[%s3339 + $0xd0c] sm:%s3332]
                  %4180 = vst [vmem:[%s3340 + $0x68c] sm:%s3332] %v4179
                  %v4181 = vld [vmem:[%s3339 + $0xd10] sm:%s3332]
                  %4182 = vst [vmem:[%s3340 + $0x690] sm:%s3332] %v4181
                  %v4183 = vld [vmem:[%s3339 + $0xd14] sm:%s3332]
                  %4184 = vst [vmem:[%s3340 + $0x694] sm:%s3332] %v4183
                  %v4185 = vld [vmem:[%s3339 + $0xd18] sm:%s3332]
                  %4186 = vst [vmem:[%s3340 + $0x698] sm:%s3332] %v4185
                  %v4187 = vld [vmem:[%s3339 + $0xd1c] sm:%s3332]
                  %4188 = vst [vmem:[%s3340 + $0x69c] sm:%s3332] %v4187
                  %v4189 = vld [vmem:[%s3339 + $0xd20] sm:%s3332]
                  %4190 = vst [vmem:[%s3340 + $0x6a0] sm:%s3332] %v4189
                  %v4191 = vld [vmem:[%s3339 + $0xd24] sm:%s3332]
                  %4192 = vst [vmem:[%s3340 + $0x6a4] sm:%s3332] %v4191
                  %v4193 = vld [vmem:[%s3339 + $0xd28] sm:%s3332]
                  %4194 = vst [vmem:[%s3340 + $0x6a8] sm:%s3332] %v4193
                  %v4195 = vld [vmem:[%s3339 + $0xd2c] sm:%s3332]
                  %4196 = vst [vmem:[%s3340 + $0x6ac] sm:%s3332] %v4195
                  %v4197 = vld [vmem:[%s3339 + $0xd30] sm:%s3332]
                  %4198 = vst [vmem:[%s3340 + $0x6b0] sm:%s3332] %v4197
                  %v4199 = vld [vmem:[%s3339 + $0xd34] sm:%s3332]
                  %4200 = vst [vmem:[%s3340 + $0x6b4] sm:%s3332] %v4199
                  %v4201 = vld [vmem:[%s3339 + $0xd38] sm:%s3332]
                  %4202 = vst [vmem:[%s3340 + $0x6b8] sm:%s3332] %v4201
                  %v4203 = vld [vmem:[%s3339 + $0xd3c] sm:%s3332]
                  %4204 = vst [vmem:[%s3340 + $0x6bc] sm:%s3332] %v4203
                  %v4205 = vld [vmem:[%s3339 + $0xd80] sm:%s3332]
                  %4206 = vst [vmem:[%s3340 + $0x6c0] sm:%s3332] %v4205
                  %v4207 = vld [vmem:[%s3339 + $0xd84] sm:%s3332]
                  %4208 = vst [vmem:[%s3340 + $0x6c4] sm:%s3332] %v4207
                  %v4209 = vld [vmem:[%s3339 + $0xd88] sm:%s3332]
                  %4210 = vst [vmem:[%s3340 + $0x6c8] sm:%s3332] %v4209
                  %v4211 = vld [vmem:[%s3339 + $0xd8c] sm:%s3332]
                  %4212 = vst [vmem:[%s3340 + $0x6cc] sm:%s3332] %v4211
                  %v4213 = vld [vmem:[%s3339 + $0xd90] sm:%s3332]
                  %4214 = vst [vmem:[%s3340 + $0x6d0] sm:%s3332] %v4213
                  %v4215 = vld [vmem:[%s3339 + $0xd94] sm:%s3332]
                  %4216 = vst [vmem:[%s3340 + $0x6d4] sm:%s3332] %v4215
                  %v4217 = vld [vmem:[%s3339 + $0xd98] sm:%s3332]
                  %4218 = vst [vmem:[%s3340 + $0x6d8] sm:%s3332] %v4217
                  %v4219 = vld [vmem:[%s3339 + $0xd9c] sm:%s3332]
                  %4220 = vst [vmem:[%s3340 + $0x6dc] sm:%s3332] %v4219
                  %v4221 = vld [vmem:[%s3339 + $0xda0] sm:%s3332]
                  %4222 = vst [vmem:[%s3340 + $0x6e0] sm:%s3332] %v4221
                  %v4223 = vld [vmem:[%s3339 + $0xda4] sm:%s3332]
                  %4224 = vst [vmem:[%s3340 + $0x6e4] sm:%s3332] %v4223
                  %v4225 = vld [vmem:[%s3339 + $0xda8] sm:%s3332]
                  %4226 = vst [vmem:[%s3340 + $0x6e8] sm:%s3332] %v4225
                  %v4227 = vld [vmem:[%s3339 + $0xdac] sm:%s3332]
                  %4228 = vst [vmem:[%s3340 + $0x6ec] sm:%s3332] %v4227
                  %v4229 = vld [vmem:[%s3339 + $0xdb0] sm:%s3332]
                  %4230 = vst [vmem:[%s3340 + $0x6f0] sm:%s3332] %v4229
                  %v4231 = vld [vmem:[%s3339 + $0xdb4] sm:%s3332]
                  %4232 = vst [vmem:[%s3340 + $0x6f4] sm:%s3332] %v4231
                  %v4233 = vld [vmem:[%s3339 + $0xdb8] sm:%s3332]
                  %4234 = vst [vmem:[%s3340 + $0x6f8] sm:%s3332] %v4233
                  %v4235 = vld [vmem:[%s3339 + $0xdbc] sm:%s3332]
                  %4236 = vst [vmem:[%s3340 + $0x6fc] sm:%s3332] %v4235
                  %v4237 = vld [vmem:[%s3339 + $0xe00] sm:%s3332]
                  %4238 = vst [vmem:[%s3340 + $0x700] sm:%s3332] %v4237
                  %v4239 = vld [vmem:[%s3339 + $0xe04] sm:%s3332]
                  %4240 = vst [vmem:[%s3340 + $0x704] sm:%s3332] %v4239
                  %v4241 = vld [vmem:[%s3339 + $0xe08] sm:%s3332]
                  %4242 = vst [vmem:[%s3340 + $0x708] sm:%s3332] %v4241
                  %v4243 = vld [vmem:[%s3339 + $0xe0c] sm:%s3332]
                  %4244 = vst [vmem:[%s3340 + $0x70c] sm:%s3332] %v4243
                  %v4245 = vld [vmem:[%s3339 + $0xe10] sm:%s3332]
                  %4246 = vst [vmem:[%s3340 + $0x710] sm:%s3332] %v4245
                  %v4247 = vld [vmem:[%s3339 + $0xe14] sm:%s3332]
                  %4248 = vst [vmem:[%s3340 + $0x714] sm:%s3332] %v4247
                  %v4249 = vld [vmem:[%s3339 + $0xe18] sm:%s3332]
                  %4250 = vst [vmem:[%s3340 + $0x718] sm:%s3332] %v4249
                  %v4251 = vld [vmem:[%s3339 + $0xe1c] sm:%s3332]
                  %4252 = vst [vmem:[%s3340 + $0x71c] sm:%s3332] %v4251
                  %v4253 = vld [vmem:[%s3339 + $0xe20] sm:%s3332]
                  %4254 = vst [vmem:[%s3340 + $0x720] sm:%s3332] %v4253
                  %v4255 = vld [vmem:[%s3339 + $0xe24] sm:%s3332]
                  %4256 = vst [vmem:[%s3340 + $0x724] sm:%s3332] %v4255
                  %v4257 = vld [vmem:[%s3339 + $0xe28] sm:%s3332]
                  %4258 = vst [vmem:[%s3340 + $0x728] sm:%s3332] %v4257
                  %v4259 = vld [vmem:[%s3339 + $0xe2c] sm:%s3332]
                  %4260 = vst [vmem:[%s3340 + $0x72c] sm:%s3332] %v4259
                  %v4261 = vld [vmem:[%s3339 + $0xe30] sm:%s3332]
                  %4262 = vst [vmem:[%s3340 + $0x730] sm:%s3332] %v4261
                  %v4263 = vld [vmem:[%s3339 + $0xe34] sm:%s3332]
                  %4264 = vst [vmem:[%s3340 + $0x734] sm:%s3332] %v4263
                  %v4265 = vld [vmem:[%s3339 + $0xe38] sm:%s3332]
                  %4266 = vst [vmem:[%s3340 + $0x738] sm:%s3332] %v4265
                  %v4267 = vld [vmem:[%s3339 + $0xe3c] sm:%s3332]
                  %4268 = vst [vmem:[%s3340 + $0x73c] sm:%s3332] %v4267
                  %v4269 = vld [vmem:[%s3339 + $0xe80] sm:%s3332]
                  %4270 = vst [vmem:[%s3340 + $0x740] sm:%s3332] %v4269
                  %v4271 = vld [vmem:[%s3339 + $0xe84] sm:%s3332]
                  %4272 = vst [vmem:[%s3340 + $0x744] sm:%s3332] %v4271
                  %v4273 = vld [vmem:[%s3339 + $0xe88] sm:%s3332]
                  %4274 = vst [vmem:[%s3340 + $0x748] sm:%s3332] %v4273
                  %v4275 = vld [vmem:[%s3339 + $0xe8c] sm:%s3332]
                  %4276 = vst [vmem:[%s3340 + $0x74c] sm:%s3332] %v4275
                  %v4277 = vld [vmem:[%s3339 + $0xe90] sm:%s3332]
                  %4278 = vst [vmem:[%s3340 + $0x750] sm:%s3332] %v4277
                  %v4279 = vld [vmem:[%s3339 + $0xe94] sm:%s3332]
                  %4280 = vst [vmem:[%s3340 + $0x754] sm:%s3332] %v4279
                  %v4281 = vld [vmem:[%s3339 + $0xe98] sm:%s3332]
                  %4282 = vst [vmem:[%s3340 + $0x758] sm:%s3332] %v4281
                  %v4283 = vld [vmem:[%s3339 + $0xe9c] sm:%s3332]
                  %4284 = vst [vmem:[%s3340 + $0x75c] sm:%s3332] %v4283
                  %v4285 = vld [vmem:[%s3339 + $0xea0] sm:%s3332]
                  %4286 = vst [vmem:[%s3340 + $0x760] sm:%s3332] %v4285
                  %v4287 = vld [vmem:[%s3339 + $0xea4] sm:%s3332]
                  %4288 = vst [vmem:[%s3340 + $0x764] sm:%s3332] %v4287
                  %v4289 = vld [vmem:[%s3339 + $0xea8] sm:%s3332]
                  %4290 = vst [vmem:[%s3340 + $0x768] sm:%s3332] %v4289
                  %v4291 = vld [vmem:[%s3339 + $0xeac] sm:%s3332]
                  %4292 = vst [vmem:[%s3340 + $0x76c] sm:%s3332] %v4291
                  %v4293 = vld [vmem:[%s3339 + $0xeb0] sm:%s3332]
                  %4294 = vst [vmem:[%s3340 + $0x770] sm:%s3332] %v4293
                  %v4295 = vld [vmem:[%s3339 + $0xeb4] sm:%s3332]
                  %4296 = vst [vmem:[%s3340 + $0x774] sm:%s3332] %v4295
                  %v4297 = vld [vmem:[%s3339 + $0xeb8] sm:%s3332]
                  %4298 = vst [vmem:[%s3340 + $0x778] sm:%s3332] %v4297
                  %v4299 = vld [vmem:[%s3339 + $0xebc] sm:%s3332]
                  %4300 = vst [vmem:[%s3340 + $0x77c] sm:%s3332] %v4299
                  %v4301 = vld [vmem:[%s3339 + $0xf00] sm:%s3332]
                  %4302 = vst [vmem:[%s3340 + $0x780] sm:%s3332] %v4301
                  %v4303 = vld [vmem:[%s3339 + $0xf04] sm:%s3332]
                  %4304 = vst [vmem:[%s3340 + $0x784] sm:%s3332] %v4303
                  %v4305 = vld [vmem:[%s3339 + $0xf08] sm:%s3332]
                  %4306 = vst [vmem:[%s3340 + $0x788] sm:%s3332] %v4305
                  %v4307 = vld [vmem:[%s3339 + $0xf0c] sm:%s3332]
                  %4308 = vst [vmem:[%s3340 + $0x78c] sm:%s3332] %v4307
                  %v4309 = vld [vmem:[%s3339 + $0xf10] sm:%s3332]
                  %4310 = vst [vmem:[%s3340 + $0x790] sm:%s3332] %v4309
                  %v4311 = vld [vmem:[%s3339 + $0xf14] sm:%s3332]
                  %4312 = vst [vmem:[%s3340 + $0x794] sm:%s3332] %v4311
                  %v4313 = vld [vmem:[%s3339 + $0xf18] sm:%s3332]
                  %4314 = vst [vmem:[%s3340 + $0x798] sm:%s3332] %v4313
                  %v4315 = vld [vmem:[%s3339 + $0xf1c] sm:%s3332]
                  %4316 = vst [vmem:[%s3340 + $0x79c] sm:%s3332] %v4315
                  %v4317 = vld [vmem:[%s3339 + $0xf20] sm:%s3332]
                  %4318 = vst [vmem:[%s3340 + $0x7a0] sm:%s3332] %v4317
                  %v4319 = vld [vmem:[%s3339 + $0xf24] sm:%s3332]
                  %4320 = vst [vmem:[%s3340 + $0x7a4] sm:%s3332] %v4319
                  %v4321 = vld [vmem:[%s3339 + $0xf28] sm:%s3332]
                  %4322 = vst [vmem:[%s3340 + $0x7a8] sm:%s3332] %v4321
                  %v4323 = vld [vmem:[%s3339 + $0xf2c] sm:%s3332]
                  %4324 = vst [vmem:[%s3340 + $0x7ac] sm:%s3332] %v4323
                  %v4325 = vld [vmem:[%s3339 + $0xf30] sm:%s3332]
                  %4326 = vst [vmem:[%s3340 + $0x7b0] sm:%s3332] %v4325
                  %v4327 = vld [vmem:[%s3339 + $0xf34] sm:%s3332]
                  %4328 = vst [vmem:[%s3340 + $0x7b4] sm:%s3332] %v4327
                  %v4329 = vld [vmem:[%s3339 + $0xf38] sm:%s3332]
                  %4330 = vst [vmem:[%s3340 + $0x7b8] sm:%s3332] %v4329
                  %v4331 = vld [vmem:[%s3339 + $0xf3c] sm:%s3332]
                  %4332 = vst [vmem:[%s3340 + $0x7bc] sm:%s3332] %v4331
                  %v4333 = vld [vmem:[%s3339 + $0xf80] sm:%s3332]
                  %4334 = vst [vmem:[%s3340 + $0x7c0] sm:%s3332] %v4333
                  %v4335 = vld [vmem:[%s3339 + $0xf84] sm:%s3332]
                  %4336 = vst [vmem:[%s3340 + $0x7c4] sm:%s3332] %v4335
                  %v4337 = vld [vmem:[%s3339 + $0xf88] sm:%s3332]
                  %4338 = vst [vmem:[%s3340 + $0x7c8] sm:%s3332] %v4337
                  %v4339 = vld [vmem:[%s3339 + $0xf8c] sm:%s3332]
                  %4340 = vst [vmem:[%s3340 + $0x7cc] sm:%s3332] %v4339
                  %v4341 = vld [vmem:[%s3339 + $0xf90] sm:%s3332]
                  %4342 = vst [vmem:[%s3340 + $0x7d0] sm:%s3332] %v4341
                  %v4343 = vld [vmem:[%s3339 + $0xf94] sm:%s3332]
                  %4344 = vst [vmem:[%s3340 + $0x7d4] sm:%s3332] %v4343
                  %v4345 = vld [vmem:[%s3339 + $0xf98] sm:%s3332]
                  %4346 = vst [vmem:[%s3340 + $0x7d8] sm:%s3332] %v4345
                  %v4347 = vld [vmem:[%s3339 + $0xf9c] sm:%s3332]
                  %4348 = vst [vmem:[%s3340 + $0x7dc] sm:%s3332] %v4347
                  %v4349 = vld [vmem:[%s3339 + $0xfa0] sm:%s3332]
                  %4350 = vst [vmem:[%s3340 + $0x7e0] sm:%s3332] %v4349
                  %v4351 = vld [vmem:[%s3339 + $0xfa4] sm:%s3332]
                  %4352 = vst [vmem:[%s3340 + $0x7e4] sm:%s3332] %v4351
                  %v4353 = vld [vmem:[%s3339 + $0xfa8] sm:%s3332]
                  %4354 = vst [vmem:[%s3340 + $0x7e8] sm:%s3332] %v4353
                  %v4355 = vld [vmem:[%s3339 + $0xfac] sm:%s3332]
                  %4356 = vst [vmem:[%s3340 + $0x7ec] sm:%s3332] %v4355
                  %v4357 = vld [vmem:[%s3339 + $0xfb0] sm:%s3332]
                  %4358 = vst [vmem:[%s3340 + $0x7f0] sm:%s3332] %v4357
                  %v4359 = vld [vmem:[%s3339 + $0xfb4] sm:%s3332]
                  %4360 = vst [vmem:[%s3340 + $0x7f4] sm:%s3332] %v4359
                  %v4361 = vld [vmem:[%s3339 + $0xfb8] sm:%s3332]
                  %4362 = vst [vmem:[%s3340 + $0x7f8] sm:%s3332] %v4361
                  %v4363 = vld [vmem:[%s3339 + $0xfbc] sm:%s3332]
                  %4364 = vst [vmem:[%s3340 + $0x7fc] sm:%s3332] %v4363
                $region70: #{tpu_custom_call.1} parent=57 // loop_footer
                  %s3338 = sadd.s32 1, %s3334
                $region71: #{tpu_custom_call.1} parent=57 // loop_footer_branch
                  %3333 = sbr.rel target = $region67
                $region72: #{tpu_custom_call.1} parent=57 // loop_exit
                  _
              $region58: #{tpu_custom_call.1} parent=31 // pred_fallthru
                _
            $region32: #{tpu_custom_call.1} parent=27 // pred_fallthru
              _
            // Predicated region
            $region33: #{tpu_custom_call.1} parent=27 // pred_check
              _
            $region34: #{tpu_custom_call.1} parent=27 // pred_check_branch
              %212 = sbr.rel (0) target = $region36
            $region35: #{tpu_custom_call.1} parent=27 // pred_region
              %s214 = ssub.s32 16, 1
              loop: start=0, step=1, limit=1
              $region37: #{tpu_custom_call.1} parent=35 // loop_pre_header
                _
              $region38: #{tpu_custom_call.1} parent=35 // loop_header
                %s216 = sphi 0, %s220
                %p217 = scmp.ge.s32.totalorder %s216, 1
                %s221 = sphi %s206, %s206
                %s222 = sphi %s200, %s200
              $region39: #{tpu_custom_call.1} parent=35 // loop_header_branch
                %219 = sbr.rel (%p217) target = $region43
              $region40: #{tpu_custom_call.1} parent=35 // loop_body
                %v223 = vld [vmem:[%s221] sm:%s214]
                %224 = vst [vmem:[%s222] sm:%s214] %v223
                %v225 = vld [vmem:[%s221 + $0x4] sm:%s214]
                %226 = vst [vmem:[%s222 + $0x4] sm:%s214] %v225
                %v227 = vld [vmem:[%s221 + $0x8] sm:%s214]
                %228 = vst [vmem:[%s222 + $0x8] sm:%s214] %v227
                %v229 = vld [vmem:[%s221 + $0xc] sm:%s214]
                %230 = vst [vmem:[%s222 + $0xc] sm:%s214] %v229
                %v231 = vld [vmem:[%s221 + $0x10] sm:%s214]
                %232 = vst [vmem:[%s222 + $0x10] sm:%s214] %v231
                %v233 = vld [vmem:[%s221 + $0x14] sm:%s214]
                %234 = vst [vmem:[%s222 + $0x14] sm:%s214] %v233
                %v235 = vld [vmem:[%s221 + $0x18] sm:%s214]
                %236 = vst [vmem:[%s222 + $0x18] sm:%s214] %v235
                %v237 = vld [vmem:[%s221 + $0x1c] sm:%s214]
                %238 = vst [vmem:[%s222 + $0x1c] sm:%s214] %v237
                %v239 = vld [vmem:[%s221 + $0x20] sm:%s214]
                %240 = vst [vmem:[%s222 + $0x20] sm:%s214] %v239
                %v241 = vld [vmem:[%s221 + $0x24] sm:%s214]
                %242 = vst [vmem:[%s222 + $0x24] sm:%s214] %v241
                %v243 = vld [vmem:[%s221 + $0x28] sm:%s214]
                %244 = vst [vmem:[%s222 + $0x28] sm:%s214] %v243
                %v245 = vld [vmem:[%s221 + $0x2c] sm:%s214]
                %246 = vst [vmem:[%s222 + $0x2c] sm:%s214] %v245
                %v247 = vld [vmem:[%s221 + $0x30] sm:%s214]
                %248 = vst [vmem:[%s222 + $0x30] sm:%s214] %v247
                %v249 = vld [vmem:[%s221 + $0x34] sm:%s214]
                %250 = vst [vmem:[%s222 + $0x34] sm:%s214] %v249
                %v251 = vld [vmem:[%s221 + $0x38] sm:%s214]
                %252 = vst [vmem:[%s222 + $0x38] sm:%s214] %v251
                %v253 = vld [vmem:[%s221 + $0x3c] sm:%s214]
                %254 = vst [vmem:[%s222 + $0x3c] sm:%s214] %v253
                %v255 = vld [vmem:[%s221 + $0x80] sm:%s214]
                %256 = vst [vmem:[%s222 + $0x40] sm:%s214] %v255
                %v257 = vld [vmem:[%s221 + $0x84] sm:%s214]
                %258 = vst [vmem:[%s222 + $0x44] sm:%s214] %v257
                %v259 = vld [vmem:[%s221 + $0x88] sm:%s214]
                %260 = vst [vmem:[%s222 + $0x48] sm:%s214] %v259
                %v261 = vld [vmem:[%s221 + $0x8c] sm:%s214]
                %262 = vst [vmem:[%s222 + $0x4c] sm:%s214] %v261
                %v263 = vld [vmem:[%s221 + $0x90] sm:%s214]
                %264 = vst [vmem:[%s222 + $0x50] sm:%s214] %v263
                %v265 = vld [vmem:[%s221 + $0x94] sm:%s214]
                %266 = vst [vmem:[%s222 + $0x54] sm:%s214] %v265
                %v267 = vld [vmem:[%s221 + $0x98] sm:%s214]
                %268 = vst [vmem:[%s222 + $0x58] sm:%s214] %v267
                %v269 = vld [vmem:[%s221 + $0x9c] sm:%s214]
                %270 = vst [vmem:[%s222 + $0x5c] sm:%s214] %v269
                %v271 = vld [vmem:[%s221 + $0xa0] sm:%s214]
                %272 = vst [vmem:[%s222 + $0x60] sm:%s214] %v271
                %v273 = vld [vmem:[%s221 + $0xa4] sm:%s214]
                %274 = vst [vmem:[%s222 + $0x64] sm:%s214] %v273
                %v275 = vld [vmem:[%s221 + $0xa8] sm:%s214]
                %276 = vst [vmem:[%s222 + $0x68] sm:%s214] %v275
                %v277 = vld [vmem:[%s221 + $0xac] sm:%s214]
                %278 = vst [vmem:[%s222 + $0x6c] sm:%s214] %v277
                %v279 = vld [vmem:[%s221 + $0xb0] sm:%s214]
                %280 = vst [vmem:[%s222 + $0x70] sm:%s214] %v279
                %v281 = vld [vmem:[%s221 + $0xb4] sm:%s214]
                %282 = vst [vmem:[%s222 + $0x74] sm:%s214] %v281
                %v283 = vld [vmem:[%s221 + $0xb8] sm:%s214]
                %284 = vst [vmem:[%s222 + $0x78] sm:%s214] %v283
                %v285 = vld [vmem:[%s221 + $0xbc] sm:%s214]
                %286 = vst [vmem:[%s222 + $0x7c] sm:%s214] %v285
                %v287 = vld [vmem:[%s221 + $0x100] sm:%s214]
                %288 = vst [vmem:[%s222 + $0x80] sm:%s214] %v287
                %v289 = vld [vmem:[%s221 + $0x104] sm:%s214]
                %290 = vst [vmem:[%s222 + $0x84] sm:%s214] %v289
                %v291 = vld [vmem:[%s221 + $0x108] sm:%s214]
                %292 = vst [vmem:[%s222 + $0x88] sm:%s214] %v291
                %v293 = vld [vmem:[%s221 + $0x10c] sm:%s214]
                %294 = vst [vmem:[%s222 + $0x8c] sm:%s214] %v293
                %v295 = vld [vmem:[%s221 + $0x110] sm:%s214]
                %296 = vst [vmem:[%s222 + $0x90] sm:%s214] %v295
                %v297 = vld [vmem:[%s221 + $0x114] sm:%s214]
                %298 = vst [vmem:[%s222 + $0x94] sm:%s214] %v297
                %v299 = vld [vmem:[%s221 + $0x118] sm:%s214]
                %300 = vst [vmem:[%s222 + $0x98] sm:%s214] %v299
                %v301 = vld [vmem:[%s221 + $0x11c] sm:%s214]
                %302 = vst [vmem:[%s222 + $0x9c] sm:%s214] %v301
                %v303 = vld [vmem:[%s221 + $0x120] sm:%s214]
                %304 = vst [vmem:[%s222 + $0xa0] sm:%s214] %v303
                %v305 = vld [vmem:[%s221 + $0x124] sm:%s214]
                %306 = vst [vmem:[%s222 + $0xa4] sm:%s214] %v305
                %v307 = vld [vmem:[%s221 + $0x128] sm:%s214]
                %308 = vst [vmem:[%s222 + $0xa8] sm:%s214] %v307
                %v309 = vld [vmem:[%s221 + $0x12c] sm:%s214]
                %310 = vst [vmem:[%s222 + $0xac] sm:%s214] %v309
                %v311 = vld [vmem:[%s221 + $0x130] sm:%s214]
                %312 = vst [vmem:[%s222 + $0xb0] sm:%s214] %v311
                %v313 = vld [vmem:[%s221 + $0x134] sm:%s214]
                %314 = vst [vmem:[%s222 + $0xb4] sm:%s214] %v313
                %v315 = vld [vmem:[%s221 + $0x138] sm:%s214]
                %316 = vst [vmem:[%s222 + $0xb8] sm:%s214] %v315
                %v317 = vld [vmem:[%s221 + $0x13c] sm:%s214]
                %318 = vst [vmem:[%s222 + $0xbc] sm:%s214] %v317
                %v319 = vld [vmem:[%s221 + $0x180] sm:%s214]
                %320 = vst [vmem:[%s222 + $0xc0] sm:%s214] %v319
                %v321 = vld [vmem:[%s221 + $0x184] sm:%s214]
                %322 = vst [vmem:[%s222 + $0xc4] sm:%s214] %v321
                %v323 = vld [vmem:[%s221 + $0x188] sm:%s214]
                %324 = vst [vmem:[%s222 + $0xc8] sm:%s214] %v323
                %v325 = vld [vmem:[%s221 + $0x18c] sm:%s214]
                %326 = vst [vmem:[%s222 + $0xcc] sm:%s214] %v325
                %v327 = vld [vmem:[%s221 + $0x190] sm:%s214]
                %328 = vst [vmem:[%s222 + $0xd0] sm:%s214] %v327
                %v329 = vld [vmem:[%s221 + $0x194] sm:%s214]
                %330 = vst [vmem:[%s222 + $0xd4] sm:%s214] %v329
                %v331 = vld [vmem:[%s221 + $0x198] sm:%s214]
                %332 = vst [vmem:[%s222 + $0xd8] sm:%s214] %v331
                %v333 = vld [vmem:[%s221 + $0x19c] sm:%s214]
                %334 = vst [vmem:[%s222 + $0xdc] sm:%s214] %v333
                %v335 = vld [vmem:[%s221 + $0x1a0] sm:%s214]
                %336 = vst [vmem:[%s222 + $0xe0] sm:%s214] %v335
                %v337 = vld [vmem:[%s221 + $0x1a4] sm:%s214]
                %338 = vst [vmem:[%s222 + $0xe4] sm:%s214] %v337
                %v339 = vld [vmem:[%s221 + $0x1a8] sm:%s214]
                %340 = vst [vmem:[%s222 + $0xe8] sm:%s214] %v339
                %v341 = vld [vmem:[%s221 + $0x1ac] sm:%s214]
                %342 = vst [vmem:[%s222 + $0xec] sm:%s214] %v341
                %v343 = vld [vmem:[%s221 + $0x1b0] sm:%s214]
                %344 = vst [vmem:[%s222 + $0xf0] sm:%s214] %v343
                %v345 = vld [vmem:[%s221 + $0x1b4] sm:%s214]
                %346 = vst [vmem:[%s222 + $0xf4] sm:%s214] %v345
                %v347 = vld [vmem:[%s221 + $0x1b8] sm:%s214]
                %348 = vst [vmem:[%s222 + $0xf8] sm:%s214] %v347
                %v349 = vld [vmem:[%s221 + $0x1bc] sm:%s214]
                %350 = vst [vmem:[%s222 + $0xfc] sm:%s214] %v349
                %v351 = vld [vmem:[%s221 + $0x200] sm:%s214]
                %352 = vst [vmem:[%s222 + $0x100] sm:%s214] %v351
                %v353 = vld [vmem:[%s221 + $0x204] sm:%s214]
                %354 = vst [vmem:[%s222 + $0x104] sm:%s214] %v353
                %v355 = vld [vmem:[%s221 + $0x208] sm:%s214]
                %356 = vst [vmem:[%s222 + $0x108] sm:%s214] %v355
                %v357 = vld [vmem:[%s221 + $0x20c] sm:%s214]
                %358 = vst [vmem:[%s222 + $0x10c] sm:%s214] %v357
                %v359 = vld [vmem:[%s221 + $0x210] sm:%s214]
                %360 = vst [vmem:[%s222 + $0x110] sm:%s214] %v359
                %v361 = vld [vmem:[%s221 + $0x214] sm:%s214]
                %362 = vst [vmem:[%s222 + $0x114] sm:%s214] %v361
                %v363 = vld [vmem:[%s221 + $0x218] sm:%s214]
                %364 = vst [vmem:[%s222 + $0x118] sm:%s214] %v363
                %v365 = vld [vmem:[%s221 + $0x21c] sm:%s214]
                %366 = vst [vmem:[%s222 + $0x11c] sm:%s214] %v365
                %v367 = vld [vmem:[%s221 + $0x220] sm:%s214]
                %368 = vst [vmem:[%s222 + $0x120] sm:%s214] %v367
                %v369 = vld [vmem:[%s221 + $0x224] sm:%s214]
                %370 = vst [vmem:[%s222 + $0x124] sm:%s214] %v369
                %v371 = vld [vmem:[%s221 + $0x228] sm:%s214]
                %372 = vst [vmem:[%s222 + $0x128] sm:%s214] %v371
                %v373 = vld [vmem:[%s221 + $0x22c] sm:%s214]
                %374 = vst [vmem:[%s222 + $0x12c] sm:%s214] %v373
                %v375 = vld [vmem:[%s221 + $0x230] sm:%s214]
                %376 = vst [vmem:[%s222 + $0x130] sm:%s214] %v375
                %v377 = vld [vmem:[%s221 + $0x234] sm:%s214]
                %378 = vst [vmem:[%s222 + $0x134] sm:%s214] %v377
                %v379 = vld [vmem:[%s221 + $0x238] sm:%s214]
                %380 = vst [vmem:[%s222 + $0x138] sm:%s214] %v379
                %v381 = vld [vmem:[%s221 + $0x23c] sm:%s214]
                %382 = vst [vmem:[%s222 + $0x13c] sm:%s214] %v381
                %v383 = vld [vmem:[%s221 + $0x280] sm:%s214]
                %384 = vst [vmem:[%s222 + $0x140] sm:%s214] %v383
                %v385 = vld [vmem:[%s221 + $0x284] sm:%s214]
                %386 = vst [vmem:[%s222 + $0x144] sm:%s214] %v385
                %v387 = vld [vmem:[%s221 + $0x288] sm:%s214]
                %388 = vst [vmem:[%s222 + $0x148] sm:%s214] %v387
                %v389 = vld [vmem:[%s221 + $0x28c] sm:%s214]
                %390 = vst [vmem:[%s222 + $0x14c] sm:%s214] %v389
                %v391 = vld [vmem:[%s221 + $0x290] sm:%s214]
                %392 = vst [vmem:[%s222 + $0x150] sm:%s214] %v391
                %v393 = vld [vmem:[%s221 + $0x294] sm:%s214]
                %394 = vst [vmem:[%s222 + $0x154] sm:%s214] %v393
                %v395 = vld [vmem:[%s221 + $0x298] sm:%s214]
                %396 = vst [vmem:[%s222 + $0x158] sm:%s214] %v395
                %v397 = vld [vmem:[%s221 + $0x29c] sm:%s214]
                %398 = vst [vmem:[%s222 + $0x15c] sm:%s214] %v397
                %v399 = vld [vmem:[%s221 + $0x2a0] sm:%s214]
                %400 = vst [vmem:[%s222 + $0x160] sm:%s214] %v399
                %v401 = vld [vmem:[%s221 + $0x2a4] sm:%s214]
                %402 = vst [vmem:[%s222 + $0x164] sm:%s214] %v401
                %v403 = vld [vmem:[%s221 + $0x2a8] sm:%s214]
                %404 = vst [vmem:[%s222 + $0x168] sm:%s214] %v403
                %v405 = vld [vmem:[%s221 + $0x2ac] sm:%s214]
                %406 = vst [vmem:[%s222 + $0x16c] sm:%s214] %v405
                %v407 = vld [vmem:[%s221 + $0x2b0] sm:%s214]
                %408 = vst [vmem:[%s222 + $0x170] sm:%s214] %v407
                %v409 = vld [vmem:[%s221 + $0x2b4] sm:%s214]
                %410 = vst [vmem:[%s222 + $0x174] sm:%s214] %v409
                %v411 = vld [vmem:[%s221 + $0x2b8] sm:%s214]
                %412 = vst [vmem:[%s222 + $0x178] sm:%s214] %v411
                %v413 = vld [vmem:[%s221 + $0x2bc] sm:%s214]
                %414 = vst [vmem:[%s222 + $0x17c] sm:%s214] %v413
                %v415 = vld [vmem:[%s221 + $0x300] sm:%s214]
                %416 = vst [vmem:[%s222 + $0x180] sm:%s214] %v415
                %v417 = vld [vmem:[%s221 + $0x304] sm:%s214]
                %418 = vst [vmem:[%s222 + $0x184] sm:%s214] %v417
                %v419 = vld [vmem:[%s221 + $0x308] sm:%s214]
                %420 = vst [vmem:[%s222 + $0x188] sm:%s214] %v419
                %v421 = vld [vmem:[%s221 + $0x30c] sm:%s214]
                %422 = vst [vmem:[%s222 + $0x18c] sm:%s214] %v421
                %v423 = vld [vmem:[%s221 + $0x310] sm:%s214]
                %424 = vst [vmem:[%s222 + $0x190] sm:%s214] %v423
                %v425 = vld [vmem:[%s221 + $0x314] sm:%s214]
                %426 = vst [vmem:[%s222 + $0x194] sm:%s214] %v425
                %v427 = vld [vmem:[%s221 + $0x318] sm:%s214]
                %428 = vst [vmem:[%s222 + $0x198] sm:%s214] %v427
                %v429 = vld [vmem:[%s221 + $0x31c] sm:%s214]
                %430 = vst [vmem:[%s222 + $0x19c] sm:%s214] %v429
                %v431 = vld [vmem:[%s221 + $0x320] sm:%s214]
                %432 = vst [vmem:[%s222 + $0x1a0] sm:%s214] %v431
                %v433 = vld [vmem:[%s221 + $0x324] sm:%s214]
                %434 = vst [vmem:[%s222 + $0x1a4] sm:%s214] %v433
                %v435 = vld [vmem:[%s221 + $0x328] sm:%s214]
                %436 = vst [vmem:[%s222 + $0x1a8] sm:%s214] %v435
                %v437 = vld [vmem:[%s221 + $0x32c] sm:%s214]
                %438 = vst [vmem:[%s222 + $0x1ac] sm:%s214] %v437
                %v439 = vld [vmem:[%s221 + $0x330] sm:%s214]
                %440 = vst [vmem:[%s222 + $0x1b0] sm:%s214] %v439
                %v441 = vld [vmem:[%s221 + $0x334] sm:%s214]
                %442 = vst [vmem:[%s222 + $0x1b4] sm:%s214] %v441
                %v443 = vld [vmem:[%s221 + $0x338] sm:%s214]
                %444 = vst [vmem:[%s222 + $0x1b8] sm:%s214] %v443
                %v445 = vld [vmem:[%s221 + $0x33c] sm:%s214]
                %446 = vst [vmem:[%s222 + $0x1bc] sm:%s214] %v445
                %v447 = vld [vmem:[%s221 + $0x380] sm:%s214]
                %448 = vst [vmem:[%s222 + $0x1c0] sm:%s214] %v447
                %v449 = vld [vmem:[%s221 + $0x384] sm:%s214]
                %450 = vst [vmem:[%s222 + $0x1c4] sm:%s214] %v449
                %v451 = vld [vmem:[%s221 + $0x388] sm:%s214]
                %452 = vst [vmem:[%s222 + $0x1c8] sm:%s214] %v451
                %v453 = vld [vmem:[%s221 + $0x38c] sm:%s214]
                %454 = vst [vmem:[%s222 + $0x1cc] sm:%s214] %v453
                %v455 = vld [vmem:[%s221 + $0x390] sm:%s214]
                %456 = vst [vmem:[%s222 + $0x1d0] sm:%s214] %v455
                %v457 = vld [vmem:[%s221 + $0x394] sm:%s214]
                %458 = vst [vmem:[%s222 + $0x1d4] sm:%s214] %v457
                %v459 = vld [vmem:[%s221 + $0x398] sm:%s214]
                %460 = vst [vmem:[%s222 + $0x1d8] sm:%s214] %v459
                %v461 = vld [vmem:[%s221 + $0x39c] sm:%s214]
                %462 = vst [vmem:[%s222 + $0x1dc] sm:%s214] %v461
                %v463 = vld [vmem:[%s221 + $0x3a0] sm:%s214]
                %464 = vst [vmem:[%s222 + $0x1e0] sm:%s214] %v463
                %v465 = vld [vmem:[%s221 + $0x3a4] sm:%s214]
                %466 = vst [vmem:[%s222 + $0x1e4] sm:%s214] %v465
                %v467 = vld [vmem:[%s221 + $0x3a8] sm:%s214]
                %468 = vst [vmem:[%s222 + $0x1e8] sm:%s214] %v467
                %v469 = vld [vmem:[%s221 + $0x3ac] sm:%s214]
                %470 = vst [vmem:[%s222 + $0x1ec] sm:%s214] %v469
                %v471 = vld [vmem:[%s221 + $0x3b0] sm:%s214]
                %472 = vst [vmem:[%s222 + $0x1f0] sm:%s214] %v471
                %v473 = vld [vmem:[%s221 + $0x3b4] sm:%s214]
                %474 = vst [vmem:[%s222 + $0x1f4] sm:%s214] %v473
                %v475 = vld [vmem:[%s221 + $0x3b8] sm:%s214]
                %476 = vst [vmem:[%s222 + $0x1f8] sm:%s214] %v475
                %v477 = vld [vmem:[%s221 + $0x3bc] sm:%s214]
                %478 = vst [vmem:[%s222 + $0x1fc] sm:%s214] %v477
                %v479 = vld [vmem:[%s221 + $0x400] sm:%s214]
                %480 = vst [vmem:[%s222 + $0x200] sm:%s214] %v479
                %v481 = vld [vmem:[%s221 + $0x404] sm:%s214]
                %482 = vst [vmem:[%s222 + $0x204] sm:%s214] %v481
                %v483 = vld [vmem:[%s221 + $0x408] sm:%s214]
                %484 = vst [vmem:[%s222 + $0x208] sm:%s214] %v483
                %v485 = vld [vmem:[%s221 + $0x40c] sm:%s214]
                %486 = vst [vmem:[%s222 + $0x20c] sm:%s214] %v485
                %v487 = vld [vmem:[%s221 + $0x410] sm:%s214]
                %488 = vst [vmem:[%s222 + $0x210] sm:%s214] %v487
                %v489 = vld [vmem:[%s221 + $0x414] sm:%s214]
                %490 = vst [vmem:[%s222 + $0x214] sm:%s214] %v489
                %v491 = vld [vmem:[%s221 + $0x418] sm:%s214]
                %492 = vst [vmem:[%s222 + $0x218] sm:%s214] %v491
                %v493 = vld [vmem:[%s221 + $0x41c] sm:%s214]
                %494 = vst [vmem:[%s222 + $0x21c] sm:%s214] %v493
                %v495 = vld [vmem:[%s221 + $0x420] sm:%s214]
                %496 = vst [vmem:[%s222 + $0x220] sm:%s214] %v495
                %v497 = vld [vmem:[%s221 + $0x424] sm:%s214]
                %498 = vst [vmem:[%s222 + $0x224] sm:%s214] %v497
                %v499 = vld [vmem:[%s221 + $0x428] sm:%s214]
                %500 = vst [vmem:[%s222 + $0x228] sm:%s214] %v499
                %v501 = vld [vmem:[%s221 + $0x42c] sm:%s214]
                %502 = vst [vmem:[%s222 + $0x22c] sm:%s214] %v501
                %v503 = vld [vmem:[%s221 + $0x430] sm:%s214]
                %504 = vst [vmem:[%s222 + $0x230] sm:%s214] %v503
                %v505 = vld [vmem:[%s221 + $0x434] sm:%s214]
                %506 = vst [vmem:[%s222 + $0x234] sm:%s214] %v505
                %v507 = vld [vmem:[%s221 + $0x438] sm:%s214]
                %508 = vst [vmem:[%s222 + $0x238] sm:%s214] %v507
                %v509 = vld [vmem:[%s221 + $0x43c] sm:%s214]
                %510 = vst [vmem:[%s222 + $0x23c] sm:%s214] %v509
                %v511 = vld [vmem:[%s221 + $0x480] sm:%s214]
                %512 = vst [vmem:[%s222 + $0x240] sm:%s214] %v511
                %v513 = vld [vmem:[%s221 + $0x484] sm:%s214]
                %514 = vst [vmem:[%s222 + $0x244] sm:%s214] %v513
                %v515 = vld [vmem:[%s221 + $0x488] sm:%s214]
                %516 = vst [vmem:[%s222 + $0x248] sm:%s214] %v515
                %v517 = vld [vmem:[%s221 + $0x48c] sm:%s214]
                %518 = vst [vmem:[%s222 + $0x24c] sm:%s214] %v517
                %v519 = vld [vmem:[%s221 + $0x490] sm:%s214]
                %520 = vst [vmem:[%s222 + $0x250] sm:%s214] %v519
                %v521 = vld [vmem:[%s221 + $0x494] sm:%s214]
                %522 = vst [vmem:[%s222 + $0x254] sm:%s214] %v521
                %v523 = vld [vmem:[%s221 + $0x498] sm:%s214]
                %524 = vst [vmem:[%s222 + $0x258] sm:%s214] %v523
                %v525 = vld [vmem:[%s221 + $0x49c] sm:%s214]
                %526 = vst [vmem:[%s222 + $0x25c] sm:%s214] %v525
                %v527 = vld [vmem:[%s221 + $0x4a0] sm:%s214]
                %528 = vst [vmem:[%s222 + $0x260] sm:%s214] %v527
                %v529 = vld [vmem:[%s221 + $0x4a4] sm:%s214]
                %530 = vst [vmem:[%s222 + $0x264] sm:%s214] %v529
                %v531 = vld [vmem:[%s221 + $0x4a8] sm:%s214]
                %532 = vst [vmem:[%s222 + $0x268] sm:%s214] %v531
                %v533 = vld [vmem:[%s221 + $0x4ac] sm:%s214]
                %534 = vst [vmem:[%s222 + $0x26c] sm:%s214] %v533
                %v535 = vld [vmem:[%s221 + $0x4b0] sm:%s214]
                %536 = vst [vmem:[%s222 + $0x270] sm:%s214] %v535
                %v537 = vld [vmem:[%s221 + $0x4b4] sm:%s214]
                %538 = vst [vmem:[%s222 + $0x274] sm:%s214] %v537
                %v539 = vld [vmem:[%s221 + $0x4b8] sm:%s214]
                %540 = vst [vmem:[%s222 + $0x278] sm:%s214] %v539
                %v541 = vld [vmem:[%s221 + $0x4bc] sm:%s214]
                %542 = vst [vmem:[%s222 + $0x27c] sm:%s214] %v541
                %v543 = vld [vmem:[%s221 + $0x500] sm:%s214]
                %544 = vst [vmem:[%s222 + $0x280] sm:%s214] %v543
                %v545 = vld [vmem:[%s221 + $0x504] sm:%s214]
                %546 = vst [vmem:[%s222 + $0x284] sm:%s214] %v545
                %v547 = vld [vmem:[%s221 + $0x508] sm:%s214]
                %548 = vst [vmem:[%s222 + $0x288] sm:%s214] %v547
                %v549 = vld [vmem:[%s221 + $0x50c] sm:%s214]
                %550 = vst [vmem:[%s222 + $0x28c] sm:%s214] %v549
                %v551 = vld [vmem:[%s221 + $0x510] sm:%s214]
                %552 = vst [vmem:[%s222 + $0x290] sm:%s214] %v551
                %v553 = vld [vmem:[%s221 + $0x514] sm:%s214]
                %554 = vst [vmem:[%s222 + $0x294] sm:%s214] %v553
                %v555 = vld [vmem:[%s221 + $0x518] sm:%s214]
                %556 = vst [vmem:[%s222 + $0x298] sm:%s214] %v555
                %v557 = vld [vmem:[%s221 + $0x51c] sm:%s214]
                %558 = vst [vmem:[%s222 + $0x29c] sm:%s214] %v557
                %v559 = vld [vmem:[%s221 + $0x520] sm:%s214]
                %560 = vst [vmem:[%s222 + $0x2a0] sm:%s214] %v559
                %v561 = vld [vmem:[%s221 + $0x524] sm:%s214]
                %562 = vst [vmem:[%s222 + $0x2a4] sm:%s214] %v561
                %v563 = vld [vmem:[%s221 + $0x528] sm:%s214]
                %564 = vst [vmem:[%s222 + $0x2a8] sm:%s214] %v563
                %v565 = vld [vmem:[%s221 + $0x52c] sm:%s214]
                %566 = vst [vmem:[%s222 + $0x2ac] sm:%s214] %v565
                %v567 = vld [vmem:[%s221 + $0x530] sm:%s214]
                %568 = vst [vmem:[%s222 + $0x2b0] sm:%s214] %v567
                %v569 = vld [vmem:[%s221 + $0x534] sm:%s214]
                %570 = vst [vmem:[%s222 + $0x2b4] sm:%s214] %v569
                %v571 = vld [vmem:[%s221 + $0x538] sm:%s214]
                %572 = vst [vmem:[%s222 + $0x2b8] sm:%s214] %v571
                %v573 = vld [vmem:[%s221 + $0x53c] sm:%s214]
                %574 = vst [vmem:[%s222 + $0x2bc] sm:%s214] %v573
                %v575 = vld [vmem:[%s221 + $0x580] sm:%s214]
                %576 = vst [vmem:[%s222 + $0x2c0] sm:%s214] %v575
                %v577 = vld [vmem:[%s221 + $0x584] sm:%s214]
                %578 = vst [vmem:[%s222 + $0x2c4] sm:%s214] %v577
                %v579 = vld [vmem:[%s221 + $0x588] sm:%s214]
                %580 = vst [vmem:[%s222 + $0x2c8] sm:%s214] %v579
                %v581 = vld [vmem:[%s221 + $0x58c] sm:%s214]
                %582 = vst [vmem:[%s222 + $0x2cc] sm:%s214] %v581
                %v583 = vld [vmem:[%s221 + $0x590] sm:%s214]
                %584 = vst [vmem:[%s222 + $0x2d0] sm:%s214] %v583
                %v585 = vld [vmem:[%s221 + $0x594] sm:%s214]
                %586 = vst [vmem:[%s222 + $0x2d4] sm:%s214] %v585
                %v587 = vld [vmem:[%s221 + $0x598] sm:%s214]
                %588 = vst [vmem:[%s222 + $0x2d8] sm:%s214] %v587
                %v589 = vld [vmem:[%s221 + $0x59c] sm:%s214]
                %590 = vst [vmem:[%s222 + $0x2dc] sm:%s214] %v589
                %v591 = vld [vmem:[%s221 + $0x5a0] sm:%s214]
                %592 = vst [vmem:[%s222 + $0x2e0] sm:%s214] %v591
                %v593 = vld [vmem:[%s221 + $0x5a4] sm:%s214]
                %594 = vst [vmem:[%s222 + $0x2e4] sm:%s214] %v593
                %v595 = vld [vmem:[%s221 + $0x5a8] sm:%s214]
                %596 = vst [vmem:[%s222 + $0x2e8] sm:%s214] %v595
                %v597 = vld [vmem:[%s221 + $0x5ac] sm:%s214]
                %598 = vst [vmem:[%s222 + $0x2ec] sm:%s214] %v597
                %v599 = vld [vmem:[%s221 + $0x5b0] sm:%s214]
                %600 = vst [vmem:[%s222 + $0x2f0] sm:%s214] %v599
                %v601 = vld [vmem:[%s221 + $0x5b4] sm:%s214]
                %602 = vst [vmem:[%s222 + $0x2f4] sm:%s214] %v601
                %v603 = vld [vmem:[%s221 + $0x5b8] sm:%s214]
                %604 = vst [vmem:[%s222 + $0x2f8] sm:%s214] %v603
                %v605 = vld [vmem:[%s221 + $0x5bc] sm:%s214]
                %606 = vst [vmem:[%s222 + $0x2fc] sm:%s214] %v605
                %v607 = vld [vmem:[%s221 + $0x600] sm:%s214]
                %608 = vst [vmem:[%s222 + $0x300] sm:%s214] %v607
                %v609 = vld [vmem:[%s221 + $0x604] sm:%s214]
                %610 = vst [vmem:[%s222 + $0x304] sm:%s214] %v609
                %v611 = vld [vmem:[%s221 + $0x608] sm:%s214]
                %612 = vst [vmem:[%s222 + $0x308] sm:%s214] %v611
                %v613 = vld [vmem:[%s221 + $0x60c] sm:%s214]
                %614 = vst [vmem:[%s222 + $0x30c] sm:%s214] %v613
                %v615 = vld [vmem:[%s221 + $0x610] sm:%s214]
                %616 = vst [vmem:[%s222 + $0x310] sm:%s214] %v615
                %v617 = vld [vmem:[%s221 + $0x614] sm:%s214]
                %618 = vst [vmem:[%s222 + $0x314] sm:%s214] %v617
                %v619 = vld [vmem:[%s221 + $0x618] sm:%s214]
                %620 = vst [vmem:[%s222 + $0x318] sm:%s214] %v619
                %v621 = vld [vmem:[%s221 + $0x61c] sm:%s214]
                %622 = vst [vmem:[%s222 + $0x31c] sm:%s214] %v621
                %v623 = vld [vmem:[%s221 + $0x620] sm:%s214]
                %624 = vst [vmem:[%s222 + $0x320] sm:%s214] %v623
                %v625 = vld [vmem:[%s221 + $0x624] sm:%s214]
                %626 = vst [vmem:[%s222 + $0x324] sm:%s214] %v625
                %v627 = vld [vmem:[%s221 + $0x628] sm:%s214]
                %628 = vst [vmem:[%s222 + $0x328] sm:%s214] %v627
                %v629 = vld [vmem:[%s221 + $0x62c] sm:%s214]
                %630 = vst [vmem:[%s222 + $0x32c] sm:%s214] %v629
                %v631 = vld [vmem:[%s221 + $0x630] sm:%s214]
                %632 = vst [vmem:[%s222 + $0x330] sm:%s214] %v631
                %v633 = vld [vmem:[%s221 + $0x634] sm:%s214]
                %634 = vst [vmem:[%s222 + $0x334] sm:%s214] %v633
                %v635 = vld [vmem:[%s221 + $0x638] sm:%s214]
                %636 = vst [vmem:[%s222 + $0x338] sm:%s214] %v635
                %v637 = vld [vmem:[%s221 + $0x63c] sm:%s214]
                %638 = vst [vmem:[%s222 + $0x33c] sm:%s214] %v637
                %v639 = vld [vmem:[%s221 + $0x680] sm:%s214]
                %640 = vst [vmem:[%s222 + $0x340] sm:%s214] %v639
                %v641 = vld [vmem:[%s221 + $0x684] sm:%s214]
                %642 = vst [vmem:[%s222 + $0x344] sm:%s214] %v641
                %v643 = vld [vmem:[%s221 + $0x688] sm:%s214]
                %644 = vst [vmem:[%s222 + $0x348] sm:%s214] %v643
                %v645 = vld [vmem:[%s221 + $0x68c] sm:%s214]
                %646 = vst [vmem:[%s222 + $0x34c] sm:%s214] %v645
                %v647 = vld [vmem:[%s221 + $0x690] sm:%s214]
                %648 = vst [vmem:[%s222 + $0x350] sm:%s214] %v647
                %v649 = vld [vmem:[%s221 + $0x694] sm:%s214]
                %650 = vst [vmem:[%s222 + $0x354] sm:%s214] %v649
                %v651 = vld [vmem:[%s221 + $0x698] sm:%s214]
                %652 = vst [vmem:[%s222 + $0x358] sm:%s214] %v651
                %v653 = vld [vmem:[%s221 + $0x69c] sm:%s214]
                %654 = vst [vmem:[%s222 + $0x35c] sm:%s214] %v653
                %v655 = vld [vmem:[%s221 + $0x6a0] sm:%s214]
                %656 = vst [vmem:[%s222 + $0x360] sm:%s214] %v655
                %v657 = vld [vmem:[%s221 + $0x6a4] sm:%s214]
                %658 = vst [vmem:[%s222 + $0x364] sm:%s214] %v657
                %v659 = vld [vmem:[%s221 + $0x6a8] sm:%s214]
                %660 = vst [vmem:[%s222 + $0x368] sm:%s214] %v659
                %v661 = vld [vmem:[%s221 + $0x6ac] sm:%s214]
                %662 = vst [vmem:[%s222 + $0x36c] sm:%s214] %v661
                %v663 = vld [vmem:[%s221 + $0x6b0] sm:%s214]
                %664 = vst [vmem:[%s222 + $0x370] sm:%s214] %v663
                %v665 = vld [vmem:[%s221 + $0x6b4] sm:%s214]
                %666 = vst [vmem:[%s222 + $0x374] sm:%s214] %v665
                %v667 = vld [vmem:[%s221 + $0x6b8] sm:%s214]
                %668 = vst [vmem:[%s222 + $0x378] sm:%s214] %v667
                %v669 = vld [vmem:[%s221 + $0x6bc] sm:%s214]
                %670 = vst [vmem:[%s222 + $0x37c] sm:%s214] %v669
                %v671 = vld [vmem:[%s221 + $0x700] sm:%s214]
                %672 = vst [vmem:[%s222 + $0x380] sm:%s214] %v671
                %v673 = vld [vmem:[%s221 + $0x704] sm:%s214]
                %674 = vst [vmem:[%s222 + $0x384] sm:%s214] %v673
                %v675 = vld [vmem:[%s221 + $0x708] sm:%s214]
                %676 = vst [vmem:[%s222 + $0x388] sm:%s214] %v675
                %v677 = vld [vmem:[%s221 + $0x70c] sm:%s214]
                %678 = vst [vmem:[%s222 + $0x38c] sm:%s214] %v677
                %v679 = vld [vmem:[%s221 + $0x710] sm:%s214]
                %680 = vst [vmem:[%s222 + $0x390] sm:%s214] %v679
                %v681 = vld [vmem:[%s221 + $0x714] sm:%s214]
                %682 = vst [vmem:[%s222 + $0x394] sm:%s214] %v681
                %v683 = vld [vmem:[%s221 + $0x718] sm:%s214]
                %684 = vst [vmem:[%s222 + $0x398] sm:%s214] %v683
                %v685 = vld [vmem:[%s221 + $0x71c] sm:%s214]
                %686 = vst [vmem:[%s222 + $0x39c] sm:%s214] %v685
                %v687 = vld [vmem:[%s221 + $0x720] sm:%s214]
                %688 = vst [vmem:[%s222 + $0x3a0] sm:%s214] %v687
                %v689 = vld [vmem:[%s221 + $0x724] sm:%s214]
                %690 = vst [vmem:[%s222 + $0x3a4] sm:%s214] %v689
                %v691 = vld [vmem:[%s221 + $0x728] sm:%s214]
                %692 = vst [vmem:[%s222 + $0x3a8] sm:%s214] %v691
                %v693 = vld [vmem:[%s221 + $0x72c] sm:%s214]
                %694 = vst [vmem:[%s222 + $0x3ac] sm:%s214] %v693
                %v695 = vld [vmem:[%s221 + $0x730] sm:%s214]
                %696 = vst [vmem:[%s222 + $0x3b0] sm:%s214] %v695
                %v697 = vld [vmem:[%s221 + $0x734] sm:%s214]
                %698 = vst [vmem:[%s222 + $0x3b4] sm:%s214] %v697
                %v699 = vld [vmem:[%s221 + $0x738] sm:%s214]
                %700 = vst [vmem:[%s222 + $0x3b8] sm:%s214] %v699
                %v701 = vld [vmem:[%s221 + $0x73c] sm:%s214]
                %702 = vst [vmem:[%s222 + $0x3bc] sm:%s214] %v701
                %v703 = vld [vmem:[%s221 + $0x780] sm:%s214]
                %704 = vst [vmem:[%s222 + $0x3c0] sm:%s214] %v703
                %v705 = vld [vmem:[%s221 + $0x784] sm:%s214]
                %706 = vst [vmem:[%s222 + $0x3c4] sm:%s214] %v705
                %v707 = vld [vmem:[%s221 + $0x788] sm:%s214]
                %708 = vst [vmem:[%s222 + $0x3c8] sm:%s214] %v707
                %v709 = vld [vmem:[%s221 + $0x78c] sm:%s214]
                %710 = vst [vmem:[%s222 + $0x3cc] sm:%s214] %v709
                %v711 = vld [vmem:[%s221 + $0x790] sm:%s214]
                %712 = vst [vmem:[%s222 + $0x3d0] sm:%s214] %v711
                %v713 = vld [vmem:[%s221 + $0x794] sm:%s214]
                %714 = vst [vmem:[%s222 + $0x3d4] sm:%s214] %v713
                %v715 = vld [vmem:[%s221 + $0x798] sm:%s214]
                %716 = vst [vmem:[%s222 + $0x3d8] sm:%s214] %v715
                %v717 = vld [vmem:[%s221 + $0x79c] sm:%s214]
                %718 = vst [vmem:[%s222 + $0x3dc] sm:%s214] %v717
                %v719 = vld [vmem:[%s221 + $0x7a0] sm:%s214]
                %720 = vst [vmem:[%s222 + $0x3e0] sm:%s214] %v719
                %v721 = vld [vmem:[%s221 + $0x7a4] sm:%s214]
                %722 = vst [vmem:[%s222 + $0x3e4] sm:%s214] %v721
                %v723 = vld [vmem:[%s221 + $0x7a8] sm:%s214]
                %724 = vst [vmem:[%s222 + $0x3e8] sm:%s214] %v723
                %v725 = vld [vmem:[%s221 + $0x7ac] sm:%s214]
                %726 = vst [vmem:[%s222 + $0x3ec] sm:%s214] %v725
                %v727 = vld [vmem:[%s221 + $0x7b0] sm:%s214]
                %728 = vst [vmem:[%s222 + $0x3f0] sm:%s214] %v727
                %v729 = vld [vmem:[%s221 + $0x7b4] sm:%s214]
                %730 = vst [vmem:[%s222 + $0x3f4] sm:%s214] %v729
                %v731 = vld [vmem:[%s221 + $0x7b8] sm:%s214]
                %732 = vst [vmem:[%s222 + $0x3f8] sm:%s214] %v731
                %v733 = vld [vmem:[%s221 + $0x7bc] sm:%s214]
                %734 = vst [vmem:[%s222 + $0x3fc] sm:%s214] %v733
                %v735 = vld [vmem:[%s221 + $0x800] sm:%s214]
                %736 = vst [vmem:[%s222 + $0x400] sm:%s214] %v735
                %v737 = vld [vmem:[%s221 + $0x804] sm:%s214]
                %738 = vst [vmem:[%s222 + $0x404] sm:%s214] %v737
                %v739 = vld [vmem:[%s221 + $0x808] sm:%s214]
                %740 = vst [vmem:[%s222 + $0x408] sm:%s214] %v739
                %v741 = vld [vmem:[%s221 + $0x80c] sm:%s214]
                %742 = vst [vmem:[%s222 + $0x40c] sm:%s214] %v741
                %v743 = vld [vmem:[%s221 + $0x810] sm:%s214]
                %744 = vst [vmem:[%s222 + $0x410] sm:%s214] %v743
                %v745 = vld [vmem:[%s221 + $0x814] sm:%s214]
                %746 = vst [vmem:[%s222 + $0x414] sm:%s214] %v745
                %v747 = vld [vmem:[%s221 + $0x818] sm:%s214]
                %748 = vst [vmem:[%s222 + $0x418] sm:%s214] %v747
                %v749 = vld [vmem:[%s221 + $0x81c] sm:%s214]
                %750 = vst [vmem:[%s222 + $0x41c] sm:%s214] %v749
                %v751 = vld [vmem:[%s221 + $0x820] sm:%s214]
                %752 = vst [vmem:[%s222 + $0x420] sm:%s214] %v751
                %v753 = vld [vmem:[%s221 + $0x824] sm:%s214]
                %754 = vst [vmem:[%s222 + $0x424] sm:%s214] %v753
                %v755 = vld [vmem:[%s221 + $0x828] sm:%s214]
                %756 = vst [vmem:[%s222 + $0x428] sm:%s214] %v755
                %v757 = vld [vmem:[%s221 + $0x82c] sm:%s214]
                %758 = vst [vmem:[%s222 + $0x42c] sm:%s214] %v757
                %v759 = vld [vmem:[%s221 + $0x830] sm:%s214]
                %760 = vst [vmem:[%s222 + $0x430] sm:%s214] %v759
                %v761 = vld [vmem:[%s221 + $0x834] sm:%s214]
                %762 = vst [vmem:[%s222 + $0x434] sm:%s214] %v761
                %v763 = vld [vmem:[%s221 + $0x838] sm:%s214]
                %764 = vst [vmem:[%s222 + $0x438] sm:%s214] %v763
                %v765 = vld [vmem:[%s221 + $0x83c] sm:%s214]
                %766 = vst [vmem:[%s222 + $0x43c] sm:%s214] %v765
                %v767 = vld [vmem:[%s221 + $0x880] sm:%s214]
                %768 = vst [vmem:[%s222 + $0x440] sm:%s214] %v767
                %v769 = vld [vmem:[%s221 + $0x884] sm:%s214]
                %770 = vst [vmem:[%s222 + $0x444] sm:%s214] %v769
                %v771 = vld [vmem:[%s221 + $0x888] sm:%s214]
                %772 = vst [vmem:[%s222 + $0x448] sm:%s214] %v771
                %v773 = vld [vmem:[%s221 + $0x88c] sm:%s214]
                %774 = vst [vmem:[%s222 + $0x44c] sm:%s214] %v773
                %v775 = vld [vmem:[%s221 + $0x890] sm:%s214]
                %776 = vst [vmem:[%s222 + $0x450] sm:%s214] %v775
                %v777 = vld [vmem:[%s221 + $0x894] sm:%s214]
                %778 = vst [vmem:[%s222 + $0x454] sm:%s214] %v777
                %v779 = vld [vmem:[%s221 + $0x898] sm:%s214]
                %780 = vst [vmem:[%s222 + $0x458] sm:%s214] %v779
                %v781 = vld [vmem:[%s221 + $0x89c] sm:%s214]
                %782 = vst [vmem:[%s222 + $0x45c] sm:%s214] %v781
                %v783 = vld [vmem:[%s221 + $0x8a0] sm:%s214]
                %784 = vst [vmem:[%s222 + $0x460] sm:%s214] %v783
                %v785 = vld [vmem:[%s221 + $0x8a4] sm:%s214]
                %786 = vst [vmem:[%s222 + $0x464] sm:%s214] %v785
                %v787 = vld [vmem:[%s221 + $0x8a8] sm:%s214]
                %788 = vst [vmem:[%s222 + $0x468] sm:%s214] %v787
                %v789 = vld [vmem:[%s221 + $0x8ac] sm:%s214]
                %790 = vst [vmem:[%s222 + $0x46c] sm:%s214] %v789
                %v791 = vld [vmem:[%s221 + $0x8b0] sm:%s214]
                %792 = vst [vmem:[%s222 + $0x470] sm:%s214] %v791
                %v793 = vld [vmem:[%s221 + $0x8b4] sm:%s214]
                %794 = vst [vmem:[%s222 + $0x474] sm:%s214] %v793
                %v795 = vld [vmem:[%s221 + $0x8b8] sm:%s214]
                %796 = vst [vmem:[%s222 + $0x478] sm:%s214] %v795
                %v797 = vld [vmem:[%s221 + $0x8bc] sm:%s214]
                %798 = vst [vmem:[%s222 + $0x47c] sm:%s214] %v797
                %v799 = vld [vmem:[%s221 + $0x900] sm:%s214]
                %800 = vst [vmem:[%s222 + $0x480] sm:%s214] %v799
                %v801 = vld [vmem:[%s221 + $0x904] sm:%s214]
                %802 = vst [vmem:[%s222 + $0x484] sm:%s214] %v801
                %v803 = vld [vmem:[%s221 + $0x908] sm:%s214]
                %804 = vst [vmem:[%s222 + $0x488] sm:%s214] %v803
                %v805 = vld [vmem:[%s221 + $0x90c] sm:%s214]
                %806 = vst [vmem:[%s222 + $0x48c] sm:%s214] %v805
                %v807 = vld [vmem:[%s221 + $0x910] sm:%s214]
                %808 = vst [vmem:[%s222 + $0x490] sm:%s214] %v807
                %v809 = vld [vmem:[%s221 + $0x914] sm:%s214]
                %810 = vst [vmem:[%s222 + $0x494] sm:%s214] %v809
                %v811 = vld [vmem:[%s221 + $0x918] sm:%s214]
                %812 = vst [vmem:[%s222 + $0x498] sm:%s214] %v811
                %v813 = vld [vmem:[%s221 + $0x91c] sm:%s214]
                %814 = vst [vmem:[%s222 + $0x49c] sm:%s214] %v813
                %v815 = vld [vmem:[%s221 + $0x920] sm:%s214]
                %816 = vst [vmem:[%s222 + $0x4a0] sm:%s214] %v815
                %v817 = vld [vmem:[%s221 + $0x924] sm:%s214]
                %818 = vst [vmem:[%s222 + $0x4a4] sm:%s214] %v817
                %v819 = vld [vmem:[%s221 + $0x928] sm:%s214]
                %820 = vst [vmem:[%s222 + $0x4a8] sm:%s214] %v819
                %v821 = vld [vmem:[%s221 + $0x92c] sm:%s214]
                %822 = vst [vmem:[%s222 + $0x4ac] sm:%s214] %v821
                %v823 = vld [vmem:[%s221 + $0x930] sm:%s214]
                %824 = vst [vmem:[%s222 + $0x4b0] sm:%s214] %v823
                %v825 = vld [vmem:[%s221 + $0x934] sm:%s214]
                %826 = vst [vmem:[%s222 + $0x4b4] sm:%s214] %v825
                %v827 = vld [vmem:[%s221 + $0x938] sm:%s214]
                %828 = vst [vmem:[%s222 + $0x4b8] sm:%s214] %v827
                %v829 = vld [vmem:[%s221 + $0x93c] sm:%s214]
                %830 = vst [vmem:[%s222 + $0x4bc] sm:%s214] %v829
                %v831 = vld [vmem:[%s221 + $0x980] sm:%s214]
                %832 = vst [vmem:[%s222 + $0x4c0] sm:%s214] %v831
                %v833 = vld [vmem:[%s221 + $0x984] sm:%s214]
                %834 = vst [vmem:[%s222 + $0x4c4] sm:%s214] %v833
                %v835 = vld [vmem:[%s221 + $0x988] sm:%s214]
                %836 = vst [vmem:[%s222 + $0x4c8] sm:%s214] %v835
                %v837 = vld [vmem:[%s221 + $0x98c] sm:%s214]
                %838 = vst [vmem:[%s222 + $0x4cc] sm:%s214] %v837
                %v839 = vld [vmem:[%s221 + $0x990] sm:%s214]
                %840 = vst [vmem:[%s222 + $0x4d0] sm:%s214] %v839
                %v841 = vld [vmem:[%s221 + $0x994] sm:%s214]
                %842 = vst [vmem:[%s222 + $0x4d4] sm:%s214] %v841
                %v843 = vld [vmem:[%s221 + $0x998] sm:%s214]
                %844 = vst [vmem:[%s222 + $0x4d8] sm:%s214] %v843
                %v845 = vld [vmem:[%s221 + $0x99c] sm:%s214]
                %846 = vst [vmem:[%s222 + $0x4dc] sm:%s214] %v845
                %v847 = vld [vmem:[%s221 + $0x9a0] sm:%s214]
                %848 = vst [vmem:[%s222 + $0x4e0] sm:%s214] %v847
                %v849 = vld [vmem:[%s221 + $0x9a4] sm:%s214]
                %850 = vst [vmem:[%s222 + $0x4e4] sm:%s214] %v849
                %v851 = vld [vmem:[%s221 + $0x9a8] sm:%s214]
                %852 = vst [vmem:[%s222 + $0x4e8] sm:%s214] %v851
                %v853 = vld [vmem:[%s221 + $0x9ac] sm:%s214]
                %854 = vst [vmem:[%s222 + $0x4ec] sm:%s214] %v853
                %v855 = vld [vmem:[%s221 + $0x9b0] sm:%s214]
                %856 = vst [vmem:[%s222 + $0x4f0] sm:%s214] %v855
                %v857 = vld [vmem:[%s221 + $0x9b4] sm:%s214]
                %858 = vst [vmem:[%s222 + $0x4f4] sm:%s214] %v857
                %v859 = vld [vmem:[%s221 + $0x9b8] sm:%s214]
                %860 = vst [vmem:[%s222 + $0x4f8] sm:%s214] %v859
                %v861 = vld [vmem:[%s221 + $0x9bc] sm:%s214]
                %862 = vst [vmem:[%s222 + $0x4fc] sm:%s214] %v861
                %v863 = vld [vmem:[%s221 + $0xa00] sm:%s214]
                %864 = vst [vmem:[%s222 + $0x500] sm:%s214] %v863
                %v865 = vld [vmem:[%s221 + $0xa04] sm:%s214]
                %866 = vst [vmem:[%s222 + $0x504] sm:%s214] %v865
                %v867 = vld [vmem:[%s221 + $0xa08] sm:%s214]
                %868 = vst [vmem:[%s222 + $0x508] sm:%s214] %v867
                %v869 = vld [vmem:[%s221 + $0xa0c] sm:%s214]
                %870 = vst [vmem:[%s222 + $0x50c] sm:%s214] %v869
                %v871 = vld [vmem:[%s221 + $0xa10] sm:%s214]
                %872 = vst [vmem:[%s222 + $0x510] sm:%s214] %v871
                %v873 = vld [vmem:[%s221 + $0xa14] sm:%s214]
                %874 = vst [vmem:[%s222 + $0x514] sm:%s214] %v873
                %v875 = vld [vmem:[%s221 + $0xa18] sm:%s214]
                %876 = vst [vmem:[%s222 + $0x518] sm:%s214] %v875
                %v877 = vld [vmem:[%s221 + $0xa1c] sm:%s214]
                %878 = vst [vmem:[%s222 + $0x51c] sm:%s214] %v877
                %v879 = vld [vmem:[%s221 + $0xa20] sm:%s214]
                %880 = vst [vmem:[%s222 + $0x520] sm:%s214] %v879
                %v881 = vld [vmem:[%s221 + $0xa24] sm:%s214]
                %882 = vst [vmem:[%s222 + $0x524] sm:%s214] %v881
                %v883 = vld [vmem:[%s221 + $0xa28] sm:%s214]
                %884 = vst [vmem:[%s222 + $0x528] sm:%s214] %v883
                %v885 = vld [vmem:[%s221 + $0xa2c] sm:%s214]
                %886 = vst [vmem:[%s222 + $0x52c] sm:%s214] %v885
                %v887 = vld [vmem:[%s221 + $0xa30] sm:%s214]
                %888 = vst [vmem:[%s222 + $0x530] sm:%s214] %v887
                %v889 = vld [vmem:[%s221 + $0xa34] sm:%s214]
                %890 = vst [vmem:[%s222 + $0x534] sm:%s214] %v889
                %v891 = vld [vmem:[%s221 + $0xa38] sm:%s214]
                %892 = vst [vmem:[%s222 + $0x538] sm:%s214] %v891
                %v893 = vld [vmem:[%s221 + $0xa3c] sm:%s214]
                %894 = vst [vmem:[%s222 + $0x53c] sm:%s214] %v893
                %v895 = vld [vmem:[%s221 + $0xa80] sm:%s214]
                %896 = vst [vmem:[%s222 + $0x540] sm:%s214] %v895
                %v897 = vld [vmem:[%s221 + $0xa84] sm:%s214]
                %898 = vst [vmem:[%s222 + $0x544] sm:%s214] %v897
                %v899 = vld [vmem:[%s221 + $0xa88] sm:%s214]
                %900 = vst [vmem:[%s222 + $0x548] sm:%s214] %v899
                %v901 = vld [vmem:[%s221 + $0xa8c] sm:%s214]
                %902 = vst [vmem:[%s222 + $0x54c] sm:%s214] %v901
                %v903 = vld [vmem:[%s221 + $0xa90] sm:%s214]
                %904 = vst [vmem:[%s222 + $0x550] sm:%s214] %v903
                %v905 = vld [vmem:[%s221 + $0xa94] sm:%s214]
                %906 = vst [vmem:[%s222 + $0x554] sm:%s214] %v905
                %v907 = vld [vmem:[%s221 + $0xa98] sm:%s214]
                %908 = vst [vmem:[%s222 + $0x558] sm:%s214] %v907
                %v909 = vld [vmem:[%s221 + $0xa9c] sm:%s214]
                %910 = vst [vmem:[%s222 + $0x55c] sm:%s214] %v909
                %v911 = vld [vmem:[%s221 + $0xaa0] sm:%s214]
                %912 = vst [vmem:[%s222 + $0x560] sm:%s214] %v911
                %v913 = vld [vmem:[%s221 + $0xaa4] sm:%s214]
                %914 = vst [vmem:[%s222 + $0x564] sm:%s214] %v913
                %v915 = vld [vmem:[%s221 + $0xaa8] sm:%s214]
                %916 = vst [vmem:[%s222 + $0x568] sm:%s214] %v915
                %v917 = vld [vmem:[%s221 + $0xaac] sm:%s214]
                %918 = vst [vmem:[%s222 + $0x56c] sm:%s214] %v917
                %v919 = vld [vmem:[%s221 + $0xab0] sm:%s214]
                %920 = vst [vmem:[%s222 + $0x570] sm:%s214] %v919
                %v921 = vld [vmem:[%s221 + $0xab4] sm:%s214]
                %922 = vst [vmem:[%s222 + $0x574] sm:%s214] %v921
                %v923 = vld [vmem:[%s221 + $0xab8] sm:%s214]
                %924 = vst [vmem:[%s222 + $0x578] sm:%s214] %v923
                %v925 = vld [vmem:[%s221 + $0xabc] sm:%s214]
                %926 = vst [vmem:[%s222 + $0x57c] sm:%s214] %v925
                %v927 = vld [vmem:[%s221 + $0xb00] sm:%s214]
                %928 = vst [vmem:[%s222 + $0x580] sm:%s214] %v927
                %v929 = vld [vmem:[%s221 + $0xb04] sm:%s214]
                %930 = vst [vmem:[%s222 + $0x584] sm:%s214] %v929
                %v931 = vld [vmem:[%s221 + $0xb08] sm:%s214]
                %932 = vst [vmem:[%s222 + $0x588] sm:%s214] %v931
                %v933 = vld [vmem:[%s221 + $0xb0c] sm:%s214]
                %934 = vst [vmem:[%s222 + $0x58c] sm:%s214] %v933
                %v935 = vld [vmem:[%s221 + $0xb10] sm:%s214]
                %936 = vst [vmem:[%s222 + $0x590] sm:%s214] %v935
                %v937 = vld [vmem:[%s221 + $0xb14] sm:%s214]
                %938 = vst [vmem:[%s222 + $0x594] sm:%s214] %v937
                %v939 = vld [vmem:[%s221 + $0xb18] sm:%s214]
                %940 = vst [vmem:[%s222 + $0x598] sm:%s214] %v939
                %v941 = vld [vmem:[%s221 + $0xb1c] sm:%s214]
                %942 = vst [vmem:[%s222 + $0x59c] sm:%s214] %v941
                %v943 = vld [vmem:[%s221 + $0xb20] sm:%s214]
                %944 = vst [vmem:[%s222 + $0x5a0] sm:%s214] %v943
                %v945 = vld [vmem:[%s221 + $0xb24] sm:%s214]
                %946 = vst [vmem:[%s222 + $0x5a4] sm:%s214] %v945
                %v947 = vld [vmem:[%s221 + $0xb28] sm:%s214]
                %948 = vst [vmem:[%s222 + $0x5a8] sm:%s214] %v947
                %v949 = vld [vmem:[%s221 + $0xb2c] sm:%s214]
                %950 = vst [vmem:[%s222 + $0x5ac] sm:%s214] %v949
                %v951 = vld [vmem:[%s221 + $0xb30] sm:%s214]
                %952 = vst [vmem:[%s222 + $0x5b0] sm:%s214] %v951
                %v953 = vld [vmem:[%s221 + $0xb34] sm:%s214]
                %954 = vst [vmem:[%s222 + $0x5b4] sm:%s214] %v953
                %v955 = vld [vmem:[%s221 + $0xb38] sm:%s214]
                %956 = vst [vmem:[%s222 + $0x5b8] sm:%s214] %v955
                %v957 = vld [vmem:[%s221 + $0xb3c] sm:%s214]
                %958 = vst [vmem:[%s222 + $0x5bc] sm:%s214] %v957
                %v959 = vld [vmem:[%s221 + $0xb80] sm:%s214]
                %960 = vst [vmem:[%s222 + $0x5c0] sm:%s214] %v959
                %v961 = vld [vmem:[%s221 + $0xb84] sm:%s214]
                %962 = vst [vmem:[%s222 + $0x5c4] sm:%s214] %v961
                %v963 = vld [vmem:[%s221 + $0xb88] sm:%s214]
                %964 = vst [vmem:[%s222 + $0x5c8] sm:%s214] %v963
                %v965 = vld [vmem:[%s221 + $0xb8c] sm:%s214]
                %966 = vst [vmem:[%s222 + $0x5cc] sm:%s214] %v965
                %v967 = vld [vmem:[%s221 + $0xb90] sm:%s214]
                %968 = vst [vmem:[%s222 + $0x5d0] sm:%s214] %v967
                %v969 = vld [vmem:[%s221 + $0xb94] sm:%s214]
                %970 = vst [vmem:[%s222 + $0x5d4] sm:%s214] %v969
                %v971 = vld [vmem:[%s221 + $0xb98] sm:%s214]
                %972 = vst [vmem:[%s222 + $0x5d8] sm:%s214] %v971
                %v973 = vld [vmem:[%s221 + $0xb9c] sm:%s214]
                %974 = vst [vmem:[%s222 + $0x5dc] sm:%s214] %v973
                %v975 = vld [vmem:[%s221 + $0xba0] sm:%s214]
                %976 = vst [vmem:[%s222 + $0x5e0] sm:%s214] %v975
                %v977 = vld [vmem:[%s221 + $0xba4] sm:%s214]
                %978 = vst [vmem:[%s222 + $0x5e4] sm:%s214] %v977
                %v979 = vld [vmem:[%s221 + $0xba8] sm:%s214]
                %980 = vst [vmem:[%s222 + $0x5e8] sm:%s214] %v979
                %v981 = vld [vmem:[%s221 + $0xbac] sm:%s214]
                %982 = vst [vmem:[%s222 + $0x5ec] sm:%s214] %v981
                %v983 = vld [vmem:[%s221 + $0xbb0] sm:%s214]
                %984 = vst [vmem:[%s222 + $0x5f0] sm:%s214] %v983
                %v985 = vld [vmem:[%s221 + $0xbb4] sm:%s214]
                %986 = vst [vmem:[%s222 + $0x5f4] sm:%s214] %v985
                %v987 = vld [vmem:[%s221 + $0xbb8] sm:%s214]
                %988 = vst [vmem:[%s222 + $0x5f8] sm:%s214] %v987
                %v989 = vld [vmem:[%s221 + $0xbbc] sm:%s214]
                %990 = vst [vmem:[%s222 + $0x5fc] sm:%s214] %v989
                %v991 = vld [vmem:[%s221 + $0xc00] sm:%s214]
                %992 = vst [vmem:[%s222 + $0x600] sm:%s214] %v991
                %v993 = vld [vmem:[%s221 + $0xc04] sm:%s214]
                %994 = vst [vmem:[%s222 + $0x604] sm:%s214] %v993
                %v995 = vld [vmem:[%s221 + $0xc08] sm:%s214]
                %996 = vst [vmem:[%s222 + $0x608] sm:%s214] %v995
                %v997 = vld [vmem:[%s221 + $0xc0c] sm:%s214]
                %998 = vst [vmem:[%s222 + $0x60c] sm:%s214] %v997
                %v999 = vld [vmem:[%s221 + $0xc10] sm:%s214]
                %1000 = vst [vmem:[%s222 + $0x610] sm:%s214] %v999
                %v1001 = vld [vmem:[%s221 + $0xc14] sm:%s214]
                %1002 = vst [vmem:[%s222 + $0x614] sm:%s214] %v1001
                %v1003 = vld [vmem:[%s221 + $0xc18] sm:%s214]
                %1004 = vst [vmem:[%s222 + $0x618] sm:%s214] %v1003
                %v1005 = vld [vmem:[%s221 + $0xc1c] sm:%s214]
                %1006 = vst [vmem:[%s222 + $0x61c] sm:%s214] %v1005
                %v1007 = vld [vmem:[%s221 + $0xc20] sm:%s214]
                %1008 = vst [vmem:[%s222 + $0x620] sm:%s214] %v1007
                %v1009 = vld [vmem:[%s221 + $0xc24] sm:%s214]
                %1010 = vst [vmem:[%s222 + $0x624] sm:%s214] %v1009
                %v1011 = vld [vmem:[%s221 + $0xc28] sm:%s214]
                %1012 = vst [vmem:[%s222 + $0x628] sm:%s214] %v1011
                %v1013 = vld [vmem:[%s221 + $0xc2c] sm:%s214]
                %1014 = vst [vmem:[%s222 + $0x62c] sm:%s214] %v1013
                %v1015 = vld [vmem:[%s221 + $0xc30] sm:%s214]
                %1016 = vst [vmem:[%s222 + $0x630] sm:%s214] %v1015
                %v1017 = vld [vmem:[%s221 + $0xc34] sm:%s214]
                %1018 = vst [vmem:[%s222 + $0x634] sm:%s214] %v1017
                %v1019 = vld [vmem:[%s221 + $0xc38] sm:%s214]
                %1020 = vst [vmem:[%s222 + $0x638] sm:%s214] %v1019
                %v1021 = vld [vmem:[%s221 + $0xc3c] sm:%s214]
                %1022 = vst [vmem:[%s222 + $0x63c] sm:%s214] %v1021
                %v1023 = vld [vmem:[%s221 + $0xc80] sm:%s214]
                %1024 = vst [vmem:[%s222 + $0x640] sm:%s214] %v1023
                %v1025 = vld [vmem:[%s221 + $0xc84] sm:%s214]
                %1026 = vst [vmem:[%s222 + $0x644] sm:%s214] %v1025
                %v1027 = vld [vmem:[%s221 + $0xc88] sm:%s214]
                %1028 = vst [vmem:[%s222 + $0x648] sm:%s214] %v1027
                %v1029 = vld [vmem:[%s221 + $0xc8c] sm:%s214]
                %1030 = vst [vmem:[%s222 + $0x64c] sm:%s214] %v1029
                %v1031 = vld [vmem:[%s221 + $0xc90] sm:%s214]
                %1032 = vst [vmem:[%s222 + $0x650] sm:%s214] %v1031
                %v1033 = vld [vmem:[%s221 + $0xc94] sm:%s214]
                %1034 = vst [vmem:[%s222 + $0x654] sm:%s214] %v1033
                %v1035 = vld [vmem:[%s221 + $0xc98] sm:%s214]
                %1036 = vst [vmem:[%s222 + $0x658] sm:%s214] %v1035
                %v1037 = vld [vmem:[%s221 + $0xc9c] sm:%s214]
                %1038 = vst [vmem:[%s222 + $0x65c] sm:%s214] %v1037
                %v1039 = vld [vmem:[%s221 + $0xca0] sm:%s214]
                %1040 = vst [vmem:[%s222 + $0x660] sm:%s214] %v1039
                %v1041 = vld [vmem:[%s221 + $0xca4] sm:%s214]
                %1042 = vst [vmem:[%s222 + $0x664] sm:%s214] %v1041
                %v1043 = vld [vmem:[%s221 + $0xca8] sm:%s214]
                %1044 = vst [vmem:[%s222 + $0x668] sm:%s214] %v1043
                %v1045 = vld [vmem:[%s221 + $0xcac] sm:%s214]
                %1046 = vst [vmem:[%s222 + $0x66c] sm:%s214] %v1045
                %v1047 = vld [vmem:[%s221 + $0xcb0] sm:%s214]
                %1048 = vst [vmem:[%s222 + $0x670] sm:%s214] %v1047
                %v1049 = vld [vmem:[%s221 + $0xcb4] sm:%s214]
                %1050 = vst [vmem:[%s222 + $0x674] sm:%s214] %v1049
                %v1051 = vld [vmem:[%s221 + $0xcb8] sm:%s214]
                %1052 = vst [vmem:[%s222 + $0x678] sm:%s214] %v1051
                %v1053 = vld [vmem:[%s221 + $0xcbc] sm:%s214]
                %1054 = vst [vmem:[%s222 + $0x67c] sm:%s214] %v1053
                %v1055 = vld [vmem:[%s221 + $0xd00] sm:%s214]
                %1056 = vst [vmem:[%s222 + $0x680] sm:%s214] %v1055
                %v1057 = vld [vmem:[%s221 + $0xd04] sm:%s214]
                %1058 = vst [vmem:[%s222 + $0x684] sm:%s214] %v1057
                %v1059 = vld [vmem:[%s221 + $0xd08] sm:%s214]
                %1060 = vst [vmem:[%s222 + $0x688] sm:%s214] %v1059
                %v1061 = vld [vmem:[%s221 + $0xd0c] sm:%s214]
                %1062 = vst [vmem:[%s222 + $0x68c] sm:%s214] %v1061
                %v1063 = vld [vmem:[%s221 + $0xd10] sm:%s214]
                %1064 = vst [vmem:[%s222 + $0x690] sm:%s214] %v1063
                %v1065 = vld [vmem:[%s221 + $0xd14] sm:%s214]
                %1066 = vst [vmem:[%s222 + $0x694] sm:%s214] %v1065
                %v1067 = vld [vmem:[%s221 + $0xd18] sm:%s214]
                %1068 = vst [vmem:[%s222 + $0x698] sm:%s214] %v1067
                %v1069 = vld [vmem:[%s221 + $0xd1c] sm:%s214]
                %1070 = vst [vmem:[%s222 + $0x69c] sm:%s214] %v1069
                %v1071 = vld [vmem:[%s221 + $0xd20] sm:%s214]
                %1072 = vst [vmem:[%s222 + $0x6a0] sm:%s214] %v1071
                %v1073 = vld [vmem:[%s221 + $0xd24] sm:%s214]
                %1074 = vst [vmem:[%s222 + $0x6a4] sm:%s214] %v1073
                %v1075 = vld [vmem:[%s221 + $0xd28] sm:%s214]
                %1076 = vst [vmem:[%s222 + $0x6a8] sm:%s214] %v1075
                %v1077 = vld [vmem:[%s221 + $0xd2c] sm:%s214]
                %1078 = vst [vmem:[%s222 + $0x6ac] sm:%s214] %v1077
                %v1079 = vld [vmem:[%s221 + $0xd30] sm:%s214]
                %1080 = vst [vmem:[%s222 + $0x6b0] sm:%s214] %v1079
                %v1081 = vld [vmem:[%s221 + $0xd34] sm:%s214]
                %1082 = vst [vmem:[%s222 + $0x6b4] sm:%s214] %v1081
                %v1083 = vld [vmem:[%s221 + $0xd38] sm:%s214]
                %1084 = vst [vmem:[%s222 + $0x6b8] sm:%s214] %v1083
                %v1085 = vld [vmem:[%s221 + $0xd3c] sm:%s214]
                %1086 = vst [vmem:[%s222 + $0x6bc] sm:%s214] %v1085
                %v1087 = vld [vmem:[%s221 + $0xd80] sm:%s214]
                %1088 = vst [vmem:[%s222 + $0x6c0] sm:%s214] %v1087
                %v1089 = vld [vmem:[%s221 + $0xd84] sm:%s214]
                %1090 = vst [vmem:[%s222 + $0x6c4] sm:%s214] %v1089
                %v1091 = vld [vmem:[%s221 + $0xd88] sm:%s214]
                %1092 = vst [vmem:[%s222 + $0x6c8] sm:%s214] %v1091
                %v1093 = vld [vmem:[%s221 + $0xd8c] sm:%s214]
                %1094 = vst [vmem:[%s222 + $0x6cc] sm:%s214] %v1093
                %v1095 = vld [vmem:[%s221 + $0xd90] sm:%s214]
                %1096 = vst [vmem:[%s222 + $0x6d0] sm:%s214] %v1095
                %v1097 = vld [vmem:[%s221 + $0xd94] sm:%s214]
                %1098 = vst [vmem:[%s222 + $0x6d4] sm:%s214] %v1097
                %v1099 = vld [vmem:[%s221 + $0xd98] sm:%s214]
                %1100 = vst [vmem:[%s222 + $0x6d8] sm:%s214] %v1099
                %v1101 = vld [vmem:[%s221 + $0xd9c] sm:%s214]
                %1102 = vst [vmem:[%s222 + $0x6dc] sm:%s214] %v1101
                %v1103 = vld [vmem:[%s221 + $0xda0] sm:%s214]
                %1104 = vst [vmem:[%s222 + $0x6e0] sm:%s214] %v1103
                %v1105 = vld [vmem:[%s221 + $0xda4] sm:%s214]
                %1106 = vst [vmem:[%s222 + $0x6e4] sm:%s214] %v1105
                %v1107 = vld [vmem:[%s221 + $0xda8] sm:%s214]
                %1108 = vst [vmem:[%s222 + $0x6e8] sm:%s214] %v1107
                %v1109 = vld [vmem:[%s221 + $0xdac] sm:%s214]
                %1110 = vst [vmem:[%s222 + $0x6ec] sm:%s214] %v1109
                %v1111 = vld [vmem:[%s221 + $0xdb0] sm:%s214]
                %1112 = vst [vmem:[%s222 + $0x6f0] sm:%s214] %v1111
                %v1113 = vld [vmem:[%s221 + $0xdb4] sm:%s214]
                %1114 = vst [vmem:[%s222 + $0x6f4] sm:%s214] %v1113
                %v1115 = vld [vmem:[%s221 + $0xdb8] sm:%s214]
                %1116 = vst [vmem:[%s222 + $0x6f8] sm:%s214] %v1115
                %v1117 = vld [vmem:[%s221 + $0xdbc] sm:%s214]
                %1118 = vst [vmem:[%s222 + $0x6fc] sm:%s214] %v1117
                %v1119 = vld [vmem:[%s221 + $0xe00] sm:%s214]
                %1120 = vst [vmem:[%s222 + $0x700] sm:%s214] %v1119
                %v1121 = vld [vmem:[%s221 + $0xe04] sm:%s214]
                %1122 = vst [vmem:[%s222 + $0x704] sm:%s214] %v1121
                %v1123 = vld [vmem:[%s221 + $0xe08] sm:%s214]
                %1124 = vst [vmem:[%s222 + $0x708] sm:%s214] %v1123
                %v1125 = vld [vmem:[%s221 + $0xe0c] sm:%s214]
                %1126 = vst [vmem:[%s222 + $0x70c] sm:%s214] %v1125
                %v1127 = vld [vmem:[%s221 + $0xe10] sm:%s214]
                %1128 = vst [vmem:[%s222 + $0x710] sm:%s214] %v1127
                %v1129 = vld [vmem:[%s221 + $0xe14] sm:%s214]
                %1130 = vst [vmem:[%s222 + $0x714] sm:%s214] %v1129
                %v1131 = vld [vmem:[%s221 + $0xe18] sm:%s214]
                %1132 = vst [vmem:[%s222 + $0x718] sm:%s214] %v1131
                %v1133 = vld [vmem:[%s221 + $0xe1c] sm:%s214]
                %1134 = vst [vmem:[%s222 + $0x71c] sm:%s214] %v1133
                %v1135 = vld [vmem:[%s221 + $0xe20] sm:%s214]
                %1136 = vst [vmem:[%s222 + $0x720] sm:%s214] %v1135
                %v1137 = vld [vmem:[%s221 + $0xe24] sm:%s214]
                %1138 = vst [vmem:[%s222 + $0x724] sm:%s214] %v1137
                %v1139 = vld [vmem:[%s221 + $0xe28] sm:%s214]
                %1140 = vst [vmem:[%s222 + $0x728] sm:%s214] %v1139
                %v1141 = vld [vmem:[%s221 + $0xe2c] sm:%s214]
                %1142 = vst [vmem:[%s222 + $0x72c] sm:%s214] %v1141
                %v1143 = vld [vmem:[%s221 + $0xe30] sm:%s214]
                %1144 = vst [vmem:[%s222 + $0x730] sm:%s214] %v1143
                %v1145 = vld [vmem:[%s221 + $0xe34] sm:%s214]
                %1146 = vst [vmem:[%s222 + $0x734] sm:%s214] %v1145
                %v1147 = vld [vmem:[%s221 + $0xe38] sm:%s214]
                %1148 = vst [vmem:[%s222 + $0x738] sm:%s214] %v1147
                %v1149 = vld [vmem:[%s221 + $0xe3c] sm:%s214]
                %1150 = vst [vmem:[%s222 + $0x73c] sm:%s214] %v1149
                %v1151 = vld [vmem:[%s221 + $0xe80] sm:%s214]
                %1152 = vst [vmem:[%s222 + $0x740] sm:%s214] %v1151
                %v1153 = vld [vmem:[%s221 + $0xe84] sm:%s214]
                %1154 = vst [vmem:[%s222 + $0x744] sm:%s214] %v1153
                %v1155 = vld [vmem:[%s221 + $0xe88] sm:%s214]
                %1156 = vst [vmem:[%s222 + $0x748] sm:%s214] %v1155
                %v1157 = vld [vmem:[%s221 + $0xe8c] sm:%s214]
                %1158 = vst [vmem:[%s222 + $0x74c] sm:%s214] %v1157
                %v1159 = vld [vmem:[%s221 + $0xe90] sm:%s214]
                %1160 = vst [vmem:[%s222 + $0x750] sm:%s214] %v1159
                %v1161 = vld [vmem:[%s221 + $0xe94] sm:%s214]
                %1162 = vst [vmem:[%s222 + $0x754] sm:%s214] %v1161
                %v1163 = vld [vmem:[%s221 + $0xe98] sm:%s214]
                %1164 = vst [vmem:[%s222 + $0x758] sm:%s214] %v1163
                %v1165 = vld [vmem:[%s221 + $0xe9c] sm:%s214]
                %1166 = vst [vmem:[%s222 + $0x75c] sm:%s214] %v1165
                %v1167 = vld [vmem:[%s221 + $0xea0] sm:%s214]
                %1168 = vst [vmem:[%s222 + $0x760] sm:%s214] %v1167
                %v1169 = vld [vmem:[%s221 + $0xea4] sm:%s214]
                %1170 = vst [vmem:[%s222 + $0x764] sm:%s214] %v1169
                %v1171 = vld [vmem:[%s221 + $0xea8] sm:%s214]
                %1172 = vst [vmem:[%s222 + $0x768] sm:%s214] %v1171
                %v1173 = vld [vmem:[%s221 + $0xeac] sm:%s214]
                %1174 = vst [vmem:[%s222 + $0x76c] sm:%s214] %v1173
                %v1175 = vld [vmem:[%s221 + $0xeb0] sm:%s214]
                %1176 = vst [vmem:[%s222 + $0x770] sm:%s214] %v1175
                %v1177 = vld [vmem:[%s221 + $0xeb4] sm:%s214]
                %1178 = vst [vmem:[%s222 + $0x774] sm:%s214] %v1177
                %v1179 = vld [vmem:[%s221 + $0xeb8] sm:%s214]
                %1180 = vst [vmem:[%s222 + $0x778] sm:%s214] %v1179
                %v1181 = vld [vmem:[%s221 + $0xebc] sm:%s214]
                %1182 = vst [vmem:[%s222 + $0x77c] sm:%s214] %v1181
                %v1183 = vld [vmem:[%s221 + $0xf00] sm:%s214]
                %1184 = vst [vmem:[%s222 + $0x780] sm:%s214] %v1183
                %v1185 = vld [vmem:[%s221 + $0xf04] sm:%s214]
                %1186 = vst [vmem:[%s222 + $0x784] sm:%s214] %v1185
                %v1187 = vld [vmem:[%s221 + $0xf08] sm:%s214]
                %1188 = vst [vmem:[%s222 + $0x788] sm:%s214] %v1187
                %v1189 = vld [vmem:[%s221 + $0xf0c] sm:%s214]
                %1190 = vst [vmem:[%s222 + $0x78c] sm:%s214] %v1189
                %v1191 = vld [vmem:[%s221 + $0xf10] sm:%s214]
                %1192 = vst [vmem:[%s222 + $0x790] sm:%s214] %v1191
                %v1193 = vld [vmem:[%s221 + $0xf14] sm:%s214]
                %1194 = vst [vmem:[%s222 + $0x794] sm:%s214] %v1193
                %v1195 = vld [vmem:[%s221 + $0xf18] sm:%s214]
                %1196 = vst [vmem:[%s222 + $0x798] sm:%s214] %v1195
                %v1197 = vld [vmem:[%s221 + $0xf1c] sm:%s214]
                %1198 = vst [vmem:[%s222 + $0x79c] sm:%s214] %v1197
                %v1199 = vld [vmem:[%s221 + $0xf20] sm:%s214]
                %1200 = vst [vmem:[%s222 + $0x7a0] sm:%s214] %v1199
                %v1201 = vld [vmem:[%s221 + $0xf24] sm:%s214]
                %1202 = vst [vmem:[%s222 + $0x7a4] sm:%s214] %v1201
                %v1203 = vld [vmem:[%s221 + $0xf28] sm:%s214]
                %1204 = vst [vmem:[%s222 + $0x7a8] sm:%s214] %v1203
                %v1205 = vld [vmem:[%s221 + $0xf2c] sm:%s214]
                %1206 = vst [vmem:[%s222 + $0x7ac] sm:%s214] %v1205
                %v1207 = vld [vmem:[%s221 + $0xf30] sm:%s214]
                %1208 = vst [vmem:[%s222 + $0x7b0] sm:%s214] %v1207
                %v1209 = vld [vmem:[%s221 + $0xf34] sm:%s214]
                %1210 = vst [vmem:[%s222 + $0x7b4] sm:%s214] %v1209
                %v1211 = vld [vmem:[%s221 + $0xf38] sm:%s214]
                %1212 = vst [vmem:[%s222 + $0x7b8] sm:%s214] %v1211
                %v1213 = vld [vmem:[%s221 + $0xf3c] sm:%s214]
                %1214 = vst [vmem:[%s222 + $0x7bc] sm:%s214] %v1213
                %v1215 = vld [vmem:[%s221 + $0xf80] sm:%s214]
                %1216 = vst [vmem:[%s222 + $0x7c0] sm:%s214] %v1215
                %v1217 = vld [vmem:[%s221 + $0xf84] sm:%s214]
                %1218 = vst [vmem:[%s222 + $0x7c4] sm:%s214] %v1217
                %v1219 = vld [vmem:[%s221 + $0xf88] sm:%s214]
                %1220 = vst [vmem:[%s222 + $0x7c8] sm:%s214] %v1219
                %v1221 = vld [vmem:[%s221 + $0xf8c] sm:%s214]
                %1222 = vst [vmem:[%s222 + $0x7cc] sm:%s214] %v1221
                %v1223 = vld [vmem:[%s221 + $0xf90] sm:%s214]
                %1224 = vst [vmem:[%s222 + $0x7d0] sm:%s214] %v1223
                %v1225 = vld [vmem:[%s221 + $0xf94] sm:%s214]
                %1226 = vst [vmem:[%s222 + $0x7d4] sm:%s214] %v1225
                %v1227 = vld [vmem:[%s221 + $0xf98] sm:%s214]
                %1228 = vst [vmem:[%s222 + $0x7d8] sm:%s214] %v1227
                %v1229 = vld [vmem:[%s221 + $0xf9c] sm:%s214]
                %1230 = vst [vmem:[%s222 + $0x7dc] sm:%s214] %v1229
                %v1231 = vld [vmem:[%s221 + $0xfa0] sm:%s214]
                %1232 = vst [vmem:[%s222 + $0x7e0] sm:%s214] %v1231
                %v1233 = vld [vmem:[%s221 + $0xfa4] sm:%s214]
                %1234 = vst [vmem:[%s222 + $0x7e4] sm:%s214] %v1233
                %v1235 = vld [vmem:[%s221 + $0xfa8] sm:%s214]
                %1236 = vst [vmem:[%s222 + $0x7e8] sm:%s214] %v1235
                %v1237 = vld [vmem:[%s221 + $0xfac] sm:%s214]
                %1238 = vst [vmem:[%s222 + $0x7ec] sm:%s214] %v1237
                %v1239 = vld [vmem:[%s221 + $0xfb0] sm:%s214]
                %1240 = vst [vmem:[%s222 + $0x7f0] sm:%s214] %v1239
                %v1241 = vld [vmem:[%s221 + $0xfb4] sm:%s214]
                %1242 = vst [vmem:[%s222 + $0x7f4] sm:%s214] %v1241
                %v1243 = vld [vmem:[%s221 + $0xfb8] sm:%s214]
                %1244 = vst [vmem:[%s222 + $0x7f8] sm:%s214] %v1243
                %v1245 = vld [vmem:[%s221 + $0xfbc] sm:%s214]
                %1246 = vst [vmem:[%s222 + $0x7fc] sm:%s214] %v1245
              $region41: #{tpu_custom_call.1} parent=35 // loop_footer
                %s220 = sadd.s32 1, %s216
              $region42: #{tpu_custom_call.1} parent=35 // loop_footer_branch
                %215 = sbr.rel target = $region38
              $region43: #{tpu_custom_call.1} parent=35 // loop_exit
                _
            $region36: #{tpu_custom_call.1} parent=27 // pred_fallthru
              _
          $region28: #{tpu_custom_call.1} parent=23 // pred_fallthru
            _
          %4365 = vnop
        $region24: #{tpu_custom_call.1} parent=19 // pred_fallthru
          _
        // Predicated region
        $region73: #{tpu_custom_call.1} parent=19 // pred_check
          %p4366 = pneg %p82
        $region74: #{tpu_custom_call.1} parent=19 // pred_check_branch
          %4368 = sbr.rel (%p4366) target = $region76
        $region75: #{tpu_custom_call.1} parent=19 // pred_region
          %s4369 = smul.u32 16, %s29
          %p4370 = scmp.lt.s32.totalorder %s4369, 31
          %s4371 = scalar_select %p4370, %s4369, 31
          %s4372 = smul.addr %s4371, 4
          %s4373 = scalar_lea.vmem %s2, %s4372
          %s4374 = smul.u32 16, %s29
        $region76: #{tpu_custom_call.1} parent=19 // pred_fallthru
          _
        // Predicated region
        $region77: #{tpu_custom_call.1} parent=19 // pred_check
          %p4375 = pneg %p134
        $region78: #{tpu_custom_call.1} parent=19 // pred_check_branch
          %4377 = sbr.rel (%p4375) target = $region80
        $region79: #{tpu_custom_call.1} parent=19 // pred_region
          %s4378 = smul.u32 16, %s29
          %p4379 = scmp.lt.s32.totalorder %s4378, 31
          %s4380 = scalar_select %p4379, %s4378, 31
          %s4381 = smul.addr %s4380, 8
          %s4382 = scalar_lea.vmem %s4, %s4381
          %s4383 = smul.u32 16, %s29
        $region80: #{tpu_custom_call.1} parent=19 // pred_fallthru
          _
      $region20: #{tpu_custom_call.1} parent=5 // pred_fallthru
        _
      %p4384 = scmp.le.s32.totalorder 1, %s22
      %p4385 = scmp.lt.s32.totalorder %s22, 3
      %p4386 = pnand %p4384, %p4385
      %p4387 = pneg %p4386
      // Predicated region
      $region81: #{tpu_custom_call.1} parent=5 // pred_check
        _
      $region82: #{tpu_custom_call.1} parent=5 // pred_check_branch
        %4389 = sbr.rel (%p4386) target = $region84
      $region83: #{tpu_custom_call.1} parent=5 // pred_region
        %s4390 = ssub.s32 %s22, 1
        %s4391 = sand.u32 %s49, 1
        %s4392 = sand.u32 %s49, 1
        %s4393 = smul.addr %s4392, 2048
        %s4394 = scalar_lea.vmem [#allocation4], %s4393
        // Predicated region
        $region85: #{tpu_custom_call.1} parent=83 // pred_check
          %p4395 = pneg %p62
        $region86: #{tpu_custom_call.1} parent=83 // pred_check_branch
          %4397 = sbr.rel (%p4395) target = $region88
        $region87: #{tpu_custom_call.1} parent=83 // pred_region
          _
        $region88: #{tpu_custom_call.1} parent=83 // pred_fallthru
          _
        %s4398 = sand.u32 %s49, 1
        %s4399 = sand.u32 %s49, 1
        %s4400 = smul.addr %s4399, 2048
        %s4401 = scalar_lea.vmem [#allocation4], %s4400
        %p4402 = pneg %p62
        %p4403 = pneg %p59
        %s4404 = smul.u32 16, %s31
        %p4405 = scmp.lt.s32.totalorder %s4404, 31
        %s4406 = scalar_select %p4405, %s4404, 31
        %s4407 = smul.addr %s4406, 4
        %s4408 = scalar_lea.vmem %s2, %s4407
        %p4409 = pneg %p88
        %p4410 = pneg %p85
        %s4411 = smul.u32 32, %s32
        %p4412 = scmp.lt.s32.totalorder %s4411, 31
        %s4413 = scalar_select %p4412, %s4411, 31
        %s4414 = smul.addr %s4413, 4
        %s4415 = scalar_lea.vmem %s3, %s4414
        %p4416 = pneg %p114
        %p4417 = pneg %p111
        %s4418 = smul.u32 16, %s31
        %p4419 = scmp.lt.s32.totalorder %s4418, 31
        %s4420 = scalar_select %p4419, %s4418, 31
        %s4421 = smul.addr %s4420, 8
        %s4422 = scalar_lea.vmem %s4, %s4421
        %p4423 = pneg %p140
        %p4424 = pneg %p137
        %p4425 = pneg %p166
        %p4426 = pneg %p163
        %s4427 = sand.u32 %s153, 1
        %s4428 = scalar_lea.sflag [#allocation6], %s4427
        %s4429 = sand.u32 %s153, 1
        %s4430 = smul.addr %s4429, 128
        %s4431 = scalar_lea.vmem [#allocation5], %s4430
        %s4432 = smul.u32 32, %s32
        %s4433 = smul.u32 16, %s31
        %s4434 = smul.u32 16, %s31
        %p4435 = scmp.lt.s32.totalorder %s4434, 31
        %s4436 = scalar_select %p4435, %s4434, 31
        %s4437 = smul.addr %s4436, 4
        %s4438 = scalar_lea.vmem %s2, %s4437
        %s4439 = smul.u32 16, %s31
        %s4440 = smul.u32 32, %s32
        %p4441 = scmp.lt.s32.totalorder %s4440, 31
        %s4442 = scalar_select %p4441, %s4440, 31
        %s4443 = smul.addr %s4442, 4
        %s4444 = scalar_lea.vmem %s3, %s4443
        %s4445 = smul.u32 32, %s32
        %s4446 = smul.u32 16, %s31
        %p4447 = scmp.lt.s32.totalorder %s4446, 31
        %s4448 = scalar_select %p4447, %s4446, 31
        %s4449 = smul.addr %s4448, 8
        %s4450 = scalar_lea.vmem %s4, %s4449
        %s4451 = smul.u32 16, %s31
        %s4452 = smul.u32 16, %s31
        %p4453 = scmp.eq.s32.totalorder %s32, 0
        // Predicated region
        $region89: #{tpu_custom_call.1} parent=83 // pred_check
          %p4454 = pneg %p4453
        $region90: #{tpu_custom_call.1} parent=83 // pred_check_branch
          %4456 = sbr.rel (%p4454) target = $region92
        $region91: #{tpu_custom_call.1} parent=83 // pred_region
          %v4457 = vld [vmem:[%s4450] sm:$0xff]
          %v4458 = vld [vmem:[%s4450 + $0x8] sm:$0xff]
          %v4459 = vld [vmem:[%s4450 + $0x10] sm:$0xff]
          %v4460 = vld [vmem:[%s4450 + $0x18] sm:$0xff]
          %v4461 = vld [vmem:[%s4450 + $0x20] sm:$0xff]
          %v4462 = vld [vmem:[%s4450 + $0x28] sm:$0xff]
          %v4463 = vld [vmem:[%s4450 + $0x30] sm:$0xff]
          %v4464 = vld [vmem:[%s4450 + $0x38] sm:$0xff]
          %v4465 = vld [vmem:[%s4450 + $0x40] sm:$0xff]
          %v4466 = vld [vmem:[%s4450 + $0x48] sm:$0xff]
          %v4467 = vld [vmem:[%s4450 + $0x50] sm:$0xff]
          %v4468 = vld [vmem:[%s4450 + $0x58] sm:$0xff]
          %v4469 = vld [vmem:[%s4450 + $0x60] sm:$0xff]
          %v4470 = vld [vmem:[%s4450 + $0x68] sm:$0xff]
          %v4471 = vld [vmem:[%s4450 + $0x70] sm:$0xff]
          %v4472 = vld [vmem:[%s4450 + $0x78] sm:$0xff]
          %4473 = vst [vmem:[%s4431] sm:$0xff] %v4457
          %4474 = vst [vmem:[%s4431 + $0x8] sm:$0xff] %v4458
          %4475 = vst [vmem:[%s4431 + $0x10] sm:$0xff] %v4459
          %4476 = vst [vmem:[%s4431 + $0x18] sm:$0xff] %v4460
          %4477 = vst [vmem:[%s4431 + $0x20] sm:$0xff] %v4461
          %4478 = vst [vmem:[%s4431 + $0x28] sm:$0xff] %v4462
          %4479 = vst [vmem:[%s4431 + $0x30] sm:$0xff] %v4463
          %4480 = vst [vmem:[%s4431 + $0x38] sm:$0xff] %v4464
          %4481 = vst [vmem:[%s4431 + $0x40] sm:$0xff] %v4465
          %4482 = vst [vmem:[%s4431 + $0x48] sm:$0xff] %v4466
          %4483 = vst [vmem:[%s4431 + $0x50] sm:$0xff] %v4467
          %4484 = vst [vmem:[%s4431 + $0x58] sm:$0xff] %v4468
          %4485 = vst [vmem:[%s4431 + $0x60] sm:$0xff] %v4469
          %4486 = vst [vmem:[%s4431 + $0x68] sm:$0xff] %v4470
          %4487 = vst [vmem:[%s4431 + $0x70] sm:$0xff] %v4471
          %4488 = vst [vmem:[%s4431 + $0x78] sm:$0xff] %v4472
        $region92: #{tpu_custom_call.1} parent=83 // pred_fallthru
          _
        %s4489 = sshra.s32 %s32, 7
        %s4490 = sand.u32 %s32, 127
        %s4491 = sadd.s32 %s4489, %s31
        %s4492 = smul.u32 %s4491, 128
        %s4493 = sshra.s32 %s32, 7
        %s4494 = sand.u32 %s32, 127
        %s4495 = sadd.s32 %s4492, %s4494
        %s4496 = sld [smem:[#allocation3 + %s4495]]
        %p4497 = scmp.gt.s32.totalorder %s4496, 0
        // Predicated region
        $region93: #{tpu_custom_call.1} parent=83 // pred_check
          %p4498 = pneg %p4497
        $region94: #{tpu_custom_call.1} parent=83 // pred_check_branch
          %4500 = sbr.rel (%p4498) target = $region96
        $region95: #{tpu_custom_call.1} parent=83 // pred_region
          %v4501 = vld [vmem:[%s4438] sm:$0xf]
          %v4502 = vld [vmem:[%s4438 + $0x4] sm:$0xf]
          %v4503 = vld [vmem:[%s4438 + $0x8] sm:$0xf]
          %v4504 = vld [vmem:[%s4438 + $0xc] sm:$0xf]
          %v4505 = vld [vmem:[%s4438 + $0x10] sm:$0xf]
          %v4506 = vld [vmem:[%s4438 + $0x14] sm:$0xf]
          %v4507 = vld [vmem:[%s4438 + $0x18] sm:$0xf]
          %v4508 = vld [vmem:[%s4438 + $0x1c] sm:$0xf]
          %v4509 = vld [vmem:[%s4438 + $0x20] sm:$0xf]
          %v4510 = vld [vmem:[%s4438 + $0x24] sm:$0xf]
          %v4511 = vld [vmem:[%s4438 + $0x28] sm:$0xf]
          %v4512 = vld [vmem:[%s4438 + $0x2c] sm:$0xf]
          %v4513 = vld [vmem:[%s4438 + $0x30] sm:$0xf]
          %v4514 = vld [vmem:[%s4438 + $0x34] sm:$0xf]
          %v4515 = vld [vmem:[%s4438 + $0x38] sm:$0xf]
          %v4516 = vld [vmem:[%s4438 + $0x3c] sm:$0xf]
          loop: start=0, step=1, limit=32
          $region97: #{tpu_custom_call.1} parent=95 // loop_pre_header
            _
          $region98: #{tpu_custom_call.1} parent=95 // loop_header
            %s4518 = sphi 0, %s4522
            %p4519 = scmp.ge.s32.totalorder %s4518, 32
            %v4523 = vphi 0.0, %v7034
            %v4524 = vphi 0.0, %v7035
            %v4525 = vphi 0.0, %v7036
            %v4526 = vphi 0.0, %v7037
            %v4527 = vphi 0.0, %v7038
            %v4528 = vphi 0.0, %v7039
            %v4529 = vphi 0.0, %v7040
            %v4530 = vphi 0.0, %v7041
            %v4531 = vphi 0.0, %v7042
            %v4532 = vphi 0.0, %v7043
            %v4533 = vphi 0.0, %v7044
            %v4534 = vphi 0.0, %v7045
            %v4535 = vphi 0.0, %v7046
            %v4536 = vphi 0.0, %v7047
            %v4537 = vphi 0.0, %v7048
            %v4538 = vphi 0.0, %v7049
          $region99: #{tpu_custom_call.1} parent=95 // loop_header_branch
            %4521 = sbr.rel (%p4519) target = $region103
          $region100: #{tpu_custom_call.1} parent=95 // loop_body
            %s4539 = smul.u32 %s4518, 16
            %s4540 = smul.addr %s4539, 4
            %s4541 = scalar_lea.vmem %s4394, %s4540 [#allocation4]
            %v4542 = vld [vmem:[%s4541] sm:$0xf]
            %v4543 = vld [vmem:[%s4541 + $0x4] sm:$0xf]
            %v4544 = vld [vmem:[%s4541 + $0x8] sm:$0xf]
            %v4545 = vld [vmem:[%s4541 + $0xc] sm:$0xf]
            %v4546 = vld [vmem:[%s4541 + $0x10] sm:$0xf]
            %v4547 = vld [vmem:[%s4541 + $0x14] sm:$0xf]
            %v4548 = vld [vmem:[%s4541 + $0x18] sm:$0xf]
            %v4549 = vld [vmem:[%s4541 + $0x1c] sm:$0xf]
            %v4550 = vld [vmem:[%s4541 + $0x20] sm:$0xf]
            %v4551 = vld [vmem:[%s4541 + $0x24] sm:$0xf]
            %v4552 = vld [vmem:[%s4541 + $0x28] sm:$0xf]
            %v4553 = vld [vmem:[%s4541 + $0x2c] sm:$0xf]
            %v4554 = vld [vmem:[%s4541 + $0x30] sm:$0xf]
            %v4555 = vld [vmem:[%s4541 + $0x34] sm:$0xf]
            %v4556 = vld [vmem:[%s4541 + $0x38] sm:$0xf]
            %v4557 = vld [vmem:[%s4541 + $0x3c] sm:$0xf]
            %s4558 = smul.u32 %s4518, 8
            %s4559 = sshra.s32 %s4558, 3
            %s4560 = sand.u32 %s4558, 7
            %s4561 = smul.addr %s4559, 4
            %s4562 = scalar_lea.vmem %s4444, %s4561
            %v4563 = vld [vmem:[%s4562] sm:$0xf]
            %v4565 = vpack.i.b16 %v4563, %v4563
            %v4567 = vperm.slane %v4565, 0
            %v4568 = vunpack.c.l.bf16 %v4501
            %v4569 = vunpack.c.l.bf16 %v4502
            %v4570 = vunpack.c.l.bf16 %v4503
            %v4571 = vunpack.c.l.bf16 %v4504
            %v4572 = vunpack.c.l.bf16 %v4505
            %v4573 = vunpack.c.l.bf16 %v4506
            %v4574 = vunpack.c.l.bf16 %v4507
            %v4575 = vunpack.c.l.bf16 %v4508
            %v4576 = vunpack.c.l.bf16 %v4509
            %v4577 = vunpack.c.l.bf16 %v4510
            %v4578 = vunpack.c.l.bf16 %v4511
            %v4579 = vunpack.c.l.bf16 %v4512
            %v4580 = vunpack.c.l.bf16 %v4513
            %v4581 = vunpack.c.l.bf16 %v4514
            %v4582 = vunpack.c.l.bf16 %v4515
            %v4583 = vunpack.c.l.bf16 %v4516
            %v4584 = vunpack.c.l.bf16 %v4567
            %v4585 = vadd.f32 %v4568, %v4584
            %v4586 = vadd.f32 %v4569, %v4584
            %v4587 = vadd.f32 %v4570, %v4584
            %v4588 = vadd.f32 %v4571, %v4584
            %v4589 = vadd.f32 %v4572, %v4584
            %v4590 = vadd.f32 %v4573, %v4584
            %v4591 = vadd.f32 %v4574, %v4584
            %v4592 = vadd.f32 %v4575, %v4584
            %v4593 = vadd.f32 %v4576, %v4584
            %v4594 = vadd.f32 %v4577, %v4584
            %v4595 = vadd.f32 %v4578, %v4584
            %v4596 = vadd.f32 %v4579, %v4584
            %v4597 = vadd.f32 %v4580, %v4584
            %v4598 = vadd.f32 %v4581, %v4584
            %v4599 = vadd.f32 %v4582, %v4584
            %v4600 = vadd.f32 %v4583, %v4584
            %v4601 = vpack.c.bf16 %v4585, %v4585
            %v4602 = vpack.c.bf16 %v4586, %v4586
            %v4603 = vpack.c.bf16 %v4587, %v4587
            %v4604 = vpack.c.bf16 %v4588, %v4588
            %v4605 = vpack.c.bf16 %v4589, %v4589
            %v4606 = vpack.c.bf16 %v4590, %v4590
            %v4607 = vpack.c.bf16 %v4591, %v4591
            %v4608 = vpack.c.bf16 %v4592, %v4592
            %v4609 = vpack.c.bf16 %v4593, %v4593
            %v4610 = vpack.c.bf16 %v4594, %v4594
            %v4611 = vpack.c.bf16 %v4595, %v4595
            %v4612 = vpack.c.bf16 %v4596, %v4596
            %v4613 = vpack.c.bf16 %v4597, %v4597
            %v4614 = vpack.c.bf16 %v4598, %v4598
            %v4615 = vpack.c.bf16 %v4599, %v4599
            %v4616 = vpack.c.bf16 %v4600, %v4600
            %v4617 = vunpack.c.l.bf16 %v4601
            %v4618 = vunpack.c.l.bf16 %v4602
            %v4619 = vunpack.c.l.bf16 %v4603
            %v4620 = vunpack.c.l.bf16 %v4604
            %v4621 = vunpack.c.l.bf16 %v4605
            %v4622 = vunpack.c.l.bf16 %v4606
            %v4623 = vunpack.c.l.bf16 %v4607
            %v4624 = vunpack.c.l.bf16 %v4608
            %v4625 = vunpack.c.l.bf16 %v4609
            %v4626 = vunpack.c.l.bf16 %v4610
            %v4627 = vunpack.c.l.bf16 %v4611
            %v4628 = vunpack.c.l.bf16 %v4612
            %v4629 = vunpack.c.l.bf16 %v4613
            %v4630 = vunpack.c.l.bf16 %v4614
            %v4631 = vunpack.c.l.bf16 %v4615
            %v4632 = vunpack.c.l.bf16 %v4616
            %v4633 = vmax.f32 %v4617, 0.0
            %v4634 = vmax.f32 %v4618, 0.0
            %v4635 = vmax.f32 %v4619, 0.0
            %v4636 = vmax.f32 %v4620, 0.0
            %v4637 = vmax.f32 %v4621, 0.0
            %v4638 = vmax.f32 %v4622, 0.0
            %v4639 = vmax.f32 %v4623, 0.0
            %v4640 = vmax.f32 %v4624, 0.0
            %v4641 = vmax.f32 %v4625, 0.0
            %v4642 = vmax.f32 %v4626, 0.0
            %v4643 = vmax.f32 %v4627, 0.0
            %v4644 = vmax.f32 %v4628, 0.0
            %v4645 = vmax.f32 %v4629, 0.0
            %v4646 = vmax.f32 %v4630, 0.0
            %v4647 = vmax.f32 %v4631, 0.0
            %v4648 = vmax.f32 %v4632, 0.0
            %v4649 = vpack.c.bf16 %v4633, %v4633
            %v4650 = vpack.c.bf16 %v4634, %v4634
            %v4651 = vpack.c.bf16 %v4635, %v4635
            %v4652 = vpack.c.bf16 %v4636, %v4636
            %v4653 = vpack.c.bf16 %v4637, %v4637
            %v4654 = vpack.c.bf16 %v4638, %v4638
            %v4655 = vpack.c.bf16 %v4639, %v4639
            %v4656 = vpack.c.bf16 %v4640, %v4640
            %v4657 = vpack.c.bf16 %v4641, %v4641
            %v4658 = vpack.c.bf16 %v4642, %v4642
            %v4659 = vpack.c.bf16 %v4643, %v4643
            %v4660 = vpack.c.bf16 %v4644, %v4644
            %v4661 = vpack.c.bf16 %v4645, %v4645
            %v4662 = vpack.c.bf16 %v4646, %v4646
            %v4663 = vpack.c.bf16 %v4647, %v4647
            %v4664 = vpack.c.bf16 %v4648, %v4648
            %4666 = vset.pattern.permute.xlu0 0
            %4667 = vperm.xlu0 %4666, %v4542
            %v4668 = vpop.permute.xlu0 %4667
            %v4671 = vunpack.c.l.s4 839922192
            %v4672 = vunpack.c.0.s8 %v4671
            %v4673 = vperm.slane %v4668, %v4672
            %4675 = vset.pattern.permute.xlu0 0
            %4676 = vperm.xlu0 %4675, %v4543
            %v4677 = vpop.permute.xlu0 %4676
            %v4680 = vunpack.c.l.s4 839922192
            %v4681 = vunpack.c.0.s8 %v4680
            %v4682 = vperm.slane %v4677, %v4681
            %4684 = vset.pattern.permute.xlu0 0
            %4685 = vperm.xlu0 %4684, %v4544
            %v4686 = vpop.permute.xlu0 %4685
            %v4689 = vunpack.c.l.s4 839922192
            %v4690 = vunpack.c.0.s8 %v4689
            %v4691 = vperm.slane %v4686, %v4690
            %4693 = vset.pattern.permute.xlu0 0
            %4694 = vperm.xlu0 %4693, %v4545
            %v4695 = vpop.permute.xlu0 %4694
            %v4698 = vunpack.c.l.s4 839922192
            %v4699 = vunpack.c.0.s8 %v4698
            %v4700 = vperm.slane %v4695, %v4699
            %4702 = vset.pattern.permute.xlu0 0
            %4703 = vperm.xlu0 %4702, %v4546
            %v4704 = vpop.permute.xlu0 %4703
            %v4707 = vunpack.c.l.s4 839922192
            %v4708 = vunpack.c.0.s8 %v4707
            %v4709 = vperm.slane %v4704, %v4708
            %4711 = vset.pattern.permute.xlu0 0
            %4712 = vperm.xlu0 %4711, %v4547
            %v4713 = vpop.permute.xlu0 %4712
            %v4716 = vunpack.c.l.s4 839922192
            %v4717 = vunpack.c.0.s8 %v4716
            %v4718 = vperm.slane %v4713, %v4717
            %4720 = vset.pattern.permute.xlu0 0
            %4721 = vperm.xlu0 %4720, %v4548
            %v4722 = vpop.permute.xlu0 %4721
            %v4725 = vunpack.c.l.s4 839922192
            %v4726 = vunpack.c.0.s8 %v4725
            %v4727 = vperm.slane %v4722, %v4726
            %4729 = vset.pattern.permute.xlu0 0
            %4730 = vperm.xlu0 %4729, %v4549
            %v4731 = vpop.permute.xlu0 %4730
            %v4734 = vunpack.c.l.s4 839922192
            %v4735 = vunpack.c.0.s8 %v4734
            %v4736 = vperm.slane %v4731, %v4735
            %4738 = vset.pattern.permute.xlu0 0
            %4739 = vperm.xlu0 %4738, %v4550
            %v4740 = vpop.permute.xlu0 %4739
            %v4743 = vunpack.c.l.s4 839922192
            %v4744 = vunpack.c.0.s8 %v4743
            %v4745 = vperm.slane %v4740, %v4744
            %4747 = vset.pattern.permute.xlu0 0
            %4748 = vperm.xlu0 %4747, %v4551
            %v4749 = vpop.permute.xlu0 %4748
            %v4752 = vunpack.c.l.s4 839922192
            %v4753 = vunpack.c.0.s8 %v4752
            %v4754 = vperm.slane %v4749, %v4753
            %4756 = vset.pattern.permute.xlu0 0
            %4757 = vperm.xlu0 %4756, %v4552
            %v4758 = vpop.permute.xlu0 %4757
            %v4761 = vunpack.c.l.s4 839922192
            %v4762 = vunpack.c.0.s8 %v4761
            %v4763 = vperm.slane %v4758, %v4762
            %4765 = vset.pattern.permute.xlu0 0
            %4766 = vperm.xlu0 %4765, %v4553
            %v4767 = vpop.permute.xlu0 %4766
            %v4770 = vunpack.c.l.s4 839922192
            %v4771 = vunpack.c.0.s8 %v4770
            %v4772 = vperm.slane %v4767, %v4771
            %4774 = vset.pattern.permute.xlu0 0
            %4775 = vperm.xlu0 %4774, %v4554
            %v4776 = vpop.permute.xlu0 %4775
            %v4779 = vunpack.c.l.s4 839922192
            %v4780 = vunpack.c.0.s8 %v4779
            %v4781 = vperm.slane %v4776, %v4780
            %4783 = vset.pattern.permute.xlu0 0
            %4784 = vperm.xlu0 %4783, %v4555
            %v4785 = vpop.permute.xlu0 %4784
            %v4788 = vunpack.c.l.s4 839922192
            %v4789 = vunpack.c.0.s8 %v4788
            %v4790 = vperm.slane %v4785, %v4789
            %4792 = vset.pattern.permute.xlu0 0
            %4793 = vperm.xlu0 %4792, %v4556
            %v4794 = vpop.permute.xlu0 %4793
            %v4797 = vunpack.c.l.s4 839922192
            %v4798 = vunpack.c.0.s8 %v4797
            %v4799 = vperm.slane %v4794, %v4798
            %4801 = vset.pattern.permute.xlu0 0
            %4802 = vperm.xlu0 %4801, %v4557
            %v4803 = vpop.permute.xlu0 %4802
            %v4806 = vunpack.c.l.s4 839922192
            %v4807 = vunpack.c.0.s8 %v4806
            %v4808 = vperm.slane %v4803, %v4807
            %v4809 = vunpack.c.l.bf16 %v4673
            %v4810 = vunpack.c.l.bf16 %v4682
            %v4811 = vunpack.c.l.bf16 %v4691
            %v4812 = vunpack.c.l.bf16 %v4700
            %v4813 = vunpack.c.l.bf16 %v4709
            %v4814 = vunpack.c.l.bf16 %v4718
            %v4815 = vunpack.c.l.bf16 %v4727
            %v4816 = vunpack.c.l.bf16 %v4736
            %v4817 = vunpack.c.l.bf16 %v4745
            %v4818 = vunpack.c.l.bf16 %v4754
            %v4819 = vunpack.c.l.bf16 %v4763
            %v4820 = vunpack.c.l.bf16 %v4772
            %v4821 = vunpack.c.l.bf16 %v4781
            %v4822 = vunpack.c.l.bf16 %v4790
            %v4823 = vunpack.c.l.bf16 %v4799
            %v4824 = vunpack.c.l.bf16 %v4808
            %v4825 = vunpack.c.l.bf16 %v4649
            %v4826 = vunpack.c.l.bf16 %v4650
            %v4827 = vunpack.c.l.bf16 %v4651
            %v4828 = vunpack.c.l.bf16 %v4652
            %v4829 = vunpack.c.l.bf16 %v4653
            %v4830 = vunpack.c.l.bf16 %v4654
            %v4831 = vunpack.c.l.bf16 %v4655
            %v4832 = vunpack.c.l.bf16 %v4656
            %v4833 = vunpack.c.l.bf16 %v4657
            %v4834 = vunpack.c.l.bf16 %v4658
            %v4835 = vunpack.c.l.bf16 %v4659
            %v4836 = vunpack.c.l.bf16 %v4660
            %v4837 = vunpack.c.l.bf16 %v4661
            %v4838 = vunpack.c.l.bf16 %v4662
            %v4839 = vunpack.c.l.bf16 %v4663
            %v4840 = vunpack.c.l.bf16 %v4664
            %v4841 = vmul.f32 %v4809, %v4825
            %v4842 = vmul.f32 %v4810, %v4826
            %v4843 = vmul.f32 %v4811, %v4827
            %v4844 = vmul.f32 %v4812, %v4828
            %v4845 = vmul.f32 %v4813, %v4829
            %v4846 = vmul.f32 %v4814, %v4830
            %v4847 = vmul.f32 %v4815, %v4831
            %v4848 = vmul.f32 %v4816, %v4832
            %v4849 = vmul.f32 %v4817, %v4833
            %v4850 = vmul.f32 %v4818, %v4834
            %v4851 = vmul.f32 %v4819, %v4835
            %v4852 = vmul.f32 %v4820, %v4836
            %v4853 = vmul.f32 %v4821, %v4837
            %v4854 = vmul.f32 %v4822, %v4838
            %v4855 = vmul.f32 %v4823, %v4839
            %v4856 = vmul.f32 %v4824, %v4840
            %v4857 = vpack.c.bf16 %v4841, %v4841
            %v4858 = vpack.c.bf16 %v4842, %v4842
            %v4859 = vpack.c.bf16 %v4843, %v4843
            %v4860 = vpack.c.bf16 %v4844, %v4844
            %v4861 = vpack.c.bf16 %v4845, %v4845
            %v4862 = vpack.c.bf16 %v4846, %v4846
            %v4863 = vpack.c.bf16 %v4847, %v4847
            %v4864 = vpack.c.bf16 %v4848, %v4848
            %v4865 = vpack.c.bf16 %v4849, %v4849
            %v4866 = vpack.c.bf16 %v4850, %v4850
            %v4867 = vpack.c.bf16 %v4851, %v4851
            %v4868 = vpack.c.bf16 %v4852, %v4852
            %v4869 = vpack.c.bf16 %v4853, %v4853
            %v4870 = vpack.c.bf16 %v4854, %v4854
            %v4871 = vpack.c.bf16 %v4855, %v4855
            %v4872 = vpack.c.bf16 %v4856, %v4856
            %v4873 = vunpack.c.l.bf16 %v4857
            %v4874 = vunpack.c.l.bf16 %v4858
            %v4875 = vunpack.c.l.bf16 %v4859
            %v4876 = vunpack.c.l.bf16 %v4860
            %v4877 = vunpack.c.l.bf16 %v4861
            %v4878 = vunpack.c.l.bf16 %v4862
            %v4879 = vunpack.c.l.bf16 %v4863
            %v4880 = vunpack.c.l.bf16 %v4864
            %v4881 = vunpack.c.l.bf16 %v4865
            %v4882 = vunpack.c.l.bf16 %v4866
            %v4883 = vunpack.c.l.bf16 %v4867
            %v4884 = vunpack.c.l.bf16 %v4868
            %v4885 = vunpack.c.l.bf16 %v4869
            %v4886 = vunpack.c.l.bf16 %v4870
            %v4887 = vunpack.c.l.bf16 %v4871
            %v4888 = vunpack.c.l.bf16 %v4872
            %v4889 = vadd.f32 %v4523, %v4873
            %v4890 = vadd.f32 %v4524, %v4874
            %v4891 = vadd.f32 %v4525, %v4875
            %v4892 = vadd.f32 %v4526, %v4876
            %v4893 = vadd.f32 %v4527, %v4877
            %v4894 = vadd.f32 %v4528, %v4878
            %v4895 = vadd.f32 %v4529, %v4879
            %v4896 = vadd.f32 %v4530, %v4880
            %v4897 = vadd.f32 %v4531, %v4881
            %v4898 = vadd.f32 %v4532, %v4882
            %v4899 = vadd.f32 %v4533, %v4883
            %v4900 = vadd.f32 %v4534, %v4884
            %v4901 = vadd.f32 %v4535, %v4885
            %v4902 = vadd.f32 %v4536, %v4886
            %v4903 = vadd.f32 %v4537, %v4887
            %v4904 = vadd.f32 %v4538, %v4888
            %v4905 = vshrl.u32 %v4563, 16
            %v4906 = vpack.i.b16 %v4905, %v4905
            %v4908 = vperm.slane %v4906, 0
            %v4909 = vunpack.c.l.bf16 %v4908
            %v4910 = vadd.f32 %v4568, %v4909
            %v4911 = vadd.f32 %v4569, %v4909
            %v4912 = vadd.f32 %v4570, %v4909
            %v4913 = vadd.f32 %v4571, %v4909
            %v4914 = vadd.f32 %v4572, %v4909
            %v4915 = vadd.f32 %v4573, %v4909
            %v4916 = vadd.f32 %v4574, %v4909
            %v4917 = vadd.f32 %v4575, %v4909
            %v4918 = vadd.f32 %v4576, %v4909
            %v4919 = vadd.f32 %v4577, %v4909
            %v4920 = vadd.f32 %v4578, %v4909
            %v4921 = vadd.f32 %v4579, %v4909
            %v4922 = vadd.f32 %v4580, %v4909
            %v4923 = vadd.f32 %v4581, %v4909
            %v4924 = vadd.f32 %v4582, %v4909
            %v4925 = vadd.f32 %v4583, %v4909
            %v4926 = vpack.c.bf16 %v4910, %v4910
            %v4927 = vpack.c.bf16 %v4911, %v4911
            %v4928 = vpack.c.bf16 %v4912, %v4912
            %v4929 = vpack.c.bf16 %v4913, %v4913
            %v4930 = vpack.c.bf16 %v4914, %v4914
            %v4931 = vpack.c.bf16 %v4915, %v4915
            %v4932 = vpack.c.bf16 %v4916, %v4916
            %v4933 = vpack.c.bf16 %v4917, %v4917
            %v4934 = vpack.c.bf16 %v4918, %v4918
            %v4935 = vpack.c.bf16 %v4919, %v4919
            %v4936 = vpack.c.bf16 %v4920, %v4920
            %v4937 = vpack.c.bf16 %v4921, %v4921
            %v4938 = vpack.c.bf16 %v4922, %v4922
            %v4939 = vpack.c.bf16 %v4923, %v4923
            %v4940 = vpack.c.bf16 %v4924, %v4924
            %v4941 = vpack.c.bf16 %v4925, %v4925
            %v4942 = vunpack.c.l.bf16 %v4926
            %v4943 = vunpack.c.l.bf16 %v4927
            %v4944 = vunpack.c.l.bf16 %v4928
            %v4945 = vunpack.c.l.bf16 %v4929
            %v4946 = vunpack.c.l.bf16 %v4930
            %v4947 = vunpack.c.l.bf16 %v4931
            %v4948 = vunpack.c.l.bf16 %v4932
            %v4949 = vunpack.c.l.bf16 %v4933
            %v4950 = vunpack.c.l.bf16 %v4934
            %v4951 = vunpack.c.l.bf16 %v4935
            %v4952 = vunpack.c.l.bf16 %v4936
            %v4953 = vunpack.c.l.bf16 %v4937
            %v4954 = vunpack.c.l.bf16 %v4938
            %v4955 = vunpack.c.l.bf16 %v4939
            %v4956 = vunpack.c.l.bf16 %v4940
            %v4957 = vunpack.c.l.bf16 %v4941
            %v4958 = vmax.f32 %v4942, 0.0
            %v4959 = vmax.f32 %v4943, 0.0
            %v4960 = vmax.f32 %v4944, 0.0
            %v4961 = vmax.f32 %v4945, 0.0
            %v4962 = vmax.f32 %v4946, 0.0
            %v4963 = vmax.f32 %v4947, 0.0
            %v4964 = vmax.f32 %v4948, 0.0
            %v4965 = vmax.f32 %v4949, 0.0
            %v4966 = vmax.f32 %v4950, 0.0
            %v4967 = vmax.f32 %v4951, 0.0
            %v4968 = vmax.f32 %v4952, 0.0
            %v4969 = vmax.f32 %v4953, 0.0
            %v4970 = vmax.f32 %v4954, 0.0
            %v4971 = vmax.f32 %v4955, 0.0
            %v4972 = vmax.f32 %v4956, 0.0
            %v4973 = vmax.f32 %v4957, 0.0
            %v4974 = vpack.c.bf16 %v4958, %v4958
            %v4975 = vpack.c.bf16 %v4959, %v4959
            %v4976 = vpack.c.bf16 %v4960, %v4960
            %v4977 = vpack.c.bf16 %v4961, %v4961
            %v4978 = vpack.c.bf16 %v4962, %v4962
            %v4979 = vpack.c.bf16 %v4963, %v4963
            %v4980 = vpack.c.bf16 %v4964, %v4964
            %v4981 = vpack.c.bf16 %v4965, %v4965
            %v4982 = vpack.c.bf16 %v4966, %v4966
            %v4983 = vpack.c.bf16 %v4967, %v4967
            %v4984 = vpack.c.bf16 %v4968, %v4968
            %v4985 = vpack.c.bf16 %v4969, %v4969
            %v4986 = vpack.c.bf16 %v4970, %v4970
            %v4987 = vpack.c.bf16 %v4971, %v4971
            %v4988 = vpack.c.bf16 %v4972, %v4972
            %v4989 = vpack.c.bf16 %v4973, %v4973
            %4990 = vset.pattern.permute.xlu0 1
            %4991 = vperm.xlu0 %4990, %v4542
            %v4992 = vpop.permute.xlu0 %4991
            %v4995 = vunpack.c.l.s4 839922192
            %v4996 = vunpack.c.0.s8 %v4995
            %v4997 = vperm.slane %v4992, %v4996
            %4998 = vset.pattern.permute.xlu0 1
            %4999 = vperm.xlu0 %4998, %v4543
            %v5000 = vpop.permute.xlu0 %4999
            %v5003 = vunpack.c.l.s4 839922192
            %v5004 = vunpack.c.0.s8 %v5003
            %v5005 = vperm.slane %v5000, %v5004
            %5006 = vset.pattern.permute.xlu0 1
            %5007 = vperm.xlu0 %5006, %v4544
            %v5008 = vpop.permute.xlu0 %5007
            %v5011 = vunpack.c.l.s4 839922192
            %v5012 = vunpack.c.0.s8 %v5011
            %v5013 = vperm.slane %v5008, %v5012
            %5014 = vset.pattern.permute.xlu0 1
            %5015 = vperm.xlu0 %5014, %v4545
            %v5016 = vpop.permute.xlu0 %5015
            %v5019 = vunpack.c.l.s4 839922192
            %v5020 = vunpack.c.0.s8 %v5019
            %v5021 = vperm.slane %v5016, %v5020
            %5022 = vset.pattern.permute.xlu0 1
            %5023 = vperm.xlu0 %5022, %v4546
            %v5024 = vpop.permute.xlu0 %5023
            %v5027 = vunpack.c.l.s4 839922192
            %v5028 = vunpack.c.0.s8 %v5027
            %v5029 = vperm.slane %v5024, %v5028
            %5030 = vset.pattern.permute.xlu0 1
            %5031 = vperm.xlu0 %5030, %v4547
            %v5032 = vpop.permute.xlu0 %5031
            %v5035 = vunpack.c.l.s4 839922192
            %v5036 = vunpack.c.0.s8 %v5035
            %v5037 = vperm.slane %v5032, %v5036
            %5038 = vset.pattern.permute.xlu0 1
            %5039 = vperm.xlu0 %5038, %v4548
            %v5040 = vpop.permute.xlu0 %5039
            %v5043 = vunpack.c.l.s4 839922192
            %v5044 = vunpack.c.0.s8 %v5043
            %v5045 = vperm.slane %v5040, %v5044
            %5046 = vset.pattern.permute.xlu0 1
            %5047 = vperm.xlu0 %5046, %v4549
            %v5048 = vpop.permute.xlu0 %5047
            %v5051 = vunpack.c.l.s4 839922192
            %v5052 = vunpack.c.0.s8 %v5051
            %v5053 = vperm.slane %v5048, %v5052
            %5054 = vset.pattern.permute.xlu0 1
            %5055 = vperm.xlu0 %5054, %v4550
            %v5056 = vpop.permute.xlu0 %5055
            %v5059 = vunpack.c.l.s4 839922192
            %v5060 = vunpack.c.0.s8 %v5059
            %v5061 = vperm.slane %v5056, %v5060
            %5062 = vset.pattern.permute.xlu0 1
            %5063 = vperm.xlu0 %5062, %v4551
            %v5064 = vpop.permute.xlu0 %5063
            %v5067 = vunpack.c.l.s4 839922192
            %v5068 = vunpack.c.0.s8 %v5067
            %v5069 = vperm.slane %v5064, %v5068
            %5070 = vset.pattern.permute.xlu0 1
            %5071 = vperm.xlu0 %5070, %v4552
            %v5072 = vpop.permute.xlu0 %5071
            %v5075 = vunpack.c.l.s4 839922192
            %v5076 = vunpack.c.0.s8 %v5075
            %v5077 = vperm.slane %v5072, %v5076
            %5078 = vset.pattern.permute.xlu0 1
            %5079 = vperm.xlu0 %5078, %v4553
            %v5080 = vpop.permute.xlu0 %5079
            %v5083 = vunpack.c.l.s4 839922192
            %v5084 = vunpack.c.0.s8 %v5083
            %v5085 = vperm.slane %v5080, %v5084
            %5086 = vset.pattern.permute.xlu0 1
            %5087 = vperm.xlu0 %5086, %v4554
            %v5088 = vpop.permute.xlu0 %5087
            %v5091 = vunpack.c.l.s4 839922192
            %v5092 = vunpack.c.0.s8 %v5091
            %v5093 = vperm.slane %v5088, %v5092
            %5094 = vset.pattern.permute.xlu0 1
            %5095 = vperm.xlu0 %5094, %v4555
            %v5096 = vpop.permute.xlu0 %5095
            %v5099 = vunpack.c.l.s4 839922192
            %v5100 = vunpack.c.0.s8 %v5099
            %v5101 = vperm.slane %v5096, %v5100
            %5102 = vset.pattern.permute.xlu0 1
            %5103 = vperm.xlu0 %5102, %v4556
            %v5104 = vpop.permute.xlu0 %5103
            %v5107 = vunpack.c.l.s4 839922192
            %v5108 = vunpack.c.0.s8 %v5107
            %v5109 = vperm.slane %v5104, %v5108
            %5110 = vset.pattern.permute.xlu0 1
            %5111 = vperm.xlu0 %5110, %v4557
            %v5112 = vpop.permute.xlu0 %5111
            %v5115 = vunpack.c.l.s4 839922192
            %v5116 = vunpack.c.0.s8 %v5115
            %v5117 = vperm.slane %v5112, %v5116
            %v5118 = vunpack.c.l.bf16 %v4997
            %v5119 = vunpack.c.l.bf16 %v5005
            %v5120 = vunpack.c.l.bf16 %v5013
            %v5121 = vunpack.c.l.bf16 %v5021
            %v5122 = vunpack.c.l.bf16 %v5029
            %v5123 = vunpack.c.l.bf16 %v5037
            %v5124 = vunpack.c.l.bf16 %v5045
            %v5125 = vunpack.c.l.bf16 %v5053
            %v5126 = vunpack.c.l.bf16 %v5061
            %v5127 = vunpack.c.l.bf16 %v5069
            %v5128 = vunpack.c.l.bf16 %v5077
            %v5129 = vunpack.c.l.bf16 %v5085
            %v5130 = vunpack.c.l.bf16 %v5093
            %v5131 = vunpack.c.l.bf16 %v5101
            %v5132 = vunpack.c.l.bf16 %v5109
            %v5133 = vunpack.c.l.bf16 %v5117
            %v5134 = vunpack.c.l.bf16 %v4974
            %v5135 = vunpack.c.l.bf16 %v4975
            %v5136 = vunpack.c.l.bf16 %v4976
            %v5137 = vunpack.c.l.bf16 %v4977
            %v5138 = vunpack.c.l.bf16 %v4978
            %v5139 = vunpack.c.l.bf16 %v4979
            %v5140 = vunpack.c.l.bf16 %v4980
            %v5141 = vunpack.c.l.bf16 %v4981
            %v5142 = vunpack.c.l.bf16 %v4982
            %v5143 = vunpack.c.l.bf16 %v4983
            %v5144 = vunpack.c.l.bf16 %v4984
            %v5145 = vunpack.c.l.bf16 %v4985
            %v5146 = vunpack.c.l.bf16 %v4986
            %v5147 = vunpack.c.l.bf16 %v4987
            %v5148 = vunpack.c.l.bf16 %v4988
            %v5149 = vunpack.c.l.bf16 %v4989
            %v5150 = vmul.f32 %v5118, %v5134
            %v5151 = vmul.f32 %v5119, %v5135
            %v5152 = vmul.f32 %v5120, %v5136
            %v5153 = vmul.f32 %v5121, %v5137
            %v5154 = vmul.f32 %v5122, %v5138
            %v5155 = vmul.f32 %v5123, %v5139
            %v5156 = vmul.f32 %v5124, %v5140
            %v5157 = vmul.f32 %v5125, %v5141
            %v5158 = vmul.f32 %v5126, %v5142
            %v5159 = vmul.f32 %v5127, %v5143
            %v5160 = vmul.f32 %v5128, %v5144
            %v5161 = vmul.f32 %v5129, %v5145
            %v5162 = vmul.f32 %v5130, %v5146
            %v5163 = vmul.f32 %v5131, %v5147
            %v5164 = vmul.f32 %v5132, %v5148
            %v5165 = vmul.f32 %v5133, %v5149
            %v5166 = vpack.c.bf16 %v5150, %v5150
            %v5167 = vpack.c.bf16 %v5151, %v5151
            %v5168 = vpack.c.bf16 %v5152, %v5152
            %v5169 = vpack.c.bf16 %v5153, %v5153
            %v5170 = vpack.c.bf16 %v5154, %v5154
            %v5171 = vpack.c.bf16 %v5155, %v5155
            %v5172 = vpack.c.bf16 %v5156, %v5156
            %v5173 = vpack.c.bf16 %v5157, %v5157
            %v5174 = vpack.c.bf16 %v5158, %v5158
            %v5175 = vpack.c.bf16 %v5159, %v5159
            %v5176 = vpack.c.bf16 %v5160, %v5160
            %v5177 = vpack.c.bf16 %v5161, %v5161
            %v5178 = vpack.c.bf16 %v5162, %v5162
            %v5179 = vpack.c.bf16 %v5163, %v5163
            %v5180 = vpack.c.bf16 %v5164, %v5164
            %v5181 = vpack.c.bf16 %v5165, %v5165
            %v5182 = vunpack.c.l.bf16 %v5166
            %v5183 = vunpack.c.l.bf16 %v5167
            %v5184 = vunpack.c.l.bf16 %v5168
            %v5185 = vunpack.c.l.bf16 %v5169
            %v5186 = vunpack.c.l.bf16 %v5170
            %v5187 = vunpack.c.l.bf16 %v5171
            %v5188 = vunpack.c.l.bf16 %v5172
            %v5189 = vunpack.c.l.bf16 %v5173
            %v5190 = vunpack.c.l.bf16 %v5174
            %v5191 = vunpack.c.l.bf16 %v5175
            %v5192 = vunpack.c.l.bf16 %v5176
            %v5193 = vunpack.c.l.bf16 %v5177
            %v5194 = vunpack.c.l.bf16 %v5178
            %v5195 = vunpack.c.l.bf16 %v5179
            %v5196 = vunpack.c.l.bf16 %v5180
            %v5197 = vunpack.c.l.bf16 %v5181
            %v5198 = vadd.f32 %v4889, %v5182
            %v5199 = vadd.f32 %v4890, %v5183
            %v5200 = vadd.f32 %v4891, %v5184
            %v5201 = vadd.f32 %v4892, %v5185
            %v5202 = vadd.f32 %v4893, %v5186
            %v5203 = vadd.f32 %v4894, %v5187
            %v5204 = vadd.f32 %v4895, %v5188
            %v5205 = vadd.f32 %v4896, %v5189
            %v5206 = vadd.f32 %v4897, %v5190
            %v5207 = vadd.f32 %v4898, %v5191
            %v5208 = vadd.f32 %v4899, %v5192
            %v5209 = vadd.f32 %v4900, %v5193
            %v5210 = vadd.f32 %v4901, %v5194
            %v5211 = vadd.f32 %v4902, %v5195
            %v5212 = vadd.f32 %v4903, %v5196
            %v5213 = vadd.f32 %v4904, %v5197
            %v5214 = vperm.slane %v4565, 1
            %v5215 = vunpack.c.l.bf16 %v5214
            %v5216 = vadd.f32 %v4568, %v5215
            %v5217 = vadd.f32 %v4569, %v5215
            %v5218 = vadd.f32 %v4570, %v5215
            %v5219 = vadd.f32 %v4571, %v5215
            %v5220 = vadd.f32 %v4572, %v5215
            %v5221 = vadd.f32 %v4573, %v5215
            %v5222 = vadd.f32 %v4574, %v5215
            %v5223 = vadd.f32 %v4575, %v5215
            %v5224 = vadd.f32 %v4576, %v5215
            %v5225 = vadd.f32 %v4577, %v5215
            %v5226 = vadd.f32 %v4578, %v5215
            %v5227 = vadd.f32 %v4579, %v5215
            %v5228 = vadd.f32 %v4580, %v5215
            %v5229 = vadd.f32 %v4581, %v5215
            %v5230 = vadd.f32 %v4582, %v5215
            %v5231 = vadd.f32 %v4583, %v5215
            %v5232 = vpack.c.bf16 %v5216, %v5216
            %v5233 = vpack.c.bf16 %v5217, %v5217
            %v5234 = vpack.c.bf16 %v5218, %v5218
            %v5235 = vpack.c.bf16 %v5219, %v5219
            %v5236 = vpack.c.bf16 %v5220, %v5220
            %v5237 = vpack.c.bf16 %v5221, %v5221
            %v5238 = vpack.c.bf16 %v5222, %v5222
            %v5239 = vpack.c.bf16 %v5223, %v5223
            %v5240 = vpack.c.bf16 %v5224, %v5224
            %v5241 = vpack.c.bf16 %v5225, %v5225
            %v5242 = vpack.c.bf16 %v5226, %v5226
            %v5243 = vpack.c.bf16 %v5227, %v5227
            %v5244 = vpack.c.bf16 %v5228, %v5228
            %v5245 = vpack.c.bf16 %v5229, %v5229
            %v5246 = vpack.c.bf16 %v5230, %v5230
            %v5247 = vpack.c.bf16 %v5231, %v5231
            %v5248 = vunpack.c.l.bf16 %v5232
            %v5249 = vunpack.c.l.bf16 %v5233
            %v5250 = vunpack.c.l.bf16 %v5234
            %v5251 = vunpack.c.l.bf16 %v5235
            %v5252 = vunpack.c.l.bf16 %v5236
            %v5253 = vunpack.c.l.bf16 %v5237
            %v5254 = vunpack.c.l.bf16 %v5238
            %v5255 = vunpack.c.l.bf16 %v5239
            %v5256 = vunpack.c.l.bf16 %v5240
            %v5257 = vunpack.c.l.bf16 %v5241
            %v5258 = vunpack.c.l.bf16 %v5242
            %v5259 = vunpack.c.l.bf16 %v5243
            %v5260 = vunpack.c.l.bf16 %v5244
            %v5261 = vunpack.c.l.bf16 %v5245
            %v5262 = vunpack.c.l.bf16 %v5246
            %v5263 = vunpack.c.l.bf16 %v5247
            %v5264 = vmax.f32 %v5248, 0.0
            %v5265 = vmax.f32 %v5249, 0.0
            %v5266 = vmax.f32 %v5250, 0.0
            %v5267 = vmax.f32 %v5251, 0.0
            %v5268 = vmax.f32 %v5252, 0.0
            %v5269 = vmax.f32 %v5253, 0.0
            %v5270 = vmax.f32 %v5254, 0.0
            %v5271 = vmax.f32 %v5255, 0.0
            %v5272 = vmax.f32 %v5256, 0.0
            %v5273 = vmax.f32 %v5257, 0.0
            %v5274 = vmax.f32 %v5258, 0.0
            %v5275 = vmax.f32 %v5259, 0.0
            %v5276 = vmax.f32 %v5260, 0.0
            %v5277 = vmax.f32 %v5261, 0.0
            %v5278 = vmax.f32 %v5262, 0.0
            %v5279 = vmax.f32 %v5263, 0.0
            %v5280 = vpack.c.bf16 %v5264, %v5264
            %v5281 = vpack.c.bf16 %v5265, %v5265
            %v5282 = vpack.c.bf16 %v5266, %v5266
            %v5283 = vpack.c.bf16 %v5267, %v5267
            %v5284 = vpack.c.bf16 %v5268, %v5268
            %v5285 = vpack.c.bf16 %v5269, %v5269
            %v5286 = vpack.c.bf16 %v5270, %v5270
            %v5287 = vpack.c.bf16 %v5271, %v5271
            %v5288 = vpack.c.bf16 %v5272, %v5272
            %v5289 = vpack.c.bf16 %v5273, %v5273
            %v5290 = vpack.c.bf16 %v5274, %v5274
            %v5291 = vpack.c.bf16 %v5275, %v5275
            %v5292 = vpack.c.bf16 %v5276, %v5276
            %v5293 = vpack.c.bf16 %v5277, %v5277
            %v5294 = vpack.c.bf16 %v5278, %v5278
            %v5295 = vpack.c.bf16 %v5279, %v5279
            %5296 = vset.pattern.permute.xlu0 2
            %5297 = vperm.xlu0 %5296, %v4542
            %v5298 = vpop.permute.xlu0 %5297
            %v5301 = vunpack.c.l.s4 839922192
            %v5302 = vunpack.c.0.s8 %v5301
            %v5303 = vperm.slane %v5298, %v5302
            %5304 = vset.pattern.permute.xlu0 2
            %5305 = vperm.xlu0 %5304, %v4543
            %v5306 = vpop.permute.xlu0 %5305
            %v5309 = vunpack.c.l.s4 839922192
            %v5310 = vunpack.c.0.s8 %v5309
            %v5311 = vperm.slane %v5306, %v5310
            %5312 = vset.pattern.permute.xlu0 2
            %5313 = vperm.xlu0 %5312, %v4544
            %v5314 = vpop.permute.xlu0 %5313
            %v5317 = vunpack.c.l.s4 839922192
            %v5318 = vunpack.c.0.s8 %v5317
            %v5319 = vperm.slane %v5314, %v5318
            %5320 = vset.pattern.permute.xlu0 2
            %5321 = vperm.xlu0 %5320, %v4545
            %v5322 = vpop.permute.xlu0 %5321
            %v5325 = vunpack.c.l.s4 839922192
            %v5326 = vunpack.c.0.s8 %v5325
            %v5327 = vperm.slane %v5322, %v5326
            %5328 = vset.pattern.permute.xlu0 2
            %5329 = vperm.xlu0 %5328, %v4546
            %v5330 = vpop.permute.xlu0 %5329
            %v5333 = vunpack.c.l.s4 839922192
            %v5334 = vunpack.c.0.s8 %v5333
            %v5335 = vperm.slane %v5330, %v5334
            %5336 = vset.pattern.permute.xlu0 2
            %5337 = vperm.xlu0 %5336, %v4547
            %v5338 = vpop.permute.xlu0 %5337
            %v5341 = vunpack.c.l.s4 839922192
            %v5342 = vunpack.c.0.s8 %v5341
            %v5343 = vperm.slane %v5338, %v5342
            %5344 = vset.pattern.permute.xlu0 2
            %5345 = vperm.xlu0 %5344, %v4548
            %v5346 = vpop.permute.xlu0 %5345
            %v5349 = vunpack.c.l.s4 839922192
            %v5350 = vunpack.c.0.s8 %v5349
            %v5351 = vperm.slane %v5346, %v5350
            %5352 = vset.pattern.permute.xlu0 2
            %5353 = vperm.xlu0 %5352, %v4549
            %v5354 = vpop.permute.xlu0 %5353
            %v5357 = vunpack.c.l.s4 839922192
            %v5358 = vunpack.c.0.s8 %v5357
            %v5359 = vperm.slane %v5354, %v5358
            %5360 = vset.pattern.permute.xlu0 2
            %5361 = vperm.xlu0 %5360, %v4550
            %v5362 = vpop.permute.xlu0 %5361
            %v5365 = vunpack.c.l.s4 839922192
            %v5366 = vunpack.c.0.s8 %v5365
            %v5367 = vperm.slane %v5362, %v5366
            %5368 = vset.pattern.permute.xlu0 2
            %5369 = vperm.xlu0 %5368, %v4551
            %v5370 = vpop.permute.xlu0 %5369
            %v5373 = vunpack.c.l.s4 839922192
            %v5374 = vunpack.c.0.s8 %v5373
            %v5375 = vperm.slane %v5370, %v5374
            %5376 = vset.pattern.permute.xlu0 2
            %5377 = vperm.xlu0 %5376, %v4552
            %v5378 = vpop.permute.xlu0 %5377
            %v5381 = vunpack.c.l.s4 839922192
            %v5382 = vunpack.c.0.s8 %v5381
            %v5383 = vperm.slane %v5378, %v5382
            %5384 = vset.pattern.permute.xlu0 2
            %5385 = vperm.xlu0 %5384, %v4553
            %v5386 = vpop.permute.xlu0 %5385
            %v5389 = vunpack.c.l.s4 839922192
            %v5390 = vunpack.c.0.s8 %v5389
            %v5391 = vperm.slane %v5386, %v5390
            %5392 = vset.pattern.permute.xlu0 2
            %5393 = vperm.xlu0 %5392, %v4554
            %v5394 = vpop.permute.xlu0 %5393
            %v5397 = vunpack.c.l.s4 839922192
            %v5398 = vunpack.c.0.s8 %v5397
            %v5399 = vperm.slane %v5394, %v5398
            %5400 = vset.pattern.permute.xlu0 2
            %5401 = vperm.xlu0 %5400, %v4555
            %v5402 = vpop.permute.xlu0 %5401
            %v5405 = vunpack.c.l.s4 839922192
            %v5406 = vunpack.c.0.s8 %v5405
            %v5407 = vperm.slane %v5402, %v5406
            %5408 = vset.pattern.permute.xlu0 2
            %5409 = vperm.xlu0 %5408, %v4556
            %v5410 = vpop.permute.xlu0 %5409
            %v5413 = vunpack.c.l.s4 839922192
            %v5414 = vunpack.c.0.s8 %v5413
            %v5415 = vperm.slane %v5410, %v5414
            %5416 = vset.pattern.permute.xlu0 2
            %5417 = vperm.xlu0 %5416, %v4557
            %v5418 = vpop.permute.xlu0 %5417
            %v5421 = vunpack.c.l.s4 839922192
            %v5422 = vunpack.c.0.s8 %v5421
            %v5423 = vperm.slane %v5418, %v5422
            %v5424 = vunpack.c.l.bf16 %v5303
            %v5425 = vunpack.c.l.bf16 %v5311
            %v5426 = vunpack.c.l.bf16 %v5319
            %v5427 = vunpack.c.l.bf16 %v5327
            %v5428 = vunpack.c.l.bf16 %v5335
            %v5429 = vunpack.c.l.bf16 %v5343
            %v5430 = vunpack.c.l.bf16 %v5351
            %v5431 = vunpack.c.l.bf16 %v5359
            %v5432 = vunpack.c.l.bf16 %v5367
            %v5433 = vunpack.c.l.bf16 %v5375
            %v5434 = vunpack.c.l.bf16 %v5383
            %v5435 = vunpack.c.l.bf16 %v5391
            %v5436 = vunpack.c.l.bf16 %v5399
            %v5437 = vunpack.c.l.bf16 %v5407
            %v5438 = vunpack.c.l.bf16 %v5415
            %v5439 = vunpack.c.l.bf16 %v5423
            %v5440 = vunpack.c.l.bf16 %v5280
            %v5441 = vunpack.c.l.bf16 %v5281
            %v5442 = vunpack.c.l.bf16 %v5282
            %v5443 = vunpack.c.l.bf16 %v5283
            %v5444 = vunpack.c.l.bf16 %v5284
            %v5445 = vunpack.c.l.bf16 %v5285
            %v5446 = vunpack.c.l.bf16 %v5286
            %v5447 = vunpack.c.l.bf16 %v5287
            %v5448 = vunpack.c.l.bf16 %v5288
            %v5449 = vunpack.c.l.bf16 %v5289
            %v5450 = vunpack.c.l.bf16 %v5290
            %v5451 = vunpack.c.l.bf16 %v5291
            %v5452 = vunpack.c.l.bf16 %v5292
            %v5453 = vunpack.c.l.bf16 %v5293
            %v5454 = vunpack.c.l.bf16 %v5294
            %v5455 = vunpack.c.l.bf16 %v5295
            %v5456 = vmul.f32 %v5424, %v5440
            %v5457 = vmul.f32 %v5425, %v5441
            %v5458 = vmul.f32 %v5426, %v5442
            %v5459 = vmul.f32 %v5427, %v5443
            %v5460 = vmul.f32 %v5428, %v5444
            %v5461 = vmul.f32 %v5429, %v5445
            %v5462 = vmul.f32 %v5430, %v5446
            %v5463 = vmul.f32 %v5431, %v5447
            %v5464 = vmul.f32 %v5432, %v5448
            %v5465 = vmul.f32 %v5433, %v5449
            %v5466 = vmul.f32 %v5434, %v5450
            %v5467 = vmul.f32 %v5435, %v5451
            %v5468 = vmul.f32 %v5436, %v5452
            %v5469 = vmul.f32 %v5437, %v5453
            %v5470 = vmul.f32 %v5438, %v5454
            %v5471 = vmul.f32 %v5439, %v5455
            %v5472 = vpack.c.bf16 %v5456, %v5456
            %v5473 = vpack.c.bf16 %v5457, %v5457
            %v5474 = vpack.c.bf16 %v5458, %v5458
            %v5475 = vpack.c.bf16 %v5459, %v5459
            %v5476 = vpack.c.bf16 %v5460, %v5460
            %v5477 = vpack.c.bf16 %v5461, %v5461
            %v5478 = vpack.c.bf16 %v5462, %v5462
            %v5479 = vpack.c.bf16 %v5463, %v5463
            %v5480 = vpack.c.bf16 %v5464, %v5464
            %v5481 = vpack.c.bf16 %v5465, %v5465
            %v5482 = vpack.c.bf16 %v5466, %v5466
            %v5483 = vpack.c.bf16 %v5467, %v5467
            %v5484 = vpack.c.bf16 %v5468, %v5468
            %v5485 = vpack.c.bf16 %v5469, %v5469
            %v5486 = vpack.c.bf16 %v5470, %v5470
            %v5487 = vpack.c.bf16 %v5471, %v5471
            %v5488 = vunpack.c.l.bf16 %v5472
            %v5489 = vunpack.c.l.bf16 %v5473
            %v5490 = vunpack.c.l.bf16 %v5474
            %v5491 = vunpack.c.l.bf16 %v5475
            %v5492 = vunpack.c.l.bf16 %v5476
            %v5493 = vunpack.c.l.bf16 %v5477
            %v5494 = vunpack.c.l.bf16 %v5478
            %v5495 = vunpack.c.l.bf16 %v5479
            %v5496 = vunpack.c.l.bf16 %v5480
            %v5497 = vunpack.c.l.bf16 %v5481
            %v5498 = vunpack.c.l.bf16 %v5482
            %v5499 = vunpack.c.l.bf16 %v5483
            %v5500 = vunpack.c.l.bf16 %v5484
            %v5501 = vunpack.c.l.bf16 %v5485
            %v5502 = vunpack.c.l.bf16 %v5486
            %v5503 = vunpack.c.l.bf16 %v5487
            %v5504 = vadd.f32 %v5198, %v5488
            %v5505 = vadd.f32 %v5199, %v5489
            %v5506 = vadd.f32 %v5200, %v5490
            %v5507 = vadd.f32 %v5201, %v5491
            %v5508 = vadd.f32 %v5202, %v5492
            %v5509 = vadd.f32 %v5203, %v5493
            %v5510 = vadd.f32 %v5204, %v5494
            %v5511 = vadd.f32 %v5205, %v5495
            %v5512 = vadd.f32 %v5206, %v5496
            %v5513 = vadd.f32 %v5207, %v5497
            %v5514 = vadd.f32 %v5208, %v5498
            %v5515 = vadd.f32 %v5209, %v5499
            %v5516 = vadd.f32 %v5210, %v5500
            %v5517 = vadd.f32 %v5211, %v5501
            %v5518 = vadd.f32 %v5212, %v5502
            %v5519 = vadd.f32 %v5213, %v5503
            %v5520 = vperm.slane %v4906, 1
            %v5521 = vunpack.c.l.bf16 %v5520
            %v5522 = vadd.f32 %v4568, %v5521
            %v5523 = vadd.f32 %v4569, %v5521
            %v5524 = vadd.f32 %v4570, %v5521
            %v5525 = vadd.f32 %v4571, %v5521
            %v5526 = vadd.f32 %v4572, %v5521
            %v5527 = vadd.f32 %v4573, %v5521
            %v5528 = vadd.f32 %v4574, %v5521
            %v5529 = vadd.f32 %v4575, %v5521
            %v5530 = vadd.f32 %v4576, %v5521
            %v5531 = vadd.f32 %v4577, %v5521
            %v5532 = vadd.f32 %v4578, %v5521
            %v5533 = vadd.f32 %v4579, %v5521
            %v5534 = vadd.f32 %v4580, %v5521
            %v5535 = vadd.f32 %v4581, %v5521
            %v5536 = vadd.f32 %v4582, %v5521
            %v5537 = vadd.f32 %v4583, %v5521
            %v5538 = vpack.c.bf16 %v5522, %v5522
            %v5539 = vpack.c.bf16 %v5523, %v5523
            %v5540 = vpack.c.bf16 %v5524, %v5524
            %v5541 = vpack.c.bf16 %v5525, %v5525
            %v5542 = vpack.c.bf16 %v5526, %v5526
            %v5543 = vpack.c.bf16 %v5527, %v5527
            %v5544 = vpack.c.bf16 %v5528, %v5528
            %v5545 = vpack.c.bf16 %v5529, %v5529
            %v5546 = vpack.c.bf16 %v5530, %v5530
            %v5547 = vpack.c.bf16 %v5531, %v5531
            %v5548 = vpack.c.bf16 %v5532, %v5532
            %v5549 = vpack.c.bf16 %v5533, %v5533
            %v5550 = vpack.c.bf16 %v5534, %v5534
            %v5551 = vpack.c.bf16 %v5535, %v5535
            %v5552 = vpack.c.bf16 %v5536, %v5536
            %v5553 = vpack.c.bf16 %v5537, %v5537
            %v5554 = vunpack.c.l.bf16 %v5538
            %v5555 = vunpack.c.l.bf16 %v5539
            %v5556 = vunpack.c.l.bf16 %v5540
            %v5557 = vunpack.c.l.bf16 %v5541
            %v5558 = vunpack.c.l.bf16 %v5542
            %v5559 = vunpack.c.l.bf16 %v5543
            %v5560 = vunpack.c.l.bf16 %v5544
            %v5561 = vunpack.c.l.bf16 %v5545
            %v5562 = vunpack.c.l.bf16 %v5546
            %v5563 = vunpack.c.l.bf16 %v5547
            %v5564 = vunpack.c.l.bf16 %v5548
            %v5565 = vunpack.c.l.bf16 %v5549
            %v5566 = vunpack.c.l.bf16 %v5550
            %v5567 = vunpack.c.l.bf16 %v5551
            %v5568 = vunpack.c.l.bf16 %v5552
            %v5569 = vunpack.c.l.bf16 %v5553
            %v5570 = vmax.f32 %v5554, 0.0
            %v5571 = vmax.f32 %v5555, 0.0
            %v5572 = vmax.f32 %v5556, 0.0
            %v5573 = vmax.f32 %v5557, 0.0
            %v5574 = vmax.f32 %v5558, 0.0
            %v5575 = vmax.f32 %v5559, 0.0
            %v5576 = vmax.f32 %v5560, 0.0
            %v5577 = vmax.f32 %v5561, 0.0
            %v5578 = vmax.f32 %v5562, 0.0
            %v5579 = vmax.f32 %v5563, 0.0
            %v5580 = vmax.f32 %v5564, 0.0
            %v5581 = vmax.f32 %v5565, 0.0
            %v5582 = vmax.f32 %v5566, 0.0
            %v5583 = vmax.f32 %v5567, 0.0
            %v5584 = vmax.f32 %v5568, 0.0
            %v5585 = vmax.f32 %v5569, 0.0
            %v5586 = vpack.c.bf16 %v5570, %v5570
            %v5587 = vpack.c.bf16 %v5571, %v5571
            %v5588 = vpack.c.bf16 %v5572, %v5572
            %v5589 = vpack.c.bf16 %v5573, %v5573
            %v5590 = vpack.c.bf16 %v5574, %v5574
            %v5591 = vpack.c.bf16 %v5575, %v5575
            %v5592 = vpack.c.bf16 %v5576, %v5576
            %v5593 = vpack.c.bf16 %v5577, %v5577
            %v5594 = vpack.c.bf16 %v5578, %v5578
            %v5595 = vpack.c.bf16 %v5579, %v5579
            %v5596 = vpack.c.bf16 %v5580, %v5580
            %v5597 = vpack.c.bf16 %v5581, %v5581
            %v5598 = vpack.c.bf16 %v5582, %v5582
            %v5599 = vpack.c.bf16 %v5583, %v5583
            %v5600 = vpack.c.bf16 %v5584, %v5584
            %v5601 = vpack.c.bf16 %v5585, %v5585
            %5602 = vset.pattern.permute.xlu0 3
            %5603 = vperm.xlu0 %5602, %v4542
            %v5604 = vpop.permute.xlu0 %5603
            %v5607 = vunpack.c.l.s4 839922192
            %v5608 = vunpack.c.0.s8 %v5607
            %v5609 = vperm.slane %v5604, %v5608
            %5610 = vset.pattern.permute.xlu0 3
            %5611 = vperm.xlu0 %5610, %v4543
            %v5612 = vpop.permute.xlu0 %5611
            %v5615 = vunpack.c.l.s4 839922192
            %v5616 = vunpack.c.0.s8 %v5615
            %v5617 = vperm.slane %v5612, %v5616
            %5618 = vset.pattern.permute.xlu0 3
            %5619 = vperm.xlu0 %5618, %v4544
            %v5620 = vpop.permute.xlu0 %5619
            %v5623 = vunpack.c.l.s4 839922192
            %v5624 = vunpack.c.0.s8 %v5623
            %v5625 = vperm.slane %v5620, %v5624
            %5626 = vset.pattern.permute.xlu0 3
            %5627 = vperm.xlu0 %5626, %v4545
            %v5628 = vpop.permute.xlu0 %5627
            %v5631 = vunpack.c.l.s4 839922192
            %v5632 = vunpack.c.0.s8 %v5631
            %v5633 = vperm.slane %v5628, %v5632
            %5634 = vset.pattern.permute.xlu0 3
            %5635 = vperm.xlu0 %5634, %v4546
            %v5636 = vpop.permute.xlu0 %5635
            %v5639 = vunpack.c.l.s4 839922192
            %v5640 = vunpack.c.0.s8 %v5639
            %v5641 = vperm.slane %v5636, %v5640
            %5642 = vset.pattern.permute.xlu0 3
            %5643 = vperm.xlu0 %5642, %v4547
            %v5644 = vpop.permute.xlu0 %5643
            %v5647 = vunpack.c.l.s4 839922192
            %v5648 = vunpack.c.0.s8 %v5647
            %v5649 = vperm.slane %v5644, %v5648
            %5650 = vset.pattern.permute.xlu0 3
            %5651 = vperm.xlu0 %5650, %v4548
            %v5652 = vpop.permute.xlu0 %5651
            %v5655 = vunpack.c.l.s4 839922192
            %v5656 = vunpack.c.0.s8 %v5655
            %v5657 = vperm.slane %v5652, %v5656
            %5658 = vset.pattern.permute.xlu0 3
            %5659 = vperm.xlu0 %5658, %v4549
            %v5660 = vpop.permute.xlu0 %5659
            %v5663 = vunpack.c.l.s4 839922192
            %v5664 = vunpack.c.0.s8 %v5663
            %v5665 = vperm.slane %v5660, %v5664
            %5666 = vset.pattern.permute.xlu0 3
            %5667 = vperm.xlu0 %5666, %v4550
            %v5668 = vpop.permute.xlu0 %5667
            %v5671 = vunpack.c.l.s4 839922192
            %v5672 = vunpack.c.0.s8 %v5671
            %v5673 = vperm.slane %v5668, %v5672
            %5674 = vset.pattern.permute.xlu0 3
            %5675 = vperm.xlu0 %5674, %v4551
            %v5676 = vpop.permute.xlu0 %5675
            %v5679 = vunpack.c.l.s4 839922192
            %v5680 = vunpack.c.0.s8 %v5679
            %v5681 = vperm.slane %v5676, %v5680
            %5682 = vset.pattern.permute.xlu0 3
            %5683 = vperm.xlu0 %5682, %v4552
            %v5684 = vpop.permute.xlu0 %5683
            %v5687 = vunpack.c.l.s4 839922192
            %v5688 = vunpack.c.0.s8 %v5687
            %v5689 = vperm.slane %v5684, %v5688
            %5690 = vset.pattern.permute.xlu0 3
            %5691 = vperm.xlu0 %5690, %v4553
            %v5692 = vpop.permute.xlu0 %5691
            %v5695 = vunpack.c.l.s4 839922192
            %v5696 = vunpack.c.0.s8 %v5695
            %v5697 = vperm.slane %v5692, %v5696
            %5698 = vset.pattern.permute.xlu0 3
            %5699 = vperm.xlu0 %5698, %v4554
            %v5700 = vpop.permute.xlu0 %5699
            %v5703 = vunpack.c.l.s4 839922192
            %v5704 = vunpack.c.0.s8 %v5703
            %v5705 = vperm.slane %v5700, %v5704
            %5706 = vset.pattern.permute.xlu0 3
            %5707 = vperm.xlu0 %5706, %v4555
            %v5708 = vpop.permute.xlu0 %5707
            %v5711 = vunpack.c.l.s4 839922192
            %v5712 = vunpack.c.0.s8 %v5711
            %v5713 = vperm.slane %v5708, %v5712
            %5714 = vset.pattern.permute.xlu0 3
            %5715 = vperm.xlu0 %5714, %v4556
            %v5716 = vpop.permute.xlu0 %5715
            %v5719 = vunpack.c.l.s4 839922192
            %v5720 = vunpack.c.0.s8 %v5719
            %v5721 = vperm.slane %v5716, %v5720
            %5722 = vset.pattern.permute.xlu0 3
            %5723 = vperm.xlu0 %5722, %v4557
            %v5724 = vpop.permute.xlu0 %5723
            %v5727 = vunpack.c.l.s4 839922192
            %v5728 = vunpack.c.0.s8 %v5727
            %v5729 = vperm.slane %v5724, %v5728
            %v5730 = vunpack.c.l.bf16 %v5609
            %v5731 = vunpack.c.l.bf16 %v5617
            %v5732 = vunpack.c.l.bf16 %v5625
            %v5733 = vunpack.c.l.bf16 %v5633
            %v5734 = vunpack.c.l.bf16 %v5641
            %v5735 = vunpack.c.l.bf16 %v5649
            %v5736 = vunpack.c.l.bf16 %v5657
            %v5737 = vunpack.c.l.bf16 %v5665
            %v5738 = vunpack.c.l.bf16 %v5673
            %v5739 = vunpack.c.l.bf16 %v5681
            %v5740 = vunpack.c.l.bf16 %v5689
            %v5741 = vunpack.c.l.bf16 %v5697
            %v5742 = vunpack.c.l.bf16 %v5705
            %v5743 = vunpack.c.l.bf16 %v5713
            %v5744 = vunpack.c.l.bf16 %v5721
            %v5745 = vunpack.c.l.bf16 %v5729
            %v5746 = vunpack.c.l.bf16 %v5586
            %v5747 = vunpack.c.l.bf16 %v5587
            %v5748 = vunpack.c.l.bf16 %v5588
            %v5749 = vunpack.c.l.bf16 %v5589
            %v5750 = vunpack.c.l.bf16 %v5590
            %v5751 = vunpack.c.l.bf16 %v5591
            %v5752 = vunpack.c.l.bf16 %v5592
            %v5753 = vunpack.c.l.bf16 %v5593
            %v5754 = vunpack.c.l.bf16 %v5594
            %v5755 = vunpack.c.l.bf16 %v5595
            %v5756 = vunpack.c.l.bf16 %v5596
            %v5757 = vunpack.c.l.bf16 %v5597
            %v5758 = vunpack.c.l.bf16 %v5598
            %v5759 = vunpack.c.l.bf16 %v5599
            %v5760 = vunpack.c.l.bf16 %v5600
            %v5761 = vunpack.c.l.bf16 %v5601
            %v5762 = vmul.f32 %v5730, %v5746
            %v5763 = vmul.f32 %v5731, %v5747
            %v5764 = vmul.f32 %v5732, %v5748
            %v5765 = vmul.f32 %v5733, %v5749
            %v5766 = vmul.f32 %v5734, %v5750
            %v5767 = vmul.f32 %v5735, %v5751
            %v5768 = vmul.f32 %v5736, %v5752
            %v5769 = vmul.f32 %v5737, %v5753
            %v5770 = vmul.f32 %v5738, %v5754
            %v5771 = vmul.f32 %v5739, %v5755
            %v5772 = vmul.f32 %v5740, %v5756
            %v5773 = vmul.f32 %v5741, %v5757
            %v5774 = vmul.f32 %v5742, %v5758
            %v5775 = vmul.f32 %v5743, %v5759
            %v5776 = vmul.f32 %v5744, %v5760
            %v5777 = vmul.f32 %v5745, %v5761
            %v5778 = vpack.c.bf16 %v5762, %v5762
            %v5779 = vpack.c.bf16 %v5763, %v5763
            %v5780 = vpack.c.bf16 %v5764, %v5764
            %v5781 = vpack.c.bf16 %v5765, %v5765
            %v5782 = vpack.c.bf16 %v5766, %v5766
            %v5783 = vpack.c.bf16 %v5767, %v5767
            %v5784 = vpack.c.bf16 %v5768, %v5768
            %v5785 = vpack.c.bf16 %v5769, %v5769
            %v5786 = vpack.c.bf16 %v5770, %v5770
            %v5787 = vpack.c.bf16 %v5771, %v5771
            %v5788 = vpack.c.bf16 %v5772, %v5772
            %v5789 = vpack.c.bf16 %v5773, %v5773
            %v5790 = vpack.c.bf16 %v5774, %v5774
            %v5791 = vpack.c.bf16 %v5775, %v5775
            %v5792 = vpack.c.bf16 %v5776, %v5776
            %v5793 = vpack.c.bf16 %v5777, %v5777
            %v5794 = vunpack.c.l.bf16 %v5778
            %v5795 = vunpack.c.l.bf16 %v5779
            %v5796 = vunpack.c.l.bf16 %v5780
            %v5797 = vunpack.c.l.bf16 %v5781
            %v5798 = vunpack.c.l.bf16 %v5782
            %v5799 = vunpack.c.l.bf16 %v5783
            %v5800 = vunpack.c.l.bf16 %v5784
            %v5801 = vunpack.c.l.bf16 %v5785
            %v5802 = vunpack.c.l.bf16 %v5786
            %v5803 = vunpack.c.l.bf16 %v5787
            %v5804 = vunpack.c.l.bf16 %v5788
            %v5805 = vunpack.c.l.bf16 %v5789
            %v5806 = vunpack.c.l.bf16 %v5790
            %v5807 = vunpack.c.l.bf16 %v5791
            %v5808 = vunpack.c.l.bf16 %v5792
            %v5809 = vunpack.c.l.bf16 %v5793
            %v5810 = vadd.f32 %v5504, %v5794
            %v5811 = vadd.f32 %v5505, %v5795
            %v5812 = vadd.f32 %v5506, %v5796
            %v5813 = vadd.f32 %v5507, %v5797
            %v5814 = vadd.f32 %v5508, %v5798
            %v5815 = vadd.f32 %v5509, %v5799
            %v5816 = vadd.f32 %v5510, %v5800
            %v5817 = vadd.f32 %v5511, %v5801
            %v5818 = vadd.f32 %v5512, %v5802
            %v5819 = vadd.f32 %v5513, %v5803
            %v5820 = vadd.f32 %v5514, %v5804
            %v5821 = vadd.f32 %v5515, %v5805
            %v5822 = vadd.f32 %v5516, %v5806
            %v5823 = vadd.f32 %v5517, %v5807
            %v5824 = vadd.f32 %v5518, %v5808
            %v5825 = vadd.f32 %v5519, %v5809
            %v5826 = vperm.slane %v4565, 2
            %v5827 = vunpack.c.l.bf16 %v5826
            %v5828 = vadd.f32 %v4568, %v5827
            %v5829 = vadd.f32 %v4569, %v5827
            %v5830 = vadd.f32 %v4570, %v5827
            %v5831 = vadd.f32 %v4571, %v5827
            %v5832 = vadd.f32 %v4572, %v5827
            %v5833 = vadd.f32 %v4573, %v5827
            %v5834 = vadd.f32 %v4574, %v5827
            %v5835 = vadd.f32 %v4575, %v5827
            %v5836 = vadd.f32 %v4576, %v5827
            %v5837 = vadd.f32 %v4577, %v5827
            %v5838 = vadd.f32 %v4578, %v5827
            %v5839 = vadd.f32 %v4579, %v5827
            %v5840 = vadd.f32 %v4580, %v5827
            %v5841 = vadd.f32 %v4581, %v5827
            %v5842 = vadd.f32 %v4582, %v5827
            %v5843 = vadd.f32 %v4583, %v5827
            %v5844 = vpack.c.bf16 %v5828, %v5828
            %v5845 = vpack.c.bf16 %v5829, %v5829
            %v5846 = vpack.c.bf16 %v5830, %v5830
            %v5847 = vpack.c.bf16 %v5831, %v5831
            %v5848 = vpack.c.bf16 %v5832, %v5832
            %v5849 = vpack.c.bf16 %v5833, %v5833
            %v5850 = vpack.c.bf16 %v5834, %v5834
            %v5851 = vpack.c.bf16 %v5835, %v5835
            %v5852 = vpack.c.bf16 %v5836, %v5836
            %v5853 = vpack.c.bf16 %v5837, %v5837
            %v5854 = vpack.c.bf16 %v5838, %v5838
            %v5855 = vpack.c.bf16 %v5839, %v5839
            %v5856 = vpack.c.bf16 %v5840, %v5840
            %v5857 = vpack.c.bf16 %v5841, %v5841
            %v5858 = vpack.c.bf16 %v5842, %v5842
            %v5859 = vpack.c.bf16 %v5843, %v5843
            %v5860 = vunpack.c.l.bf16 %v5844
            %v5861 = vunpack.c.l.bf16 %v5845
            %v5862 = vunpack.c.l.bf16 %v5846
            %v5863 = vunpack.c.l.bf16 %v5847
            %v5864 = vunpack.c.l.bf16 %v5848
            %v5865 = vunpack.c.l.bf16 %v5849
            %v5866 = vunpack.c.l.bf16 %v5850
            %v5867 = vunpack.c.l.bf16 %v5851
            %v5868 = vunpack.c.l.bf16 %v5852
            %v5869 = vunpack.c.l.bf16 %v5853
            %v5870 = vunpack.c.l.bf16 %v5854
            %v5871 = vunpack.c.l.bf16 %v5855
            %v5872 = vunpack.c.l.bf16 %v5856
            %v5873 = vunpack.c.l.bf16 %v5857
            %v5874 = vunpack.c.l.bf16 %v5858
            %v5875 = vunpack.c.l.bf16 %v5859
            %v5876 = vmax.f32 %v5860, 0.0
            %v5877 = vmax.f32 %v5861, 0.0
            %v5878 = vmax.f32 %v5862, 0.0
            %v5879 = vmax.f32 %v5863, 0.0
            %v5880 = vmax.f32 %v5864, 0.0
            %v5881 = vmax.f32 %v5865, 0.0
            %v5882 = vmax.f32 %v5866, 0.0
            %v5883 = vmax.f32 %v5867, 0.0
            %v5884 = vmax.f32 %v5868, 0.0
            %v5885 = vmax.f32 %v5869, 0.0
            %v5886 = vmax.f32 %v5870, 0.0
            %v5887 = vmax.f32 %v5871, 0.0
            %v5888 = vmax.f32 %v5872, 0.0
            %v5889 = vmax.f32 %v5873, 0.0
            %v5890 = vmax.f32 %v5874, 0.0
            %v5891 = vmax.f32 %v5875, 0.0
            %v5892 = vpack.c.bf16 %v5876, %v5876
            %v5893 = vpack.c.bf16 %v5877, %v5877
            %v5894 = vpack.c.bf16 %v5878, %v5878
            %v5895 = vpack.c.bf16 %v5879, %v5879
            %v5896 = vpack.c.bf16 %v5880, %v5880
            %v5897 = vpack.c.bf16 %v5881, %v5881
            %v5898 = vpack.c.bf16 %v5882, %v5882
            %v5899 = vpack.c.bf16 %v5883, %v5883
            %v5900 = vpack.c.bf16 %v5884, %v5884
            %v5901 = vpack.c.bf16 %v5885, %v5885
            %v5902 = vpack.c.bf16 %v5886, %v5886
            %v5903 = vpack.c.bf16 %v5887, %v5887
            %v5904 = vpack.c.bf16 %v5888, %v5888
            %v5905 = vpack.c.bf16 %v5889, %v5889
            %v5906 = vpack.c.bf16 %v5890, %v5890
            %v5907 = vpack.c.bf16 %v5891, %v5891
            %5908 = vset.pattern.permute.xlu0 4
            %5909 = vperm.xlu0 %5908, %v4542
            %v5910 = vpop.permute.xlu0 %5909
            %v5913 = vunpack.c.l.s4 839922192
            %v5914 = vunpack.c.0.s8 %v5913
            %v5915 = vperm.slane %v5910, %v5914
            %5916 = vset.pattern.permute.xlu0 4
            %5917 = vperm.xlu0 %5916, %v4543
            %v5918 = vpop.permute.xlu0 %5917
            %v5921 = vunpack.c.l.s4 839922192
            %v5922 = vunpack.c.0.s8 %v5921
            %v5923 = vperm.slane %v5918, %v5922
            %5924 = vset.pattern.permute.xlu0 4
            %5925 = vperm.xlu0 %5924, %v4544
            %v5926 = vpop.permute.xlu0 %5925
            %v5929 = vunpack.c.l.s4 839922192
            %v5930 = vunpack.c.0.s8 %v5929
            %v5931 = vperm.slane %v5926, %v5930
            %5932 = vset.pattern.permute.xlu0 4
            %5933 = vperm.xlu0 %5932, %v4545
            %v5934 = vpop.permute.xlu0 %5933
            %v5937 = vunpack.c.l.s4 839922192
            %v5938 = vunpack.c.0.s8 %v5937
            %v5939 = vperm.slane %v5934, %v5938
            %5940 = vset.pattern.permute.xlu0 4
            %5941 = vperm.xlu0 %5940, %v4546
            %v5942 = vpop.permute.xlu0 %5941
            %v5945 = vunpack.c.l.s4 839922192
            %v5946 = vunpack.c.0.s8 %v5945
            %v5947 = vperm.slane %v5942, %v5946
            %5948 = vset.pattern.permute.xlu0 4
            %5949 = vperm.xlu0 %5948, %v4547
            %v5950 = vpop.permute.xlu0 %5949
            %v5953 = vunpack.c.l.s4 839922192
            %v5954 = vunpack.c.0.s8 %v5953
            %v5955 = vperm.slane %v5950, %v5954
            %5956 = vset.pattern.permute.xlu0 4
            %5957 = vperm.xlu0 %5956, %v4548
            %v5958 = vpop.permute.xlu0 %5957
            %v5961 = vunpack.c.l.s4 839922192
            %v5962 = vunpack.c.0.s8 %v5961
            %v5963 = vperm.slane %v5958, %v5962
            %5964 = vset.pattern.permute.xlu0 4
            %5965 = vperm.xlu0 %5964, %v4549
            %v5966 = vpop.permute.xlu0 %5965
            %v5969 = vunpack.c.l.s4 839922192
            %v5970 = vunpack.c.0.s8 %v5969
            %v5971 = vperm.slane %v5966, %v5970
            %5972 = vset.pattern.permute.xlu0 4
            %5973 = vperm.xlu0 %5972, %v4550
            %v5974 = vpop.permute.xlu0 %5973
            %v5977 = vunpack.c.l.s4 839922192
            %v5978 = vunpack.c.0.s8 %v5977
            %v5979 = vperm.slane %v5974, %v5978
            %5980 = vset.pattern.permute.xlu0 4
            %5981 = vperm.xlu0 %5980, %v4551
            %v5982 = vpop.permute.xlu0 %5981
            %v5985 = vunpack.c.l.s4 839922192
            %v5986 = vunpack.c.0.s8 %v5985
            %v5987 = vperm.slane %v5982, %v5986
            %5988 = vset.pattern.permute.xlu0 4
            %5989 = vperm.xlu0 %5988, %v4552
            %v5990 = vpop.permute.xlu0 %5989
            %v5993 = vunpack.c.l.s4 839922192
            %v5994 = vunpack.c.0.s8 %v5993
            %v5995 = vperm.slane %v5990, %v5994
            %5996 = vset.pattern.permute.xlu0 4
            %5997 = vperm.xlu0 %5996, %v4553
            %v5998 = vpop.permute.xlu0 %5997
            %v6001 = vunpack.c.l.s4 839922192
            %v6002 = vunpack.c.0.s8 %v6001
            %v6003 = vperm.slane %v5998, %v6002
            %6004 = vset.pattern.permute.xlu0 4
            %6005 = vperm.xlu0 %6004, %v4554
            %v6006 = vpop.permute.xlu0 %6005
            %v6009 = vunpack.c.l.s4 839922192
            %v6010 = vunpack.c.0.s8 %v6009
            %v6011 = vperm.slane %v6006, %v6010
            %6012 = vset.pattern.permute.xlu0 4
            %6013 = vperm.xlu0 %6012, %v4555
            %v6014 = vpop.permute.xlu0 %6013
            %v6017 = vunpack.c.l.s4 839922192
            %v6018 = vunpack.c.0.s8 %v6017
            %v6019 = vperm.slane %v6014, %v6018
            %6020 = vset.pattern.permute.xlu0 4
            %6021 = vperm.xlu0 %6020, %v4556
            %v6022 = vpop.permute.xlu0 %6021
            %v6025 = vunpack.c.l.s4 839922192
            %v6026 = vunpack.c.0.s8 %v6025
            %v6027 = vperm.slane %v6022, %v6026
            %6028 = vset.pattern.permute.xlu0 4
            %6029 = vperm.xlu0 %6028, %v4557
            %v6030 = vpop.permute.xlu0 %6029
            %v6033 = vunpack.c.l.s4 839922192
            %v6034 = vunpack.c.0.s8 %v6033
            %v6035 = vperm.slane %v6030, %v6034
            %v6036 = vunpack.c.l.bf16 %v5915
            %v6037 = vunpack.c.l.bf16 %v5923
            %v6038 = vunpack.c.l.bf16 %v5931
            %v6039 = vunpack.c.l.bf16 %v5939
            %v6040 = vunpack.c.l.bf16 %v5947
            %v6041 = vunpack.c.l.bf16 %v5955
            %v6042 = vunpack.c.l.bf16 %v5963
            %v6043 = vunpack.c.l.bf16 %v5971
            %v6044 = vunpack.c.l.bf16 %v5979
            %v6045 = vunpack.c.l.bf16 %v5987
            %v6046 = vunpack.c.l.bf16 %v5995
            %v6047 = vunpack.c.l.bf16 %v6003
            %v6048 = vunpack.c.l.bf16 %v6011
            %v6049 = vunpack.c.l.bf16 %v6019
            %v6050 = vunpack.c.l.bf16 %v6027
            %v6051 = vunpack.c.l.bf16 %v6035
            %v6052 = vunpack.c.l.bf16 %v5892
            %v6053 = vunpack.c.l.bf16 %v5893
            %v6054 = vunpack.c.l.bf16 %v5894
            %v6055 = vunpack.c.l.bf16 %v5895
            %v6056 = vunpack.c.l.bf16 %v5896
            %v6057 = vunpack.c.l.bf16 %v5897
            %v6058 = vunpack.c.l.bf16 %v5898
            %v6059 = vunpack.c.l.bf16 %v5899
            %v6060 = vunpack.c.l.bf16 %v5900
            %v6061 = vunpack.c.l.bf16 %v5901
            %v6062 = vunpack.c.l.bf16 %v5902
            %v6063 = vunpack.c.l.bf16 %v5903
            %v6064 = vunpack.c.l.bf16 %v5904
            %v6065 = vunpack.c.l.bf16 %v5905
            %v6066 = vunpack.c.l.bf16 %v5906
            %v6067 = vunpack.c.l.bf16 %v5907
            %v6068 = vmul.f32 %v6036, %v6052
            %v6069 = vmul.f32 %v6037, %v6053
            %v6070 = vmul.f32 %v6038, %v6054
            %v6071 = vmul.f32 %v6039, %v6055
            %v6072 = vmul.f32 %v6040, %v6056
            %v6073 = vmul.f32 %v6041, %v6057
            %v6074 = vmul.f32 %v6042, %v6058
            %v6075 = vmul.f32 %v6043, %v6059
            %v6076 = vmul.f32 %v6044, %v6060
            %v6077 = vmul.f32 %v6045, %v6061
            %v6078 = vmul.f32 %v6046, %v6062
            %v6079 = vmul.f32 %v6047, %v6063
            %v6080 = vmul.f32 %v6048, %v6064
            %v6081 = vmul.f32 %v6049, %v6065
            %v6082 = vmul.f32 %v6050, %v6066
            %v6083 = vmul.f32 %v6051, %v6067
            %v6084 = vpack.c.bf16 %v6068, %v6068
            %v6085 = vpack.c.bf16 %v6069, %v6069
            %v6086 = vpack.c.bf16 %v6070, %v6070
            %v6087 = vpack.c.bf16 %v6071, %v6071
            %v6088 = vpack.c.bf16 %v6072, %v6072
            %v6089 = vpack.c.bf16 %v6073, %v6073
            %v6090 = vpack.c.bf16 %v6074, %v6074
            %v6091 = vpack.c.bf16 %v6075, %v6075
            %v6092 = vpack.c.bf16 %v6076, %v6076
            %v6093 = vpack.c.bf16 %v6077, %v6077
            %v6094 = vpack.c.bf16 %v6078, %v6078
            %v6095 = vpack.c.bf16 %v6079, %v6079
            %v6096 = vpack.c.bf16 %v6080, %v6080
            %v6097 = vpack.c.bf16 %v6081, %v6081
            %v6098 = vpack.c.bf16 %v6082, %v6082
            %v6099 = vpack.c.bf16 %v6083, %v6083
            %v6100 = vunpack.c.l.bf16 %v6084
            %v6101 = vunpack.c.l.bf16 %v6085
            %v6102 = vunpack.c.l.bf16 %v6086
            %v6103 = vunpack.c.l.bf16 %v6087
            %v6104 = vunpack.c.l.bf16 %v6088
            %v6105 = vunpack.c.l.bf16 %v6089
            %v6106 = vunpack.c.l.bf16 %v6090
            %v6107 = vunpack.c.l.bf16 %v6091
            %v6108 = vunpack.c.l.bf16 %v6092
            %v6109 = vunpack.c.l.bf16 %v6093
            %v6110 = vunpack.c.l.bf16 %v6094
            %v6111 = vunpack.c.l.bf16 %v6095
            %v6112 = vunpack.c.l.bf16 %v6096
            %v6113 = vunpack.c.l.bf16 %v6097
            %v6114 = vunpack.c.l.bf16 %v6098
            %v6115 = vunpack.c.l.bf16 %v6099
            %v6116 = vadd.f32 %v5810, %v6100
            %v6117 = vadd.f32 %v5811, %v6101
            %v6118 = vadd.f32 %v5812, %v6102
            %v6119 = vadd.f32 %v5813, %v6103
            %v6120 = vadd.f32 %v5814, %v6104
            %v6121 = vadd.f32 %v5815, %v6105
            %v6122 = vadd.f32 %v5816, %v6106
            %v6123 = vadd.f32 %v5817, %v6107
            %v6124 = vadd.f32 %v5818, %v6108
            %v6125 = vadd.f32 %v5819, %v6109
            %v6126 = vadd.f32 %v5820, %v6110
            %v6127 = vadd.f32 %v5821, %v6111
            %v6128 = vadd.f32 %v5822, %v6112
            %v6129 = vadd.f32 %v5823, %v6113
            %v6130 = vadd.f32 %v5824, %v6114
            %v6131 = vadd.f32 %v5825, %v6115
            %v6132 = vperm.slane %v4906, 2
            %v6133 = vunpack.c.l.bf16 %v6132
            %v6134 = vadd.f32 %v4568, %v6133
            %v6135 = vadd.f32 %v4569, %v6133
            %v6136 = vadd.f32 %v4570, %v6133
            %v6137 = vadd.f32 %v4571, %v6133
            %v6138 = vadd.f32 %v4572, %v6133
            %v6139 = vadd.f32 %v4573, %v6133
            %v6140 = vadd.f32 %v4574, %v6133
            %v6141 = vadd.f32 %v4575, %v6133
            %v6142 = vadd.f32 %v4576, %v6133
            %v6143 = vadd.f32 %v4577, %v6133
            %v6144 = vadd.f32 %v4578, %v6133
            %v6145 = vadd.f32 %v4579, %v6133
            %v6146 = vadd.f32 %v4580, %v6133
            %v6147 = vadd.f32 %v4581, %v6133
            %v6148 = vadd.f32 %v4582, %v6133
            %v6149 = vadd.f32 %v4583, %v6133
            %v6150 = vpack.c.bf16 %v6134, %v6134
            %v6151 = vpack.c.bf16 %v6135, %v6135
            %v6152 = vpack.c.bf16 %v6136, %v6136
            %v6153 = vpack.c.bf16 %v6137, %v6137
            %v6154 = vpack.c.bf16 %v6138, %v6138
            %v6155 = vpack.c.bf16 %v6139, %v6139
            %v6156 = vpack.c.bf16 %v6140, %v6140
            %v6157 = vpack.c.bf16 %v6141, %v6141
            %v6158 = vpack.c.bf16 %v6142, %v6142
            %v6159 = vpack.c.bf16 %v6143, %v6143
            %v6160 = vpack.c.bf16 %v6144, %v6144
            %v6161 = vpack.c.bf16 %v6145, %v6145
            %v6162 = vpack.c.bf16 %v6146, %v6146
            %v6163 = vpack.c.bf16 %v6147, %v6147
            %v6164 = vpack.c.bf16 %v6148, %v6148
            %v6165 = vpack.c.bf16 %v6149, %v6149
            %v6166 = vunpack.c.l.bf16 %v6150
            %v6167 = vunpack.c.l.bf16 %v6151
            %v6168 = vunpack.c.l.bf16 %v6152
            %v6169 = vunpack.c.l.bf16 %v6153
            %v6170 = vunpack.c.l.bf16 %v6154
            %v6171 = vunpack.c.l.bf16 %v6155
            %v6172 = vunpack.c.l.bf16 %v6156
            %v6173 = vunpack.c.l.bf16 %v6157
            %v6174 = vunpack.c.l.bf16 %v6158
            %v6175 = vunpack.c.l.bf16 %v6159
            %v6176 = vunpack.c.l.bf16 %v6160
            %v6177 = vunpack.c.l.bf16 %v6161
            %v6178 = vunpack.c.l.bf16 %v6162
            %v6179 = vunpack.c.l.bf16 %v6163
            %v6180 = vunpack.c.l.bf16 %v6164
            %v6181 = vunpack.c.l.bf16 %v6165
            %v6182 = vmax.f32 %v6166, 0.0
            %v6183 = vmax.f32 %v6167, 0.0
            %v6184 = vmax.f32 %v6168, 0.0
            %v6185 = vmax.f32 %v6169, 0.0
            %v6186 = vmax.f32 %v6170, 0.0
            %v6187 = vmax.f32 %v6171, 0.0
            %v6188 = vmax.f32 %v6172, 0.0
            %v6189 = vmax.f32 %v6173, 0.0
            %v6190 = vmax.f32 %v6174, 0.0
            %v6191 = vmax.f32 %v6175, 0.0
            %v6192 = vmax.f32 %v6176, 0.0
            %v6193 = vmax.f32 %v6177, 0.0
            %v6194 = vmax.f32 %v6178, 0.0
            %v6195 = vmax.f32 %v6179, 0.0
            %v6196 = vmax.f32 %v6180, 0.0
            %v6197 = vmax.f32 %v6181, 0.0
            %v6198 = vpack.c.bf16 %v6182, %v6182
            %v6199 = vpack.c.bf16 %v6183, %v6183
            %v6200 = vpack.c.bf16 %v6184, %v6184
            %v6201 = vpack.c.bf16 %v6185, %v6185
            %v6202 = vpack.c.bf16 %v6186, %v6186
            %v6203 = vpack.c.bf16 %v6187, %v6187
            %v6204 = vpack.c.bf16 %v6188, %v6188
            %v6205 = vpack.c.bf16 %v6189, %v6189
            %v6206 = vpack.c.bf16 %v6190, %v6190
            %v6207 = vpack.c.bf16 %v6191, %v6191
            %v6208 = vpack.c.bf16 %v6192, %v6192
            %v6209 = vpack.c.bf16 %v6193, %v6193
            %v6210 = vpack.c.bf16 %v6194, %v6194
            %v6211 = vpack.c.bf16 %v6195, %v6195
            %v6212 = vpack.c.bf16 %v6196, %v6196
            %v6213 = vpack.c.bf16 %v6197, %v6197
            %6214 = vset.pattern.permute.xlu0 5
            %6215 = vperm.xlu0 %6214, %v4542
            %v6216 = vpop.permute.xlu0 %6215
            %v6219 = vunpack.c.l.s4 839922192
            %v6220 = vunpack.c.0.s8 %v6219
            %v6221 = vperm.slane %v6216, %v6220
            %6222 = vset.pattern.permute.xlu0 5
            %6223 = vperm.xlu0 %6222, %v4543
            %v6224 = vpop.permute.xlu0 %6223
            %v6227 = vunpack.c.l.s4 839922192
            %v6228 = vunpack.c.0.s8 %v6227
            %v6229 = vperm.slane %v6224, %v6228
            %6230 = vset.pattern.permute.xlu0 5
            %6231 = vperm.xlu0 %6230, %v4544
            %v6232 = vpop.permute.xlu0 %6231
            %v6235 = vunpack.c.l.s4 839922192
            %v6236 = vunpack.c.0.s8 %v6235
            %v6237 = vperm.slane %v6232, %v6236
            %6238 = vset.pattern.permute.xlu0 5
            %6239 = vperm.xlu0 %6238, %v4545
            %v6240 = vpop.permute.xlu0 %6239
            %v6243 = vunpack.c.l.s4 839922192
            %v6244 = vunpack.c.0.s8 %v6243
            %v6245 = vperm.slane %v6240, %v6244
            %6246 = vset.pattern.permute.xlu0 5
            %6247 = vperm.xlu0 %6246, %v4546
            %v6248 = vpop.permute.xlu0 %6247
            %v6251 = vunpack.c.l.s4 839922192
            %v6252 = vunpack.c.0.s8 %v6251
            %v6253 = vperm.slane %v6248, %v6252
            %6254 = vset.pattern.permute.xlu0 5
            %6255 = vperm.xlu0 %6254, %v4547
            %v6256 = vpop.permute.xlu0 %6255
            %v6259 = vunpack.c.l.s4 839922192
            %v6260 = vunpack.c.0.s8 %v6259
            %v6261 = vperm.slane %v6256, %v6260
            %6262 = vset.pattern.permute.xlu0 5
            %6263 = vperm.xlu0 %6262, %v4548
            %v6264 = vpop.permute.xlu0 %6263
            %v6267 = vunpack.c.l.s4 839922192
            %v6268 = vunpack.c.0.s8 %v6267
            %v6269 = vperm.slane %v6264, %v6268
            %6270 = vset.pattern.permute.xlu0 5
            %6271 = vperm.xlu0 %6270, %v4549
            %v6272 = vpop.permute.xlu0 %6271
            %v6275 = vunpack.c.l.s4 839922192
            %v6276 = vunpack.c.0.s8 %v6275
            %v6277 = vperm.slane %v6272, %v6276
            %6278 = vset.pattern.permute.xlu0 5
            %6279 = vperm.xlu0 %6278, %v4550
            %v6280 = vpop.permute.xlu0 %6279
            %v6283 = vunpack.c.l.s4 839922192
            %v6284 = vunpack.c.0.s8 %v6283
            %v6285 = vperm.slane %v6280, %v6284
            %6286 = vset.pattern.permute.xlu0 5
            %6287 = vperm.xlu0 %6286, %v4551
            %v6288 = vpop.permute.xlu0 %6287
            %v6291 = vunpack.c.l.s4 839922192
            %v6292 = vunpack.c.0.s8 %v6291
            %v6293 = vperm.slane %v6288, %v6292
            %6294 = vset.pattern.permute.xlu0 5
            %6295 = vperm.xlu0 %6294, %v4552
            %v6296 = vpop.permute.xlu0 %6295
            %v6299 = vunpack.c.l.s4 839922192
            %v6300 = vunpack.c.0.s8 %v6299
            %v6301 = vperm.slane %v6296, %v6300
            %6302 = vset.pattern.permute.xlu0 5
            %6303 = vperm.xlu0 %6302, %v4553
            %v6304 = vpop.permute.xlu0 %6303
            %v6307 = vunpack.c.l.s4 839922192
            %v6308 = vunpack.c.0.s8 %v6307
            %v6309 = vperm.slane %v6304, %v6308
            %6310 = vset.pattern.permute.xlu0 5
            %6311 = vperm.xlu0 %6310, %v4554
            %v6312 = vpop.permute.xlu0 %6311
            %v6315 = vunpack.c.l.s4 839922192
            %v6316 = vunpack.c.0.s8 %v6315
            %v6317 = vperm.slane %v6312, %v6316
            %6318 = vset.pattern.permute.xlu0 5
            %6319 = vperm.xlu0 %6318, %v4555
            %v6320 = vpop.permute.xlu0 %6319
            %v6323 = vunpack.c.l.s4 839922192
            %v6324 = vunpack.c.0.s8 %v6323
            %v6325 = vperm.slane %v6320, %v6324
            %6326 = vset.pattern.permute.xlu0 5
            %6327 = vperm.xlu0 %6326, %v4556
            %v6328 = vpop.permute.xlu0 %6327
            %v6331 = vunpack.c.l.s4 839922192
            %v6332 = vunpack.c.0.s8 %v6331
            %v6333 = vperm.slane %v6328, %v6332
            %6334 = vset.pattern.permute.xlu0 5
            %6335 = vperm.xlu0 %6334, %v4557
            %v6336 = vpop.permute.xlu0 %6335
            %v6339 = vunpack.c.l.s4 839922192
            %v6340 = vunpack.c.0.s8 %v6339
            %v6341 = vperm.slane %v6336, %v6340
            %v6342 = vunpack.c.l.bf16 %v6221
            %v6343 = vunpack.c.l.bf16 %v6229
            %v6344 = vunpack.c.l.bf16 %v6237
            %v6345 = vunpack.c.l.bf16 %v6245
            %v6346 = vunpack.c.l.bf16 %v6253
            %v6347 = vunpack.c.l.bf16 %v6261
            %v6348 = vunpack.c.l.bf16 %v6269
            %v6349 = vunpack.c.l.bf16 %v6277
            %v6350 = vunpack.c.l.bf16 %v6285
            %v6351 = vunpack.c.l.bf16 %v6293
            %v6352 = vunpack.c.l.bf16 %v6301
            %v6353 = vunpack.c.l.bf16 %v6309
            %v6354 = vunpack.c.l.bf16 %v6317
            %v6355 = vunpack.c.l.bf16 %v6325
            %v6356 = vunpack.c.l.bf16 %v6333
            %v6357 = vunpack.c.l.bf16 %v6341
            %v6358 = vunpack.c.l.bf16 %v6198
            %v6359 = vunpack.c.l.bf16 %v6199
            %v6360 = vunpack.c.l.bf16 %v6200
            %v6361 = vunpack.c.l.bf16 %v6201
            %v6362 = vunpack.c.l.bf16 %v6202
            %v6363 = vunpack.c.l.bf16 %v6203
            %v6364 = vunpack.c.l.bf16 %v6204
            %v6365 = vunpack.c.l.bf16 %v6205
            %v6366 = vunpack.c.l.bf16 %v6206
            %v6367 = vunpack.c.l.bf16 %v6207
            %v6368 = vunpack.c.l.bf16 %v6208
            %v6369 = vunpack.c.l.bf16 %v6209
            %v6370 = vunpack.c.l.bf16 %v6210
            %v6371 = vunpack.c.l.bf16 %v6211
            %v6372 = vunpack.c.l.bf16 %v6212
            %v6373 = vunpack.c.l.bf16 %v6213
            %v6374 = vmul.f32 %v6342, %v6358
            %v6375 = vmul.f32 %v6343, %v6359
            %v6376 = vmul.f32 %v6344, %v6360
            %v6377 = vmul.f32 %v6345, %v6361
            %v6378 = vmul.f32 %v6346, %v6362
            %v6379 = vmul.f32 %v6347, %v6363
            %v6380 = vmul.f32 %v6348, %v6364
            %v6381 = vmul.f32 %v6349, %v6365
            %v6382 = vmul.f32 %v6350, %v6366
            %v6383 = vmul.f32 %v6351, %v6367
            %v6384 = vmul.f32 %v6352, %v6368
            %v6385 = vmul.f32 %v6353, %v6369
            %v6386 = vmul.f32 %v6354, %v6370
            %v6387 = vmul.f32 %v6355, %v6371
            %v6388 = vmul.f32 %v6356, %v6372
            %v6389 = vmul.f32 %v6357, %v6373
            %v6390 = vpack.c.bf16 %v6374, %v6374
            %v6391 = vpack.c.bf16 %v6375, %v6375
            %v6392 = vpack.c.bf16 %v6376, %v6376
            %v6393 = vpack.c.bf16 %v6377, %v6377
            %v6394 = vpack.c.bf16 %v6378, %v6378
            %v6395 = vpack.c.bf16 %v6379, %v6379
            %v6396 = vpack.c.bf16 %v6380, %v6380
            %v6397 = vpack.c.bf16 %v6381, %v6381
            %v6398 = vpack.c.bf16 %v6382, %v6382
            %v6399 = vpack.c.bf16 %v6383, %v6383
            %v6400 = vpack.c.bf16 %v6384, %v6384
            %v6401 = vpack.c.bf16 %v6385, %v6385
            %v6402 = vpack.c.bf16 %v6386, %v6386
            %v6403 = vpack.c.bf16 %v6387, %v6387
            %v6404 = vpack.c.bf16 %v6388, %v6388
            %v6405 = vpack.c.bf16 %v6389, %v6389
            %v6406 = vunpack.c.l.bf16 %v6390
            %v6407 = vunpack.c.l.bf16 %v6391
            %v6408 = vunpack.c.l.bf16 %v6392
            %v6409 = vunpack.c.l.bf16 %v6393
            %v6410 = vunpack.c.l.bf16 %v6394
            %v6411 = vunpack.c.l.bf16 %v6395
            %v6412 = vunpack.c.l.bf16 %v6396
            %v6413 = vunpack.c.l.bf16 %v6397
            %v6414 = vunpack.c.l.bf16 %v6398
            %v6415 = vunpack.c.l.bf16 %v6399
            %v6416 = vunpack.c.l.bf16 %v6400
            %v6417 = vunpack.c.l.bf16 %v6401
            %v6418 = vunpack.c.l.bf16 %v6402
            %v6419 = vunpack.c.l.bf16 %v6403
            %v6420 = vunpack.c.l.bf16 %v6404
            %v6421 = vunpack.c.l.bf16 %v6405
            %v6422 = vadd.f32 %v6116, %v6406
            %v6423 = vadd.f32 %v6117, %v6407
            %v6424 = vadd.f32 %v6118, %v6408
            %v6425 = vadd.f32 %v6119, %v6409
            %v6426 = vadd.f32 %v6120, %v6410
            %v6427 = vadd.f32 %v6121, %v6411
            %v6428 = vadd.f32 %v6122, %v6412
            %v6429 = vadd.f32 %v6123, %v6413
            %v6430 = vadd.f32 %v6124, %v6414
            %v6431 = vadd.f32 %v6125, %v6415
            %v6432 = vadd.f32 %v6126, %v6416
            %v6433 = vadd.f32 %v6127, %v6417
            %v6434 = vadd.f32 %v6128, %v6418
            %v6435 = vadd.f32 %v6129, %v6419
            %v6436 = vadd.f32 %v6130, %v6420
            %v6437 = vadd.f32 %v6131, %v6421
            %v6438 = vperm.slane %v4565, 3
            %v6439 = vunpack.c.l.bf16 %v6438
            %v6440 = vadd.f32 %v4568, %v6439
            %v6441 = vadd.f32 %v4569, %v6439
            %v6442 = vadd.f32 %v4570, %v6439
            %v6443 = vadd.f32 %v4571, %v6439
            %v6444 = vadd.f32 %v4572, %v6439
            %v6445 = vadd.f32 %v4573, %v6439
            %v6446 = vadd.f32 %v4574, %v6439
            %v6447 = vadd.f32 %v4575, %v6439
            %v6448 = vadd.f32 %v4576, %v6439
            %v6449 = vadd.f32 %v4577, %v6439
            %v6450 = vadd.f32 %v4578, %v6439
            %v6451 = vadd.f32 %v4579, %v6439
            %v6452 = vadd.f32 %v4580, %v6439
            %v6453 = vadd.f32 %v4581, %v6439
            %v6454 = vadd.f32 %v4582, %v6439
            %v6455 = vadd.f32 %v4583, %v6439
            %v6456 = vpack.c.bf16 %v6440, %v6440
            %v6457 = vpack.c.bf16 %v6441, %v6441
            %v6458 = vpack.c.bf16 %v6442, %v6442
            %v6459 = vpack.c.bf16 %v6443, %v6443
            %v6460 = vpack.c.bf16 %v6444, %v6444
            %v6461 = vpack.c.bf16 %v6445, %v6445
            %v6462 = vpack.c.bf16 %v6446, %v6446
            %v6463 = vpack.c.bf16 %v6447, %v6447
            %v6464 = vpack.c.bf16 %v6448, %v6448
            %v6465 = vpack.c.bf16 %v6449, %v6449
            %v6466 = vpack.c.bf16 %v6450, %v6450
            %v6467 = vpack.c.bf16 %v6451, %v6451
            %v6468 = vpack.c.bf16 %v6452, %v6452
            %v6469 = vpack.c.bf16 %v6453, %v6453
            %v6470 = vpack.c.bf16 %v6454, %v6454
            %v6471 = vpack.c.bf16 %v6455, %v6455
            %v6472 = vunpack.c.l.bf16 %v6456
            %v6473 = vunpack.c.l.bf16 %v6457
            %v6474 = vunpack.c.l.bf16 %v6458
            %v6475 = vunpack.c.l.bf16 %v6459
            %v6476 = vunpack.c.l.bf16 %v6460
            %v6477 = vunpack.c.l.bf16 %v6461
            %v6478 = vunpack.c.l.bf16 %v6462
            %v6479 = vunpack.c.l.bf16 %v6463
            %v6480 = vunpack.c.l.bf16 %v6464
            %v6481 = vunpack.c.l.bf16 %v6465
            %v6482 = vunpack.c.l.bf16 %v6466
            %v6483 = vunpack.c.l.bf16 %v6467
            %v6484 = vunpack.c.l.bf16 %v6468
            %v6485 = vunpack.c.l.bf16 %v6469
            %v6486 = vunpack.c.l.bf16 %v6470
            %v6487 = vunpack.c.l.bf16 %v6471
            %v6488 = vmax.f32 %v6472, 0.0
            %v6489 = vmax.f32 %v6473, 0.0
            %v6490 = vmax.f32 %v6474, 0.0
            %v6491 = vmax.f32 %v6475, 0.0
            %v6492 = vmax.f32 %v6476, 0.0
            %v6493 = vmax.f32 %v6477, 0.0
            %v6494 = vmax.f32 %v6478, 0.0
            %v6495 = vmax.f32 %v6479, 0.0
            %v6496 = vmax.f32 %v6480, 0.0
            %v6497 = vmax.f32 %v6481, 0.0
            %v6498 = vmax.f32 %v6482, 0.0
            %v6499 = vmax.f32 %v6483, 0.0
            %v6500 = vmax.f32 %v6484, 0.0
            %v6501 = vmax.f32 %v6485, 0.0
            %v6502 = vmax.f32 %v6486, 0.0
            %v6503 = vmax.f32 %v6487, 0.0
            %v6504 = vpack.c.bf16 %v6488, %v6488
            %v6505 = vpack.c.bf16 %v6489, %v6489
            %v6506 = vpack.c.bf16 %v6490, %v6490
            %v6507 = vpack.c.bf16 %v6491, %v6491
            %v6508 = vpack.c.bf16 %v6492, %v6492
            %v6509 = vpack.c.bf16 %v6493, %v6493
            %v6510 = vpack.c.bf16 %v6494, %v6494
            %v6511 = vpack.c.bf16 %v6495, %v6495
            %v6512 = vpack.c.bf16 %v6496, %v6496
            %v6513 = vpack.c.bf16 %v6497, %v6497
            %v6514 = vpack.c.bf16 %v6498, %v6498
            %v6515 = vpack.c.bf16 %v6499, %v6499
            %v6516 = vpack.c.bf16 %v6500, %v6500
            %v6517 = vpack.c.bf16 %v6501, %v6501
            %v6518 = vpack.c.bf16 %v6502, %v6502
            %v6519 = vpack.c.bf16 %v6503, %v6503
            %6520 = vset.pattern.permute.xlu0 6
            %6521 = vperm.xlu0 %6520, %v4542
            %v6522 = vpop.permute.xlu0 %6521
            %v6525 = vunpack.c.l.s4 839922192
            %v6526 = vunpack.c.0.s8 %v6525
            %v6527 = vperm.slane %v6522, %v6526
            %6528 = vset.pattern.permute.xlu0 6
            %6529 = vperm.xlu0 %6528, %v4543
            %v6530 = vpop.permute.xlu0 %6529
            %v6533 = vunpack.c.l.s4 839922192
            %v6534 = vunpack.c.0.s8 %v6533
            %v6535 = vperm.slane %v6530, %v6534
            %6536 = vset.pattern.permute.xlu0 6
            %6537 = vperm.xlu0 %6536, %v4544
            %v6538 = vpop.permute.xlu0 %6537
            %v6541 = vunpack.c.l.s4 839922192
            %v6542 = vunpack.c.0.s8 %v6541
            %v6543 = vperm.slane %v6538, %v6542
            %6544 = vset.pattern.permute.xlu0 6
            %6545 = vperm.xlu0 %6544, %v4545
            %v6546 = vpop.permute.xlu0 %6545
            %v6549 = vunpack.c.l.s4 839922192
            %v6550 = vunpack.c.0.s8 %v6549
            %v6551 = vperm.slane %v6546, %v6550
            %6552 = vset.pattern.permute.xlu0 6
            %6553 = vperm.xlu0 %6552, %v4546
            %v6554 = vpop.permute.xlu0 %6553
            %v6557 = vunpack.c.l.s4 839922192
            %v6558 = vunpack.c.0.s8 %v6557
            %v6559 = vperm.slane %v6554, %v6558
            %6560 = vset.pattern.permute.xlu0 6
            %6561 = vperm.xlu0 %6560, %v4547
            %v6562 = vpop.permute.xlu0 %6561
            %v6565 = vunpack.c.l.s4 839922192
            %v6566 = vunpack.c.0.s8 %v6565
            %v6567 = vperm.slane %v6562, %v6566
            %6568 = vset.pattern.permute.xlu0 6
            %6569 = vperm.xlu0 %6568, %v4548
            %v6570 = vpop.permute.xlu0 %6569
            %v6573 = vunpack.c.l.s4 839922192
            %v6574 = vunpack.c.0.s8 %v6573
            %v6575 = vperm.slane %v6570, %v6574
            %6576 = vset.pattern.permute.xlu0 6
            %6577 = vperm.xlu0 %6576, %v4549
            %v6578 = vpop.permute.xlu0 %6577
            %v6581 = vunpack.c.l.s4 839922192
            %v6582 = vunpack.c.0.s8 %v6581
            %v6583 = vperm.slane %v6578, %v6582
            %6584 = vset.pattern.permute.xlu0 6
            %6585 = vperm.xlu0 %6584, %v4550
            %v6586 = vpop.permute.xlu0 %6585
            %v6589 = vunpack.c.l.s4 839922192
            %v6590 = vunpack.c.0.s8 %v6589
            %v6591 = vperm.slane %v6586, %v6590
            %6592 = vset.pattern.permute.xlu0 6
            %6593 = vperm.xlu0 %6592, %v4551
            %v6594 = vpop.permute.xlu0 %6593
            %v6597 = vunpack.c.l.s4 839922192
            %v6598 = vunpack.c.0.s8 %v6597
            %v6599 = vperm.slane %v6594, %v6598
            %6600 = vset.pattern.permute.xlu0 6
            %6601 = vperm.xlu0 %6600, %v4552
            %v6602 = vpop.permute.xlu0 %6601
            %v6605 = vunpack.c.l.s4 839922192
            %v6606 = vunpack.c.0.s8 %v6605
            %v6607 = vperm.slane %v6602, %v6606
            %6608 = vset.pattern.permute.xlu0 6
            %6609 = vperm.xlu0 %6608, %v4553
            %v6610 = vpop.permute.xlu0 %6609
            %v6613 = vunpack.c.l.s4 839922192
            %v6614 = vunpack.c.0.s8 %v6613
            %v6615 = vperm.slane %v6610, %v6614
            %6616 = vset.pattern.permute.xlu0 6
            %6617 = vperm.xlu0 %6616, %v4554
            %v6618 = vpop.permute.xlu0 %6617
            %v6621 = vunpack.c.l.s4 839922192
            %v6622 = vunpack.c.0.s8 %v6621
            %v6623 = vperm.slane %v6618, %v6622
            %6624 = vset.pattern.permute.xlu0 6
            %6625 = vperm.xlu0 %6624, %v4555
            %v6626 = vpop.permute.xlu0 %6625
            %v6629 = vunpack.c.l.s4 839922192
            %v6630 = vunpack.c.0.s8 %v6629
            %v6631 = vperm.slane %v6626, %v6630
            %6632 = vset.pattern.permute.xlu0 6
            %6633 = vperm.xlu0 %6632, %v4556
            %v6634 = vpop.permute.xlu0 %6633
            %v6637 = vunpack.c.l.s4 839922192
            %v6638 = vunpack.c.0.s8 %v6637
            %v6639 = vperm.slane %v6634, %v6638
            %6640 = vset.pattern.permute.xlu0 6
            %6641 = vperm.xlu0 %6640, %v4557
            %v6642 = vpop.permute.xlu0 %6641
            %v6645 = vunpack.c.l.s4 839922192
            %v6646 = vunpack.c.0.s8 %v6645
            %v6647 = vperm.slane %v6642, %v6646
            %v6648 = vunpack.c.l.bf16 %v6527
            %v6649 = vunpack.c.l.bf16 %v6535
            %v6650 = vunpack.c.l.bf16 %v6543
            %v6651 = vunpack.c.l.bf16 %v6551
            %v6652 = vunpack.c.l.bf16 %v6559
            %v6653 = vunpack.c.l.bf16 %v6567
            %v6654 = vunpack.c.l.bf16 %v6575
            %v6655 = vunpack.c.l.bf16 %v6583
            %v6656 = vunpack.c.l.bf16 %v6591
            %v6657 = vunpack.c.l.bf16 %v6599
            %v6658 = vunpack.c.l.bf16 %v6607
            %v6659 = vunpack.c.l.bf16 %v6615
            %v6660 = vunpack.c.l.bf16 %v6623
            %v6661 = vunpack.c.l.bf16 %v6631
            %v6662 = vunpack.c.l.bf16 %v6639
            %v6663 = vunpack.c.l.bf16 %v6647
            %v6664 = vunpack.c.l.bf16 %v6504
            %v6665 = vunpack.c.l.bf16 %v6505
            %v6666 = vunpack.c.l.bf16 %v6506
            %v6667 = vunpack.c.l.bf16 %v6507
            %v6668 = vunpack.c.l.bf16 %v6508
            %v6669 = vunpack.c.l.bf16 %v6509
            %v6670 = vunpack.c.l.bf16 %v6510
            %v6671 = vunpack.c.l.bf16 %v6511
            %v6672 = vunpack.c.l.bf16 %v6512
            %v6673 = vunpack.c.l.bf16 %v6513
            %v6674 = vunpack.c.l.bf16 %v6514
            %v6675 = vunpack.c.l.bf16 %v6515
            %v6676 = vunpack.c.l.bf16 %v6516
            %v6677 = vunpack.c.l.bf16 %v6517
            %v6678 = vunpack.c.l.bf16 %v6518
            %v6679 = vunpack.c.l.bf16 %v6519
            %v6680 = vmul.f32 %v6648, %v6664
            %v6681 = vmul.f32 %v6649, %v6665
            %v6682 = vmul.f32 %v6650, %v6666
            %v6683 = vmul.f32 %v6651, %v6667
            %v6684 = vmul.f32 %v6652, %v6668
            %v6685 = vmul.f32 %v6653, %v6669
            %v6686 = vmul.f32 %v6654, %v6670
            %v6687 = vmul.f32 %v6655, %v6671
            %v6688 = vmul.f32 %v6656, %v6672
            %v6689 = vmul.f32 %v6657, %v6673
            %v6690 = vmul.f32 %v6658, %v6674
            %v6691 = vmul.f32 %v6659, %v6675
            %v6692 = vmul.f32 %v6660, %v6676
            %v6693 = vmul.f32 %v6661, %v6677
            %v6694 = vmul.f32 %v6662, %v6678
            %v6695 = vmul.f32 %v6663, %v6679
            %v6696 = vpack.c.bf16 %v6680, %v6680
            %v6697 = vpack.c.bf16 %v6681, %v6681
            %v6698 = vpack.c.bf16 %v6682, %v6682
            %v6699 = vpack.c.bf16 %v6683, %v6683
            %v6700 = vpack.c.bf16 %v6684, %v6684
            %v6701 = vpack.c.bf16 %v6685, %v6685
            %v6702 = vpack.c.bf16 %v6686, %v6686
            %v6703 = vpack.c.bf16 %v6687, %v6687
            %v6704 = vpack.c.bf16 %v6688, %v6688
            %v6705 = vpack.c.bf16 %v6689, %v6689
            %v6706 = vpack.c.bf16 %v6690, %v6690
            %v6707 = vpack.c.bf16 %v6691, %v6691
            %v6708 = vpack.c.bf16 %v6692, %v6692
            %v6709 = vpack.c.bf16 %v6693, %v6693
            %v6710 = vpack.c.bf16 %v6694, %v6694
            %v6711 = vpack.c.bf16 %v6695, %v6695
            %v6712 = vunpack.c.l.bf16 %v6696
            %v6713 = vunpack.c.l.bf16 %v6697
            %v6714 = vunpack.c.l.bf16 %v6698
            %v6715 = vunpack.c.l.bf16 %v6699
            %v6716 = vunpack.c.l.bf16 %v6700
            %v6717 = vunpack.c.l.bf16 %v6701
            %v6718 = vunpack.c.l.bf16 %v6702
            %v6719 = vunpack.c.l.bf16 %v6703
            %v6720 = vunpack.c.l.bf16 %v6704
            %v6721 = vunpack.c.l.bf16 %v6705
            %v6722 = vunpack.c.l.bf16 %v6706
            %v6723 = vunpack.c.l.bf16 %v6707
            %v6724 = vunpack.c.l.bf16 %v6708
            %v6725 = vunpack.c.l.bf16 %v6709
            %v6726 = vunpack.c.l.bf16 %v6710
            %v6727 = vunpack.c.l.bf16 %v6711
            %v6728 = vadd.f32 %v6422, %v6712
            %v6729 = vadd.f32 %v6423, %v6713
            %v6730 = vadd.f32 %v6424, %v6714
            %v6731 = vadd.f32 %v6425, %v6715
            %v6732 = vadd.f32 %v6426, %v6716
            %v6733 = vadd.f32 %v6427, %v6717
            %v6734 = vadd.f32 %v6428, %v6718
            %v6735 = vadd.f32 %v6429, %v6719
            %v6736 = vadd.f32 %v6430, %v6720
            %v6737 = vadd.f32 %v6431, %v6721
            %v6738 = vadd.f32 %v6432, %v6722
            %v6739 = vadd.f32 %v6433, %v6723
            %v6740 = vadd.f32 %v6434, %v6724
            %v6741 = vadd.f32 %v6435, %v6725
            %v6742 = vadd.f32 %v6436, %v6726
            %v6743 = vadd.f32 %v6437, %v6727
            %v6744 = vperm.slane %v4906, 3
            %v6745 = vunpack.c.l.bf16 %v6744
            %v6746 = vadd.f32 %v4568, %v6745
            %v6747 = vadd.f32 %v4569, %v6745
            %v6748 = vadd.f32 %v4570, %v6745
            %v6749 = vadd.f32 %v4571, %v6745
            %v6750 = vadd.f32 %v4572, %v6745
            %v6751 = vadd.f32 %v4573, %v6745
            %v6752 = vadd.f32 %v4574, %v6745
            %v6753 = vadd.f32 %v4575, %v6745
            %v6754 = vadd.f32 %v4576, %v6745
            %v6755 = vadd.f32 %v4577, %v6745
            %v6756 = vadd.f32 %v4578, %v6745
            %v6757 = vadd.f32 %v4579, %v6745
            %v6758 = vadd.f32 %v4580, %v6745
            %v6759 = vadd.f32 %v4581, %v6745
            %v6760 = vadd.f32 %v4582, %v6745
            %v6761 = vadd.f32 %v4583, %v6745
            %v6762 = vpack.c.bf16 %v6746, %v6746
            %v6763 = vpack.c.bf16 %v6747, %v6747
            %v6764 = vpack.c.bf16 %v6748, %v6748
            %v6765 = vpack.c.bf16 %v6749, %v6749
            %v6766 = vpack.c.bf16 %v6750, %v6750
            %v6767 = vpack.c.bf16 %v6751, %v6751
            %v6768 = vpack.c.bf16 %v6752, %v6752
            %v6769 = vpack.c.bf16 %v6753, %v6753
            %v6770 = vpack.c.bf16 %v6754, %v6754
            %v6771 = vpack.c.bf16 %v6755, %v6755
            %v6772 = vpack.c.bf16 %v6756, %v6756
            %v6773 = vpack.c.bf16 %v6757, %v6757
            %v6774 = vpack.c.bf16 %v6758, %v6758
            %v6775 = vpack.c.bf16 %v6759, %v6759
            %v6776 = vpack.c.bf16 %v6760, %v6760
            %v6777 = vpack.c.bf16 %v6761, %v6761
            %v6778 = vunpack.c.l.bf16 %v6762
            %v6779 = vunpack.c.l.bf16 %v6763
            %v6780 = vunpack.c.l.bf16 %v6764
            %v6781 = vunpack.c.l.bf16 %v6765
            %v6782 = vunpack.c.l.bf16 %v6766
            %v6783 = vunpack.c.l.bf16 %v6767
            %v6784 = vunpack.c.l.bf16 %v6768
            %v6785 = vunpack.c.l.bf16 %v6769
            %v6786 = vunpack.c.l.bf16 %v6770
            %v6787 = vunpack.c.l.bf16 %v6771
            %v6788 = vunpack.c.l.bf16 %v6772
            %v6789 = vunpack.c.l.bf16 %v6773
            %v6790 = vunpack.c.l.bf16 %v6774
            %v6791 = vunpack.c.l.bf16 %v6775
            %v6792 = vunpack.c.l.bf16 %v6776
            %v6793 = vunpack.c.l.bf16 %v6777
            %v6794 = vmax.f32 %v6778, 0.0
            %v6795 = vmax.f32 %v6779, 0.0
            %v6796 = vmax.f32 %v6780, 0.0
            %v6797 = vmax.f32 %v6781, 0.0
            %v6798 = vmax.f32 %v6782, 0.0
            %v6799 = vmax.f32 %v6783, 0.0
            %v6800 = vmax.f32 %v6784, 0.0
            %v6801 = vmax.f32 %v6785, 0.0
            %v6802 = vmax.f32 %v6786, 0.0
            %v6803 = vmax.f32 %v6787, 0.0
            %v6804 = vmax.f32 %v6788, 0.0
            %v6805 = vmax.f32 %v6789, 0.0
            %v6806 = vmax.f32 %v6790, 0.0
            %v6807 = vmax.f32 %v6791, 0.0
            %v6808 = vmax.f32 %v6792, 0.0
            %v6809 = vmax.f32 %v6793, 0.0
            %v6810 = vpack.c.bf16 %v6794, %v6794
            %v6811 = vpack.c.bf16 %v6795, %v6795
            %v6812 = vpack.c.bf16 %v6796, %v6796
            %v6813 = vpack.c.bf16 %v6797, %v6797
            %v6814 = vpack.c.bf16 %v6798, %v6798
            %v6815 = vpack.c.bf16 %v6799, %v6799
            %v6816 = vpack.c.bf16 %v6800, %v6800
            %v6817 = vpack.c.bf16 %v6801, %v6801
            %v6818 = vpack.c.bf16 %v6802, %v6802
            %v6819 = vpack.c.bf16 %v6803, %v6803
            %v6820 = vpack.c.bf16 %v6804, %v6804
            %v6821 = vpack.c.bf16 %v6805, %v6805
            %v6822 = vpack.c.bf16 %v6806, %v6806
            %v6823 = vpack.c.bf16 %v6807, %v6807
            %v6824 = vpack.c.bf16 %v6808, %v6808
            %v6825 = vpack.c.bf16 %v6809, %v6809
            %6826 = vset.pattern.permute.xlu0 7
            %6827 = vperm.xlu0 %6826, %v4542
            %v6828 = vpop.permute.xlu0 %6827
            %v6831 = vunpack.c.l.s4 839922192
            %v6832 = vunpack.c.0.s8 %v6831
            %v6833 = vperm.slane %v6828, %v6832
            %6834 = vset.pattern.permute.xlu0 7
            %6835 = vperm.xlu0 %6834, %v4543
            %v6836 = vpop.permute.xlu0 %6835
            %v6839 = vunpack.c.l.s4 839922192
            %v6840 = vunpack.c.0.s8 %v6839
            %v6841 = vperm.slane %v6836, %v6840
            %6842 = vset.pattern.permute.xlu0 7
            %6843 = vperm.xlu0 %6842, %v4544
            %v6844 = vpop.permute.xlu0 %6843
            %v6847 = vunpack.c.l.s4 839922192
            %v6848 = vunpack.c.0.s8 %v6847
            %v6849 = vperm.slane %v6844, %v6848
            %6850 = vset.pattern.permute.xlu0 7
            %6851 = vperm.xlu0 %6850, %v4545
            %v6852 = vpop.permute.xlu0 %6851
            %v6855 = vunpack.c.l.s4 839922192
            %v6856 = vunpack.c.0.s8 %v6855
            %v6857 = vperm.slane %v6852, %v6856
            %6858 = vset.pattern.permute.xlu0 7
            %6859 = vperm.xlu0 %6858, %v4546
            %v6860 = vpop.permute.xlu0 %6859
            %v6863 = vunpack.c.l.s4 839922192
            %v6864 = vunpack.c.0.s8 %v6863
            %v6865 = vperm.slane %v6860, %v6864
            %6866 = vset.pattern.permute.xlu0 7
            %6867 = vperm.xlu0 %6866, %v4547
            %v6868 = vpop.permute.xlu0 %6867
            %v6871 = vunpack.c.l.s4 839922192
            %v6872 = vunpack.c.0.s8 %v6871
            %v6873 = vperm.slane %v6868, %v6872
            %6874 = vset.pattern.permute.xlu0 7
            %6875 = vperm.xlu0 %6874, %v4548
            %v6876 = vpop.permute.xlu0 %6875
            %v6879 = vunpack.c.l.s4 839922192
            %v6880 = vunpack.c.0.s8 %v6879
            %v6881 = vperm.slane %v6876, %v6880
            %6882 = vset.pattern.permute.xlu0 7
            %6883 = vperm.xlu0 %6882, %v4549
            %v6884 = vpop.permute.xlu0 %6883
            %v6887 = vunpack.c.l.s4 839922192
            %v6888 = vunpack.c.0.s8 %v6887
            %v6889 = vperm.slane %v6884, %v6888
            %6890 = vset.pattern.permute.xlu0 7
            %6891 = vperm.xlu0 %6890, %v4550
            %v6892 = vpop.permute.xlu0 %6891
            %v6895 = vunpack.c.l.s4 839922192
            %v6896 = vunpack.c.0.s8 %v6895
            %v6897 = vperm.slane %v6892, %v6896
            %6898 = vset.pattern.permute.xlu0 7
            %6899 = vperm.xlu0 %6898, %v4551
            %v6900 = vpop.permute.xlu0 %6899
            %v6903 = vunpack.c.l.s4 839922192
            %v6904 = vunpack.c.0.s8 %v6903
            %v6905 = vperm.slane %v6900, %v6904
            %6906 = vset.pattern.permute.xlu0 7
            %6907 = vperm.xlu0 %6906, %v4552
            %v6908 = vpop.permute.xlu0 %6907
            %v6911 = vunpack.c.l.s4 839922192
            %v6912 = vunpack.c.0.s8 %v6911
            %v6913 = vperm.slane %v6908, %v6912
            %6914 = vset.pattern.permute.xlu0 7
            %6915 = vperm.xlu0 %6914, %v4553
            %v6916 = vpop.permute.xlu0 %6915
            %v6919 = vunpack.c.l.s4 839922192
            %v6920 = vunpack.c.0.s8 %v6919
            %v6921 = vperm.slane %v6916, %v6920
            %6922 = vset.pattern.permute.xlu0 7
            %6923 = vperm.xlu0 %6922, %v4554
            %v6924 = vpop.permute.xlu0 %6923
            %v6927 = vunpack.c.l.s4 839922192
            %v6928 = vunpack.c.0.s8 %v6927
            %v6929 = vperm.slane %v6924, %v6928
            %6930 = vset.pattern.permute.xlu0 7
            %6931 = vperm.xlu0 %6930, %v4555
            %v6932 = vpop.permute.xlu0 %6931
            %v6935 = vunpack.c.l.s4 839922192
            %v6936 = vunpack.c.0.s8 %v6935
            %v6937 = vperm.slane %v6932, %v6936
            %6938 = vset.pattern.permute.xlu0 7
            %6939 = vperm.xlu0 %6938, %v4556
            %v6940 = vpop.permute.xlu0 %6939
            %v6943 = vunpack.c.l.s4 839922192
            %v6944 = vunpack.c.0.s8 %v6943
            %v6945 = vperm.slane %v6940, %v6944
            %6946 = vset.pattern.permute.xlu0 7
            %6947 = vperm.xlu0 %6946, %v4557
            %v6948 = vpop.permute.xlu0 %6947
            %v6951 = vunpack.c.l.s4 839922192
            %v6952 = vunpack.c.0.s8 %v6951
            %v6953 = vperm.slane %v6948, %v6952
            %v6954 = vunpack.c.l.bf16 %v6833
            %v6955 = vunpack.c.l.bf16 %v6841
            %v6956 = vunpack.c.l.bf16 %v6849
            %v6957 = vunpack.c.l.bf16 %v6857
            %v6958 = vunpack.c.l.bf16 %v6865
            %v6959 = vunpack.c.l.bf16 %v6873
            %v6960 = vunpack.c.l.bf16 %v6881
            %v6961 = vunpack.c.l.bf16 %v6889
            %v6962 = vunpack.c.l.bf16 %v6897
            %v6963 = vunpack.c.l.bf16 %v6905
            %v6964 = vunpack.c.l.bf16 %v6913
            %v6965 = vunpack.c.l.bf16 %v6921
            %v6966 = vunpack.c.l.bf16 %v6929
            %v6967 = vunpack.c.l.bf16 %v6937
            %v6968 = vunpack.c.l.bf16 %v6945
            %v6969 = vunpack.c.l.bf16 %v6953
            %v6970 = vunpack.c.l.bf16 %v6810
            %v6971 = vunpack.c.l.bf16 %v6811
            %v6972 = vunpack.c.l.bf16 %v6812
            %v6973 = vunpack.c.l.bf16 %v6813
            %v6974 = vunpack.c.l.bf16 %v6814
            %v6975 = vunpack.c.l.bf16 %v6815
            %v6976 = vunpack.c.l.bf16 %v6816
            %v6977 = vunpack.c.l.bf16 %v6817
            %v6978 = vunpack.c.l.bf16 %v6818
            %v6979 = vunpack.c.l.bf16 %v6819
            %v6980 = vunpack.c.l.bf16 %v6820
            %v6981 = vunpack.c.l.bf16 %v6821
            %v6982 = vunpack.c.l.bf16 %v6822
            %v6983 = vunpack.c.l.bf16 %v6823
            %v6984 = vunpack.c.l.bf16 %v6824
            %v6985 = vunpack.c.l.bf16 %v6825
            %v6986 = vmul.f32 %v6954, %v6970
            %v6987 = vmul.f32 %v6955, %v6971
            %v6988 = vmul.f32 %v6956, %v6972
            %v6989 = vmul.f32 %v6957, %v6973
            %v6990 = vmul.f32 %v6958, %v6974
            %v6991 = vmul.f32 %v6959, %v6975
            %v6992 = vmul.f32 %v6960, %v6976
            %v6993 = vmul.f32 %v6961, %v6977
            %v6994 = vmul.f32 %v6962, %v6978
            %v6995 = vmul.f32 %v6963, %v6979
            %v6996 = vmul.f32 %v6964, %v6980
            %v6997 = vmul.f32 %v6965, %v6981
            %v6998 = vmul.f32 %v6966, %v6982
            %v6999 = vmul.f32 %v6967, %v6983
            %v7000 = vmul.f32 %v6968, %v6984
            %v7001 = vmul.f32 %v6969, %v6985
            %v7002 = vpack.c.bf16 %v6986, %v6986
            %v7003 = vpack.c.bf16 %v6987, %v6987
            %v7004 = vpack.c.bf16 %v6988, %v6988
            %v7005 = vpack.c.bf16 %v6989, %v6989
            %v7006 = vpack.c.bf16 %v6990, %v6990
            %v7007 = vpack.c.bf16 %v6991, %v6991
            %v7008 = vpack.c.bf16 %v6992, %v6992
            %v7009 = vpack.c.bf16 %v6993, %v6993
            %v7010 = vpack.c.bf16 %v6994, %v6994
            %v7011 = vpack.c.bf16 %v6995, %v6995
            %v7012 = vpack.c.bf16 %v6996, %v6996
            %v7013 = vpack.c.bf16 %v6997, %v6997
            %v7014 = vpack.c.bf16 %v6998, %v6998
            %v7015 = vpack.c.bf16 %v6999, %v6999
            %v7016 = vpack.c.bf16 %v7000, %v7000
            %v7017 = vpack.c.bf16 %v7001, %v7001
            %v7018 = vunpack.c.l.bf16 %v7002
            %v7019 = vunpack.c.l.bf16 %v7003
            %v7020 = vunpack.c.l.bf16 %v7004
            %v7021 = vunpack.c.l.bf16 %v7005
            %v7022 = vunpack.c.l.bf16 %v7006
            %v7023 = vunpack.c.l.bf16 %v7007
            %v7024 = vunpack.c.l.bf16 %v7008
            %v7025 = vunpack.c.l.bf16 %v7009
            %v7026 = vunpack.c.l.bf16 %v7010
            %v7027 = vunpack.c.l.bf16 %v7011
            %v7028 = vunpack.c.l.bf16 %v7012
            %v7029 = vunpack.c.l.bf16 %v7013
            %v7030 = vunpack.c.l.bf16 %v7014
            %v7031 = vunpack.c.l.bf16 %v7015
            %v7032 = vunpack.c.l.bf16 %v7016
            %v7033 = vunpack.c.l.bf16 %v7017
            %v7034 = vadd.f32 %v6728, %v7018
            %v7035 = vadd.f32 %v6729, %v7019
            %v7036 = vadd.f32 %v6730, %v7020
            %v7037 = vadd.f32 %v6731, %v7021
            %v7038 = vadd.f32 %v6732, %v7022
            %v7039 = vadd.f32 %v6733, %v7023
            %v7040 = vadd.f32 %v6734, %v7024
            %v7041 = vadd.f32 %v6735, %v7025
            %v7042 = vadd.f32 %v6736, %v7026
            %v7043 = vadd.f32 %v6737, %v7027
            %v7044 = vadd.f32 %v6738, %v7028
            %v7045 = vadd.f32 %v6739, %v7029
            %v7046 = vadd.f32 %v6740, %v7030
            %v7047 = vadd.f32 %v6741, %v7031
            %v7048 = vadd.f32 %v6742, %v7032
            %v7049 = vadd.f32 %v6743, %v7033
          $region101: #{tpu_custom_call.1} parent=95 // loop_footer
            %s4522 = sadd.s32 1, %s4518
          $region102: #{tpu_custom_call.1} parent=95 // loop_footer_branch
            %4517 = sbr.rel target = $region98
          $region103: #{tpu_custom_call.1} parent=95 // loop_exit
            _
          %v7050 = vld [vmem:[%s4431] sm:$0xff]
          %v7051 = vld [vmem:[%s4431 + $0x8] sm:$0xff]
          %v7052 = vld [vmem:[%s4431 + $0x10] sm:$0xff]
          %v7053 = vld [vmem:[%s4431 + $0x18] sm:$0xff]
          %v7054 = vld [vmem:[%s4431 + $0x20] sm:$0xff]
          %v7055 = vld [vmem:[%s4431 + $0x28] sm:$0xff]
          %v7056 = vld [vmem:[%s4431 + $0x30] sm:$0xff]
          %v7057 = vld [vmem:[%s4431 + $0x38] sm:$0xff]
          %v7058 = vld [vmem:[%s4431 + $0x40] sm:$0xff]
          %v7059 = vld [vmem:[%s4431 + $0x48] sm:$0xff]
          %v7060 = vld [vmem:[%s4431 + $0x50] sm:$0xff]
          %v7061 = vld [vmem:[%s4431 + $0x58] sm:$0xff]
          %v7062 = vld [vmem:[%s4431 + $0x60] sm:$0xff]
          %v7063 = vld [vmem:[%s4431 + $0x68] sm:$0xff]
          %v7064 = vld [vmem:[%s4431 + $0x70] sm:$0xff]
          %v7065 = vld [vmem:[%s4431 + $0x78] sm:$0xff]
          %v7066 = vadd.f32 %v7050, %v4523
          %v7067 = vadd.f32 %v7051, %v4524
          %v7068 = vadd.f32 %v7052, %v4525
          %v7069 = vadd.f32 %v7053, %v4526
          %v7070 = vadd.f32 %v7054, %v4527
          %v7071 = vadd.f32 %v7055, %v4528
          %v7072 = vadd.f32 %v7056, %v4529
          %v7073 = vadd.f32 %v7057, %v4530
          %v7074 = vadd.f32 %v7058, %v4531
          %v7075 = vadd.f32 %v7059, %v4532
          %v7076 = vadd.f32 %v7060, %v4533
          %v7077 = vadd.f32 %v7061, %v4534
          %v7078 = vadd.f32 %v7062, %v4535
          %v7079 = vadd.f32 %v7063, %v4536
          %v7080 = vadd.f32 %v7064, %v4537
          %v7081 = vadd.f32 %v7065, %v4538
          %7082 = vst [vmem:[%s4431] sm:$0xff] %v7066
          %7083 = vst [vmem:[%s4431 + $0x8] sm:$0xff] %v7067
          %7084 = vst [vmem:[%s4431 + $0x10] sm:$0xff] %v7068
          %7085 = vst [vmem:[%s4431 + $0x18] sm:$0xff] %v7069
          %7086 = vst [vmem:[%s4431 + $0x20] sm:$0xff] %v7070
          %7087 = vst [vmem:[%s4431 + $0x28] sm:$0xff] %v7071
          %7088 = vst [vmem:[%s4431 + $0x30] sm:$0xff] %v7072
          %7089 = vst [vmem:[%s4431 + $0x38] sm:$0xff] %v7073
          %7090 = vst [vmem:[%s4431 + $0x40] sm:$0xff] %v7074
          %7091 = vst [vmem:[%s4431 + $0x48] sm:$0xff] %v7075
          %7092 = vst [vmem:[%s4431 + $0x50] sm:$0xff] %v7076
          %7093 = vst [vmem:[%s4431 + $0x58] sm:$0xff] %v7077
          %7094 = vst [vmem:[%s4431 + $0x60] sm:$0xff] %v7078
          %7095 = vst [vmem:[%s4431 + $0x68] sm:$0xff] %v7079
          %7096 = vst [vmem:[%s4431 + $0x70] sm:$0xff] %v7080
          %7097 = vst [vmem:[%s4431 + $0x78] sm:$0xff] %v7081
        $region96: #{tpu_custom_call.1} parent=83 // pred_fallthru
          _
        %s7098 = sand.u32 %s153, 1
        %s7099 = scalar_lea.sflag [#allocation6], %s7098
        %s7100 = sand.u32 %s153, 1
        %s7101 = smul.addr %s7100, 128
        %s7102 = scalar_lea.vmem [#allocation5], %s7101
        // Predicated region
        $region104: #{tpu_custom_call.1} parent=83 // pred_check
          %p7103 = pneg %p163
        $region105: #{tpu_custom_call.1} parent=83 // pred_check_branch
          %7105 = sbr.rel (%p7103) target = $region107
        $region106: #{tpu_custom_call.1} parent=83 // pred_region
          %s7106 = smul.u32 16, %s31
          %7108 = vsyncadd %s7099, 0
          %s7109 = smul.addr %s7106, 8
          %s7110 = scalar_lea.hbm %s5, %s7109
          %s7111 = sshll.u32 %s7102, 4
          %s7112 = int_to_ptr.vmem [resolvable:$true] %s7111
          %s7113 = sshll.u32 %s7110, 4
          %s7114 = int_to_ptr.hbm [resolvable:$true] %s7113
          %7119 = dma.vmem_to_hbm [thread:$0]  %s7112, 2048, %s7114, %s7099, 128, 128, 8
        $region107: #{tpu_custom_call.1} parent=83 // pred_fallthru
          _
      $region84: #{tpu_custom_call.1} parent=5 // pred_fallthru
        _
      %p7120 = scmp.le.s32.totalorder 2, %s22
      // Predicated region
      $region108: #{tpu_custom_call.1} parent=5 // pred_check
        %p7121 = pneg %p7120
      $region109: #{tpu_custom_call.1} parent=5 // pred_check_branch
        %7123 = sbr.rel (%p7121) target = $region111
      $region110: #{tpu_custom_call.1} parent=5 // pred_region
        %s7124 = ssub.s32 %s22, 2
        // Predicated region
        $region112: #{tpu_custom_call.1} parent=110 // pred_check
          %p7125 = pneg %p169
        $region113: #{tpu_custom_call.1} parent=110 // pred_check_branch
          %7127 = sbr.rel (%p7125) target = $region115
        $region114: #{tpu_custom_call.1} parent=110 // pred_region
          %s7128 = sand.u32 %s154, 1
          %s7129 = scalar_lea.sflag [#allocation6], %s7128
          %s7130 = sand.u32 %s154, 1
          %s7131 = smul.addr %s7130, 128
          %s7132 = scalar_lea.vmem [#allocation5], %s7131
          %7134 = dma.done %s7129, 2048
        $region115: #{tpu_custom_call.1} parent=110 // pred_fallthru
          _
      $region111: #{tpu_custom_call.1} parent=5 // pred_fallthru
        _
    $region6: #{tpu_custom_call.1} parent=1 // loop_footer
      %s26 = sadd.s32 1, %s22
    $region7: #{tpu_custom_call.1} parent=1 // loop_footer_branch
      %21 = sbr.rel target = $region3
    $region8: #{tpu_custom_call.1} parent=1 // loop_exit
      _
    %7135 = vsyncpa [#allocation6], 1
    %s7136 = scalar_lea.sflag [#allocation6], 1
    %7137 = vsyncpa %s7136, 1

</llo_original>
